<compile_context>
chip_gen: v7x
topology: tpu7x:2x2x1
jax: 0.10.0
libtpu: 0.0.40
codegen_flags: <defaults>
</compile_context>

<pallas_src>
import functools

import numpy as np
import jax
import jax.numpy as jnp
from jax.experimental import pallas as pl
from jax.experimental.pallas import tpu as pltpu


# ----------------------------------------------------------------------------
# Host-side construction of the "matrix program" (weight-only preprocessing)
# ----------------------------------------------------------------------------
def _shift_matrix(h_out, h_in, dy):
    """S[yo, yi] = 1  iff  yi == yo + dy (rows outside [0, h_in) give zeros)."""
    s = np.zeros((h_out, h_in), np.float32)
    for yo in range(h_out):
        yi = yo + dy
        if 0 <= yi < h_in:
            s[yo, yi] = 1.0
    return s


def _row_pool_matrix(h_in, k, parity):
    """P[yo, yi] = 1  iff  yi == k*yo + parity   (row selection for MaxPool)."""
    h_out = h_in // k
    p = np.zeros((h_out, h_in), np.float32)
    for yo in range(h_out):
        p[yo, k * yo + parity] = 1.0
    return p


def _col_pool_matrix(w_in, c, k, parity):
    """Q[xi*C+c, xo*C+c] = 1  iff  xi == k*xo + parity (column selection)."""
    w_out = w_in // k
    q = np.zeros((w_in * c, w_out * c), np.float32)
    eye = np.eye(c, dtype=np.float32)
    for xo in range(w_out):
        xi = k * xo + parity
        q[xi * c:(xi + 1) * c, xo * c:(xo + 1) * c] = eye
    return q


def _band_matrix(wf, ky, w_in, w_out, pad):
    """1-D conv along x (for vertical tap ky) as a banded matrix.

    wf: [Cout, Cin, kh, kw] with BN scale already folded.
    Returns B with B[xi*Cin+ci, xo*Cout+co] = wf[co, ci, ky, xi-xo+pad]
    (zero outside the kernel support -> x zero-padding is built in).
    """
    cout, cin, _, kw = wf.shape
    b = np.zeros((w_in * cin, w_out * cout), np.float32)
    for xo in range(w_out):
        for kx in range(kw):
            xi = xo + kx - pad
            if 0 <= xi < w_in:
                b[xi * cin:(xi + 1) * cin, xo * cout:(xo + 1) * cout] = \
                    wf[:, :, ky, kx].T
    return b


def build_program(params, imgH, imgW, input_channel, num_class):
    """Turn the whole VGG+CTC network into a flat list of small matrices so the
    kernel only ever does 2-D matmuls / elementwise max / bias+ReLU."""
    plan, operands = [], []
    h, w, c = imgH, imgW, input_channel

    def add(arr, dtype):
        operands.append(jnp.asarray(arr, dtype))

    def conv(idx, kh, kw, pad):
        nonlocal h, w, c
        p = params["convs"][idx]
        wt = np.asarray(p["w"], np.float32)            # [Cout, Cin, kh, kw]
        scale = np.asarray(p["scale"], np.float32)
        bias = np.asarray(p["bias"], np.float32)
        cout, cin = wt.shape[0], wt.shape[1]
        assert cin == c
        wf = wt * scale[:, None, None, None]           # fold BN scale into W
        h_out = h + 2 * pad - kh + 1
        w_out = w + 2 * pad - kw + 1
        id_ky = None
        for ky in range(kh):
            if ky - pad == 0 and h_out == h:
                id_ky = ky                             # vertical tap == identity
        for ky in range(kh):
            if ky != id_ky:
                add(_shift_matrix(h_out, h, ky - pad), jnp.bfloat16)
        for ky in range(kh):
            add(_band_matrix(wf, ky, w, w_out, pad), jnp.bfloat16)
        add(np.tile(bias, w_out)[None, :], jnp.float32)   # [1, w_out*Cout]
        plan.append({"kind": "conv", "kh": kh, "id_ky": id_ky})
        h, w, c = h_out, w_out, cout

    def pool(kh, kw):
        nonlocal h, w
        assert h % kh == 0 and w % kw == 0
        pool_x = kw > 1
        if pool_x:
            add(_col_pool_matrix(w, c, kw, 0), jnp.bfloat16)
            add(_col_pool_matrix(w, c, kw, 1), jnp.bfloat16)
            w //= kw
        add(_row_pool_matrix(h, kh, 0), jnp.bfloat16)
        add(_row_pool_matrix(h, kh, 1), jnp.bfloat16)
        h //= kh
        plan.append({"kind": "pool", "pool_x": pool_x})

    # ---- VGG_FeatureExtractor ----------------------------------------------
    conv(0, 3, 3, 1); pool(2, 2)
    conv(1, 3, 3, 1); pool(2, 2)
    conv(2, 3, 3, 1)
    conv(3, 3, 3, 1); pool(2, 1)
    conv(4, 3, 3, 1)          # conv + folded BatchNorm + ReLU
    conv(5, 3, 3, 1)          # conv + folded BatchNorm + ReLU
    pool(2, 1)
    conv(6, 2, 2, 0)          # k=2, pad=0

    # ---- AdaptiveAvgPool2d((None,1)) on permute(0,2,1,3): mean over W ------
    add(np.tile(np.eye(c, dtype=np.float32), (w, 1)) / float(w), jnp.bfloat16)
    plan.append({"kind": "avg"})

    # ---- CTC prediction head: Linear(C -> num_class) ------------------------
    add(np.asarray(params["fc_w"], np.float32), jnp.bfloat16)     # [C, nc]
    add(np.asarray(params["fc_b"], np.float32)[None, :], jnp.float32)
    plan.append({"kind": "linear"})

    return plan, operands, h          # h == sequence length (3 for 64x32 input)


# ----------------------------------------------------------------------------
# The single fused Pallas kernel (runs the whole network for one image)
# ----------------------------------------------------------------------------
def _fused_vgg_ctc_kernel(plan, x_ref, *refs):
    out_ref = refs[-1]
    it = iter(refs[:-1])

    def rdot(a, m_ref):               # [m,k] f32  @  bf16 weight ref [k,n]
        return jnp.dot(a.astype(jnp.bfloat16), m_ref[...],
                       preferred_element_type=jnp.float32)

    def ldot(m_ref, a):               # bf16 selection ref [m,k]  @  [k,n] f32
        return jnp.dot(m_ref[...], a.astype(jnp.bfloat16),
                       preferred_element_type=jnp.float32)

    x = x_ref[0].astype(jnp.float32)          # [H, W*Cin] for this image
    for op in plan:
        kind = op["kind"]
        if kind == "conv":
            kh, id_ky = op["kh"], op["id_ky"]
            s_refs = {ky: next(it) for ky in range(kh) if ky != id_ky}
            b_refs = [next(it) for _ in range(kh)]
            bias_ref = next(it)
            acc = None
            for ky in range(kh):
                xs = x if ky == id_ky else ldot(s_refs[ky], x)   # vertical tap
                term = rdot(xs, b_refs[ky])                       # banded 1-D conv
                acc = term if acc is None else acc + term
            x = jnp.maximum(acc + bias_ref[...], 0.0)             # bias + ReLU
        elif kind == "pool":
            if op["pool_x"]:
                q_e, q_o = next(it), next(it)
                x = jnp.maximum(rdot(x, q_e), rdot(x, q_o))       # max over kw
            p_e, p_o = next(it), next(it)
            x = jnp.maximum(ldot(p_e, x), ldot(p_o, x))           # max over kh
        elif kind == "avg":                                       # mean over W
            x = rdot(x, next(it))
        elif kind == "linear":                                    # CTC head
            w_ref, b_ref = next(it), next(it)
            x = rdot(x, w_ref) + b_ref[...]
    out_ref[0] = x.astype(out_ref.dtype)


def build_model(params, *, imgH, imgW, input_channel, num_class):
    plan, operands, seq_len = build_program(params, imgH, imgW,
                                            input_channel, num_class)
    kernel = functools.partial(_fused_vgg_ctc_kernel, plan)
    op_shapes = [o.shape for o in operands]

    @jax.jit
    def forward(x, *ops):
        B = x.shape[0]
        # single tiny glue op: NCHW -> per-image channels-last [B, H, W*Cin]
        x0 = jnp.transpose(x, (0, 2, 3, 1)).reshape(B, imgH, imgW * input_channel)
        x0 = x0.astype(jnp.float32)
        in_specs = [pl.BlockSpec((1, imgH, imgW * input_channel),
                                 lambda b: (b, 0, 0))]
        in_specs += [pl.BlockSpec(s, lambda b: (0, 0)) for s in op_shapes]
        return pl.pallas_call(
            kernel,
            out_shape=jax.ShapeDtypeStruct((B, seq_len, num_class), jnp.float32),
            grid=(B,),
            in_specs=in_specs,
            out_specs=pl.BlockSpec((1, seq_len, num_class), lambda b: (b, 0, 0)),
            compiler_params=pltpu.CompilerParams(
                dimension_semantics=("parallel",)),
        )(x0, *ops)

    return forward, operands


# ----------------------------------------------------------------------------
# Parameter init (deterministic, PyTorch-style fan-in scaling)
# ----------------------------------------------------------------------------
def _uniform(key, shape, fan_in):
    bound = 1.0 / jnp.sqrt(jnp.maximum(fan_in, 1)).astype(jnp.float32)
    return jax.random.uniform(key, shape, jnp.float32, -bound, bound)


def init_params(key, input_channel=1, output_channel=32, num_class=10):
    oc = [output_channel // 8, output_channel // 4, output_channel // 2, output_channel]
    # (Cout, Cin, kh, kw, has_bias, has_bn)
    conv_cfg = [
        (oc[0], input_channel, 3, 3, True, False),
        (oc[1], oc[0], 3, 3, True, False),
        (oc[2], oc[1], 3, 3, True, False),
        (oc[2], oc[2], 3, 3, True, False),
        (oc[3], oc[2], 3, 3, False, True),
        (oc[3], oc[3], 3, 3, False, True),
        (oc[3], oc[3], 2, 2, True, False),
    ]
    params = {"convs": []}
    keys = jax.random.split(key, len(conv_cfg) * 2 + 2)
    ki = 0
    eps = 1e-5
    for (co, ci, kh, kw, has_bias, has_bn) in conv_cfg:
        fan_in = ci * kh * kw
        w = _uniform(keys[ki], (co, ci, kh, kw), fan_in); ki += 1
        if has_bn:
            # BatchNorm2d: gamma=1, beta=0, running_mean=0, running_var=1
            # TODO(synk): BN folded with inference-mode running statistics
            # (training-mode batch statistics are not reproduced).
            gamma = jnp.ones((co,), jnp.float32)
            beta = jnp.zeros((co,), jnp.float32)
            mean = jnp.zeros((co,), jnp.float32)
            var = jnp.ones((co,), jnp.float32)
            scale = gamma / jnp.sqrt(var + eps)
            shift = beta - mean * scale
            params["convs"].append({"w": w, "scale": scale, "bias": shift})
        else:
            b = _uniform(keys[ki], (co,), fan_in) if has_bias else jnp.zeros((co,), jnp.float32)
            ki += 1
            params["convs"].append({"w": w, "scale": jnp.ones((co,), jnp.float32), "bias": b})
    # CTC prediction head: Linear(output_channel -> num_class), stored as [in, out]
    params["fc_w"] = _uniform(keys[ki], (output_channel, num_class), output_channel); ki += 1
    params["fc_b"] = _uniform(keys[ki], (num_class,), output_channel)
    return params


if __name__ == "__main__":
    key = jax.random.PRNGKey(0)
    k_param, k_in = jax.random.split(key)

    B, Cin, H, W = 2, 1, 64, 32
    num_class = 10
    params = init_params(k_param, input_channel=Cin, output_channel=32,
                         num_class=num_class)

    forward, operands = build_model(params, imgH=H, imgW=W, input_channel=Cin,
                                    num_class=num_class)

    x = jax.random.normal(k_in, (B, Cin, H, W), jnp.float32)
    out = forward(x, *operands)
    out = jax.block_until_ready(out)

    assert out.shape == (B, 3, num_class), out.shape
    assert bool(jnp.all(jnp.isfinite(out)))
    print("KERNEL_OK")
</pallas_src>

<mosaic_0001>
module attributes {stable_mosaic.version = 11 : i64} {
  func.func @_fused_vgg_ctc_kernel(%arg0: i32, %arg1: memref<1x64x32xf32, #tpu.memory_space<vmem>>, %arg2: memref<64x64xbf16, #tpu.memory_space<vmem>>, %arg3: memref<64x64xbf16, #tpu.memory_space<vmem>>, %arg4: memref<32x128xbf16, #tpu.memory_space<vmem>>, %arg5: memref<32x128xbf16, #tpu.memory_space<vmem>>, %arg6: memref<32x128xbf16, #tpu.memory_space<vmem>>, %arg7: memref<1x128xf32, #tpu.memory_space<vmem>>, %arg8: memref<128x64xbf16, #tpu.memory_space<vmem>>, %arg9: memref<128x64xbf16, #tpu.memory_space<vmem>>, %arg10: memref<32x64xbf16, #tpu.memory_space<vmem>>, %arg11: memref<32x64xbf16, #tpu.memory_space<vmem>>, %arg12: memref<32x32xbf16, #tpu.memory_space<vmem>>, %arg13: memref<32x32xbf16, #tpu.memory_space<vmem>>, %arg14: memref<64x128xbf16, #tpu.memory_space<vmem>>, %arg15: memref<64x128xbf16, #tpu.memory_space<vmem>>, %arg16: memref<64x128xbf16, #tpu.memory_space<vmem>>, %arg17: memref<1x128xf32, #tpu.memory_space<vmem>>, %arg18: memref<128x64xbf16, #tpu.memory_space<vmem>>, %arg19: memref<128x64xbf16, #tpu.memory_space<vmem>>, %arg20: memref<16x32xbf16, #tpu.memory_space<vmem>>, %arg21: memref<16x32xbf16, #tpu.memory_space<vmem>>, %arg22: memref<16x16xbf16, #tpu.memory_space<vmem>>, %arg23: memref<16x16xbf16, #tpu.memory_space<vmem>>, %arg24: memref<64x128xbf16, #tpu.memory_space<vmem>>, %arg25: memref<64x128xbf16, #tpu.memory_space<vmem>>, %arg26: memref<64x128xbf16, #tpu.memory_space<vmem>>, %arg27: memref<1x128xf32, #tpu.memory_space<vmem>>, %arg28: memref<16x16xbf16, #tpu.memory_space<vmem>>, %arg29: memref<16x16xbf16, #tpu.memory_space<vmem>>, %arg30: memref<128x128xbf16, #tpu.memory_space<vmem>>, %arg31: memref<128x128xbf16, #tpu.memory_space<vmem>>, %arg32: memref<128x128xbf16, #tpu.memory_space<vmem>>, %arg33: memref<1x128xf32, #tpu.memory_space<vmem>>, %arg34: memref<8x16xbf16, #tpu.memory_space<vmem>>, %arg35: memref<8x16xbf16, #tpu.memory_space<vmem>>, %arg36: memref<8x8xbf16, #tpu.memory_space<vmem>>, %arg37: memref<8x8xbf16, #tpu.memory_space<vmem>>, %arg38: memref<128x256xbf16, #tpu.memory_space<vmem>>, %arg39: memref<128x256xbf16, #tpu.memory_space<vmem>>, %arg40: memref<128x256xbf16, #tpu.memory_space<vmem>>, %arg41: memref<1x256xf32, #tpu.memory_space<vmem>>, %arg42: memref<8x8xbf16, #tpu.memory_space<vmem>>, %arg43: memref<8x8xbf16, #tpu.memory_space<vmem>>, %arg44: memref<256x256xbf16, #tpu.memory_space<vmem>>, %arg45: memref<256x256xbf16, #tpu.memory_space<vmem>>, %arg46: memref<256x256xbf16, #tpu.memory_space<vmem>>, %arg47: memref<1x256xf32, #tpu.memory_space<vmem>>, %arg48: memref<4x8xbf16, #tpu.memory_space<vmem>>, %arg49: memref<4x8xbf16, #tpu.memory_space<vmem>>, %arg50: memref<3x4xbf16, #tpu.memory_space<vmem>>, %arg51: memref<3x4xbf16, #tpu.memory_space<vmem>>, %arg52: memref<256x224xbf16, #tpu.memory_space<vmem>>, %arg53: memref<256x224xbf16, #tpu.memory_space<vmem>>, %arg54: memref<1x224xf32, #tpu.memory_space<vmem>>, %arg55: memref<224x32xbf16, #tpu.memory_space<vmem>>, %arg56: memref<32x10xbf16, #tpu.memory_space<vmem>>, %arg57: memref<1x10xf32, #tpu.memory_space<vmem>>, %arg58: memref<1x3x10xf32, #tpu.memory_space<vmem>>) attributes {dimension_semantics = [#tpu.dimension_semantics<parallel>], iteration_bounds = array<i64: 2>, scalar_prefetch = 0 : i64, scratch_operands = 0 : i64, tpu.core_type = #tpu.core_type<tc>, window_params = [{transform_indices = @transform_0, window_bounds = array<i64: 1, 64, 32>}, {pipeline_mode = #tpu.pipeline_mode<synchronous>, transform_indices = @transform_1, window_bounds = array<i64: 64, 64>}, {pipeline_mode = #tpu.pipeline_mode<synchronous>, transform_indices = @transform_2, window_bounds = array<i64: 64, 64>}, {pipeline_mode = #tpu.pipeline_mode<synchronous>, transform_indices = @transform_3, window_bounds = array<i64: 32, 128>}, {pipeline_mode = #tpu.pipeline_mode<synchronous>, transform_indices = @transform_4, window_bounds = array<i64: 32, 128>}, {pipeline_mode = #tpu.pipeline_mode<synchronous>, transform_indices = @transform_5, window_bounds = array<i64: 32, 128>}, {pipeline_mode = #tpu.pipeline_mode<synchronous>, transform_indices = @transform_6, window_bounds = array<i64: 1, 128>}, {pipeline_mode = #tpu.pipeline_mode<synchronous>, transform_indices = @transform_7, window_bounds = array<i64: 128, 64>}, {pipeline_mode = #tpu.pipeline_mode<synchronous>, transform_indices = @transform_8, window_bounds = array<i64: 128, 64>}, {pipeline_mode = #tpu.pipeline_mode<synchronous>, transform_indices = @transform_9, window_bounds = array<i64: 32, 64>}, {pipeline_mode = #tpu.pipeline_mode<synchronous>, transform_indices = @transform_10, window_bounds = array<i64: 32, 64>}, {pipeline_mode = #tpu.pipeline_mode<synchronous>, transform_indices = @transform_11, window_bounds = array<i64: 32, 32>}, {pipeline_mode = #tpu.pipeline_mode<synchronous>, transform_indices = @transform_12, window_bounds = array<i64: 32, 32>}, {pipeline_mode = #tpu.pipeline_mode<synchronous>, transform_indices = @transform_13, window_bounds = array<i64: 64, 128>}, {pipeline_mode = #tpu.pipeline_mode<synchronous>, transform_indices = @transform_14, window_bounds = array<i64: 64, 128>}, {pipeline_mode = #tpu.pipeline_mode<synchronous>, transform_indices = @transform_15, window_bounds = array<i64: 64, 128>}, {pipeline_mode = #tpu.pipeline_mode<synchronous>, transform_indices = @transform_16, window_bounds = array<i64: 1, 128>}, {pipeline_mode = #tpu.pipeline_mode<synchronous>, transform_indices = @transform_17, window_bounds = array<i64: 128, 64>}, {pipeline_mode = #tpu.pipeline_mode<synchronous>, transform_indices = @transform_18, window_bounds = array<i64: 128, 64>}, {pipeline_mode = #tpu.pipeline_mode<synchronous>, transform_indices = @transform_19, window_bounds = array<i64: 16, 32>}, {pipeline_mode = #tpu.pipeline_mode<synchronous>, transform_indices = @transform_20, window_bounds = array<i64: 16, 32>}, {pipeline_mode = #tpu.pipeline_mode<synchronous>, transform_indices = @transform_21, window_bounds = array<i64: 16, 16>}, {pipeline_mode = #tpu.pipeline_mode<synchronous>, transform_indices = @transform_22, window_bounds = array<i64: 16, 16>}, {pipeline_mode = #tpu.pipeline_mode<synchronous>, transform_indices = @transform_23, window_bounds = array<i64: 64, 128>}, {pipeline_mode = #tpu.pipeline_mode<synchronous>, transform_indices = @transform_24, window_bounds = array<i64: 64, 128>}, {pipeline_mode = #tpu.pipeline_mode<synchronous>, transform_indices = @transform_25, window_bounds = array<i64: 64, 128>}, {pipeline_mode = #tpu.pipeline_mode<synchronous>, transform_indices = @transform_26, window_bounds = array<i64: 1, 128>}, {pipeline_mode = #tpu.pipeline_mode<synchronous>, transform_indices = @transform_27, window_bounds = array<i64: 16, 16>}, {pipeline_mode = #tpu.pipeline_mode<synchronous>, transform_indices = @transform_28, window_bounds = array<i64: 16, 16>}, {pipeline_mode = #tpu.pipeline_mode<synchronous>, transform_indices = @transform_29, window_bounds = array<i64: 128, 128>}, {pipeline_mode = #tpu.pipeline_mode<synchronous>, transform_indices = @transform_30, window_bounds = array<i64: 128, 128>}, {pipeline_mode = #tpu.pipeline_mode<synchronous>, transform_indices = @transform_31, window_bounds = array<i64: 128, 128>}, {pipeline_mode = #tpu.pipeline_mode<synchronous>, transform_indices = @transform_32, window_bounds = array<i64: 1, 128>}, {pipeline_mode = #tpu.pipeline_mode<synchronous>, transform_indices = @transform_33, window_bounds = array<i64: 8, 16>}, {pipeline_mode = #tpu.pipeline_mode<synchronous>, transform_indices = @transform_34, window_bounds = array<i64: 8, 16>}, {pipeline_mode = #tpu.pipeline_mode<synchronous>, transform_indices = @transform_35, window_bounds = array<i64: 8, 8>}, {pipeline_mode = #tpu.pipeline_mode<synchronous>, transform_indices = @transform_36, window_bounds = array<i64: 8, 8>}, {pipeline_mode = #tpu.pipeline_mode<synchronous>, transform_indices = @transform_37, window_bounds = array<i64: 128, 256>}, {pipeline_mode = #tpu.pipeline_mode<synchronous>, transform_indices = @transform_38, window_bounds = array<i64: 128, 256>}, {pipeline_mode = #tpu.pipeline_mode<synchronous>, transform_indices = @transform_39, window_bounds = array<i64: 128, 256>}, {pipeline_mode = #tpu.pipeline_mode<synchronous>, transform_indices = @transform_40, window_bounds = array<i64: 1, 256>}, {pipeline_mode = #tpu.pipeline_mode<synchronous>, transform_indices = @transform_41, window_bounds = array<i64: 8, 8>}, {pipeline_mode = #tpu.pipeline_mode<synchronous>, transform_indices = @transform_42, window_bounds = array<i64: 8, 8>}, {pipeline_mode = #tpu.pipeline_mode<synchronous>, transform_indices = @transform_43, window_bounds = array<i64: 256, 256>}, {pipeline_mode = #tpu.pipeline_mode<synchronous>, transform_indices = @transform_44, window_bounds = array<i64: 256, 256>}, {pipeline_mode = #tpu.pipeline_mode<synchronous>, transform_indices = @transform_45, window_bounds = array<i64: 256, 256>}, {pipeline_mode = #tpu.pipeline_mode<synchronous>, transform_indices = @transform_46, window_bounds = array<i64: 1, 256>}, {pipeline_mode = #tpu.pipeline_mode<synchronous>, transform_indices = @transform_47, window_bounds = array<i64: 4, 8>}, {pipeline_mode = #tpu.pipeline_mode<synchronous>, transform_indices = @transform_48, window_bounds = array<i64: 4, 8>}, {pipeline_mode = #tpu.pipeline_mode<synchronous>, transform_indices = @transform_49, window_bounds = array<i64: 3, 4>}, {pipeline_mode = #tpu.pipeline_mode<synchronous>, transform_indices = @transform_50, window_bounds = array<i64: 3, 4>}, {pipeline_mode = #tpu.pipeline_mode<synchronous>, transform_indices = @transform_51, window_bounds = array<i64: 256, 224>}, {pipeline_mode = #tpu.pipeline_mode<synchronous>, transform_indices = @transform_52, window_bounds = array<i64: 256, 224>}, {pipeline_mode = #tpu.pipeline_mode<synchronous>, transform_indices = @transform_53, window_bounds = array<i64: 1, 224>}, {pipeline_mode = #tpu.pipeline_mode<synchronous>, transform_indices = @transform_54, window_bounds = array<i64: 224, 32>}, {pipeline_mode = #tpu.pipeline_mode<synchronous>, transform_indices = @transform_55, window_bounds = array<i64: 32, 10>}, {pipeline_mode = #tpu.pipeline_mode<synchronous>, transform_indices = @transform_56, window_bounds = array<i64: 1, 10>}, {transform_indices = @transform_57, window_bounds = array<i64: 1, 3, 10>}]} {
    %c0 = arith.constant 0 : index
    %c0_0 = arith.constant 0 : index
    %c0_1 = arith.constant 0 : index
    %0 = vector.load %arg1[%c0, %c0_0, %c0_1] : memref<1x64x32xf32, #tpu.memory_space<vmem>>, vector<1x64x32xf32>
    %1 = vector.shape_cast %0 : vector<1x64x32xf32> to vector<64x32xf32>
    %c0_2 = arith.constant 0 : index
    %c0_3 = arith.constant 0 : index
    %2 = vector.load %arg2[%c0_2, %c0_3] : memref<64x64xbf16, #tpu.memory_space<vmem>>, vector<64x64xbf16>
    %3 = arith.truncf %1 : vector<64x32xf32> to vector<64x32xbf16>
    %cst = arith.constant dense<0.000000e+00> : vector<64x32xf32>
    %4 = tpu.matmul %2, %3, %cst {dimension_numbers = #tpu.dot_dimension_numbers<[1], [0], [0], [1], [0, 0, 1, 1], [], []>} : vector<64x64xbf16>, vector<64x32xbf16>, vector<64x32xf32> -> vector<64x32xf32>
    %5 = arith.truncf %4 : vector<64x32xf32> to vector<64x32xbf16>
    %c0_4 = arith.constant 0 : index
    %c0_5 = arith.constant 0 : index
    %6 = vector.load %arg4[%c0_4, %c0_5] : memref<32x128xbf16, #tpu.memory_space<vmem>>, vector<32x128xbf16>
    %cst_6 = arith.constant dense<0.000000e+00> : vector<64x128xf32>
    %7 = tpu.matmul %5, %6, %cst_6 {dimension_numbers = #tpu.dot_dimension_numbers<[1], [0], [0], [1], [0, 0, 1, 1], [], []>} : vector<64x32xbf16>, vector<32x128xbf16>, vector<64x128xf32> -> vector<64x128xf32>
    %8 = arith.truncf %1 : vector<64x32xf32> to vector<64x32xbf16>
    %c0_7 = arith.constant 0 : index
    %c0_8 = arith.constant 0 : index
    %9 = vector.load %arg5[%c0_7, %c0_8] : memref<32x128xbf16, #tpu.memory_space<vmem>>, vector<32x128xbf16>
    %cst_9 = arith.constant dense<0.000000e+00> : vector<64x128xf32>
    %10 = tpu.matmul %8, %9, %cst_9 {dimension_numbers = #tpu.dot_dimension_numbers<[1], [0], [0], [1], [0, 0, 1, 1], [], []>} : vector<64x32xbf16>, vector<32x128xbf16>, vector<64x128xf32> -> vector<64x128xf32>
    %11 = arith.addf %7, %10 : vector<64x128xf32>
    %c0_10 = arith.constant 0 : index
    %c0_11 = arith.constant 0 : index
    %12 = vector.load %arg3[%c0_10, %c0_11] : memref<64x64xbf16, #tpu.memory_space<vmem>>, vector<64x64xbf16>
    %13 = arith.truncf %1 : vector<64x32xf32> to vector<64x32xbf16>
    %cst_12 = arith.constant dense<0.000000e+00> : vector<64x32xf32>
    %14 = tpu.matmul %12, %13, %cst_12 {dimension_numbers = #tpu.dot_dimension_numbers<[1], [0], [0], [1], [0, 0, 1, 1], [], []>} : vector<64x64xbf16>, vector<64x32xbf16>, vector<64x32xf32> -> vector<64x32xf32>
    %15 = arith.truncf %14 : vector<64x32xf32> to vector<64x32xbf16>
    %c0_13 = arith.constant 0 : index
    %c0_14 = arith.constant 0 : index
    %16 = vector.load %arg6[%c0_13, %c0_14] : memref<32x128xbf16, #tpu.memory_space<vmem>>, vector<32x128xbf16>
    %cst_15 = arith.constant dense<0.000000e+00> : vector<64x128xf32>
    %17 = tpu.matmul %15, %16, %cst_15 {dimension_numbers = #tpu.dot_dimension_numbers<[1], [0], [0], [1], [0, 0, 1, 1], [], []>} : vector<64x32xbf16>, vector<32x128xbf16>, vector<64x128xf32> -> vector<64x128xf32>
    %18 = arith.addf %11, %17 : vector<64x128xf32>
    %c0_16 = arith.constant 0 : index
    %c0_17 = arith.constant 0 : index
    %19 = vector.load %arg7[%c0_16, %c0_17] : memref<1x128xf32, #tpu.memory_space<vmem>>, vector<1x128xf32>
    %20 = vector.broadcast %19 : vector<1x128xf32> to vector<64x128xf32>
    %21 = arith.addf %18, %20 : vector<64x128xf32>
    %cst_18 = arith.constant 0.000000e+00 : f32
    %22 = vector.broadcast %cst_18 : f32 to vector<64x128xf32>
    %23 = arith.maximumf %21, %22 : vector<64x128xf32>
    %24 = arith.truncf %23 : vector<64x128xf32> to vector<64x128xbf16>
    %c0_19 = arith.constant 0 : index
    %c0_20 = arith.constant 0 : index
    %25 = vector.load %arg8[%c0_19, %c0_20] : memref<128x64xbf16, #tpu.memory_space<vmem>>, vector<128x64xbf16>
    %cst_21 = arith.constant dense<0.000000e+00> : vector<64x64xf32>
    %26 = tpu.matmul %24, %25, %cst_21 {dimension_numbers = #tpu.dot_dimension_numbers<[1], [0], [0], [1], [0, 0, 1, 1], [], []>} : vector<64x128xbf16>, vector<128x64xbf16>, vector<64x64xf32> -> vector<64x64xf32>
    %27 = arith.truncf %23 : vector<64x128xf32> to vector<64x128xbf16>
    %c0_22 = arith.constant 0 : index
    %c0_23 = arith.constant 0 : index
    %28 = vector.load %arg9[%c0_22, %c0_23] : memref<128x64xbf16, #tpu.memory_space<vmem>>, vector<128x64xbf16>
    %cst_24 = arith.constant dense<0.000000e+00> : vector<64x64xf32>
    %29 = tpu.matmul %27, %28, %cst_24 {dimension_numbers = #tpu.dot_dimension_numbers<[1], [0], [0], [1], [0, 0, 1, 1], [], []>} : vector<64x128xbf16>, vector<128x64xbf16>, vector<64x64xf32> -> vector<64x64xf32>
    %30 = arith.maximumf %26, %29 : vector<64x64xf32>
    %c0_25 = arith.constant 0 : index
    %c0_26 = arith.constant 0 : index
    %31 = vector.load %arg10[%c0_25, %c0_26] : memref<32x64xbf16, #tpu.memory_space<vmem>>, vector<32x64xbf16>
    %32 = arith.truncf %30 : vector<64x64xf32> to vector<64x64xbf16>
    %cst_27 = arith.constant dense<0.000000e+00> : vector<32x64xf32>
    %33 = tpu.matmul %31, %32, %cst_27 {dimension_numbers = #tpu.dot_dimension_numbers<[1], [0], [0], [1], [0, 0, 1, 1], [], []>} : vector<32x64xbf16>, vector<64x64xbf16>, vector<32x64xf32> -> vector<32x64xf32>
    %c0_28 = arith.constant 0 : index
    %c0_29 = arith.constant 0 : index
    %34 = vector.load %arg11[%c0_28, %c0_29] : memref<32x64xbf16, #tpu.memory_space<vmem>>, vector<32x64xbf16>
    %35 = arith.truncf %30 : vector<64x64xf32> to vector<64x64xbf16>
    %cst_30 = arith.constant dense<0.000000e+00> : vector<32x64xf32>
    %36 = tpu.matmul %34, %35, %cst_30 {dimension_numbers = #tpu.dot_dimension_numbers<[1], [0], [0], [1], [0, 0, 1, 1], [], []>} : vector<32x64xbf16>, vector<64x64xbf16>, vector<32x64xf32> -> vector<32x64xf32>
    %37 = arith.maximumf %33, %36 : vector<32x64xf32>
    %c0_31 = arith.constant 0 : index
    %c0_32 = arith.constant 0 : index
    %38 = vector.load %arg12[%c0_31, %c0_32] : memref<32x32xbf16, #tpu.memory_space<vmem>>, vector<32x32xbf16>
    %39 = arith.truncf %37 : vector<32x64xf32> to vector<32x64xbf16>
    %cst_33 = arith.constant dense<0.000000e+00> : vector<32x64xf32>
    %40 = tpu.matmul %38, %39, %cst_33 {dimension_numbers = #tpu.dot_dimension_numbers<[1], [0], [0], [1], [0, 0, 1, 1], [], []>} : vector<32x32xbf16>, vector<32x64xbf16>, vector<32x64xf32> -> vector<32x64xf32>
    %41 = arith.truncf %40 : vector<32x64xf32> to vector<32x64xbf16>
    %c0_34 = arith.constant 0 : index
    %c0_35 = arith.constant 0 : index
    %42 = vector.load %arg14[%c0_34, %c0_35] : memref<64x128xbf16, #tpu.memory_space<vmem>>, vector<64x128xbf16>
    %cst_36 = arith.constant dense<0.000000e+00> : vector<32x128xf32>
    %43 = tpu.matmul %41, %42, %cst_36 {dimension_numbers = #tpu.dot_dimension_numbers<[1], [0], [0], [1], [0, 0, 1, 1], [], []>} : vector<32x64xbf16>, vector<64x128xbf16>, vector<32x128xf32> -> vector<32x128xf32>
    %44 = arith.truncf %37 : vector<32x64xf32> to vector<32x64xbf16>
    %c0_37 = arith.constant 0 : index
    %c0_38 = arith.constant 0 : index
    %45 = vector.load %arg15[%c0_37, %c0_38] : memref<64x128xbf16, #tpu.memory_space<vmem>>, vector<64x128xbf16>
    %cst_39 = arith.constant dense<0.000000e+00> : vector<32x128xf32>
    %46 = tpu.matmul %44, %45, %cst_39 {dimension_numbers = #tpu.dot_dimension_numbers<[1], [0], [0], [1], [0, 0, 1, 1], [], []>} : vector<32x64xbf16>, vector<64x128xbf16>, vector<32x128xf32> -> vector<32x128xf32>
    %47 = arith.addf %43, %46 : vector<32x128xf32>
    %c0_40 = arith.constant 0 : index
    %c0_41 = arith.constant 0 : index
    %48 = vector.load %arg13[%c0_40, %c0_41] : memref<32x32xbf16, #tpu.memory_space<vmem>>, vector<32x32xbf16>
    %49 = arith.truncf %37 : vector<32x64xf32> to vector<32x64xbf16>
    %cst_42 = arith.constant dense<0.000000e+00> : vector<32x64xf32>
    %50 = tpu.matmul %48, %49, %cst_42 {dimension_numbers = #tpu.dot_dimension_numbers<[1], [0], [0], [1], [0, 0, 1, 1], [], []>} : vector<32x32xbf16>, vector<32x64xbf16>, vector<32x64xf32> -> vector<32x64xf32>
    %51 = arith.truncf %50 : vector<32x64xf32> to vector<32x64xbf16>
    %c0_43 = arith.constant 0 : index
    %c0_44 = arith.constant 0 : index
    %52 = vector.load %arg16[%c0_43, %c0_44] : memref<64x128xbf16, #tpu.memory_space<vmem>>, vector<64x128xbf16>
    %cst_45 = arith.constant dense<0.000000e+00> : vector<32x128xf32>
    %53 = tpu.matmul %51, %52, %cst_45 {dimension_numbers = #tpu.dot_dimension_numbers<[1], [0], [0], [1], [0, 0, 1, 1], [], []>} : vector<32x64xbf16>, vector<64x128xbf16>, vector<32x128xf32> -> vector<32x128xf32>
    %54 = arith.addf %47, %53 : vector<32x128xf32>
    %c0_46 = arith.constant 0 : index
    %c0_47 = arith.constant 0 : index
    %55 = vector.load %arg17[%c0_46, %c0_47] : memref<1x128xf32, #tpu.memory_space<vmem>>, vector<1x128xf32>
    %56 = vector.broadcast %55 : vector<1x128xf32> to vector<32x128xf32>
    %57 = arith.addf %54, %56 : vector<32x128xf32>
    %cst_48 = arith.constant 0.000000e+00 : f32
    %58 = vector.broadcast %cst_48 : f32 to vector<32x128xf32>
    %59 = arith.maximumf %57, %58 : vector<32x128xf32>
    %60 = arith.truncf %59 : vector<32x128xf32> to vector<32x128xbf16>
    %c0_49 = arith.constant 0 : index
    %c0_50 = arith.constant 0 : index
    %61 = vector.load %arg18[%c0_49, %c0_50] : memref<128x64xbf16, #tpu.memory_space<vmem>>, vector<128x64xbf16>
    %cst_51 = arith.constant dense<0.000000e+00> : vector<32x64xf32>
    %62 = tpu.matmul %60, %61, %cst_51 {dimension_numbers = #tpu.dot_dimension_numbers<[1], [0], [0], [1], [0, 0, 1, 1], [], []>} : vector<32x128xbf16>, vector<128x64xbf16>, vector<32x64xf32> -> vector<32x64xf32>
    %63 = arith.truncf %59 : vector<32x128xf32> to vector<32x128xbf16>
    %c0_52 = arith.constant 0 : index
    %c0_53 = arith.constant 0 : index
    %64 = vector.load %arg19[%c0_52, %c0_53] : memref<128x64xbf16, #tpu.memory_space<vmem>>, vector<128x64xbf16>
    %cst_54 = arith.constant dense<0.000000e+00> : vector<32x64xf32>
    %65 = tpu.matmul %63, %64, %cst_54 {dimension_numbers = #tpu.dot_dimension_numbers<[1], [0], [0], [1], [0, 0, 1, 1], [], []>} : vector<32x128xbf16>, vector<128x64xbf16>, vector<32x64xf32> -> vector<32x64xf32>
    %66 = arith.maximumf %62, %65 : vector<32x64xf32>
    %c0_55 = arith.constant 0 : index
    %c0_56 = arith.constant 0 : index
    %67 = vector.load %arg20[%c0_55, %c0_56] : memref<16x32xbf16, #tpu.memory_space<vmem>>, vector<16x32xbf16>
    %68 = arith.truncf %66 : vector<32x64xf32> to vector<32x64xbf16>
    %cst_57 = arith.constant dense<0.000000e+00> : vector<16x64xf32>
    %69 = tpu.matmul %67, %68, %cst_57 {dimension_numbers = #tpu.dot_dimension_numbers<[1], [0], [0], [1], [0, 0, 1, 1], [], []>} : vector<16x32xbf16>, vector<32x64xbf16>, vector<16x64xf32> -> vector<16x64xf32>
    %c0_58 = arith.constant 0 : index
    %c0_59 = arith.constant 0 : index
    %70 = vector.load %arg21[%c0_58, %c0_59] : memref<16x32xbf16, #tpu.memory_space<vmem>>, vector<16x32xbf16>
    %71 = arith.truncf %66 : vector<32x64xf32> to vector<32x64xbf16>
    %cst_60 = arith.constant dense<0.000000e+00> : vector<16x64xf32>
    %72 = tpu.matmul %70, %71, %cst_60 {dimension_numbers = #tpu.dot_dimension_numbers<[1], [0], [0], [1], [0, 0, 1, 1], [], []>} : vector<16x32xbf16>, vector<32x64xbf16>, vector<16x64xf32> -> vector<16x64xf32>
    %73 = arith.maximumf %69, %72 : vector<16x64xf32>
    %c0_61 = arith.constant 0 : index
    %c0_62 = arith.constant 0 : index
    %74 = vector.load %arg22[%c0_61, %c0_62] : memref<16x16xbf16, #tpu.memory_space<vmem>>, vector<16x16xbf16>
    %75 = arith.truncf %73 : vector<16x64xf32> to vector<16x64xbf16>
    %cst_63 = arith.constant dense<0.000000e+00> : vector<16x64xf32>
    %76 = tpu.matmul %74, %75, %cst_63 {dimension_numbers = #tpu.dot_dimension_numbers<[1], [0], [0], [1], [0, 0, 1, 1], [], []>} : vector<16x16xbf16>, vector<16x64xbf16>, vector<16x64xf32> -> vector<16x64xf32>
    %77 = arith.truncf %76 : vector<16x64xf32> to vector<16x64xbf16>
    %c0_64 = arith.constant 0 : index
    %c0_65 = arith.constant 0 : index
    %78 = vector.load %arg24[%c0_64, %c0_65] : memref<64x128xbf16, #tpu.memory_space<vmem>>, vector<64x128xbf16>
    %cst_66 = arith.constant dense<0.000000e+00> : vector<16x128xf32>
    %79 = tpu.matmul %77, %78, %cst_66 {dimension_numbers = #tpu.dot_dimension_numbers<[1], [0], [0], [1], [0, 0, 1, 1], [], []>} : vector<16x64xbf16>, vector<64x128xbf16>, vector<16x128xf32> -> vector<16x128xf32>
    %80 = arith.truncf %73 : vector<16x64xf32> to vector<16x64xbf16>
    %c0_67 = arith.constant 0 : index
    %c0_68 = arith.constant 0 : index
    %81 = vector.load %arg25[%c0_67, %c0_68] : memref<64x128xbf16, #tpu.memory_space<vmem>>, vector<64x128xbf16>
    %cst_69 = arith.constant dense<0.000000e+00> : vector<16x128xf32>
    %82 = tpu.matmul %80, %81, %cst_69 {dimension_numbers = #tpu.dot_dimension_numbers<[1], [0], [0], [1], [0, 0, 1, 1], [], []>} : vector<16x64xbf16>, vector<64x128xbf16>, vector<16x128xf32> -> vector<16x128xf32>
    %83 = arith.addf %79, %82 : vector<16x128xf32>
    %c0_70 = arith.constant 0 : index
    %c0_71 = arith.constant 0 : index
    %84 = vector.load %arg23[%c0_70, %c0_71] : memref<16x16xbf16, #tpu.memory_space<vmem>>, vector<16x16xbf16>
    %85 = arith.truncf %73 : vector<16x64xf32> to vector<16x64xbf16>
    %cst_72 = arith.constant dense<0.000000e+00> : vector<16x64xf32>
    %86 = tpu.matmul %84, %85, %cst_72 {dimension_numbers = #tpu.dot_dimension_numbers<[1], [0], [0], [1], [0, 0, 1, 1], [], []>} : vector<16x16xbf16>, vector<16x64xbf16>, vector<16x64xf32> -> vector<16x64xf32>
    %87 = arith.truncf %86 : vector<16x64xf32> to vector<16x64xbf16>
    %c0_73 = arith.constant 0 : index
    %c0_74 = arith.constant 0 : index
    %88 = vector.load %arg26[%c0_73, %c0_74] : memref<64x128xbf16, #tpu.memory_space<vmem>>, vector<64x128xbf16>
    %cst_75 = arith.constant dense<0.000000e+00> : vector<16x128xf32>
    %89 = tpu.matmul %87, %88, %cst_75 {dimension_numbers = #tpu.dot_dimension_numbers<[1], [0], [0], [1], [0, 0, 1, 1], [], []>} : vector<16x64xbf16>, vector<64x128xbf16>, vector<16x128xf32> -> vector<16x128xf32>
    %90 = arith.addf %83, %89 : vector<16x128xf32>
    %c0_76 = arith.constant 0 : index
    %c0_77 = arith.constant 0 : index
    %91 = vector.load %arg27[%c0_76, %c0_77] : memref<1x128xf32, #tpu.memory_space<vmem>>, vector<1x128xf32>
    %92 = vector.broadcast %91 : vector<1x128xf32> to vector<16x128xf32>
    %93 = arith.addf %90, %92 : vector<16x128xf32>
    %cst_78 = arith.constant 0.000000e+00 : f32
    %94 = vector.broadcast %cst_78 : f32 to vector<16x128xf32>
    %95 = arith.maximumf %93, %94 : vector<16x128xf32>
    %c0_79 = arith.constant 0 : index
    %c0_80 = arith.constant 0 : index
    %96 = vector.load %arg28[%c0_79, %c0_80] : memref<16x16xbf16, #tpu.memory_space<vmem>>, vector<16x16xbf16>
    %97 = arith.truncf %95 : vector<16x128xf32> to vector<16x128xbf16>
    %cst_81 = arith.constant dense<0.000000e+00> : vector<16x128xf32>
    %98 = tpu.matmul %96, %97, %cst_81 {dimension_numbers = #tpu.dot_dimension_numbers<[1], [0], [0], [1], [0, 0, 1, 1], [], []>} : vector<16x16xbf16>, vector<16x128xbf16>, vector<16x128xf32> -> vector<16x128xf32>
    %99 = arith.truncf %98 : vector<16x128xf32> to vector<16x128xbf16>
    %c0_82 = arith.constant 0 : index
    %c0_83 = arith.constant 0 : index
    %100 = vector.load %arg30[%c0_82, %c0_83] : memref<128x128xbf16, #tpu.memory_space<vmem>>, vector<128x128xbf16>
    %cst_84 = arith.constant dense<0.000000e+00> : vector<16x128xf32>
    %101 = tpu.matmul %99, %100, %cst_84 {dimension_numbers = #tpu.dot_dimension_numbers<[1], [0], [0], [1], [0, 0, 1, 1], [], []>} : vector<16x128xbf16>, vector<128x128xbf16>, vector<16x128xf32> -> vector<16x128xf32>
    %102 = arith.truncf %95 : vector<16x128xf32> to vector<16x128xbf16>
    %c0_85 = arith.constant 0 : index
    %c0_86 = arith.constant 0 : index
    %103 = vector.load %arg31[%c0_85, %c0_86] : memref<128x128xbf16, #tpu.memory_space<vmem>>, vector<128x128xbf16>
    %cst_87 = arith.constant dense<0.000000e+00> : vector<16x128xf32>
    %104 = tpu.matmul %102, %103, %cst_87 {dimension_numbers = #tpu.dot_dimension_numbers<[1], [0], [0], [1], [0, 0, 1, 1], [], []>} : vector<16x128xbf16>, vector<128x128xbf16>, vector<16x128xf32> -> vector<16x128xf32>
    %105 = arith.addf %101, %104 : vector<16x128xf32>
    %c0_88 = arith.constant 0 : index
    %c0_89 = arith.constant 0 : index
    %106 = vector.load %arg29[%c0_88, %c0_89] : memref<16x16xbf16, #tpu.memory_space<vmem>>, vector<16x16xbf16>
    %107 = arith.truncf %95 : vector<16x128xf32> to vector<16x128xbf16>
    %cst_90 = arith.constant dense<0.000000e+00> : vector<16x128xf32>
    %108 = tpu.matmul %106, %107, %cst_90 {dimension_numbers = #tpu.dot_dimension_numbers<[1], [0], [0], [1], [0, 0, 1, 1], [], []>} : vector<16x16xbf16>, vector<16x128xbf16>, vector<16x128xf32> -> vector<16x128xf32>
    %109 = arith.truncf %108 : vector<16x128xf32> to vector<16x128xbf16>
    %c0_91 = arith.constant 0 : index
    %c0_92 = arith.constant 0 : index
    %110 = vector.load %arg32[%c0_91, %c0_92] : memref<128x128xbf16, #tpu.memory_space<vmem>>, vector<128x128xbf16>
    %cst_93 = arith.constant dense<0.000000e+00> : vector<16x128xf32>
    %111 = tpu.matmul %109, %110, %cst_93 {dimension_numbers = #tpu.dot_dimension_numbers<[1], [0], [0], [1], [0, 0, 1, 1], [], []>} : vector<16x128xbf16>, vector<128x128xbf16>, vector<16x128xf32> -> vector<16x128xf32>
    %112 = arith.addf %105, %111 : vector<16x128xf32>
    %c0_94 = arith.constant 0 : index
    %c0_95 = arith.constant 0 : index
    %113 = vector.load %arg33[%c0_94, %c0_95] : memref<1x128xf32, #tpu.memory_space<vmem>>, vector<1x128xf32>
    %114 = vector.broadcast %113 : vector<1x128xf32> to vector<16x128xf32>
    %115 = arith.addf %112, %114 : vector<16x128xf32>
    %cst_96 = arith.constant 0.000000e+00 : f32
    %116 = vector.broadcast %cst_96 : f32 to vector<16x128xf32>
    %117 = arith.maximumf %115, %116 : vector<16x128xf32>
    %c0_97 = arith.constant 0 : index
    %c0_98 = arith.constant 0 : index
    %118 = vector.load %arg34[%c0_97, %c0_98] : memref<8x16xbf16, #tpu.memory_space<vmem>>, vector<8x16xbf16>
    %119 = arith.truncf %117 : vector<16x128xf32> to vector<16x128xbf16>
    %cst_99 = arith.constant dense<0.000000e+00> : vector<8x128xf32>
    %120 = tpu.matmul %118, %119, %cst_99 {dimension_numbers = #tpu.dot_dimension_numbers<[1], [0], [0], [1], [0, 0, 1, 1], [], []>} : vector<8x16xbf16>, vector<16x128xbf16>, vector<8x128xf32> -> vector<8x128xf32>
    %c0_100 = arith.constant 0 : index
    %c0_101 = arith.constant 0 : index
    %121 = vector.load %arg35[%c0_100, %c0_101] : memref<8x16xbf16, #tpu.memory_space<vmem>>, vector<8x16xbf16>
    %122 = arith.truncf %117 : vector<16x128xf32> to vector<16x128xbf16>
    %cst_102 = arith.constant dense<0.000000e+00> : vector<8x128xf32>
    %123 = tpu.matmul %121, %122, %cst_102 {dimension_numbers = #tpu.dot_dimension_numbers<[1], [0], [0], [1], [0, 0, 1, 1], [], []>} : vector<8x16xbf16>, vector<16x128xbf16>, vector<8x128xf32> -> vector<8x128xf32>
    %124 = arith.maximumf %120, %123 : vector<8x128xf32>
    %c0_103 = arith.constant 0 : index
    %c0_104 = arith.constant 0 : index
    %125 = vector.load %arg36[%c0_103, %c0_104] : memref<8x8xbf16, #tpu.memory_space<vmem>>, vector<8x8xbf16>
    %126 = arith.truncf %124 : vector<8x128xf32> to vector<8x128xbf16>
    %cst_105 = arith.constant dense<0.000000e+00> : vector<8x128xf32>
    %127 = tpu.matmul %125, %126, %cst_105 {dimension_numbers = #tpu.dot_dimension_numbers<[1], [0], [0], [1], [0, 0, 1, 1], [], []>} : vector<8x8xbf16>, vector<8x128xbf16>, vector<8x128xf32> -> vector<8x128xf32>
    %128 = arith.truncf %127 : vector<8x128xf32> to vector<8x128xbf16>
    %c0_106 = arith.constant 0 : index
    %c0_107 = arith.constant 0 : index
    %129 = vector.load %arg38[%c0_106, %c0_107] : memref<128x256xbf16, #tpu.memory_space<vmem>>, vector<128x256xbf16>
    %cst_108 = arith.constant dense<0.000000e+00> : vector<8x256xf32>
    %130 = tpu.matmul %128, %129, %cst_108 {dimension_numbers = #tpu.dot_dimension_numbers<[1], [0], [0], [1], [0, 0, 1, 1], [], []>} : vector<8x128xbf16>, vector<128x256xbf16>, vector<8x256xf32> -> vector<8x256xf32>
    %131 = arith.truncf %124 : vector<8x128xf32> to vector<8x128xbf16>
    %c0_109 = arith.constant 0 : index
    %c0_110 = arith.constant 0 : index
    %132 = vector.load %arg39[%c0_109, %c0_110] : memref<128x256xbf16, #tpu.memory_space<vmem>>, vector<128x256xbf16>
    %cst_111 = arith.constant dense<0.000000e+00> : vector<8x256xf32>
    %133 = tpu.matmul %131, %132, %cst_111 {dimension_numbers = #tpu.dot_dimension_numbers<[1], [0], [0], [1], [0, 0, 1, 1], [], []>} : vector<8x128xbf16>, vector<128x256xbf16>, vector<8x256xf32> -> vector<8x256xf32>
    %134 = arith.addf %130, %133 : vector<8x256xf32>
    %c0_112 = arith.constant 0 : index
    %c0_113 = arith.constant 0 : index
    %135 = vector.load %arg37[%c0_112, %c0_113] : memref<8x8xbf16, #tpu.memory_space<vmem>>, vector<8x8xbf16>
    %136 = arith.truncf %124 : vector<8x128xf32> to vector<8x128xbf16>
    %cst_114 = arith.constant dense<0.000000e+00> : vector<8x128xf32>
    %137 = tpu.matmul %135, %136, %cst_114 {dimension_numbers = #tpu.dot_dimension_numbers<[1], [0], [0], [1], [0, 0, 1, 1], [], []>} : vector<8x8xbf16>, vector<8x128xbf16>, vector<8x128xf32> -> vector<8x128xf32>
    %138 = arith.truncf %137 : vector<8x128xf32> to vector<8x128xbf16>
    %c0_115 = arith.constant 0 : index
    %c0_116 = arith.constant 0 : index
    %139 = vector.load %arg40[%c0_115, %c0_116] : memref<128x256xbf16, #tpu.memory_space<vmem>>, vector<128x256xbf16>
    %cst_117 = arith.constant dense<0.000000e+00> : vector<8x256xf32>
    %140 = tpu.matmul %138, %139, %cst_117 {dimension_numbers = #tpu.dot_dimension_numbers<[1], [0], [0], [1], [0, 0, 1, 1], [], []>} : vector<8x128xbf16>, vector<128x256xbf16>, vector<8x256xf32> -> vector<8x256xf32>
    %141 = arith.addf %134, %140 : vector<8x256xf32>
    %c0_118 = arith.constant 0 : index
    %c0_119 = arith.constant 0 : index
    %142 = vector.load %arg41[%c0_118, %c0_119] : memref<1x256xf32, #tpu.memory_space<vmem>>, vector<1x256xf32>
    %143 = vector.broadcast %142 : vector<1x256xf32> to vector<8x256xf32>
    %144 = arith.addf %141, %143 : vector<8x256xf32>
    %cst_120 = arith.constant 0.000000e+00 : f32
    %145 = vector.broadcast %cst_120 : f32 to vector<8x256xf32>
    %146 = arith.maximumf %144, %145 : vector<8x256xf32>
    %c0_121 = arith.constant 0 : index
    %c0_122 = arith.constant 0 : index
    %147 = vector.load %arg42[%c0_121, %c0_122] : memref<8x8xbf16, #tpu.memory_space<vmem>>, vector<8x8xbf16>
    %148 = arith.truncf %146 : vector<8x256xf32> to vector<8x256xbf16>
    %cst_123 = arith.constant dense<0.000000e+00> : vector<8x256xf32>
    %149 = tpu.matmul %147, %148, %cst_123 {dimension_numbers = #tpu.dot_dimension_numbers<[1], [0], [0], [1], [0, 0, 1, 1], [], []>} : vector<8x8xbf16>, vector<8x256xbf16>, vector<8x256xf32> -> vector<8x256xf32>
    %150 = arith.truncf %149 : vector<8x256xf32> to vector<8x256xbf16>
    %c0_124 = arith.constant 0 : index
    %c0_125 = arith.constant 0 : index
    %151 = vector.load %arg44[%c0_124, %c0_125] : memref<256x256xbf16, #tpu.memory_space<vmem>>, vector<256x256xbf16>
    %cst_126 = arith.constant dense<0.000000e+00> : vector<8x256xf32>
    %152 = tpu.matmul %150, %151, %cst_126 {dimension_numbers = #tpu.dot_dimension_numbers<[1], [0], [0], [1], [0, 0, 1, 1], [], []>} : vector<8x256xbf16>, vector<256x256xbf16>, vector<8x256xf32> -> vector<8x256xf32>
    %153 = arith.truncf %146 : vector<8x256xf32> to vector<8x256xbf16>
    %c0_127 = arith.constant 0 : index
    %c0_128 = arith.constant 0 : index
    %154 = vector.load %arg45[%c0_127, %c0_128] : memref<256x256xbf16, #tpu.memory_space<vmem>>, vector<256x256xbf16>
    %cst_129 = arith.constant dense<0.000000e+00> : vector<8x256xf32>
    %155 = tpu.matmul %153, %154, %cst_129 {dimension_numbers = #tpu.dot_dimension_numbers<[1], [0], [0], [1], [0, 0, 1, 1], [], []>} : vector<8x256xbf16>, vector<256x256xbf16>, vector<8x256xf32> -> vector<8x256xf32>
    %156 = arith.addf %152, %155 : vector<8x256xf32>
    %c0_130 = arith.constant 0 : index
    %c0_131 = arith.constant 0 : index
    %157 = vector.load %arg43[%c0_130, %c0_131] : memref<8x8xbf16, #tpu.memory_space<vmem>>, vector<8x8xbf16>
    %158 = arith.truncf %146 : vector<8x256xf32> to vector<8x256xbf16>
    %cst_132 = arith.constant dense<0.000000e+00> : vector<8x256xf32>
    %159 = tpu.matmul %157, %158, %cst_132 {dimension_numbers = #tpu.dot_dimension_numbers<[1], [0], [0], [1], [0, 0, 1, 1], [], []>} : vector<8x8xbf16>, vector<8x256xbf16>, vector<8x256xf32> -> vector<8x256xf32>
    %160 = arith.truncf %159 : vector<8x256xf32> to vector<8x256xbf16>
    %c0_133 = arith.constant 0 : index
    %c0_134 = arith.constant 0 : index
    %161 = vector.load %arg46[%c0_133, %c0_134] : memref<256x256xbf16, #tpu.memory_space<vmem>>, vector<256x256xbf16>
    %cst_135 = arith.constant dense<0.000000e+00> : vector<8x256xf32>
    %162 = tpu.matmul %160, %161, %cst_135 {dimension_numbers = #tpu.dot_dimension_numbers<[1], [0], [0], [1], [0, 0, 1, 1], [], []>} : vector<8x256xbf16>, vector<256x256xbf16>, vector<8x256xf32> -> vector<8x256xf32>
    %163 = arith.addf %156, %162 : vector<8x256xf32>
    %c0_136 = arith.constant 0 : index
    %c0_137 = arith.constant 0 : index
    %164 = vector.load %arg47[%c0_136, %c0_137] : memref<1x256xf32, #tpu.memory_space<vmem>>, vector<1x256xf32>
    %165 = vector.broadcast %164 : vector<1x256xf32> to vector<8x256xf32>
    %166 = arith.addf %163, %165 : vector<8x256xf32>
    %cst_138 = arith.constant 0.000000e+00 : f32
    %167 = vector.broadcast %cst_138 : f32 to vector<8x256xf32>
    %168 = arith.maximumf %166, %167 : vector<8x256xf32>
    %c0_139 = arith.constant 0 : index
    %c0_140 = arith.constant 0 : index
    %169 = vector.load %arg48[%c0_139, %c0_140] : memref<4x8xbf16, #tpu.memory_space<vmem>>, vector<4x8xbf16>
    %170 = arith.truncf %168 : vector<8x256xf32> to vector<8x256xbf16>
    %cst_141 = arith.constant dense<0.000000e+00> : vector<4x256xf32>
    %171 = tpu.matmul %169, %170, %cst_141 {dimension_numbers = #tpu.dot_dimension_numbers<[1], [0], [0], [1], [0, 0, 1, 1], [], []>} : vector<4x8xbf16>, vector<8x256xbf16>, vector<4x256xf32> -> vector<4x256xf32>
    %c0_142 = arith.constant 0 : index
    %c0_143 = arith.constant 0 : index
    %172 = vector.load %arg49[%c0_142, %c0_143] : memref<4x8xbf16, #tpu.memory_space<vmem>>, vector<4x8xbf16>
    %173 = arith.truncf %168 : vector<8x256xf32> to vector<8x256xbf16>
    %cst_144 = arith.constant dense<0.000000e+00> : vector<4x256xf32>
    %174 = tpu.matmul %172, %173, %cst_144 {dimension_numbers = #tpu.dot_dimension_numbers<[1], [0], [0], [1], [0, 0, 1, 1], [], []>} : vector<4x8xbf16>, vector<8x256xbf16>, vector<4x256xf32> -> vector<4x256xf32>
    %175 = arith.maximumf %171, %174 : vector<4x256xf32>
    %c0_145 = arith.constant 0 : index
    %c0_146 = arith.constant 0 : index
    %176 = vector.load %arg50[%c0_145, %c0_146] : memref<3x4xbf16, #tpu.memory_space<vmem>>, vector<3x4xbf16>
    %177 = arith.truncf %175 : vector<4x256xf32> to vector<4x256xbf16>
    %cst_147 = arith.constant dense<0.000000e+00> : vector<3x256xf32>
    %178 = tpu.matmul %176, %177, %cst_147 {dimension_numbers = #tpu.dot_dimension_numbers<[1], [0], [0], [1], [0, 0, 1, 1], [], []>} : vector<3x4xbf16>, vector<4x256xbf16>, vector<3x256xf32> -> vector<3x256xf32>
    %179 = arith.truncf %178 : vector<3x256xf32> to vector<3x256xbf16>
    %c0_148 = arith.constant 0 : index
    %c0_149 = arith.constant 0 : index
    %180 = vector.load %arg52[%c0_148, %c0_149] : memref<256x224xbf16, #tpu.memory_space<vmem>>, vector<256x224xbf16>
    %cst_150 = arith.constant dense<0.000000e+00> : vector<3x224xf32>
    %181 = tpu.matmul %179, %180, %cst_150 {dimension_numbers = #tpu.dot_dimension_numbers<[1], [0], [0], [1], [0, 0, 1, 1], [], []>} : vector<3x256xbf16>, vector<256x224xbf16>, vector<3x224xf32> -> vector<3x224xf32>
    %c0_151 = arith.constant 0 : index
    %c0_152 = arith.constant 0 : index
    %182 = vector.load %arg51[%c0_151, %c0_152] : memref<3x4xbf16, #tpu.memory_space<vmem>>, vector<3x4xbf16>
    %183 = arith.truncf %175 : vector<4x256xf32> to vector<4x256xbf16>
    %cst_153 = arith.constant dense<0.000000e+00> : vector<3x256xf32>
    %184 = tpu.matmul %182, %183, %cst_153 {dimension_numbers = #tpu.dot_dimension_numbers<[1], [0], [0], [1], [0, 0, 1, 1], [], []>} : vector<3x4xbf16>, vector<4x256xbf16>, vector<3x256xf32> -> vector<3x256xf32>
    %185 = arith.truncf %184 : vector<3x256xf32> to vector<3x256xbf16>
    %c0_154 = arith.constant 0 : index
    %c0_155 = arith.constant 0 : index
    %186 = vector.load %arg53[%c0_154, %c0_155] : memref<256x224xbf16, #tpu.memory_space<vmem>>, vector<256x224xbf16>
    %cst_156 = arith.constant dense<0.000000e+00> : vector<3x224xf32>
    %187 = tpu.matmul %185, %186, %cst_156 {dimension_numbers = #tpu.dot_dimension_numbers<[1], [0], [0], [1], [0, 0, 1, 1], [], []>} : vector<3x256xbf16>, vector<256x224xbf16>, vector<3x224xf32> -> vector<3x224xf32>
    %188 = arith.addf %181, %187 : vector<3x224xf32>
    %c0_157 = arith.constant 0 : index
    %c0_158 = arith.constant 0 : index
    %189 = vector.load %arg54[%c0_157, %c0_158] : memref<1x224xf32, #tpu.memory_space<vmem>>, vector<1x224xf32>
    %190 = vector.broadcast %189 : vector<1x224xf32> to vector<3x224xf32>
    %191 = arith.addf %188, %190 : vector<3x224xf32>
    %cst_159 = arith.constant 0.000000e+00 : f32
    %192 = vector.broadcast %cst_159 : f32 to vector<3x224xf32>
    %193 = arith.maximumf %191, %192 : vector<3x224xf32>
    %194 = arith.truncf %193 : vector<3x224xf32> to vector<3x224xbf16>
    %c0_160 = arith.constant 0 : index
    %c0_161 = arith.constant 0 : index
    %195 = vector.load %arg55[%c0_160, %c0_161] : memref<224x32xbf16, #tpu.memory_space<vmem>>, vector<224x32xbf16>
    %cst_162 = arith.constant dense<0.000000e+00> : vector<3x32xf32>
    %196 = tpu.matmul %194, %195, %cst_162 {dimension_numbers = #tpu.dot_dimension_numbers<[1], [0], [0], [1], [0, 0, 1, 1], [], []>} : vector<3x224xbf16>, vector<224x32xbf16>, vector<3x32xf32> -> vector<3x32xf32>
    %197 = arith.truncf %196 : vector<3x32xf32> to vector<3x32xbf16>
    %c0_163 = arith.constant 0 : index
    %c0_164 = arith.constant 0 : index
    %198 = vector.load %arg56[%c0_163, %c0_164] : memref<32x10xbf16, #tpu.memory_space<vmem>>, vector<32x10xbf16>
    %cst_165 = arith.constant dense<0.000000e+00> : vector<3x10xf32>
    %199 = tpu.matmul %197, %198, %cst_165 {dimension_numbers = #tpu.dot_dimension_numbers<[1], [0], [0], [1], [0, 0, 1, 1], [], []>} : vector<3x32xbf16>, vector<32x10xbf16>, vector<3x10xf32> -> vector<3x10xf32>
    %c0_166 = arith.constant 0 : index
    %c0_167 = arith.constant 0 : index
    %200 = vector.load %arg57[%c0_166, %c0_167] : memref<1x10xf32, #tpu.memory_space<vmem>>, vector<1x10xf32>
    %201 = vector.broadcast %200 : vector<1x10xf32> to vector<3x10xf32>
    %202 = arith.addf %199, %201 : vector<3x10xf32>
    %c0_168 = arith.constant 0 : index
    %c0_169 = arith.constant 0 : index
    %c0_170 = arith.constant 0 : index
    %203 = vector.load %arg58[%c0_168, %c0_169, %c0_170] : memref<1x3x10xf32, #tpu.memory_space<vmem>>, vector<1x3x10xf32>
    %204 = vector.shape_cast %203 : vector<1x3x10xf32> to vector<3x10xf32>
    %205 = vector.shape_cast %202 : vector<3x10xf32> to vector<1x3x10xf32>
    tpu.vector_store %arg58[%c0_168, %c0_169, %c0_170], %205 {strides = array<i32>} : memref<1x3x10xf32, #tpu.memory_space<vmem>>, vector<1x3x10xf32>,
    return
  }
  func.func @transform_0(%arg0: i32) -> (i32, i32, i32) {
    %c0_i32 = arith.constant 0 : i32
    %c0_i32_0 = arith.constant 0 : i32
    %c0_i32_1 = arith.constant 0 : i32
    return %arg0, %c0_i32, %c0_i32_0 : i32, i32, i32
  }
  func.func @transform_1(%arg0: i32) -> (i32, i32) {
    %c0_i32 = arith.constant 0 : i32
    %c0_i32_0 = arith.constant 0 : i32
    %c0_i32_1 = arith.constant 0 : i32
    return %c0_i32, %c0_i32_0 : i32, i32
  }
  func.func @transform_2(%arg0: i32) -> (i32, i32) {
    %c0_i32 = arith.constant 0 : i32
    %c0_i32_0 = arith.constant 0 : i32
    %c0_i32_1 = arith.constant 0 : i32
    return %c0_i32, %c0_i32_0 : i32, i32
  }
  func.func @transform_3(%arg0: i32) -> (i32, i32) {
    %c0_i32 = arith.constant 0 : i32
    %c0_i32_0 = arith.constant 0 : i32
    %c0_i32_1 = arith.constant 0 : i32
    return %c0_i32, %c0_i32_0 : i32, i32
  }
  func.func @transform_4(%arg0: i32) -> (i32, i32) {
    %c0_i32 = arith.constant 0 : i32
    %c0_i32_0 = arith.constant 0 : i32
    %c0_i32_1 = arith.constant 0 : i32
    return %c0_i32, %c0_i32_0 : i32, i32
  }
  func.func @transform_5(%arg0: i32) -> (i32, i32) {
    %c0_i32 = arith.constant 0 : i32
    %c0_i32_0 = arith.constant 0 : i32
    %c0_i32_1 = arith.constant 0 : i32
    return %c0_i32, %c0_i32_0 : i32, i32
  }
  func.func @transform_6(%arg0: i32) -> (i32, i32) {
    %c0_i32 = arith.constant 0 : i32
    %c0_i32_0 = arith.constant 0 : i32
    %c0_i32_1 = arith.constant 0 : i32
    return %c0_i32, %c0_i32_0 : i32, i32
  }
  func.func @transform_7(%arg0: i32) -> (i32, i32) {
    %c0_i32 = arith.constant 0 : i32
    %c0_i32_0 = arith.constant 0 : i32
    %c0_i32_1 = arith.constant 0 : i32
    return %c0_i32, %c0_i32_0 : i32, i32
  }
  func.func @transform_8(%arg0: i32) -> (i32, i32) {
    %c0_i32 = arith.constant 0 : i32
    %c0_i32_0 = arith.constant 0 : i32
    %c0_i32_1 = arith.constant 0 : i32
    return %c0_i32, %c0_i32_0 : i32, i32
  }
  func.func @transform_9(%arg0: i32) -> (i32, i32) {
    %c0_i32 = arith.constant 0 : i32
    %c0_i32_0 = arith.constant 0 : i32
    %c0_i32_1 = arith.constant 0 : i32
    return %c0_i32, %c0_i32_0 : i32, i32
  }
  func.func @transform_10(%arg0: i32) -> (i32, i32) {
    %c0_i32 = arith.constant 0 : i32
    %c0_i32_0 = arith.constant 0 : i32
    %c0_i32_1 = arith.constant 0 : i32
    return %c0_i32, %c0_i32_0 : i32, i32
  }
  func.func @transform_11(%arg0: i32) -> (i32, i32) {
    %c0_i32 = arith.constant 0 : i32
    %c0_i32_0 = arith.constant 0 : i32
    %c0_i32_1 = arith.constant 0 : i32
    return %c0_i32, %c0_i32_0 : i32, i32
  }
  func.func @transform_12(%arg0: i32) -> (i32, i32) {
    %c0_i32 = arith.constant 0 : i32
    %c0_i32_0 = arith.constant 0 : i32
    %c0_i32_1 = arith.constant 0 : i32
    return %c0_i32, %c0_i32_0 : i32, i32
  }
  func.func @transform_13(%arg0: i32) -> (i32, i32) {
    %c0_i32 = arith.constant 0 : i32
    %c0_i32_0 = arith.constant 0 : i32
    %c0_i32_1 = arith.constant 0 : i32
    return %c0_i32, %c0_i32_0 : i32, i32
  }
  func.func @transform_14(%arg0: i32) -> (i32, i32) {
    %c0_i32 = arith.constant 0 : i32
    %c0_i32_0 = arith.constant 0 : i32
    %c0_i32_1 = arith.constant 0 : i32
    return %c0_i32, %c0_i32_0 : i32, i32
  }
  func.func @transform_15(%arg0: i32) -> (i32, i32) {
    %c0_i32 = arith.constant 0 : i32
    %c0_i32_0 = arith.constant 0 : i32
    %c0_i32_1 = arith.constant 0 : i32
    return %c0_i32, %c0_i32_0 : i32, i32
  }
  func.func @transform_16(%arg0: i32) -> (i32, i32) {
    %c0_i32 = arith.constant 0 : i32
    %c0_i32_0 = arith.constant 0 : i32
    %c0_i32_1 = arith.constant 0 : i32
    return %c0_i32, %c0_i32_0 : i32, i32
  }
  func.func @transform_17(%arg0: i32) -> (i32, i32) {
    %c0_i32 = arith.constant 0 : i32
    %c0_i32_0 = arith.constant 0 : i32
    %c0_i32_1 = arith.constant 0 : i32
    return %c0_i32, %c0_i32_0 : i32, i32
  }
  func.func @transform_18(%arg0: i32) -> (i32, i32) {
    %c0_i32 = arith.constant 0 : i32
    %c0_i32_0 = arith.constant 0 : i32
    %c0_i32_1 = arith.constant 0 : i32
    return %c0_i32, %c0_i32_0 : i32, i32
  }
  func.func @transform_19(%arg0: i32) -> (i32, i32) {
    %c0_i32 = arith.constant 0 : i32
    %c0_i32_0 = arith.constant 0 : i32
    %c0_i32_1 = arith.constant 0 : i32
    return %c0_i32, %c0_i32_0 : i32, i32
  }
  func.func @transform_20(%arg0: i32) -> (i32, i32) {
    %c0_i32 = arith.constant 0 : i32
    %c0_i32_0 = arith.constant 0 : i32
    %c0_i32_1 = arith.constant 0 : i32
    return %c0_i32, %c0_i32_0 : i32, i32
  }
  func.func @transform_21(%arg0: i32) -> (i32, i32) {
    %c0_i32 = arith.constant 0 : i32
    %c0_i32_0 = arith.constant 0 : i32
    %c0_i32_1 = arith.constant 0 : i32
    return %c0_i32, %c0_i32_0 : i32, i32
  }
  func.func @transform_22(%arg0: i32) -> (i32, i32) {
    %c0_i32 = arith.constant 0 : i32
    %c0_i32_0 = arith.constant 0 : i32
    %c0_i32_1 = arith.constant 0 : i32
    return %c0_i32, %c0_i32_0 : i32, i32
  }
  func.func @transform_23(%arg0: i32) -> (i32, i32) {
    %c0_i32 = arith.constant 0 : i32
    %c0_i32_0 = arith.constant 0 : i32
    %c0_i32_1 = arith.constant 0 : i32
    return %c0_i32, %c0_i32_0 : i32, i32
  }
  func.func @transform_24(%arg0: i32) -> (i32, i32) {
    %c0_i32 = arith.constant 0 : i32
    %c0_i32_0 = arith.constant 0 : i32
    %c0_i32_1 = arith.constant 0 : i32
    return %c0_i32, %c0_i32_0 : i32, i32
  }
  func.func @transform_25(%arg0: i32) -> (i32, i32) {
    %c0_i32 = arith.constant 0 : i32
    %c0_i32_0 = arith.constant 0 : i32
    %c0_i32_1 = arith.constant 0 : i32
    return %c0_i32, %c0_i32_0 : i32, i32
  }
  func.func @transform_26(%arg0: i32) -> (i32, i32) {
    %c0_i32 = arith.constant 0 : i32
    %c0_i32_0 = arith.constant 0 : i32
    %c0_i32_1 = arith.constant 0 : i32
    return %c0_i32, %c0_i32_0 : i32, i32
  }
  func.func @transform_27(%arg0: i32) -> (i32, i32) {
    %c0_i32 = arith.constant 0 : i32
    %c0_i32_0 = arith.constant 0 : i32
    %c0_i32_1 = arith.constant 0 : i32
    return %c0_i32, %c0_i32_0 : i32, i32
  }
  func.func @transform_28(%arg0: i32) -> (i32, i32) {
    %c0_i32 = arith.constant 0 : i32
    %c0_i32_0 = arith.constant 0 : i32
    %c0_i32_1 = arith.constant 0 : i32
    return %c0_i32, %c0_i32_0 : i32, i32
  }
  func.func @transform_29(%arg0: i32) -> (i32, i32) {
    %c0_i32 = arith.constant 0 : i32
    %c0_i32_0 = arith.constant 0 : i32
    %c0_i32_1 = arith.constant 0 : i32
    return %c0_i32, %c0_i32_0 : i32, i32
  }
  func.func @transform_30(%arg0: i32) -> (i32, i32) {
    %c0_i32 = arith.constant 0 : i32
    %c0_i32_0 = arith.constant 0 : i32
    %c0_i32_1 = arith.constant 0 : i32
    return %c0_i32, %c0_i32_0 : i32, i32
  }
  func.func @transform_31(%arg0: i32) -> (i32, i32) {
    %c0_i32 = arith.constant 0 : i32
    %c0_i32_0 = arith.constant 0 : i32
    %c0_i32_1 = arith.constant 0 : i32
    return %c0_i32, %c0_i32_0 : i32, i32
  }
  func.func @transform_32(%arg0: i32) -> (i32, i32) {
    %c0_i32 = arith.constant 0 : i32
    %c0_i32_0 = arith.constant 0 : i32
    %c0_i32_1 = arith.constant 0 : i32
    return %c0_i32, %c0_i32_0 : i32, i32
  }
  func.func @transform_33(%arg0: i32) -> (i32, i32) {
    %c0_i32 = arith.constant 0 : i32
    %c0_i32_0 = arith.constant 0 : i32
    %c0_i32_1 = arith.constant 0 : i32
    return %c0_i32, %c0_i32_0 : i32, i32
  }
  func.func @transform_34(%arg0: i32) -> (i32, i32) {
    %c0_i32 = arith.constant 0 : i32
    %c0_i32_0 = arith.constant 0 : i32
    %c0_i32_1 = arith.constant 0 : i32
    return %c0_i32, %c0_i32_0 : i32, i32
  }
  func.func @transform_35(%arg0: i32) -> (i32, i32) {
    %c0_i32 = arith.constant 0 : i32
    %c0_i32_0 = arith.constant 0 : i32
    %c0_i32_1 = arith.constant 0 : i32
    return %c0_i32, %c0_i32_0 : i32, i32
  }
  func.func @transform_36(%arg0: i32) -> (i32, i32) {
    %c0_i32 = arith.constant 0 : i32
    %c0_i32_0 = arith.constant 0 : i32
    %c0_i32_1 = arith.constant 0 : i32
    return %c0_i32, %c0_i32_0 : i32, i32
  }
  func.func @transform_37(%arg0: i32) -> (i32, i32) {
    %c0_i32 = arith.constant 0 : i32
    %c0_i32_0 = arith.constant 0 : i32
    %c0_i32_1 = arith.constant 0 : i32
    return %c0_i32, %c0_i32_0 : i32, i32
  }
  func.func @transform_38(%arg0: i32) -> (i32, i32) {
    %c0_i32 = arith.constant 0 : i32
    %c0_i32_0 = arith.constant 0 : i32
    %c0_i32_1 = arith.constant 0 : i32
    return %c0_i32, %c0_i32_0 : i32, i32
  }
  func.func @transform_39(%arg0: i32) -> (i32, i32) {
    %c0_i32 = arith.constant 0 : i32
    %c0_i32_0 = arith.constant 0 : i32
    %c0_i32_1 = arith.constant 0 : i32
    return %c0_i32, %c0_i32_0 : i32, i32
  }
  func.func @transform_40(%arg0: i32) -> (i32, i32) {
    %c0_i32 = arith.constant 0 : i32
    %c0_i32_0 = arith.constant 0 : i32
    %c0_i32_1 = arith.constant 0 : i32
    return %c0_i32, %c0_i32_0 : i32, i32
  }
  func.func @transform_41(%arg0: i32) -> (i32, i32) {
    %c0_i32 = arith.constant 0 : i32
    %c0_i32_0 = arith.constant 0 : i32
    %c0_i32_1 = arith.constant 0 : i32
    return %c0_i32, %c0_i32_0 : i32, i32
  }
  func.func @transform_42(%arg0: i32) -> (i32, i32) {
    %c0_i32 = arith.constant 0 : i32
    %c0_i32_0 = arith.constant 0 : i32
    %c0_i32_1 = arith.constant 0 : i32
    return %c0_i32, %c0_i32_0 : i32, i32
  }
  func.func @transform_43(%arg0: i32) -> (i32, i32) {
    %c0_i32 = arith.constant 0 : i32
    %c0_i32_0 = arith.constant 0 : i32
    %c0_i32_1 = arith.constant 0 : i32
    return %c0_i32, %c0_i32_0 : i32, i32
  }
  func.func @transform_44(%arg0: i32) -> (i32, i32) {
    %c0_i32 = arith.constant 0 : i32
    %c0_i32_0 = arith.constant 0 : i32
    %c0_i32_1 = arith.constant 0 : i32
    return %c0_i32, %c0_i32_0 : i32, i32
  }
  func.func @transform_45(%arg0: i32) -> (i32, i32) {
    %c0_i32 = arith.constant 0 : i32
    %c0_i32_0 = arith.constant 0 : i32
    %c0_i32_1 = arith.constant 0 : i32
    return %c0_i32, %c0_i32_0 : i32, i32
  }
  func.func @transform_46(%arg0: i32) -> (i32, i32) {
    %c0_i32 = arith.constant 0 : i32
    %c0_i32_0 = arith.constant 0 : i32
    %c0_i32_1 = arith.constant 0 : i32
    return %c0_i32, %c0_i32_0 : i32, i32
  }
  func.func @transform_47(%arg0: i32) -> (i32, i32) {
    %c0_i32 = arith.constant 0 : i32
    %c0_i32_0 = arith.constant 0 : i32
    %c0_i32_1 = arith.constant 0 : i32
    return %c0_i32, %c0_i32_0 : i32, i32
  }
  func.func @transform_48(%arg0: i32) -> (i32, i32) {
    %c0_i32 = arith.constant 0 : i32
    %c0_i32_0 = arith.constant 0 : i32
    %c0_i32_1 = arith.constant 0 : i32
    return %c0_i32, %c0_i32_0 : i32, i32
  }
  func.func @transform_49(%arg0: i32) -> (i32, i32) {
    %c0_i32 = arith.constant 0 : i32
    %c0_i32_0 = arith.constant 0 : i32
    %c0_i32_1 = arith.constant 0 : i32
    return %c0_i32, %c0_i32_0 : i32, i32
  }
  func.func @transform_50(%arg0: i32) -> (i32, i32) {
    %c0_i32 = arith.constant 0 : i32
    %c0_i32_0 = arith.constant 0 : i32
    %c0_i32_1 = arith.constant 0 : i32
    return %c0_i32, %c0_i32_0 : i32, i32
  }
  func.func @transform_51(%arg0: i32) -> (i32, i32) {
    %c0_i32 = arith.constant 0 : i32
    %c0_i32_0 = arith.constant 0 : i32
    %c0_i32_1 = arith.constant 0 : i32
    return %c0_i32, %c0_i32_0 : i32, i32
  }
  func.func @transform_52(%arg0: i32) -> (i32, i32) {
    %c0_i32 = arith.constant 0 : i32
    %c0_i32_0 = arith.constant 0 : i32
    %c0_i32_1 = arith.constant 0 : i32
    return %c0_i32, %c0_i32_0 : i32, i32
  }
  func.func @transform_53(%arg0: i32) -> (i32, i32) {
    %c0_i32 = arith.constant 0 : i32
    %c0_i32_0 = arith.constant 0 : i32
    %c0_i32_1 = arith.constant 0 : i32
    return %c0_i32, %c0_i32_0 : i32, i32
  }
  func.func @transform_54(%arg0: i32) -> (i32, i32) {
    %c0_i32 = arith.constant 0 : i32
    %c0_i32_0 = arith.constant 0 : i32
    %c0_i32_1 = arith.constant 0 : i32
    return %c0_i32, %c0_i32_0 : i32, i32
  }
  func.func @transform_55(%arg0: i32) -> (i32, i32) {
    %c0_i32 = arith.constant 0 : i32
    %c0_i32_0 = arith.constant 0 : i32
    %c0_i32_1 = arith.constant 0 : i32
    return %c0_i32, %c0_i32_0 : i32, i32
  }
  func.func @transform_56(%arg0: i32) -> (i32, i32) {
    %c0_i32 = arith.constant 0 : i32
    %c0_i32_0 = arith.constant 0 : i32
    %c0_i32_1 = arith.constant 0 : i32
    return %c0_i32, %c0_i32_0 : i32, i32
  }
  func.func @transform_57(%arg0: i32) -> (i32, i32, i32) {
    %c0_i32 = arith.constant 0 : i32
    %c0_i32_0 = arith.constant 0 : i32
    %c0_i32_1 = arith.constant 0 : i32
    return %arg0, %c0_i32, %c0_i32_0 : i32, i32, i32
  }
}

</mosaic_0001>

<llo_original>
// kernel: forward.1
$region0: #{forward.1}
  #allocation0 [shape = 'u32[]', space=smem, size = 0x4, offset = 0x4, fixed_abs, tag = 'smem constant byte address 0x4 - core index']
  #allocation1 [shape = 'u32[144,128]{1,0:T(1,128)}', space=vmem, size = 0x12000, scoped, tag = 'internal scratch']
  %s0 = inlined_call_operand.smem [shape: u32[58], index: -1, kind: input, shape index: {}]
  %s1 = sld [smem:[%s0]]
  %s2 = scalar_lea.smem %s0, 1
  %s3 = sld [smem:[%s2]]
  %s4 = scalar_lea.smem %s0, 2
  %s5 = sld [smem:[%s4]]
  %s6 = scalar_lea.smem %s0, 3
  %s7 = sld [smem:[%s6]]
  %s8 = scalar_lea.smem %s0, 4
  %s9 = sld [smem:[%s8]]
  %s10 = scalar_lea.smem %s0, 5
  %s11 = sld [smem:[%s10]]
  %s12 = scalar_lea.smem %s0, 6
  %s13 = sld [smem:[%s12]]
  %s14 = scalar_lea.smem %s0, 7
  %s15 = sld [smem:[%s14]]
  %s16 = scalar_lea.smem %s0, 8
  %s17 = sld [smem:[%s16]]
  %s18 = scalar_lea.smem %s0, 9
  %s19 = sld [smem:[%s18]]
  %s20 = scalar_lea.smem %s0, 10
  %s21 = sld [smem:[%s20]]
  %s22 = scalar_lea.smem %s0, 11
  %s23 = sld [smem:[%s22]]
  %s24 = scalar_lea.smem %s0, 12
  %s25 = sld [smem:[%s24]]
  %s26 = scalar_lea.smem %s0, 13
  %s27 = sld [smem:[%s26]]
  %s28 = scalar_lea.smem %s0, 14
  %s29 = sld [smem:[%s28]]
  %s30 = scalar_lea.smem %s0, 15
  %s31 = sld [smem:[%s30]]
  %s32 = scalar_lea.smem %s0, 16
  %s33 = sld [smem:[%s32]]
  %s34 = scalar_lea.smem %s0, 17
  %s35 = sld [smem:[%s34]]
  %s36 = scalar_lea.smem %s0, 18
  %s37 = sld [smem:[%s36]]
  %s38 = scalar_lea.smem %s0, 19
  %s39 = sld [smem:[%s38]]
  %s40 = scalar_lea.smem %s0, 20
  %s41 = sld [smem:[%s40]]
  %s42 = scalar_lea.smem %s0, 21
  %s43 = sld [smem:[%s42]]
  %s44 = scalar_lea.smem %s0, 22
  %s45 = sld [smem:[%s44]]
  %s46 = scalar_lea.smem %s0, 23
  %s47 = sld [smem:[%s46]]
  %s48 = scalar_lea.smem %s0, 24
  %s49 = sld [smem:[%s48]]
  %s50 = scalar_lea.smem %s0, 25
  %s51 = sld [smem:[%s50]]
  %s52 = scalar_lea.smem %s0, 26
  %s53 = sld [smem:[%s52]]
  %s54 = scalar_lea.smem %s0, 27
  %s55 = sld [smem:[%s54]]
  %s56 = scalar_lea.smem %s0, 28
  %s57 = sld [smem:[%s56]]
  %s58 = scalar_lea.smem %s0, 29
  %s59 = sld [smem:[%s58]]
  %s60 = scalar_lea.smem %s0, 30
  %s61 = sld [smem:[%s60]]
  %s62 = scalar_lea.smem %s0, 31
  %s63 = sld [smem:[%s62]]
  %s64 = scalar_lea.smem %s0, 32
  %s65 = sld [smem:[%s64]]
  %s66 = scalar_lea.smem %s0, 33
  %s67 = sld [smem:[%s66]]
  %s68 = scalar_lea.smem %s0, 34
  %s69 = sld [smem:[%s68]]
  %s70 = scalar_lea.smem %s0, 35
  %s71 = sld [smem:[%s70]]
  %s72 = scalar_lea.smem %s0, 36
  %s73 = sld [smem:[%s72]]
  %s74 = scalar_lea.smem %s0, 37
  %s75 = sld [smem:[%s74]]
  %s76 = scalar_lea.smem %s0, 38
  %s77 = sld [smem:[%s76]]
  %s78 = scalar_lea.smem %s0, 39
  %s79 = sld [smem:[%s78]]
  %s80 = scalar_lea.smem %s0, 40
  %s81 = sld [smem:[%s80]]
  %s82 = scalar_lea.smem %s0, 41
  %s83 = sld [smem:[%s82]]
  %s84 = scalar_lea.smem %s0, 42
  %s85 = sld [smem:[%s84]]
  %s86 = scalar_lea.smem %s0, 43
  %s87 = sld [smem:[%s86]]
  %s88 = scalar_lea.smem %s0, 44
  %s89 = sld [smem:[%s88]]
  %s90 = scalar_lea.smem %s0, 45
  %s91 = sld [smem:[%s90]]
  %s92 = scalar_lea.smem %s0, 46
  %s93 = sld [smem:[%s92]]
  %s94 = scalar_lea.smem %s0, 47
  %s95 = sld [smem:[%s94]]
  %s96 = scalar_lea.smem %s0, 48
  %s97 = sld [smem:[%s96]]
  %s98 = scalar_lea.smem %s0, 49
  %s99 = sld [smem:[%s98]]
  %s100 = scalar_lea.smem %s0, 50
  %s101 = sld [smem:[%s100]]
  %s102 = scalar_lea.smem %s0, 51
  %s103 = sld [smem:[%s102]]
  %s104 = scalar_lea.smem %s0, 52
  %s105 = sld [smem:[%s104]]
  %s106 = scalar_lea.smem %s0, 53
  %s107 = sld [smem:[%s106]]
  %s108 = scalar_lea.smem %s0, 54
  %s109 = sld [smem:[%s108]]
  %s110 = scalar_lea.smem %s0, 55
  %s111 = sld [smem:[%s110]]
  %s112 = scalar_lea.smem %s0, 56
  %s113 = sld [smem:[%s112]]
  %s114 = scalar_lea.smem %s0, 57
  %s115 = sld [smem:[%s114]]
  %s116 = sld [smem:[#allocation0]]
  $region373: #{forward.1} parent=0
    _
  %s118 = ssub.s32 1, %s116
  %s119 = scalar_select 0, %s118, %s116
  $region1: #{forward.1} parent=0
    #allocation2 [shape = 'u8[16384]{0}', space=vmem, size = 0x4000, scoped, tag = 'input window, operand 1, single buffered']
    #allocation3 [shape = 's32[2]{0}', space=sflag, size = 0x8, scoped, tag = 'scoped memory for forward.1']
    #allocation4 [shape = 'u8[16384]{0}', space=vmem, size = 0x4000, scoped, tag = 'input window, operand 2, single buffered']
    #allocation5 [shape = 's32[1]{0}', space=sflag, size = 0x4, scoped, tag = 'scoped memory for forward.1']
    #allocation6 [shape = 'u8[8192]{0}', space=vmem, size = 0x2000, scoped, tag = 'input window, operand 3, single buffered']
    #allocation7 [shape = 'u8[8192]{0}', space=vmem, size = 0x2000, scoped, tag = 'input window, operand 4, single buffered']
    #allocation8 [shape = 's32[1]{0}', space=sflag, size = 0x4, scoped, tag = 'scoped memory for forward.1']
    #allocation9 [shape = 'u8[8192]{0}', space=vmem, size = 0x2000, scoped, tag = 'input window, operand 5, single buffered']
    #allocation10 [shape = 'u8[512]{0}', space=vmem, size = 0x400, scoped, tag = 'input window, operand 6, single buffered']
    #allocation11 [shape = 's32[1]{0}', space=sflag, size = 0x4, scoped, tag = 'scoped memory for forward.1']
    #allocation12 [shape = 'u8[8192]{0}', space=vmem, size = 0x2000, scoped, tag = 'input window, operand 9, single buffered']
    #allocation13 [shape = 'u8[8192]{0}', space=vmem, size = 0x2000, scoped, tag = 'input window, operand 10, single buffered']
    #allocation14 [shape = 's32[1]{0}', space=sflag, size = 0x4, scoped, tag = 'scoped memory for forward.1']
    #allocation15 [shape = 'u8[8192]{0}', space=vmem, size = 0x2000, scoped, tag = 'input window, operand 11, single buffered']
    #allocation16 [shape = 'u8[8192]{0}', space=vmem, size = 0x2000, scoped, tag = 'input window, operand 12, single buffered']
    #allocation17 [shape = 's32[1]{0}', space=sflag, size = 0x4, scoped, tag = 'scoped memory for forward.1']
    #allocation18 [shape = 'u8[16384]{0}', space=vmem, size = 0x4000, scoped, tag = 'input window, operand 13, single buffered']
    #allocation19 [shape = 'u8[16384]{0}', space=vmem, size = 0x4000, scoped, tag = 'input window, operand 14, single buffered']
    #allocation20 [shape = 's32[1]{0}', space=sflag, size = 0x4, scoped, tag = 'scoped memory for forward.1']
    #allocation21 [shape = 'u8[16384]{0}', space=vmem, size = 0x4000, scoped, tag = 'input window, operand 15, single buffered']
    #allocation22 [shape = 'u8[512]{0}', space=vmem, size = 0x400, scoped, tag = 'input window, operand 16, single buffered']
    #allocation23 [shape = 's32[1]{0}', space=sflag, size = 0x4, scoped, tag = 'scoped memory for forward.1']
    #allocation24 [shape = 'u8[4096]{0}', space=vmem, size = 0x1000, scoped, tag = 'input window, operand 19, single buffered']
    #allocation25 [shape = 'u8[4096]{0}', space=vmem, size = 0x1000, scoped, tag = 'input window, operand 20, single buffered']
    #allocation26 [shape = 's32[1]{0}', space=sflag, size = 0x4, scoped, tag = 'scoped memory for forward.1']
    #allocation27 [shape = 'u8[4096]{0}', space=vmem, size = 0x1000, scoped, tag = 'input window, operand 21, single buffered']
    #allocation28 [shape = 'u8[4096]{0}', space=vmem, size = 0x1000, scoped, tag = 'input window, operand 22, single buffered']
    #allocation29 [shape = 's32[1]{0}', space=sflag, size = 0x4, scoped, tag = 'scoped memory for forward.1']
    #allocation30 [shape = 'u8[16384]{0}', space=vmem, size = 0x4000, scoped, tag = 'input window, operand 23, single buffered']
    #allocation31 [shape = 'u8[16384]{0}', space=vmem, size = 0x4000, scoped, tag = 'input window, operand 24, single buffered']
    #allocation32 [shape = 's32[1]{0}', space=sflag, size = 0x4, scoped, tag = 'scoped memory for forward.1']
    #allocation33 [shape = 'u8[16384]{0}', space=vmem, size = 0x4000, scoped, tag = 'input window, operand 25, single buffered']
    #allocation34 [shape = 'u8[512]{0}', space=vmem, size = 0x400, scoped, tag = 'input window, operand 26, single buffered']
    #allocation35 [shape = 's32[1]{0}', space=sflag, size = 0x4, scoped, tag = 'scoped memory for forward.1']
    #allocation36 [shape = 'u8[4096]{0}', space=vmem, size = 0x1000, scoped, tag = 'input window, operand 27, single buffered']
    #allocation37 [shape = 'u8[4096]{0}', space=vmem, size = 0x1000, scoped, tag = 'input window, operand 28, single buffered']
    #allocation38 [shape = 's32[1]{0}', space=sflag, size = 0x4, scoped, tag = 'scoped memory for forward.1']
    #allocation39 [shape = 'u8[32768]{0}', space=vmem, size = 0x8000, scoped, tag = 'input window, operand 31, single buffered']
    #allocation40 [shape = 'u8[512]{0}', space=vmem, size = 0x400, scoped, tag = 'input window, operand 32, single buffered']
    #allocation41 [shape = 's32[1]{0}', space=sflag, size = 0x4, scoped, tag = 'scoped memory for forward.1']
    #allocation42 [shape = 'u8[2048]{0}', space=vmem, size = 0x800, scoped, tag = 'input window, operand 33, single buffered']
    #allocation43 [shape = 'u8[2048]{0}', space=vmem, size = 0x800, scoped, tag = 'input window, operand 34, single buffered']
    #allocation44 [shape = 's32[1]{0}', space=sflag, size = 0x4, scoped, tag = 'scoped memory for forward.1']
    %120 = vsyncpa [#allocation3], 0
    %121 = vsyncpa [#allocation5], 0
    %122 = vsyncpa [#allocation8], 0
    %123 = vsyncpa [#allocation11], 0
    %124 = vsyncpa [#allocation14], 0
    %125 = vsyncpa [#allocation17], 0
    %126 = vsyncpa [#allocation20], 0
    %127 = vsyncpa [#allocation23], 0
    %128 = vsyncpa [#allocation26], 0
    %129 = vsyncpa [#allocation29], 0
    %130 = vsyncpa [#allocation32], 0
    %131 = vsyncpa [#allocation35], 0
    %132 = vsyncpa [#allocation38], 0
    %133 = vsyncpa [#allocation41], 0
    %134 = vsyncpa [#allocation44], 0
    loop: start=0, step=1, limit=4
    $region2: #{forward.1} parent=1 // loop_pre_header
      _
    $region3: #{forward.1} parent=1 // loop_header
      %s136 = sphi 0, %s140
      %p137 = scmp.ge.s32.totalorder %s136, 4
      %s146 = sphi 0, %s148
      %s149 = sphi 0, %s146
      %s150 = sphi 0, %s149
      %s166 = sphi 0, %s150
      %s170 = sphi 0, %s170
      %s172 = sphi 0, %s170
      %s173 = sphi 0, %s172
      %s187 = sphi 0, %s173
      %s191 = sphi 0, %s191
      %s193 = sphi 0, %s191
      %s194 = sphi 0, %s193
      %s208 = sphi 0, %s194
      %s212 = sphi 0, %s212
      %s214 = sphi 0, %s212
      %s215 = sphi 0, %s214
      %s229 = sphi 0, %s215
      %s233 = sphi 0, %s233
      %s235 = sphi 0, %s233
      %s236 = sphi 0, %s235
      %s250 = sphi 0, %s236
      %s254 = sphi 0, %s254
      %s256 = sphi 0, %s254
      %s257 = sphi 0, %s256
      %s271 = sphi 0, %s257
      %s275 = sphi 0, %s275
      %s277 = sphi 0, %s275
      %s278 = sphi 0, %s277
      %s292 = sphi 0, %s278
      %s296 = sphi 0, %s296
      %s298 = sphi 0, %s296
      %s299 = sphi 0, %s298
      %s313 = sphi 0, %s299
      %s317 = sphi 0, %s317
      %s319 = sphi 0, %s317
      %s320 = sphi 0, %s319
      %s334 = sphi 0, %s320
      %s338 = sphi 0, %s338
      %s340 = sphi 0, %s338
      %s341 = sphi 0, %s340
      %s355 = sphi 0, %s341
      %s359 = sphi 0, %s359
      %s361 = sphi 0, %s359
      %s362 = sphi 0, %s361
      %s376 = sphi 0, %s362
      %s380 = sphi 0, %s380
      %s382 = sphi 0, %s380
      %s383 = sphi 0, %s382
      %s397 = sphi 0, %s383
      %s401 = sphi 0, %s401
      %s403 = sphi 0, %s401
      %s404 = sphi 0, %s403
      %s418 = sphi 0, %s404
      %s422 = sphi 0, %s422
      %s424 = sphi 0, %s422
      %s425 = sphi 0, %s424
      %s439 = sphi 0, %s425
      %s443 = sphi 0, %s443
      %s445 = sphi 0, %s443
      %s446 = sphi 0, %s445
      %s460 = sphi 0, %s446
      %s464 = sphi 0, %s464
      %s466 = sphi 0, %s464
      %s467 = sphi 0, %s466
      %s481 = sphi 0, %s467
      %s485 = sphi 0, %s485
      %s487 = sphi 0, %s485
      %s488 = sphi 0, %s487
      %s502 = sphi 0, %s488
      %s506 = sphi 0, %s506
      %s508 = sphi 0, %s506
      %s509 = sphi 0, %s508
      %s523 = sphi 0, %s509
      %s527 = sphi 0, %s527
      %s529 = sphi 0, %s527
      %s530 = sphi 0, %s529
      %s544 = sphi 0, %s530
      %s548 = sphi 0, %s548
      %s550 = sphi 0, %s548
      %s551 = sphi 0, %s550
      %s565 = sphi 0, %s551
      %s569 = sphi 0, %s569
      %s571 = sphi 0, %s569
      %s572 = sphi 0, %s571
      %s586 = sphi 0, %s572
      %s590 = sphi 0, %s590
      %s592 = sphi 0, %s590
      %s593 = sphi 0, %s592
      %s607 = sphi 0, %s593
      %s611 = sphi 0, %s611
      %s613 = sphi 0, %s611
      %s614 = sphi 0, %s613
      %s628 = sphi 0, %s614
      %s632 = sphi 0, %s632
      %s634 = sphi 0, %s632
      %s635 = sphi 0, %s634
      %s649 = sphi 0, %s635
      %s653 = sphi 0, %s653
      %s655 = sphi 0, %s653
      %s656 = sphi 0, %s655
      %s670 = sphi 0, %s656
      %s674 = sphi 0, %s674
      %s676 = sphi 0, %s674
      %s677 = sphi 0, %s676
      %s691 = sphi 0, %s677
      %s695 = sphi 0, %s695
      %s697 = sphi 0, %s695
      %s698 = sphi 0, %s697
      %s712 = sphi 0, %s698
      %s716 = sphi 0, %s716
      %s718 = sphi 0, %s716
      %s719 = sphi 0, %s718
      %s733 = sphi 0, %s719
      %s737 = sphi 0, %s737
      %s739 = sphi 0, %s737
      %s740 = sphi 0, %s739
      %s754 = sphi 0, %s740
      %s758 = sphi 0, %s758
      %s760 = sphi 0, %s758
      %s761 = sphi 0, %s760
      %s775 = sphi 0, %s761
      %s779 = sphi 0, %s779
      %s781 = sphi 0, %s779
      %s782 = sphi 0, %s781
      %s796 = sphi 0, %s782
      %s800 = sphi 0, %s800
      %s802 = sphi 0, %s800
      %s803 = sphi 0, %s802
      %s817 = sphi 0, %s803
      %s821 = sphi 0, %s821
      %s823 = sphi 0, %s821
      %s824 = sphi 0, %s823
      %s838 = sphi 0, %s824
      %s842 = sphi 0, %s842
      %s844 = sphi 0, %s842
      %s845 = sphi 0, %s844
      %s859 = sphi 0, %s845
      %s863 = sphi 0, %s863
      %s865 = sphi 0, %s863
      %s866 = sphi 0, %s865
      %s880 = sphi 0, %s866
      %s884 = sphi 0, %s884
      %s886 = sphi 0, %s884
      %s887 = sphi 0, %s886
      %s901 = sphi 0, %s887
      %s905 = sphi 0, %s905
      %s907 = sphi 0, %s905
      %s908 = sphi 0, %s907
      %s922 = sphi 0, %s908
      %s926 = sphi 0, %s926
      %s928 = sphi 0, %s926
      %s929 = sphi 0, %s928
      %s943 = sphi 0, %s929
      %s947 = sphi 0, %s947
      %s949 = sphi 0, %s947
      %s950 = sphi 0, %s949
      %s964 = sphi 0, %s950
      %s968 = sphi 0, %s968
      %s970 = sphi 0, %s968
      %s971 = sphi 0, %s970
      %s985 = sphi 0, %s971
      %s989 = sphi 0, %s989
      %s991 = sphi 0, %s989
      %s992 = sphi 0, %s991
      %s1006 = sphi 0, %s992
      %s1010 = sphi 0, %s1010
      %s1012 = sphi 0, %s1010
      %s1013 = sphi 0, %s1012
      %s1027 = sphi 0, %s1013
      %s1031 = sphi 0, %s1031
      %s1033 = sphi 0, %s1031
      %s1034 = sphi 0, %s1033
      %s1048 = sphi 0, %s1034
      %s1052 = sphi 0, %s1052
      %s1054 = sphi 0, %s1052
      %s1055 = sphi 0, %s1054
      %s1069 = sphi 0, %s1055
      %s1073 = sphi 0, %s1073
      %s1075 = sphi 0, %s1073
      %s1076 = sphi 0, %s1075
      %s1090 = sphi 0, %s1076
      %s1094 = sphi 0, %s1094
      %s1096 = sphi 0, %s1094
      %s1097 = sphi 0, %s1096
      %s1111 = sphi 0, %s1097
      %s1115 = sphi 0, %s1115
      %s1117 = sphi 0, %s1115
      %s1118 = sphi 0, %s1117
      %s1132 = sphi 0, %s1118
      %s1136 = sphi 0, %s1136
      %s1138 = sphi 0, %s1136
      %s1139 = sphi 0, %s1138
      %s1153 = sphi 0, %s1139
      %s1157 = sphi 0, %s1157
      %s1159 = sphi 0, %s1157
      %s1160 = sphi 0, %s1159
      %s1174 = sphi 0, %s1160
      %s1178 = sphi 0, %s1178
      %s1180 = sphi 0, %s1178
      %s1181 = sphi 0, %s1180
      %s1195 = sphi 0, %s1181
      %s1199 = sphi 0, %s1199
      %s1201 = sphi 0, %s1199
      %s1202 = sphi 0, %s1201
      %s1216 = sphi 0, %s1202
      %s1220 = sphi 0, %s1220
      %s1222 = sphi 0, %s1220
      %s1223 = sphi 0, %s1222
      %s1237 = sphi 0, %s1223
      %s1241 = sphi 0, %s1241
      %s1243 = sphi 0, %s1241
      %s1244 = sphi 0, %s1243
      %s1258 = sphi 0, %s1244
      %s1262 = sphi 0, %s1262
      %s1264 = sphi 0, %s1262
      %s1265 = sphi 0, %s1264
      %s1279 = sphi 0, %s1265
      %s1283 = sphi 0, %s1283
      %s1285 = sphi 0, %s1283
      %s1286 = sphi 0, %s1285
      %s1300 = sphi 0, %s1286
      %s1304 = sphi 0, %s1304
      %s1306 = sphi 0, %s1304
      %s1307 = sphi 0, %s1306
      %s1321 = sphi 0, %s1307
      %s1325 = sphi 0, %s1325
      %s1327 = sphi 0, %s1325
      %s1328 = sphi 0, %s1327
      %s1342 = sphi 0, %s1328
      %s1348 = sphi 0, %s1350
      %s1351 = sphi 0, %s1348
      %s1352 = sphi 0, %s1351
      %s1368 = sphi 0, %s1352
    $region4: #{forward.1} parent=1 // loop_header_branch
      %139 = sbr.rel (%p137) target = $region8
    $region5: #{forward.1} parent=1 // loop_body
      %s141 = ssub.s32 %s136, 1
      %s142 = ssub.s32 %s136, 2
      %s143 = sadd.s32 %s136, 1
      %s144 = ssub.s32 %s136, %s143
      %p145 = scmp.eq.s32.totalorder %s144, 0
      %s147 = sadd.s32 %s146, 1
      %s148 = scalar_select %p145, %s146, %s147
      %p151 = pneg %p145
      %p152 = scmp.eq.s32.totalorder %s136, 1
      %p153 = por %p151, %p152
      %p154 = scmp.ne.s32.totalorder %s146, %s149
      %p155 = scmp.eq.s32.totalorder %s136, 0
      %p156 = por %p154, %p155
      %p157 = scmp.ne.s32.totalorder %s146, %s149
      %p158 = scmp.eq.s32.totalorder %s141, 1
      %p159 = por %p157, %p158
      %p160 = scmp.ne.s32.totalorder %s149, %s150
      %p161 = scmp.eq.s32.totalorder %s141, 0
      %p162 = por %p160, %p161
      %p163 = scmp.ne.s32.totalorder %s149, %s150
      %p164 = scmp.eq.s32.totalorder %s142, 1
      %p165 = por %p163, %p164
      %p167 = scmp.ne.s32.totalorder %s150, %s166
      %p168 = scmp.eq.s32.totalorder %s142, 0
      %p169 = por %p167, %p168
      %s171 = sadd.s32 %s170, 1
      %p174 = scmp.eq.s32.totalorder %s136, 1
      %p175 = scmp.ne.s32.totalorder %s170, %s172
      %p176 = scmp.eq.s32.totalorder %s136, 0
      %p177 = por %p175, %p176
      %p178 = scmp.ne.s32.totalorder %s170, %s172
      %p179 = scmp.eq.s32.totalorder %s141, 1
      %p180 = por %p178, %p179
      %p181 = scmp.ne.s32.totalorder %s172, %s173
      %p182 = scmp.eq.s32.totalorder %s141, 0
      %p183 = por %p181, %p182
      %p184 = scmp.ne.s32.totalorder %s172, %s173
      %p185 = scmp.eq.s32.totalorder %s142, 1
      %p186 = por %p184, %p185
      %p188 = scmp.ne.s32.totalorder %s173, %s187
      %p189 = scmp.eq.s32.totalorder %s142, 0
      %p190 = por %p188, %p189
      %s192 = sadd.s32 %s191, 1
      %p195 = scmp.eq.s32.totalorder %s136, 1
      %p196 = scmp.ne.s32.totalorder %s191, %s193
      %p197 = scmp.eq.s32.totalorder %s136, 0
      %p198 = por %p196, %p197
      %p199 = scmp.ne.s32.totalorder %s191, %s193
      %p200 = scmp.eq.s32.totalorder %s141, 1
      %p201 = por %p199, %p200
      %p202 = scmp.ne.s32.totalorder %s193, %s194
      %p203 = scmp.eq.s32.totalorder %s141, 0
      %p204 = por %p202, %p203
      %p205 = scmp.ne.s32.totalorder %s193, %s194
      %p206 = scmp.eq.s32.totalorder %s142, 1
      %p207 = por %p205, %p206
      %p209 = scmp.ne.s32.totalorder %s194, %s208
      %p210 = scmp.eq.s32.totalorder %s142, 0
      %p211 = por %p209, %p210
      %s213 = sadd.s32 %s212, 1
      %p216 = scmp.eq.s32.totalorder %s136, 1
      %p217 = scmp.ne.s32.totalorder %s212, %s214
      %p218 = scmp.eq.s32.totalorder %s136, 0
      %p219 = por %p217, %p218
      %p220 = scmp.ne.s32.totalorder %s212, %s214
      %p221 = scmp.eq.s32.totalorder %s141, 1
      %p222 = por %p220, %p221
      %p223 = scmp.ne.s32.totalorder %s214, %s215
      %p224 = scmp.eq.s32.totalorder %s141, 0
      %p225 = por %p223, %p224
      %p226 = scmp.ne.s32.totalorder %s214, %s215
      %p227 = scmp.eq.s32.totalorder %s142, 1
      %p228 = por %p226, %p227
      %p230 = scmp.ne.s32.totalorder %s215, %s229
      %p231 = scmp.eq.s32.totalorder %s142, 0
      %p232 = por %p230, %p231
      %s234 = sadd.s32 %s233, 1
      %p237 = scmp.eq.s32.totalorder %s136, 1
      %p238 = scmp.ne.s32.totalorder %s233, %s235
      %p239 = scmp.eq.s32.totalorder %s136, 0
      %p240 = por %p238, %p239
      %p241 = scmp.ne.s32.totalorder %s233, %s235
      %p242 = scmp.eq.s32.totalorder %s141, 1
      %p243 = por %p241, %p242
      %p244 = scmp.ne.s32.totalorder %s235, %s236
      %p245 = scmp.eq.s32.totalorder %s141, 0
      %p246 = por %p244, %p245
      %p247 = scmp.ne.s32.totalorder %s235, %s236
      %p248 = scmp.eq.s32.totalorder %s142, 1
      %p249 = por %p247, %p248
      %p251 = scmp.ne.s32.totalorder %s236, %s250
      %p252 = scmp.eq.s32.totalorder %s142, 0
      %p253 = por %p251, %p252
      %s255 = sadd.s32 %s254, 1
      %p258 = scmp.eq.s32.totalorder %s136, 1
      %p259 = scmp.ne.s32.totalorder %s254, %s256
      %p260 = scmp.eq.s32.totalorder %s136, 0
      %p261 = por %p259, %p260
      %p262 = scmp.ne.s32.totalorder %s254, %s256
      %p263 = scmp.eq.s32.totalorder %s141, 1
      %p264 = por %p262, %p263
      %p265 = scmp.ne.s32.totalorder %s256, %s257
      %p266 = scmp.eq.s32.totalorder %s141, 0
      %p267 = por %p265, %p266
      %p268 = scmp.ne.s32.totalorder %s256, %s257
      %p269 = scmp.eq.s32.totalorder %s142, 1
      %p270 = por %p268, %p269
      %p272 = scmp.ne.s32.totalorder %s257, %s271
      %p273 = scmp.eq.s32.totalorder %s142, 0
      %p274 = por %p272, %p273
      %s276 = sadd.s32 %s275, 1
      %p279 = scmp.eq.s32.totalorder %s136, 1
      %p280 = scmp.ne.s32.totalorder %s275, %s277
      %p281 = scmp.eq.s32.totalorder %s136, 0
      %p282 = por %p280, %p281
      %p283 = scmp.ne.s32.totalorder %s275, %s277
      %p284 = scmp.eq.s32.totalorder %s141, 1
      %p285 = por %p283, %p284
      %p286 = scmp.ne.s32.totalorder %s277, %s278
      %p287 = scmp.eq.s32.totalorder %s141, 0
      %p288 = por %p286, %p287
      %p289 = scmp.ne.s32.totalorder %s277, %s278
      %p290 = scmp.eq.s32.totalorder %s142, 1
      %p291 = por %p289, %p290
      %p293 = scmp.ne.s32.totalorder %s278, %s292
      %p294 = scmp.eq.s32.totalorder %s142, 0
      %p295 = por %p293, %p294
      %s297 = sadd.s32 %s296, 1
      %p300 = scmp.eq.s32.totalorder %s136, 1
      %p301 = scmp.ne.s32.totalorder %s296, %s298
      %p302 = scmp.eq.s32.totalorder %s136, 0
      %p303 = por %p301, %p302
      %p304 = scmp.ne.s32.totalorder %s296, %s298
      %p305 = scmp.eq.s32.totalorder %s141, 1
      %p306 = por %p304, %p305
      %p307 = scmp.ne.s32.totalorder %s298, %s299
      %p308 = scmp.eq.s32.totalorder %s141, 0
      %p309 = por %p307, %p308
      %p310 = scmp.ne.s32.totalorder %s298, %s299
      %p311 = scmp.eq.s32.totalorder %s142, 1
      %p312 = por %p310, %p311
      %p314 = scmp.ne.s32.totalorder %s299, %s313
      %p315 = scmp.eq.s32.totalorder %s142, 0
      %p316 = por %p314, %p315
      %s318 = sadd.s32 %s317, 1
      %p321 = scmp.eq.s32.totalorder %s136, 1
      %p322 = scmp.ne.s32.totalorder %s317, %s319
      %p323 = scmp.eq.s32.totalorder %s136, 0
      %p324 = por %p322, %p323
      %p325 = scmp.ne.s32.totalorder %s317, %s319
      %p326 = scmp.eq.s32.totalorder %s141, 1
      %p327 = por %p325, %p326
      %p328 = scmp.ne.s32.totalorder %s319, %s320
      %p329 = scmp.eq.s32.totalorder %s141, 0
      %p330 = por %p328, %p329
      %p331 = scmp.ne.s32.totalorder %s319, %s320
      %p332 = scmp.eq.s32.totalorder %s142, 1
      %p333 = por %p331, %p332
      %p335 = scmp.ne.s32.totalorder %s320, %s334
      %p336 = scmp.eq.s32.totalorder %s142, 0
      %p337 = por %p335, %p336
      %s339 = sadd.s32 %s338, 1
      %p342 = scmp.eq.s32.totalorder %s136, 1
      %p343 = scmp.ne.s32.totalorder %s338, %s340
      %p344 = scmp.eq.s32.totalorder %s136, 0
      %p345 = por %p343, %p344
      %p346 = scmp.ne.s32.totalorder %s338, %s340
      %p347 = scmp.eq.s32.totalorder %s141, 1
      %p348 = por %p346, %p347
      %p349 = scmp.ne.s32.totalorder %s340, %s341
      %p350 = scmp.eq.s32.totalorder %s141, 0
      %p351 = por %p349, %p350
      %p352 = scmp.ne.s32.totalorder %s340, %s341
      %p353 = scmp.eq.s32.totalorder %s142, 1
      %p354 = por %p352, %p353
      %p356 = scmp.ne.s32.totalorder %s341, %s355
      %p357 = scmp.eq.s32.totalorder %s142, 0
      %p358 = por %p356, %p357
      %s360 = sadd.s32 %s359, 1
      %p363 = scmp.eq.s32.totalorder %s136, 1
      %p364 = scmp.ne.s32.totalorder %s359, %s361
      %p365 = scmp.eq.s32.totalorder %s136, 0
      %p366 = por %p364, %p365
      %p367 = scmp.ne.s32.totalorder %s359, %s361
      %p368 = scmp.eq.s32.totalorder %s141, 1
      %p369 = por %p367, %p368
      %p370 = scmp.ne.s32.totalorder %s361, %s362
      %p371 = scmp.eq.s32.totalorder %s141, 0
      %p372 = por %p370, %p371
      %p373 = scmp.ne.s32.totalorder %s361, %s362
      %p374 = scmp.eq.s32.totalorder %s142, 1
      %p375 = por %p373, %p374
      %p377 = scmp.ne.s32.totalorder %s362, %s376
      %p378 = scmp.eq.s32.totalorder %s142, 0
      %p379 = por %p377, %p378
      %s381 = sadd.s32 %s380, 1
      %p384 = scmp.eq.s32.totalorder %s136, 1
      %p385 = scmp.ne.s32.totalorder %s380, %s382
      %p386 = scmp.eq.s32.totalorder %s136, 0
      %p387 = por %p385, %p386
      %p388 = scmp.ne.s32.totalorder %s380, %s382
      %p389 = scmp.eq.s32.totalorder %s141, 1
      %p390 = por %p388, %p389
      %p391 = scmp.ne.s32.totalorder %s382, %s383
      %p392 = scmp.eq.s32.totalorder %s141, 0
      %p393 = por %p391, %p392
      %p394 = scmp.ne.s32.totalorder %s382, %s383
      %p395 = scmp.eq.s32.totalorder %s142, 1
      %p396 = por %p394, %p395
      %p398 = scmp.ne.s32.totalorder %s383, %s397
      %p399 = scmp.eq.s32.totalorder %s142, 0
      %p400 = por %p398, %p399
      %s402 = sadd.s32 %s401, 1
      %p405 = scmp.eq.s32.totalorder %s136, 1
      %p406 = scmp.ne.s32.totalorder %s401, %s403
      %p407 = scmp.eq.s32.totalorder %s136, 0
      %p408 = por %p406, %p407
      %p409 = scmp.ne.s32.totalorder %s401, %s403
      %p410 = scmp.eq.s32.totalorder %s141, 1
      %p411 = por %p409, %p410
      %p412 = scmp.ne.s32.totalorder %s403, %s404
      %p413 = scmp.eq.s32.totalorder %s141, 0
      %p414 = por %p412, %p413
      %p415 = scmp.ne.s32.totalorder %s403, %s404
      %p416 = scmp.eq.s32.totalorder %s142, 1
      %p417 = por %p415, %p416
      %p419 = scmp.ne.s32.totalorder %s404, %s418
      %p420 = scmp.eq.s32.totalorder %s142, 0
      %p421 = por %p419, %p420
      %s423 = sadd.s32 %s422, 1
      %p426 = scmp.eq.s32.totalorder %s136, 1
      %p427 = scmp.ne.s32.totalorder %s422, %s424
      %p428 = scmp.eq.s32.totalorder %s136, 0
      %p429 = por %p427, %p428
      %p430 = scmp.ne.s32.totalorder %s422, %s424
      %p431 = scmp.eq.s32.totalorder %s141, 1
      %p432 = por %p430, %p431
      %p433 = scmp.ne.s32.totalorder %s424, %s425
      %p434 = scmp.eq.s32.totalorder %s141, 0
      %p435 = por %p433, %p434
      %p436 = scmp.ne.s32.totalorder %s424, %s425
      %p437 = scmp.eq.s32.totalorder %s142, 1
      %p438 = por %p436, %p437
      %p440 = scmp.ne.s32.totalorder %s425, %s439
      %p441 = scmp.eq.s32.totalorder %s142, 0
      %p442 = por %p440, %p441
      %s444 = sadd.s32 %s443, 1
      %p447 = scmp.eq.s32.totalorder %s136, 1
      %p448 = scmp.ne.s32.totalorder %s443, %s445
      %p449 = scmp.eq.s32.totalorder %s136, 0
      %p450 = por %p448, %p449
      %p451 = scmp.ne.s32.totalorder %s443, %s445
      %p452 = scmp.eq.s32.totalorder %s141, 1
      %p453 = por %p451, %p452
      %p454 = scmp.ne.s32.totalorder %s445, %s446
      %p455 = scmp.eq.s32.totalorder %s141, 0
      %p456 = por %p454, %p455
      %p457 = scmp.ne.s32.totalorder %s445, %s446
      %p458 = scmp.eq.s32.totalorder %s142, 1
      %p459 = por %p457, %p458
      %p461 = scmp.ne.s32.totalorder %s446, %s460
      %p462 = scmp.eq.s32.totalorder %s142, 0
      %p463 = por %p461, %p462
      %s465 = sadd.s32 %s464, 1
      %p468 = scmp.eq.s32.totalorder %s136, 1
      %p469 = scmp.ne.s32.totalorder %s464, %s466
      %p470 = scmp.eq.s32.totalorder %s136, 0
      %p471 = por %p469, %p470
      %p472 = scmp.ne.s32.totalorder %s464, %s466
      %p473 = scmp.eq.s32.totalorder %s141, 1
      %p474 = por %p472, %p473
      %p475 = scmp.ne.s32.totalorder %s466, %s467
      %p476 = scmp.eq.s32.totalorder %s141, 0
      %p477 = por %p475, %p476
      %p478 = scmp.ne.s32.totalorder %s466, %s467
      %p479 = scmp.eq.s32.totalorder %s142, 1
      %p480 = por %p478, %p479
      %p482 = scmp.ne.s32.totalorder %s467, %s481
      %p483 = scmp.eq.s32.totalorder %s142, 0
      %p484 = por %p482, %p483
      %s486 = sadd.s32 %s485, 1
      %p489 = scmp.eq.s32.totalorder %s136, 1
      %p490 = scmp.ne.s32.totalorder %s485, %s487
      %p491 = scmp.eq.s32.totalorder %s136, 0
      %p492 = por %p490, %p491
      %p493 = scmp.ne.s32.totalorder %s485, %s487
      %p494 = scmp.eq.s32.totalorder %s141, 1
      %p495 = por %p493, %p494
      %p496 = scmp.ne.s32.totalorder %s487, %s488
      %p497 = scmp.eq.s32.totalorder %s141, 0
      %p498 = por %p496, %p497
      %p499 = scmp.ne.s32.totalorder %s487, %s488
      %p500 = scmp.eq.s32.totalorder %s142, 1
      %p501 = por %p499, %p500
      %p503 = scmp.ne.s32.totalorder %s488, %s502
      %p504 = scmp.eq.s32.totalorder %s142, 0
      %p505 = por %p503, %p504
      %s507 = sadd.s32 %s506, 1
      %p510 = scmp.eq.s32.totalorder %s136, 1
      %p511 = scmp.ne.s32.totalorder %s506, %s508
      %p512 = scmp.eq.s32.totalorder %s136, 0
      %p513 = por %p511, %p512
      %p514 = scmp.ne.s32.totalorder %s506, %s508
      %p515 = scmp.eq.s32.totalorder %s141, 1
      %p516 = por %p514, %p515
      %p517 = scmp.ne.s32.totalorder %s508, %s509
      %p518 = scmp.eq.s32.totalorder %s141, 0
      %p519 = por %p517, %p518
      %p520 = scmp.ne.s32.totalorder %s508, %s509
      %p521 = scmp.eq.s32.totalorder %s142, 1
      %p522 = por %p520, %p521
      %p524 = scmp.ne.s32.totalorder %s509, %s523
      %p525 = scmp.eq.s32.totalorder %s142, 0
      %p526 = por %p524, %p525
      %s528 = sadd.s32 %s527, 1
      %p531 = scmp.eq.s32.totalorder %s136, 1
      %p532 = scmp.ne.s32.totalorder %s527, %s529
      %p533 = scmp.eq.s32.totalorder %s136, 0
      %p534 = por %p532, %p533
      %p535 = scmp.ne.s32.totalorder %s527, %s529
      %p536 = scmp.eq.s32.totalorder %s141, 1
      %p537 = por %p535, %p536
      %p538 = scmp.ne.s32.totalorder %s529, %s530
      %p539 = scmp.eq.s32.totalorder %s141, 0
      %p540 = por %p538, %p539
      %p541 = scmp.ne.s32.totalorder %s529, %s530
      %p542 = scmp.eq.s32.totalorder %s142, 1
      %p543 = por %p541, %p542
      %p545 = scmp.ne.s32.totalorder %s530, %s544
      %p546 = scmp.eq.s32.totalorder %s142, 0
      %p547 = por %p545, %p546
      %s549 = sadd.s32 %s548, 1
      %p552 = scmp.eq.s32.totalorder %s136, 1
      %p553 = scmp.ne.s32.totalorder %s548, %s550
      %p554 = scmp.eq.s32.totalorder %s136, 0
      %p555 = por %p553, %p554
      %p556 = scmp.ne.s32.totalorder %s548, %s550
      %p557 = scmp.eq.s32.totalorder %s141, 1
      %p558 = por %p556, %p557
      %p559 = scmp.ne.s32.totalorder %s550, %s551
      %p560 = scmp.eq.s32.totalorder %s141, 0
      %p561 = por %p559, %p560
      %p562 = scmp.ne.s32.totalorder %s550, %s551
      %p563 = scmp.eq.s32.totalorder %s142, 1
      %p564 = por %p562, %p563
      %p566 = scmp.ne.s32.totalorder %s551, %s565
      %p567 = scmp.eq.s32.totalorder %s142, 0
      %p568 = por %p566, %p567
      %s570 = sadd.s32 %s569, 1
      %p573 = scmp.eq.s32.totalorder %s136, 1
      %p574 = scmp.ne.s32.totalorder %s569, %s571
      %p575 = scmp.eq.s32.totalorder %s136, 0
      %p576 = por %p574, %p575
      %p577 = scmp.ne.s32.totalorder %s569, %s571
      %p578 = scmp.eq.s32.totalorder %s141, 1
      %p579 = por %p577, %p578
      %p580 = scmp.ne.s32.totalorder %s571, %s572
      %p581 = scmp.eq.s32.totalorder %s141, 0
      %p582 = por %p580, %p581
      %p583 = scmp.ne.s32.totalorder %s571, %s572
      %p584 = scmp.eq.s32.totalorder %s142, 1
      %p585 = por %p583, %p584
      %p587 = scmp.ne.s32.totalorder %s572, %s586
      %p588 = scmp.eq.s32.totalorder %s142, 0
      %p589 = por %p587, %p588
      %s591 = sadd.s32 %s590, 1
      %p594 = scmp.eq.s32.totalorder %s136, 1
      %p595 = scmp.ne.s32.totalorder %s590, %s592
      %p596 = scmp.eq.s32.totalorder %s136, 0
      %p597 = por %p595, %p596
      %p598 = scmp.ne.s32.totalorder %s590, %s592
      %p599 = scmp.eq.s32.totalorder %s141, 1
      %p600 = por %p598, %p599
      %p601 = scmp.ne.s32.totalorder %s592, %s593
      %p602 = scmp.eq.s32.totalorder %s141, 0
      %p603 = por %p601, %p602
      %p604 = scmp.ne.s32.totalorder %s592, %s593
      %p605 = scmp.eq.s32.totalorder %s142, 1
      %p606 = por %p604, %p605
      %p608 = scmp.ne.s32.totalorder %s593, %s607
      %p609 = scmp.eq.s32.totalorder %s142, 0
      %p610 = por %p608, %p609
      %s612 = sadd.s32 %s611, 1
      %p615 = scmp.eq.s32.totalorder %s136, 1
      %p616 = scmp.ne.s32.totalorder %s611, %s613
      %p617 = scmp.eq.s32.totalorder %s136, 0
      %p618 = por %p616, %p617
      %p619 = scmp.ne.s32.totalorder %s611, %s613
      %p620 = scmp.eq.s32.totalorder %s141, 1
      %p621 = por %p619, %p620
      %p622 = scmp.ne.s32.totalorder %s613, %s614
      %p623 = scmp.eq.s32.totalorder %s141, 0
      %p624 = por %p622, %p623
      %p625 = scmp.ne.s32.totalorder %s613, %s614
      %p626 = scmp.eq.s32.totalorder %s142, 1
      %p627 = por %p625, %p626
      %p629 = scmp.ne.s32.totalorder %s614, %s628
      %p630 = scmp.eq.s32.totalorder %s142, 0
      %p631 = por %p629, %p630
      %s633 = sadd.s32 %s632, 1
      %p636 = scmp.eq.s32.totalorder %s136, 1
      %p637 = scmp.ne.s32.totalorder %s632, %s634
      %p638 = scmp.eq.s32.totalorder %s136, 0
      %p639 = por %p637, %p638
      %p640 = scmp.ne.s32.totalorder %s632, %s634
      %p641 = scmp.eq.s32.totalorder %s141, 1
      %p642 = por %p640, %p641
      %p643 = scmp.ne.s32.totalorder %s634, %s635
      %p644 = scmp.eq.s32.totalorder %s141, 0
      %p645 = por %p643, %p644
      %p646 = scmp.ne.s32.totalorder %s634, %s635
      %p647 = scmp.eq.s32.totalorder %s142, 1
      %p648 = por %p646, %p647
      %p650 = scmp.ne.s32.totalorder %s635, %s649
      %p651 = scmp.eq.s32.totalorder %s142, 0
      %p652 = por %p650, %p651
      %s654 = sadd.s32 %s653, 1
      %p657 = scmp.eq.s32.totalorder %s136, 1
      %p658 = scmp.ne.s32.totalorder %s653, %s655
      %p659 = scmp.eq.s32.totalorder %s136, 0
      %p660 = por %p658, %p659
      %p661 = scmp.ne.s32.totalorder %s653, %s655
      %p662 = scmp.eq.s32.totalorder %s141, 1
      %p663 = por %p661, %p662
      %p664 = scmp.ne.s32.totalorder %s655, %s656
      %p665 = scmp.eq.s32.totalorder %s141, 0
      %p666 = por %p664, %p665
      %p667 = scmp.ne.s32.totalorder %s655, %s656
      %p668 = scmp.eq.s32.totalorder %s142, 1
      %p669 = por %p667, %p668
      %p671 = scmp.ne.s32.totalorder %s656, %s670
      %p672 = scmp.eq.s32.totalorder %s142, 0
      %p673 = por %p671, %p672
      %s675 = sadd.s32 %s674, 1
      %p678 = scmp.eq.s32.totalorder %s136, 1
      %p679 = scmp.ne.s32.totalorder %s674, %s676
      %p680 = scmp.eq.s32.totalorder %s136, 0
      %p681 = por %p679, %p680
      %p682 = scmp.ne.s32.totalorder %s674, %s676
      %p683 = scmp.eq.s32.totalorder %s141, 1
      %p684 = por %p682, %p683
      %p685 = scmp.ne.s32.totalorder %s676, %s677
      %p686 = scmp.eq.s32.totalorder %s141, 0
      %p687 = por %p685, %p686
      %p688 = scmp.ne.s32.totalorder %s676, %s677
      %p689 = scmp.eq.s32.totalorder %s142, 1
      %p690 = por %p688, %p689
      %p692 = scmp.ne.s32.totalorder %s677, %s691
      %p693 = scmp.eq.s32.totalorder %s142, 0
      %p694 = por %p692, %p693
      %s696 = sadd.s32 %s695, 1
      %p699 = scmp.eq.s32.totalorder %s136, 1
      %p700 = scmp.ne.s32.totalorder %s695, %s697
      %p701 = scmp.eq.s32.totalorder %s136, 0
      %p702 = por %p700, %p701
      %p703 = scmp.ne.s32.totalorder %s695, %s697
      %p704 = scmp.eq.s32.totalorder %s141, 1
      %p705 = por %p703, %p704
      %p706 = scmp.ne.s32.totalorder %s697, %s698
      %p707 = scmp.eq.s32.totalorder %s141, 0
      %p708 = por %p706, %p707
      %p709 = scmp.ne.s32.totalorder %s697, %s698
      %p710 = scmp.eq.s32.totalorder %s142, 1
      %p711 = por %p709, %p710
      %p713 = scmp.ne.s32.totalorder %s698, %s712
      %p714 = scmp.eq.s32.totalorder %s142, 0
      %p715 = por %p713, %p714
      %s717 = sadd.s32 %s716, 1
      %p720 = scmp.eq.s32.totalorder %s136, 1
      %p721 = scmp.ne.s32.totalorder %s716, %s718
      %p722 = scmp.eq.s32.totalorder %s136, 0
      %p723 = por %p721, %p722
      %p724 = scmp.ne.s32.totalorder %s716, %s718
      %p725 = scmp.eq.s32.totalorder %s141, 1
      %p726 = por %p724, %p725
      %p727 = scmp.ne.s32.totalorder %s718, %s719
      %p728 = scmp.eq.s32.totalorder %s141, 0
      %p729 = por %p727, %p728
      %p730 = scmp.ne.s32.totalorder %s718, %s719
      %p731 = scmp.eq.s32.totalorder %s142, 1
      %p732 = por %p730, %p731
      %p734 = scmp.ne.s32.totalorder %s719, %s733
      %p735 = scmp.eq.s32.totalorder %s142, 0
      %p736 = por %p734, %p735
      %s738 = sadd.s32 %s737, 1
      %p741 = scmp.eq.s32.totalorder %s136, 1
      %p742 = scmp.ne.s32.totalorder %s737, %s739
      %p743 = scmp.eq.s32.totalorder %s136, 0
      %p744 = por %p742, %p743
      %p745 = scmp.ne.s32.totalorder %s737, %s739
      %p746 = scmp.eq.s32.totalorder %s141, 1
      %p747 = por %p745, %p746
      %p748 = scmp.ne.s32.totalorder %s739, %s740
      %p749 = scmp.eq.s32.totalorder %s141, 0
      %p750 = por %p748, %p749
      %p751 = scmp.ne.s32.totalorder %s739, %s740
      %p752 = scmp.eq.s32.totalorder %s142, 1
      %p753 = por %p751, %p752
      %p755 = scmp.ne.s32.totalorder %s740, %s754
      %p756 = scmp.eq.s32.totalorder %s142, 0
      %p757 = por %p755, %p756
      %s759 = sadd.s32 %s758, 1
      %p762 = scmp.eq.s32.totalorder %s136, 1
      %p763 = scmp.ne.s32.totalorder %s758, %s760
      %p764 = scmp.eq.s32.totalorder %s136, 0
      %p765 = por %p763, %p764
      %p766 = scmp.ne.s32.totalorder %s758, %s760
      %p767 = scmp.eq.s32.totalorder %s141, 1
      %p768 = por %p766, %p767
      %p769 = scmp.ne.s32.totalorder %s760, %s761
      %p770 = scmp.eq.s32.totalorder %s141, 0
      %p771 = por %p769, %p770
      %p772 = scmp.ne.s32.totalorder %s760, %s761
      %p773 = scmp.eq.s32.totalorder %s142, 1
      %p774 = por %p772, %p773
      %p776 = scmp.ne.s32.totalorder %s761, %s775
      %p777 = scmp.eq.s32.totalorder %s142, 0
      %p778 = por %p776, %p777
      %s780 = sadd.s32 %s779, 1
      %p783 = scmp.eq.s32.totalorder %s136, 1
      %p784 = scmp.ne.s32.totalorder %s779, %s781
      %p785 = scmp.eq.s32.totalorder %s136, 0
      %p786 = por %p784, %p785
      %p787 = scmp.ne.s32.totalorder %s779, %s781
      %p788 = scmp.eq.s32.totalorder %s141, 1
      %p789 = por %p787, %p788
      %p790 = scmp.ne.s32.totalorder %s781, %s782
      %p791 = scmp.eq.s32.totalorder %s141, 0
      %p792 = por %p790, %p791
      %p793 = scmp.ne.s32.totalorder %s781, %s782
      %p794 = scmp.eq.s32.totalorder %s142, 1
      %p795 = por %p793, %p794
      %p797 = scmp.ne.s32.totalorder %s782, %s796
      %p798 = scmp.eq.s32.totalorder %s142, 0
      %p799 = por %p797, %p798
      %s801 = sadd.s32 %s800, 1
      %p804 = scmp.eq.s32.totalorder %s136, 1
      %p805 = scmp.ne.s32.totalorder %s800, %s802
      %p806 = scmp.eq.s32.totalorder %s136, 0
      %p807 = por %p805, %p806
      %p808 = scmp.ne.s32.totalorder %s800, %s802
      %p809 = scmp.eq.s32.totalorder %s141, 1
      %p810 = por %p808, %p809
      %p811 = scmp.ne.s32.totalorder %s802, %s803
      %p812 = scmp.eq.s32.totalorder %s141, 0
      %p813 = por %p811, %p812
      %p814 = scmp.ne.s32.totalorder %s802, %s803
      %p815 = scmp.eq.s32.totalorder %s142, 1
      %p816 = por %p814, %p815
      %p818 = scmp.ne.s32.totalorder %s803, %s817
      %p819 = scmp.eq.s32.totalorder %s142, 0
      %p820 = por %p818, %p819
      %s822 = sadd.s32 %s821, 1
      %p825 = scmp.eq.s32.totalorder %s136, 1
      %p826 = scmp.ne.s32.totalorder %s821, %s823
      %p827 = scmp.eq.s32.totalorder %s136, 0
      %p828 = por %p826, %p827
      %p829 = scmp.ne.s32.totalorder %s821, %s823
      %p830 = scmp.eq.s32.totalorder %s141, 1
      %p831 = por %p829, %p830
      %p832 = scmp.ne.s32.totalorder %s823, %s824
      %p833 = scmp.eq.s32.totalorder %s141, 0
      %p834 = por %p832, %p833
      %p835 = scmp.ne.s32.totalorder %s823, %s824
      %p836 = scmp.eq.s32.totalorder %s142, 1
      %p837 = por %p835, %p836
      %p839 = scmp.ne.s32.totalorder %s824, %s838
      %p840 = scmp.eq.s32.totalorder %s142, 0
      %p841 = por %p839, %p840
      %s843 = sadd.s32 %s842, 1
      %p846 = scmp.eq.s32.totalorder %s136, 1
      %p847 = scmp.ne.s32.totalorder %s842, %s844
      %p848 = scmp.eq.s32.totalorder %s136, 0
      %p849 = por %p847, %p848
      %p850 = scmp.ne.s32.totalorder %s842, %s844
      %p851 = scmp.eq.s32.totalorder %s141, 1
      %p852 = por %p850, %p851
      %p853 = scmp.ne.s32.totalorder %s844, %s845
      %p854 = scmp.eq.s32.totalorder %s141, 0
      %p855 = por %p853, %p854
      %p856 = scmp.ne.s32.totalorder %s844, %s845
      %p857 = scmp.eq.s32.totalorder %s142, 1
      %p858 = por %p856, %p857
      %p860 = scmp.ne.s32.totalorder %s845, %s859
      %p861 = scmp.eq.s32.totalorder %s142, 0
      %p862 = por %p860, %p861
      %s864 = sadd.s32 %s863, 1
      %p867 = scmp.eq.s32.totalorder %s136, 1
      %p868 = scmp.ne.s32.totalorder %s863, %s865
      %p869 = scmp.eq.s32.totalorder %s136, 0
      %p870 = por %p868, %p869
      %p871 = scmp.ne.s32.totalorder %s863, %s865
      %p872 = scmp.eq.s32.totalorder %s141, 1
      %p873 = por %p871, %p872
      %p874 = scmp.ne.s32.totalorder %s865, %s866
      %p875 = scmp.eq.s32.totalorder %s141, 0
      %p876 = por %p874, %p875
      %p877 = scmp.ne.s32.totalorder %s865, %s866
      %p878 = scmp.eq.s32.totalorder %s142, 1
      %p879 = por %p877, %p878
      %p881 = scmp.ne.s32.totalorder %s866, %s880
      %p882 = scmp.eq.s32.totalorder %s142, 0
      %p883 = por %p881, %p882
      %s885 = sadd.s32 %s884, 1
      %p888 = scmp.eq.s32.totalorder %s136, 1
      %p889 = scmp.ne.s32.totalorder %s884, %s886
      %p890 = scmp.eq.s32.totalorder %s136, 0
      %p891 = por %p889, %p890
      %p892 = scmp.ne.s32.totalorder %s884, %s886
      %p893 = scmp.eq.s32.totalorder %s141, 1
      %p894 = por %p892, %p893
      %p895 = scmp.ne.s32.totalorder %s886, %s887
      %p896 = scmp.eq.s32.totalorder %s141, 0
      %p897 = por %p895, %p896
      %p898 = scmp.ne.s32.totalorder %s886, %s887
      %p899 = scmp.eq.s32.totalorder %s142, 1
      %p900 = por %p898, %p899
      %p902 = scmp.ne.s32.totalorder %s887, %s901
      %p903 = scmp.eq.s32.totalorder %s142, 0
      %p904 = por %p902, %p903
      %s906 = sadd.s32 %s905, 1
      %p909 = scmp.eq.s32.totalorder %s136, 1
      %p910 = scmp.ne.s32.totalorder %s905, %s907
      %p911 = scmp.eq.s32.totalorder %s136, 0
      %p912 = por %p910, %p911
      %p913 = scmp.ne.s32.totalorder %s905, %s907
      %p914 = scmp.eq.s32.totalorder %s141, 1
      %p915 = por %p913, %p914
      %p916 = scmp.ne.s32.totalorder %s907, %s908
      %p917 = scmp.eq.s32.totalorder %s141, 0
      %p918 = por %p916, %p917
      %p919 = scmp.ne.s32.totalorder %s907, %s908
      %p920 = scmp.eq.s32.totalorder %s142, 1
      %p921 = por %p919, %p920
      %p923 = scmp.ne.s32.totalorder %s908, %s922
      %p924 = scmp.eq.s32.totalorder %s142, 0
      %p925 = por %p923, %p924
      %s927 = sadd.s32 %s926, 1
      %p930 = scmp.eq.s32.totalorder %s136, 1
      %p931 = scmp.ne.s32.totalorder %s926, %s928
      %p932 = scmp.eq.s32.totalorder %s136, 0
      %p933 = por %p931, %p932
      %p934 = scmp.ne.s32.totalorder %s926, %s928
      %p935 = scmp.eq.s32.totalorder %s141, 1
      %p936 = por %p934, %p935
      %p937 = scmp.ne.s32.totalorder %s928, %s929
      %p938 = scmp.eq.s32.totalorder %s141, 0
      %p939 = por %p937, %p938
      %p940 = scmp.ne.s32.totalorder %s928, %s929
      %p941 = scmp.eq.s32.totalorder %s142, 1
      %p942 = por %p940, %p941
      %p944 = scmp.ne.s32.totalorder %s929, %s943
      %p945 = scmp.eq.s32.totalorder %s142, 0
      %p946 = por %p944, %p945
      %s948 = sadd.s32 %s947, 1
      %p951 = scmp.eq.s32.totalorder %s136, 1
      %p952 = scmp.ne.s32.totalorder %s947, %s949
      %p953 = scmp.eq.s32.totalorder %s136, 0
      %p954 = por %p952, %p953
      %p955 = scmp.ne.s32.totalorder %s947, %s949
      %p956 = scmp.eq.s32.totalorder %s141, 1
      %p957 = por %p955, %p956
      %p958 = scmp.ne.s32.totalorder %s949, %s950
      %p959 = scmp.eq.s32.totalorder %s141, 0
      %p960 = por %p958, %p959
      %p961 = scmp.ne.s32.totalorder %s949, %s950
      %p962 = scmp.eq.s32.totalorder %s142, 1
      %p963 = por %p961, %p962
      %p965 = scmp.ne.s32.totalorder %s950, %s964
      %p966 = scmp.eq.s32.totalorder %s142, 0
      %p967 = por %p965, %p966
      %s969 = sadd.s32 %s968, 1
      %p972 = scmp.eq.s32.totalorder %s136, 1
      %p973 = scmp.ne.s32.totalorder %s968, %s970
      %p974 = scmp.eq.s32.totalorder %s136, 0
      %p975 = por %p973, %p974
      %p976 = scmp.ne.s32.totalorder %s968, %s970
      %p977 = scmp.eq.s32.totalorder %s141, 1
      %p978 = por %p976, %p977
      %p979 = scmp.ne.s32.totalorder %s970, %s971
      %p980 = scmp.eq.s32.totalorder %s141, 0
      %p981 = por %p979, %p980
      %p982 = scmp.ne.s32.totalorder %s970, %s971
      %p983 = scmp.eq.s32.totalorder %s142, 1
      %p984 = por %p982, %p983
      %p986 = scmp.ne.s32.totalorder %s971, %s985
      %p987 = scmp.eq.s32.totalorder %s142, 0
      %p988 = por %p986, %p987
      %s990 = sadd.s32 %s989, 1
      %p993 = scmp.eq.s32.totalorder %s136, 1
      %p994 = scmp.ne.s32.totalorder %s989, %s991
      %p995 = scmp.eq.s32.totalorder %s136, 0
      %p996 = por %p994, %p995
      %p997 = scmp.ne.s32.totalorder %s989, %s991
      %p998 = scmp.eq.s32.totalorder %s141, 1
      %p999 = por %p997, %p998
      %p1000 = scmp.ne.s32.totalorder %s991, %s992
      %p1001 = scmp.eq.s32.totalorder %s141, 0
      %p1002 = por %p1000, %p1001
      %p1003 = scmp.ne.s32.totalorder %s991, %s992
      %p1004 = scmp.eq.s32.totalorder %s142, 1
      %p1005 = por %p1003, %p1004
      %p1007 = scmp.ne.s32.totalorder %s992, %s1006
      %p1008 = scmp.eq.s32.totalorder %s142, 0
      %p1009 = por %p1007, %p1008
      %s1011 = sadd.s32 %s1010, 1
      %p1014 = scmp.eq.s32.totalorder %s136, 1
      %p1015 = scmp.ne.s32.totalorder %s1010, %s1012
      %p1016 = scmp.eq.s32.totalorder %s136, 0
      %p1017 = por %p1015, %p1016
      %p1018 = scmp.ne.s32.totalorder %s1010, %s1012
      %p1019 = scmp.eq.s32.totalorder %s141, 1
      %p1020 = por %p1018, %p1019
      %p1021 = scmp.ne.s32.totalorder %s1012, %s1013
      %p1022 = scmp.eq.s32.totalorder %s141, 0
      %p1023 = por %p1021, %p1022
      %p1024 = scmp.ne.s32.totalorder %s1012, %s1013
      %p1025 = scmp.eq.s32.totalorder %s142, 1
      %p1026 = por %p1024, %p1025
      %p1028 = scmp.ne.s32.totalorder %s1013, %s1027
      %p1029 = scmp.eq.s32.totalorder %s142, 0
      %p1030 = por %p1028, %p1029
      %s1032 = sadd.s32 %s1031, 1
      %p1035 = scmp.eq.s32.totalorder %s136, 1
      %p1036 = scmp.ne.s32.totalorder %s1031, %s1033
      %p1037 = scmp.eq.s32.totalorder %s136, 0
      %p1038 = por %p1036, %p1037
      %p1039 = scmp.ne.s32.totalorder %s1031, %s1033
      %p1040 = scmp.eq.s32.totalorder %s141, 1
      %p1041 = por %p1039, %p1040
      %p1042 = scmp.ne.s32.totalorder %s1033, %s1034
      %p1043 = scmp.eq.s32.totalorder %s141, 0
      %p1044 = por %p1042, %p1043
      %p1045 = scmp.ne.s32.totalorder %s1033, %s1034
      %p1046 = scmp.eq.s32.totalorder %s142, 1
      %p1047 = por %p1045, %p1046
      %p1049 = scmp.ne.s32.totalorder %s1034, %s1048
      %p1050 = scmp.eq.s32.totalorder %s142, 0
      %p1051 = por %p1049, %p1050
      %s1053 = sadd.s32 %s1052, 1
      %p1056 = scmp.eq.s32.totalorder %s136, 1
      %p1057 = scmp.ne.s32.totalorder %s1052, %s1054
      %p1058 = scmp.eq.s32.totalorder %s136, 0
      %p1059 = por %p1057, %p1058
      %p1060 = scmp.ne.s32.totalorder %s1052, %s1054
      %p1061 = scmp.eq.s32.totalorder %s141, 1
      %p1062 = por %p1060, %p1061
      %p1063 = scmp.ne.s32.totalorder %s1054, %s1055
      %p1064 = scmp.eq.s32.totalorder %s141, 0
      %p1065 = por %p1063, %p1064
      %p1066 = scmp.ne.s32.totalorder %s1054, %s1055
      %p1067 = scmp.eq.s32.totalorder %s142, 1
      %p1068 = por %p1066, %p1067
      %p1070 = scmp.ne.s32.totalorder %s1055, %s1069
      %p1071 = scmp.eq.s32.totalorder %s142, 0
      %p1072 = por %p1070, %p1071
      %s1074 = sadd.s32 %s1073, 1
      %p1077 = scmp.eq.s32.totalorder %s136, 1
      %p1078 = scmp.ne.s32.totalorder %s1073, %s1075
      %p1079 = scmp.eq.s32.totalorder %s136, 0
      %p1080 = por %p1078, %p1079
      %p1081 = scmp.ne.s32.totalorder %s1073, %s1075
      %p1082 = scmp.eq.s32.totalorder %s141, 1
      %p1083 = por %p1081, %p1082
      %p1084 = scmp.ne.s32.totalorder %s1075, %s1076
      %p1085 = scmp.eq.s32.totalorder %s141, 0
      %p1086 = por %p1084, %p1085
      %p1087 = scmp.ne.s32.totalorder %s1075, %s1076
      %p1088 = scmp.eq.s32.totalorder %s142, 1
      %p1089 = por %p1087, %p1088
      %p1091 = scmp.ne.s32.totalorder %s1076, %s1090
      %p1092 = scmp.eq.s32.totalorder %s142, 0
      %p1093 = por %p1091, %p1092
      %s1095 = sadd.s32 %s1094, 1
      %p1098 = scmp.eq.s32.totalorder %s136, 1
      %p1099 = scmp.ne.s32.totalorder %s1094, %s1096
      %p1100 = scmp.eq.s32.totalorder %s136, 0
      %p1101 = por %p1099, %p1100
      %p1102 = scmp.ne.s32.totalorder %s1094, %s1096
      %p1103 = scmp.eq.s32.totalorder %s141, 1
      %p1104 = por %p1102, %p1103
      %p1105 = scmp.ne.s32.totalorder %s1096, %s1097
      %p1106 = scmp.eq.s32.totalorder %s141, 0
      %p1107 = por %p1105, %p1106
      %p1108 = scmp.ne.s32.totalorder %s1096, %s1097
      %p1109 = scmp.eq.s32.totalorder %s142, 1
      %p1110 = por %p1108, %p1109
      %p1112 = scmp.ne.s32.totalorder %s1097, %s1111
      %p1113 = scmp.eq.s32.totalorder %s142, 0
      %p1114 = por %p1112, %p1113
      %s1116 = sadd.s32 %s1115, 1
      %p1119 = scmp.eq.s32.totalorder %s136, 1
      %p1120 = scmp.ne.s32.totalorder %s1115, %s1117
      %p1121 = scmp.eq.s32.totalorder %s136, 0
      %p1122 = por %p1120, %p1121
      %p1123 = scmp.ne.s32.totalorder %s1115, %s1117
      %p1124 = scmp.eq.s32.totalorder %s141, 1
      %p1125 = por %p1123, %p1124
      %p1126 = scmp.ne.s32.totalorder %s1117, %s1118
      %p1127 = scmp.eq.s32.totalorder %s141, 0
      %p1128 = por %p1126, %p1127
      %p1129 = scmp.ne.s32.totalorder %s1117, %s1118
      %p1130 = scmp.eq.s32.totalorder %s142, 1
      %p1131 = por %p1129, %p1130
      %p1133 = scmp.ne.s32.totalorder %s1118, %s1132
      %p1134 = scmp.eq.s32.totalorder %s142, 0
      %p1135 = por %p1133, %p1134
      %s1137 = sadd.s32 %s1136, 1
      %p1140 = scmp.eq.s32.totalorder %s136, 1
      %p1141 = scmp.ne.s32.totalorder %s1136, %s1138
      %p1142 = scmp.eq.s32.totalorder %s136, 0
      %p1143 = por %p1141, %p1142
      %p1144 = scmp.ne.s32.totalorder %s1136, %s1138
      %p1145 = scmp.eq.s32.totalorder %s141, 1
      %p1146 = por %p1144, %p1145
      %p1147 = scmp.ne.s32.totalorder %s1138, %s1139
      %p1148 = scmp.eq.s32.totalorder %s141, 0
      %p1149 = por %p1147, %p1148
      %p1150 = scmp.ne.s32.totalorder %s1138, %s1139
      %p1151 = scmp.eq.s32.totalorder %s142, 1
      %p1152 = por %p1150, %p1151
      %p1154 = scmp.ne.s32.totalorder %s1139, %s1153
      %p1155 = scmp.eq.s32.totalorder %s142, 0
      %p1156 = por %p1154, %p1155
      %s1158 = sadd.s32 %s1157, 1
      %p1161 = scmp.eq.s32.totalorder %s136, 1
      %p1162 = scmp.ne.s32.totalorder %s1157, %s1159
      %p1163 = scmp.eq.s32.totalorder %s136, 0
      %p1164 = por %p1162, %p1163
      %p1165 = scmp.ne.s32.totalorder %s1157, %s1159
      %p1166 = scmp.eq.s32.totalorder %s141, 1
      %p1167 = por %p1165, %p1166
      %p1168 = scmp.ne.s32.totalorder %s1159, %s1160
      %p1169 = scmp.eq.s32.totalorder %s141, 0
      %p1170 = por %p1168, %p1169
      %p1171 = scmp.ne.s32.totalorder %s1159, %s1160
      %p1172 = scmp.eq.s32.totalorder %s142, 1
      %p1173 = por %p1171, %p1172
      %p1175 = scmp.ne.s32.totalorder %s1160, %s1174
      %p1176 = scmp.eq.s32.totalorder %s142, 0
      %p1177 = por %p1175, %p1176
      %s1179 = sadd.s32 %s1178, 1
      %p1182 = scmp.eq.s32.totalorder %s136, 1
      %p1183 = scmp.ne.s32.totalorder %s1178, %s1180
      %p1184 = scmp.eq.s32.totalorder %s136, 0
      %p1185 = por %p1183, %p1184
      %p1186 = scmp.ne.s32.totalorder %s1178, %s1180
      %p1187 = scmp.eq.s32.totalorder %s141, 1
      %p1188 = por %p1186, %p1187
      %p1189 = scmp.ne.s32.totalorder %s1180, %s1181
      %p1190 = scmp.eq.s32.totalorder %s141, 0
      %p1191 = por %p1189, %p1190
      %p1192 = scmp.ne.s32.totalorder %s1180, %s1181
      %p1193 = scmp.eq.s32.totalorder %s142, 1
      %p1194 = por %p1192, %p1193
      %p1196 = scmp.ne.s32.totalorder %s1181, %s1195
      %p1197 = scmp.eq.s32.totalorder %s142, 0
      %p1198 = por %p1196, %p1197
      %s1200 = sadd.s32 %s1199, 1
      %p1203 = scmp.eq.s32.totalorder %s136, 1
      %p1204 = scmp.ne.s32.totalorder %s1199, %s1201
      %p1205 = scmp.eq.s32.totalorder %s136, 0
      %p1206 = por %p1204, %p1205
      %p1207 = scmp.ne.s32.totalorder %s1199, %s1201
      %p1208 = scmp.eq.s32.totalorder %s141, 1
      %p1209 = por %p1207, %p1208
      %p1210 = scmp.ne.s32.totalorder %s1201, %s1202
      %p1211 = scmp.eq.s32.totalorder %s141, 0
      %p1212 = por %p1210, %p1211
      %p1213 = scmp.ne.s32.totalorder %s1201, %s1202
      %p1214 = scmp.eq.s32.totalorder %s142, 1
      %p1215 = por %p1213, %p1214
      %p1217 = scmp.ne.s32.totalorder %s1202, %s1216
      %p1218 = scmp.eq.s32.totalorder %s142, 0
      %p1219 = por %p1217, %p1218
      %s1221 = sadd.s32 %s1220, 1
      %p1224 = scmp.eq.s32.totalorder %s136, 1
      %p1225 = scmp.ne.s32.totalorder %s1220, %s1222
      %p1226 = scmp.eq.s32.totalorder %s136, 0
      %p1227 = por %p1225, %p1226
      %p1228 = scmp.ne.s32.totalorder %s1220, %s1222
      %p1229 = scmp.eq.s32.totalorder %s141, 1
      %p1230 = por %p1228, %p1229
      %p1231 = scmp.ne.s32.totalorder %s1222, %s1223
      %p1232 = scmp.eq.s32.totalorder %s141, 0
      %p1233 = por %p1231, %p1232
      %p1234 = scmp.ne.s32.totalorder %s1222, %s1223
      %p1235 = scmp.eq.s32.totalorder %s142, 1
      %p1236 = por %p1234, %p1235
      %p1238 = scmp.ne.s32.totalorder %s1223, %s1237
      %p1239 = scmp.eq.s32.totalorder %s142, 0
      %p1240 = por %p1238, %p1239
      %s1242 = sadd.s32 %s1241, 1
      %p1245 = scmp.eq.s32.totalorder %s136, 1
      %p1246 = scmp.ne.s32.totalorder %s1241, %s1243
      %p1247 = scmp.eq.s32.totalorder %s136, 0
      %p1248 = por %p1246, %p1247
      %p1249 = scmp.ne.s32.totalorder %s1241, %s1243
      %p1250 = scmp.eq.s32.totalorder %s141, 1
      %p1251 = por %p1249, %p1250
      %p1252 = scmp.ne.s32.totalorder %s1243, %s1244
      %p1253 = scmp.eq.s32.totalorder %s141, 0
      %p1254 = por %p1252, %p1253
      %p1255 = scmp.ne.s32.totalorder %s1243, %s1244
      %p1256 = scmp.eq.s32.totalorder %s142, 1
      %p1257 = por %p1255, %p1256
      %p1259 = scmp.ne.s32.totalorder %s1244, %s1258
      %p1260 = scmp.eq.s32.totalorder %s142, 0
      %p1261 = por %p1259, %p1260
      %s1263 = sadd.s32 %s1262, 1
      %p1266 = scmp.eq.s32.totalorder %s136, 1
      %p1267 = scmp.ne.s32.totalorder %s1262, %s1264
      %p1268 = scmp.eq.s32.totalorder %s136, 0
      %p1269 = por %p1267, %p1268
      %p1270 = scmp.ne.s32.totalorder %s1262, %s1264
      %p1271 = scmp.eq.s32.totalorder %s141, 1
      %p1272 = por %p1270, %p1271
      %p1273 = scmp.ne.s32.totalorder %s1264, %s1265
      %p1274 = scmp.eq.s32.totalorder %s141, 0
      %p1275 = por %p1273, %p1274
      %p1276 = scmp.ne.s32.totalorder %s1264, %s1265
      %p1277 = scmp.eq.s32.totalorder %s142, 1
      %p1278 = por %p1276, %p1277
      %p1280 = scmp.ne.s32.totalorder %s1265, %s1279
      %p1281 = scmp.eq.s32.totalorder %s142, 0
      %p1282 = por %p1280, %p1281
      %s1284 = sadd.s32 %s1283, 1
      %p1287 = scmp.eq.s32.totalorder %s136, 1
      %p1288 = scmp.ne.s32.totalorder %s1283, %s1285
      %p1289 = scmp.eq.s32.totalorder %s136, 0
      %p1290 = por %p1288, %p1289
      %p1291 = scmp.ne.s32.totalorder %s1283, %s1285
      %p1292 = scmp.eq.s32.totalorder %s141, 1
      %p1293 = por %p1291, %p1292
      %p1294 = scmp.ne.s32.totalorder %s1285, %s1286
      %p1295 = scmp.eq.s32.totalorder %s141, 0
      %p1296 = por %p1294, %p1295
      %p1297 = scmp.ne.s32.totalorder %s1285, %s1286
      %p1298 = scmp.eq.s32.totalorder %s142, 1
      %p1299 = por %p1297, %p1298
      %p1301 = scmp.ne.s32.totalorder %s1286, %s1300
      %p1302 = scmp.eq.s32.totalorder %s142, 0
      %p1303 = por %p1301, %p1302
      %s1305 = sadd.s32 %s1304, 1
      %p1308 = scmp.eq.s32.totalorder %s136, 1
      %p1309 = scmp.ne.s32.totalorder %s1304, %s1306
      %p1310 = scmp.eq.s32.totalorder %s136, 0
      %p1311 = por %p1309, %p1310
      %p1312 = scmp.ne.s32.totalorder %s1304, %s1306
      %p1313 = scmp.eq.s32.totalorder %s141, 1
      %p1314 = por %p1312, %p1313
      %p1315 = scmp.ne.s32.totalorder %s1306, %s1307
      %p1316 = scmp.eq.s32.totalorder %s141, 0
      %p1317 = por %p1315, %p1316
      %p1318 = scmp.ne.s32.totalorder %s1306, %s1307
      %p1319 = scmp.eq.s32.totalorder %s142, 1
      %p1320 = por %p1318, %p1319
      %p1322 = scmp.ne.s32.totalorder %s1307, %s1321
      %p1323 = scmp.eq.s32.totalorder %s142, 0
      %p1324 = por %p1322, %p1323
      %s1326 = sadd.s32 %s1325, 1
      %p1329 = scmp.eq.s32.totalorder %s136, 1
      %p1330 = scmp.ne.s32.totalorder %s1325, %s1327
      %p1331 = scmp.eq.s32.totalorder %s136, 0
      %p1332 = por %p1330, %p1331
      %p1333 = scmp.ne.s32.totalorder %s1325, %s1327
      %p1334 = scmp.eq.s32.totalorder %s141, 1
      %p1335 = por %p1333, %p1334
      %p1336 = scmp.ne.s32.totalorder %s1327, %s1328
      %p1337 = scmp.eq.s32.totalorder %s141, 0
      %p1338 = por %p1336, %p1337
      %p1339 = scmp.ne.s32.totalorder %s1327, %s1328
      %p1340 = scmp.eq.s32.totalorder %s142, 1
      %p1341 = por %p1339, %p1340
      %p1343 = scmp.ne.s32.totalorder %s1328, %s1342
      %p1344 = scmp.eq.s32.totalorder %s142, 0
      %p1345 = por %p1343, %p1344
      %s1346 = ssub.s32 %s136, %s143
      %p1347 = scmp.eq.s32.totalorder %s1346, 0
      %s1349 = sadd.s32 %s1348, 1
      %s1350 = scalar_select %p1347, %s1348, %s1349
      %p1353 = pneg %p1347
      %p1354 = scmp.eq.s32.totalorder %s136, 1
      %p1355 = por %p1353, %p1354
      %p1356 = scmp.ne.s32.totalorder %s1348, %s1351
      %p1357 = scmp.eq.s32.totalorder %s136, 0
      %p1358 = por %p1356, %p1357
      %p1359 = scmp.ne.s32.totalorder %s1348, %s1351
      %p1360 = scmp.eq.s32.totalorder %s141, 1
      %p1361 = por %p1359, %p1360
      %p1362 = scmp.ne.s32.totalorder %s1351, %s1352
      %p1363 = scmp.eq.s32.totalorder %s141, 0
      %p1364 = por %p1362, %p1363
      %p1365 = scmp.ne.s32.totalorder %s1351, %s1352
      %p1366 = scmp.eq.s32.totalorder %s142, 1
      %p1367 = por %p1365, %p1366
      %p1369 = scmp.ne.s32.totalorder %s1352, %s1368
      %p1370 = scmp.eq.s32.totalorder %s142, 0
      %p1371 = por %p1369, %p1370
      %p1372 = scmp.le.s32.totalorder 1, %s136
      %p1373 = scmp.lt.s32.totalorder %s136, 3
      %p1374 = pnand %p1372, %p1373
      %p1375 = pneg %p1374
      // Predicated region
      $region9: #{forward.1} parent=5 // pred_check
        _
      $region10: #{forward.1} parent=5 // pred_check_branch
        %1377 = sbr.rel (%p1374) target = $region12
      $region11: #{forward.1} parent=5 // pred_region
        %s1378 = ssub.s32 %s136, 1
        // Predicated region
        $region13: #{forward.1} parent=11 // pred_check
          %p1379 = pneg %p183
        $region14: #{forward.1} parent=11 // pred_check_branch
          %1381 = sbr.rel (%p1379) target = $region16
        $region15: #{forward.1} parent=11 // pred_region
          %s1383 = ssub.s32 512, 512
          %1384 = vsyncadd [#allocation3], %s1383
          %s1385 = sshll.u32 [#allocation2], 4
          %s1386 = int_to_ptr.vmem [resolvable:$true] %s1385
          %1391 = dma.hbm_to_vmem [thread:$0]  %s3, 512, %s1386, [#allocation3], 64, 64, 4
        $region16: #{forward.1} parent=11 // pred_fallthru
          _
        // Predicated region
        $region17: #{forward.1} parent=11 // pred_check
          %p1392 = pneg %p204
        $region18: #{forward.1} parent=11 // pred_check_branch
          %1394 = sbr.rel (%p1392) target = $region20
        $region19: #{forward.1} parent=11 // pred_region
          %s1396 = ssub.s32 512, 512
          %1397 = vsyncadd [#allocation5], %s1396
          %s1398 = sshll.u32 [#allocation4], 4
          %s1399 = int_to_ptr.vmem [resolvable:$true] %s1398
          %1404 = dma.hbm_to_vmem [thread:$0]  %s5, 512, %s1399, [#allocation5], 64, 64, 4
        $region20: #{forward.1} parent=11 // pred_fallthru
          _
        // Predicated region
        $region21: #{forward.1} parent=11 // pred_check
          %p1405 = pneg %p225
        $region22: #{forward.1} parent=11 // pred_check_branch
          %1407 = sbr.rel (%p1405) target = $region24
        $region23: #{forward.1} parent=11 // pred_region
          %s1409 = ssub.s32 256, 256
          %1410 = vsyncadd [#allocation5], %s1409
          %s1411 = sshll.u32 [#allocation6], 4
          %s1412 = int_to_ptr.vmem [resolvable:$true] %s1411
          %1417 = dma.hbm_to_vmem [thread:$0]  %s7, 256, %s1412, [#allocation5], 64, 64, 4
        $region24: #{forward.1} parent=11 // pred_fallthru
          _
        // Predicated region
        $region25: #{forward.1} parent=11 // pred_check
          %p1418 = pneg %p246
        $region26: #{forward.1} parent=11 // pred_check_branch
          %1420 = sbr.rel (%p1418) target = $region28
        $region27: #{forward.1} parent=11 // pred_region
          %s1422 = ssub.s32 256, 256
          %1423 = vsyncadd [#allocation8], %s1422
          %s1424 = sshll.u32 [#allocation7], 4
          %s1425 = int_to_ptr.vmem [resolvable:$true] %s1424
          %1430 = dma.hbm_to_vmem [thread:$0]  %s9, 256, %s1425, [#allocation8], 64, 64, 4
        $region28: #{forward.1} parent=11 // pred_fallthru
          _
        // Predicated region
        $region29: #{forward.1} parent=11 // pred_check
          %p1431 = pneg %p267
        $region30: #{forward.1} parent=11 // pred_check_branch
          %1433 = sbr.rel (%p1431) target = $region32
        $region31: #{forward.1} parent=11 // pred_region
          %s1435 = ssub.s32 256, 256
          %1436 = vsyncadd [#allocation8], %s1435
          %s1437 = sshll.u32 [#allocation9], 4
          %s1438 = int_to_ptr.vmem [resolvable:$true] %s1437
          %1443 = dma.hbm_to_vmem [thread:$0]  %s11, 256, %s1438, [#allocation8], 64, 64, 4
        $region32: #{forward.1} parent=11 // pred_fallthru
          _
        // Predicated region
        $region33: #{forward.1} parent=11 // pred_check
          %p1444 = pneg %p288
        $region34: #{forward.1} parent=11 // pred_check_branch
          %1446 = sbr.rel (%p1444) target = $region36
        $region35: #{forward.1} parent=11 // pred_region
          %s1448 = ssub.s32 16, 16
          %1449 = vsyncadd [#allocation11], %s1448
          %s1451 = sshll.u32 [#allocation10], 4
          %s1452 = int_to_ptr.vmem [resolvable:$true] %s1451
          %1454 = dma.hbm_to_vmem [thread:$0]  %s13, 16, %s1452, [#allocation11]
        $region36: #{forward.1} parent=11 // pred_fallthru
          _
        // Predicated region
        $region37: #{forward.1} parent=11 // pred_check
          %p1455 = pneg %p309
        $region38: #{forward.1} parent=11 // pred_check_branch
          %1457 = sbr.rel (%p1455) target = $region40
        $region39: #{forward.1} parent=11 // pred_region
          _
        $region40: #{forward.1} parent=11 // pred_fallthru
          _
        // Predicated region
        $region41: #{forward.1} parent=11 // pred_check
          %p1458 = pneg %p330
        $region42: #{forward.1} parent=11 // pred_check_branch
          %1460 = sbr.rel (%p1458) target = $region44
        $region43: #{forward.1} parent=11 // pred_region
          _
        $region44: #{forward.1} parent=11 // pred_fallthru
          _
        // Predicated region
        $region45: #{forward.1} parent=11 // pred_check
          %p1461 = pneg %p351
        $region46: #{forward.1} parent=11 // pred_check_branch
          %1463 = sbr.rel (%p1461) target = $region48
        $region47: #{forward.1} parent=11 // pred_region
          %s1465 = ssub.s32 256, 256
          %1466 = vsyncadd [#allocation11], %s1465
          %s1467 = sshll.u32 [#allocation12], 4
          %s1468 = int_to_ptr.vmem [resolvable:$true] %s1467
          %1473 = dma.hbm_to_vmem [thread:$0]  %s19, 256, %s1468, [#allocation11], 64, 64, 4
        $region48: #{forward.1} parent=11 // pred_fallthru
          _
        // Predicated region
        $region49: #{forward.1} parent=11 // pred_check
          %p1474 = pneg %p372
        $region50: #{forward.1} parent=11 // pred_check_branch
          %1476 = sbr.rel (%p1474) target = $region52
        $region51: #{forward.1} parent=11 // pred_region
          %s1478 = ssub.s32 256, 256
          %1479 = vsyncadd [#allocation14], %s1478
          %s1480 = sshll.u32 [#allocation13], 4
          %s1481 = int_to_ptr.vmem [resolvable:$true] %s1480
          %1486 = dma.hbm_to_vmem [thread:$0]  %s21, 256, %s1481, [#allocation14], 64, 64, 4
        $region52: #{forward.1} parent=11 // pred_fallthru
          _
        // Predicated region
        $region53: #{forward.1} parent=11 // pred_check
          %p1487 = pneg %p393
        $region54: #{forward.1} parent=11 // pred_check_branch
          %1489 = sbr.rel (%p1487) target = $region56
        $region55: #{forward.1} parent=11 // pred_region
          %s1491 = ssub.s32 256, 256
          %1492 = vsyncadd [#allocation14], %s1491
          %s1493 = sshll.u32 [#allocation15], 4
          %s1494 = int_to_ptr.vmem [resolvable:$true] %s1493
          %1499 = dma.hbm_to_vmem [thread:$0]  %s23, 256, %s1494, [#allocation14], 64, 64, 4
        $region56: #{forward.1} parent=11 // pred_fallthru
          _
        // Predicated region
        $region57: #{forward.1} parent=11 // pred_check
          %p1500 = pneg %p414
        $region58: #{forward.1} parent=11 // pred_check_branch
          %1502 = sbr.rel (%p1500) target = $region60
        $region59: #{forward.1} parent=11 // pred_region
          %s1504 = ssub.s32 256, 256
          %1505 = vsyncadd [#allocation17], %s1504
          %s1506 = sshll.u32 [#allocation16], 4
          %s1507 = int_to_ptr.vmem [resolvable:$true] %s1506
          %1512 = dma.hbm_to_vmem [thread:$0]  %s25, 256, %s1507, [#allocation17], 64, 64, 4
        $region60: #{forward.1} parent=11 // pred_fallthru
          _
        // Predicated region
        $region61: #{forward.1} parent=11 // pred_check
          %p1513 = pneg %p435
        $region62: #{forward.1} parent=11 // pred_check_branch
          %1515 = sbr.rel (%p1513) target = $region64
        $region63: #{forward.1} parent=11 // pred_region
          %s1517 = ssub.s32 512, 512
          %1518 = vsyncadd [#allocation17], %s1517
          %s1519 = sshll.u32 [#allocation18], 4
          %s1520 = int_to_ptr.vmem [resolvable:$true] %s1519
          %1525 = dma.hbm_to_vmem [thread:$0]  %s27, 512, %s1520, [#allocation17], 64, 64, 4
        $region64: #{forward.1} parent=11 // pred_fallthru
          _
        // Predicated region
        $region65: #{forward.1} parent=11 // pred_check
          %p1526 = pneg %p456
        $region66: #{forward.1} parent=11 // pred_check_branch
          %1528 = sbr.rel (%p1526) target = $region68
        $region67: #{forward.1} parent=11 // pred_region
          %s1530 = ssub.s32 512, 512
          %1531 = vsyncadd [#allocation20], %s1530
          %s1532 = sshll.u32 [#allocation19], 4
          %s1533 = int_to_ptr.vmem [resolvable:$true] %s1532
          %1538 = dma.hbm_to_vmem [thread:$0]  %s29, 512, %s1533, [#allocation20], 64, 64, 4
        $region68: #{forward.1} parent=11 // pred_fallthru
          _
        // Predicated region
        $region69: #{forward.1} parent=11 // pred_check
          %p1539 = pneg %p477
        $region70: #{forward.1} parent=11 // pred_check_branch
          %1541 = sbr.rel (%p1539) target = $region72
        $region71: #{forward.1} parent=11 // pred_region
          %s1543 = ssub.s32 512, 512
          %1544 = vsyncadd [#allocation20], %s1543
          %s1545 = sshll.u32 [#allocation21], 4
          %s1546 = int_to_ptr.vmem [resolvable:$true] %s1545
          %1551 = dma.hbm_to_vmem [thread:$0]  %s31, 512, %s1546, [#allocation20], 64, 64, 4
        $region72: #{forward.1} parent=11 // pred_fallthru
          _
        // Predicated region
        $region73: #{forward.1} parent=11 // pred_check
          %p1552 = pneg %p498
        $region74: #{forward.1} parent=11 // pred_check_branch
          %1554 = sbr.rel (%p1552) target = $region76
        $region75: #{forward.1} parent=11 // pred_region
          %s1556 = ssub.s32 16, 16
          %1557 = vsyncadd [#allocation23], %s1556
          %s1559 = sshll.u32 [#allocation22], 4
          %s1560 = int_to_ptr.vmem [resolvable:$true] %s1559
          %1562 = dma.hbm_to_vmem [thread:$0]  %s33, 16, %s1560, [#allocation23]
        $region76: #{forward.1} parent=11 // pred_fallthru
          _
        // Predicated region
        $region77: #{forward.1} parent=11 // pred_check
          %p1563 = pneg %p519
        $region78: #{forward.1} parent=11 // pred_check_branch
          %1565 = sbr.rel (%p1563) target = $region80
        $region79: #{forward.1} parent=11 // pred_region
          _
        $region80: #{forward.1} parent=11 // pred_fallthru
          _
        // Predicated region
        $region81: #{forward.1} parent=11 // pred_check
          %p1566 = pneg %p540
        $region82: #{forward.1} parent=11 // pred_check_branch
          %1568 = sbr.rel (%p1566) target = $region84
        $region83: #{forward.1} parent=11 // pred_region
          _
        $region84: #{forward.1} parent=11 // pred_fallthru
          _
        // Predicated region
        $region85: #{forward.1} parent=11 // pred_check
          %p1569 = pneg %p561
        $region86: #{forward.1} parent=11 // pred_check_branch
          %1571 = sbr.rel (%p1569) target = $region88
        $region87: #{forward.1} parent=11 // pred_region
          %s1573 = ssub.s32 128, 128
          %1574 = vsyncadd [#allocation23], %s1573
          %s1575 = sshll.u32 [#allocation24], 4
          %s1576 = int_to_ptr.vmem [resolvable:$true] %s1575
          %1581 = dma.hbm_to_vmem [thread:$0]  %s39, 128, %s1576, [#allocation23], 64, 64, 4
        $region88: #{forward.1} parent=11 // pred_fallthru
          _
        // Predicated region
        $region89: #{forward.1} parent=11 // pred_check
          %p1582 = pneg %p582
        $region90: #{forward.1} parent=11 // pred_check_branch
          %1584 = sbr.rel (%p1582) target = $region92
        $region91: #{forward.1} parent=11 // pred_region
          %s1586 = ssub.s32 128, 128
          %1587 = vsyncadd [#allocation26], %s1586
          %s1588 = sshll.u32 [#allocation25], 4
          %s1589 = int_to_ptr.vmem [resolvable:$true] %s1588
          %1594 = dma.hbm_to_vmem [thread:$0]  %s41, 128, %s1589, [#allocation26], 64, 64, 4
        $region92: #{forward.1} parent=11 // pred_fallthru
          _
        // Predicated region
        $region93: #{forward.1} parent=11 // pred_check
          %p1595 = pneg %p603
        $region94: #{forward.1} parent=11 // pred_check_branch
          %1597 = sbr.rel (%p1595) target = $region96
        $region95: #{forward.1} parent=11 // pred_region
          %s1599 = ssub.s32 128, 128
          %1600 = vsyncadd [#allocation26], %s1599
          %s1601 = sshll.u32 [#allocation27], 4
          %s1602 = int_to_ptr.vmem [resolvable:$true] %s1601
          %1607 = dma.hbm_to_vmem [thread:$0]  %s43, 128, %s1602, [#allocation26], 64, 64, 4
        $region96: #{forward.1} parent=11 // pred_fallthru
          _
        // Predicated region
        $region97: #{forward.1} parent=11 // pred_check
          %p1608 = pneg %p624
        $region98: #{forward.1} parent=11 // pred_check_branch
          %1610 = sbr.rel (%p1608) target = $region100
        $region99: #{forward.1} parent=11 // pred_region
          %s1612 = ssub.s32 128, 128
          %1613 = vsyncadd [#allocation29], %s1612
          %s1614 = sshll.u32 [#allocation28], 4
          %s1615 = int_to_ptr.vmem [resolvable:$true] %s1614
          %1620 = dma.hbm_to_vmem [thread:$0]  %s45, 128, %s1615, [#allocation29], 64, 64, 4
        $region100: #{forward.1} parent=11 // pred_fallthru
          _
        // Predicated region
        $region101: #{forward.1} parent=11 // pred_check
          %p1621 = pneg %p645
        $region102: #{forward.1} parent=11 // pred_check_branch
          %1623 = sbr.rel (%p1621) target = $region104
        $region103: #{forward.1} parent=11 // pred_region
          %s1625 = ssub.s32 512, 512
          %1626 = vsyncadd [#allocation29], %s1625
          %s1627 = sshll.u32 [#allocation30], 4
          %s1628 = int_to_ptr.vmem [resolvable:$true] %s1627
          %1633 = dma.hbm_to_vmem [thread:$0]  %s47, 512, %s1628, [#allocation29], 64, 64, 4
        $region104: #{forward.1} parent=11 // pred_fallthru
          _
        // Predicated region
        $region105: #{forward.1} parent=11 // pred_check
          %p1634 = pneg %p666
        $region106: #{forward.1} parent=11 // pred_check_branch
          %1636 = sbr.rel (%p1634) target = $region108
        $region107: #{forward.1} parent=11 // pred_region
          %s1638 = ssub.s32 512, 512
          %1639 = vsyncadd [#allocation32], %s1638
          %s1640 = sshll.u32 [#allocation31], 4
          %s1641 = int_to_ptr.vmem [resolvable:$true] %s1640
          %1646 = dma.hbm_to_vmem [thread:$0]  %s49, 512, %s1641, [#allocation32], 64, 64, 4
        $region108: #{forward.1} parent=11 // pred_fallthru
          _
        // Predicated region
        $region109: #{forward.1} parent=11 // pred_check
          %p1647 = pneg %p687
        $region110: #{forward.1} parent=11 // pred_check_branch
          %1649 = sbr.rel (%p1647) target = $region112
        $region111: #{forward.1} parent=11 // pred_region
          %s1651 = ssub.s32 512, 512
          %1652 = vsyncadd [#allocation32], %s1651
          %s1653 = sshll.u32 [#allocation33], 4
          %s1654 = int_to_ptr.vmem [resolvable:$true] %s1653
          %1659 = dma.hbm_to_vmem [thread:$0]  %s51, 512, %s1654, [#allocation32], 64, 64, 4
        $region112: #{forward.1} parent=11 // pred_fallthru
          _
        // Predicated region
        $region113: #{forward.1} parent=11 // pred_check
          %p1660 = pneg %p708
        $region114: #{forward.1} parent=11 // pred_check_branch
          %1662 = sbr.rel (%p1660) target = $region116
        $region115: #{forward.1} parent=11 // pred_region
          %s1664 = ssub.s32 16, 16
          %1665 = vsyncadd [#allocation35], %s1664
          %s1667 = sshll.u32 [#allocation34], 4
          %s1668 = int_to_ptr.vmem [resolvable:$true] %s1667
          %1670 = dma.hbm_to_vmem [thread:$0]  %s53, 16, %s1668, [#allocation35]
        $region116: #{forward.1} parent=11 // pred_fallthru
          _
        // Predicated region
        $region117: #{forward.1} parent=11 // pred_check
          %p1671 = pneg %p729
        $region118: #{forward.1} parent=11 // pred_check_branch
          %1673 = sbr.rel (%p1671) target = $region120
        $region119: #{forward.1} parent=11 // pred_region
          %s1675 = ssub.s32 128, 128
          %1676 = vsyncadd [#allocation35], %s1675
          %s1677 = sshll.u32 [#allocation36], 4
          %s1678 = int_to_ptr.vmem [resolvable:$true] %s1677
          %1683 = dma.hbm_to_vmem [thread:$0]  %s55, 128, %s1678, [#allocation35], 64, 64, 4
        $region120: #{forward.1} parent=11 // pred_fallthru
          _
        // Predicated region
        $region121: #{forward.1} parent=11 // pred_check
          %p1684 = pneg %p750
        $region122: #{forward.1} parent=11 // pred_check_branch
          %1686 = sbr.rel (%p1684) target = $region124
        $region123: #{forward.1} parent=11 // pred_region
          %s1688 = ssub.s32 128, 128
          %1689 = vsyncadd [#allocation38], %s1688
          %s1690 = sshll.u32 [#allocation37], 4
          %s1691 = int_to_ptr.vmem [resolvable:$true] %s1690
          %1696 = dma.hbm_to_vmem [thread:$0]  %s57, 128, %s1691, [#allocation38], 64, 64, 4
        $region124: #{forward.1} parent=11 // pred_fallthru
          _
        // Predicated region
        $region125: #{forward.1} parent=11 // pred_check
          %p1697 = pneg %p771
        $region126: #{forward.1} parent=11 // pred_check_branch
          %1699 = sbr.rel (%p1697) target = $region128
        $region127: #{forward.1} parent=11 // pred_region
          _
        $region128: #{forward.1} parent=11 // pred_fallthru
          _
        // Predicated region
        $region129: #{forward.1} parent=11 // pred_check
          %p1700 = pneg %p792
        $region130: #{forward.1} parent=11 // pred_check_branch
          %1702 = sbr.rel (%p1700) target = $region132
        $region131: #{forward.1} parent=11 // pred_region
          _
        $region132: #{forward.1} parent=11 // pred_fallthru
          _
        // Predicated region
        $region133: #{forward.1} parent=11 // pred_check
          %p1703 = pneg %p813
        $region134: #{forward.1} parent=11 // pred_check_branch
          %1705 = sbr.rel (%p1703) target = $region136
        $region135: #{forward.1} parent=11 // pred_region
          %s1707 = ssub.s32 1024, 1024
          %1708 = vsyncadd [#allocation38], %s1707
          %s1709 = sshll.u32 [#allocation39], 4
          %s1710 = int_to_ptr.vmem [resolvable:$true] %s1709
          %1715 = dma.hbm_to_vmem [thread:$0]  %s63, 1024, %s1710, [#allocation38], 64, 64, 4
        $region136: #{forward.1} parent=11 // pred_fallthru
          _
        // Predicated region
        $region137: #{forward.1} parent=11 // pred_check
          %p1716 = pneg %p834
        $region138: #{forward.1} parent=11 // pred_check_branch
          %1718 = sbr.rel (%p1716) target = $region140
        $region139: #{forward.1} parent=11 // pred_region
          %s1720 = ssub.s32 16, 16
          %1721 = vsyncadd [#allocation41], %s1720
          %s1723 = sshll.u32 [#allocation40], 4
          %s1724 = int_to_ptr.vmem [resolvable:$true] %s1723
          %1726 = dma.hbm_to_vmem [thread:$0]  %s65, 16, %s1724, [#allocation41]
        $region140: #{forward.1} parent=11 // pred_fallthru
          _
        // Predicated region
        $region141: #{forward.1} parent=11 // pred_check
          %p1727 = pneg %p855
        $region142: #{forward.1} parent=11 // pred_check_branch
          %1729 = sbr.rel (%p1727) target = $region144
        $region143: #{forward.1} parent=11 // pred_region
          %s1731 = ssub.s32 64, 64
          %1732 = vsyncadd [#allocation41], %s1731
          %s1734 = sshll.u32 [#allocation42], 4
          %s1735 = int_to_ptr.vmem [resolvable:$true] %s1734
          %1737 = dma.hbm_to_vmem [thread:$0]  %s67, 64, %s1735, [#allocation41]
        $region144: #{forward.1} parent=11 // pred_fallthru
          _
        // Predicated region
        $region145: #{forward.1} parent=11 // pred_check
          %p1738 = pneg %p876
        $region146: #{forward.1} parent=11 // pred_check_branch
          %1740 = sbr.rel (%p1738) target = $region148
        $region147: #{forward.1} parent=11 // pred_region
          %s1742 = ssub.s32 64, 64
          %1743 = vsyncadd [#allocation44], %s1742
          %s1745 = sshll.u32 [#allocation43], 4
          %s1746 = int_to_ptr.vmem [resolvable:$true] %s1745
          %1748 = dma.hbm_to_vmem [thread:$0]  %s69, 64, %s1746, [#allocation44]
        $region148: #{forward.1} parent=11 // pred_fallthru
          _
        // Predicated region
        $region149: #{forward.1} parent=11 // pred_check
          %p1749 = pneg %p897
        $region150: #{forward.1} parent=11 // pred_check_branch
          %1751 = sbr.rel (%p1749) target = $region152
        $region151: #{forward.1} parent=11 // pred_region
          _
        $region152: #{forward.1} parent=11 // pred_fallthru
          _
        // Predicated region
        $region153: #{forward.1} parent=11 // pred_check
          %p1752 = pneg %p918
        $region154: #{forward.1} parent=11 // pred_check_branch
          %1754 = sbr.rel (%p1752) target = $region156
        $region155: #{forward.1} parent=11 // pred_region
          _
        $region156: #{forward.1} parent=11 // pred_fallthru
          _
        // Predicated region
        $region157: #{forward.1} parent=11 // pred_check
          %p1755 = pneg %p939
        $region158: #{forward.1} parent=11 // pred_check_branch
          %1757 = sbr.rel (%p1755) target = $region160
        $region159: #{forward.1} parent=11 // pred_region
          _
        $region160: #{forward.1} parent=11 // pred_fallthru
          _
        // Predicated region
        $region161: #{forward.1} parent=11 // pred_check
          %p1758 = pneg %p960
        $region162: #{forward.1} parent=11 // pred_check_branch
          %1760 = sbr.rel (%p1758) target = $region164
        $region163: #{forward.1} parent=11 // pred_region
          _
        $region164: #{forward.1} parent=11 // pred_fallthru
          _
        // Predicated region
        $region165: #{forward.1} parent=11 // pred_check
          %p1761 = pneg %p981
        $region166: #{forward.1} parent=11 // pred_check_branch
          %1763 = sbr.rel (%p1761) target = $region168
        $region167: #{forward.1} parent=11 // pred_region
          _
        $region168: #{forward.1} parent=11 // pred_fallthru
          _
        // Predicated region
        $region169: #{forward.1} parent=11 // pred_check
          %p1764 = pneg %p1002
        $region170: #{forward.1} parent=11 // pred_check_branch
          %1766 = sbr.rel (%p1764) target = $region172
        $region171: #{forward.1} parent=11 // pred_region
          _
        $region172: #{forward.1} parent=11 // pred_fallthru
          _
        // Predicated region
        $region173: #{forward.1} parent=11 // pred_check
          %p1767 = pneg %p1023
        $region174: #{forward.1} parent=11 // pred_check_branch
          %1769 = sbr.rel (%p1767) target = $region176
        $region175: #{forward.1} parent=11 // pred_region
          _
        $region176: #{forward.1} parent=11 // pred_fallthru
          _
        // Predicated region
        $region177: #{forward.1} parent=11 // pred_check
          %p1770 = pneg %p1044
        $region178: #{forward.1} parent=11 // pred_check_branch
          %1772 = sbr.rel (%p1770) target = $region180
        $region179: #{forward.1} parent=11 // pred_region
          _
        $region180: #{forward.1} parent=11 // pred_fallthru
          _
        // Predicated region
        $region181: #{forward.1} parent=11 // pred_check
          %p1773 = pneg %p1065
        $region182: #{forward.1} parent=11 // pred_check_branch
          %1775 = sbr.rel (%p1773) target = $region184
        $region183: #{forward.1} parent=11 // pred_region
          _
        $region184: #{forward.1} parent=11 // pred_fallthru
          _
        // Predicated region
        $region185: #{forward.1} parent=11 // pred_check
          %p1776 = pneg %p1086
        $region186: #{forward.1} parent=11 // pred_check_branch
          %1778 = sbr.rel (%p1776) target = $region188
        $region187: #{forward.1} parent=11 // pred_region
          _
        $region188: #{forward.1} parent=11 // pred_fallthru
          _
        // Predicated region
        $region189: #{forward.1} parent=11 // pred_check
          %p1779 = pneg %p1107
        $region190: #{forward.1} parent=11 // pred_check_branch
          %1781 = sbr.rel (%p1779) target = $region192
        $region191: #{forward.1} parent=11 // pred_region
          _
        $region192: #{forward.1} parent=11 // pred_fallthru
          _
        // Predicated region
        $region193: #{forward.1} parent=11 // pred_check
          %p1782 = pneg %p1128
        $region194: #{forward.1} parent=11 // pred_check_branch
          %1784 = sbr.rel (%p1782) target = $region196
        $region195: #{forward.1} parent=11 // pred_region
          _
        $region196: #{forward.1} parent=11 // pred_fallthru
          _
        // Predicated region
        $region197: #{forward.1} parent=11 // pred_check
          %p1785 = pneg %p1149
        $region198: #{forward.1} parent=11 // pred_check_branch
          %1787 = sbr.rel (%p1785) target = $region200
        $region199: #{forward.1} parent=11 // pred_region
          _
        $region200: #{forward.1} parent=11 // pred_fallthru
          _
        // Predicated region
        $region201: #{forward.1} parent=11 // pred_check
          %p1788 = pneg %p1170
        $region202: #{forward.1} parent=11 // pred_check_branch
          %1790 = sbr.rel (%p1788) target = $region204
        $region203: #{forward.1} parent=11 // pred_region
          _
        $region204: #{forward.1} parent=11 // pred_fallthru
          _
        // Predicated region
        $region205: #{forward.1} parent=11 // pred_check
          %p1791 = pneg %p1191
        $region206: #{forward.1} parent=11 // pred_check_branch
          %1793 = sbr.rel (%p1791) target = $region208
        $region207: #{forward.1} parent=11 // pred_region
          _
        $region208: #{forward.1} parent=11 // pred_fallthru
          _
        // Predicated region
        $region209: #{forward.1} parent=11 // pred_check
          %p1794 = pneg %p1212
        $region210: #{forward.1} parent=11 // pred_check_branch
          %1796 = sbr.rel (%p1794) target = $region212
        $region211: #{forward.1} parent=11 // pred_region
          _
        $region212: #{forward.1} parent=11 // pred_fallthru
          _
        // Predicated region
        $region213: #{forward.1} parent=11 // pred_check
          %p1797 = pneg %p1233
        $region214: #{forward.1} parent=11 // pred_check_branch
          %1799 = sbr.rel (%p1797) target = $region216
        $region215: #{forward.1} parent=11 // pred_region
          _
        $region216: #{forward.1} parent=11 // pred_fallthru
          _
        // Predicated region
        $region217: #{forward.1} parent=11 // pred_check
          %p1800 = pneg %p1254
        $region218: #{forward.1} parent=11 // pred_check_branch
          %1802 = sbr.rel (%p1800) target = $region220
        $region219: #{forward.1} parent=11 // pred_region
          _
        $region220: #{forward.1} parent=11 // pred_fallthru
          _
        // Predicated region
        $region221: #{forward.1} parent=11 // pred_check
          %p1803 = pneg %p1275
        $region222: #{forward.1} parent=11 // pred_check_branch
          %1805 = sbr.rel (%p1803) target = $region224
        $region223: #{forward.1} parent=11 // pred_region
          _
        $region224: #{forward.1} parent=11 // pred_fallthru
          _
        // Predicated region
        $region225: #{forward.1} parent=11 // pred_check
          %p1806 = pneg %p1296
        $region226: #{forward.1} parent=11 // pred_check_branch
          %1808 = sbr.rel (%p1806) target = $region228
        $region227: #{forward.1} parent=11 // pred_region
          _
        $region228: #{forward.1} parent=11 // pred_fallthru
          _
        // Predicated region
        $region229: #{forward.1} parent=11 // pred_check
          %p1809 = pneg %p1317
        $region230: #{forward.1} parent=11 // pred_check_branch
          %1811 = sbr.rel (%p1809) target = $region232
        $region231: #{forward.1} parent=11 // pred_region
          _
        $region232: #{forward.1} parent=11 // pred_fallthru
          _
        // Predicated region
        $region233: #{forward.1} parent=11 // pred_check
          %p1812 = pneg %p1338
        $region234: #{forward.1} parent=11 // pred_check_branch
          %1814 = sbr.rel (%p1812) target = $region236
        $region235: #{forward.1} parent=11 // pred_region
          _
        $region236: #{forward.1} parent=11 // pred_fallthru
          _
      $region12: #{forward.1} parent=5 // pred_fallthru
        _
      %p1815 = scmp.lt.s32.totalorder %s136, 2
      // Predicated region
      $region237: #{forward.1} parent=5 // pred_check
        %p1816 = pneg %p1815
      $region238: #{forward.1} parent=5 // pred_check_branch
        %1818 = sbr.rel (%p1816) target = $region240
      $region239: #{forward.1} parent=5 // pred_region
        // Predicated region
        $region241: #{forward.1} parent=239 // pred_check
          %p1819 = pneg %p156
        $region242: #{forward.1} parent=239 // pred_check_branch
          %1821 = sbr.rel (%p1819) target = $region244
        $region243: #{forward.1} parent=239 // pred_region
          %p1822 = scmp.lt.s32.totalorder %s136, 1
          %s1823 = scalar_select %p1822, %s136, 1
          %s1824 = smul.addr %s1823, 8
          %s1825 = smul.addr %s1824, 8
          %s1826 = scalar_lea.vmem %s1, %s1825
        $region244: #{forward.1} parent=239 // pred_fallthru
          _
      $region240: #{forward.1} parent=5 // pred_fallthru
        _
      %p1827 = scmp.le.s32.totalorder 1, %s136
      %p1828 = scmp.lt.s32.totalorder %s136, 3
      %p1829 = pnand %p1827, %p1828
      %p1830 = pneg %p1829
      // Predicated region
      $region245: #{forward.1} parent=5 // pred_check
        _
      $region246: #{forward.1} parent=5 // pred_check_branch
        %1832 = sbr.rel (%p1829) target = $region248
      $region247: #{forward.1} parent=5 // pred_region
        %s1833 = ssub.s32 %s136, 1
        // Predicated region
        $region249: #{forward.1} parent=247 // pred_check
          %p1834 = pneg %p183
        $region250: #{forward.1} parent=247 // pred_check_branch
          %1836 = sbr.rel (%p1834) target = $region252
        $region251: #{forward.1} parent=247 // pred_region
          %1837 = dma.done [#allocation3], 512
        $region252: #{forward.1} parent=247 // pred_fallthru
          _
        // Predicated region
        $region253: #{forward.1} parent=247 // pred_check
          %p1838 = pneg %p204
        $region254: #{forward.1} parent=247 // pred_check_branch
          %1840 = sbr.rel (%p1838) target = $region256
        $region255: #{forward.1} parent=247 // pred_region
          %1841 = dma.done [#allocation5], 512
        $region256: #{forward.1} parent=247 // pred_fallthru
          _
        // Predicated region
        $region257: #{forward.1} parent=247 // pred_check
          %p1842 = pneg %p225
        $region258: #{forward.1} parent=247 // pred_check_branch
          %1844 = sbr.rel (%p1842) target = $region260
        $region259: #{forward.1} parent=247 // pred_region
          %1845 = dma.done [#allocation5], 256
        $region260: #{forward.1} parent=247 // pred_fallthru
          _
        // Predicated region
        $region261: #{forward.1} parent=247 // pred_check
          %p1846 = pneg %p246
        $region262: #{forward.1} parent=247 // pred_check_branch
          %1848 = sbr.rel (%p1846) target = $region264
        $region263: #{forward.1} parent=247 // pred_region
          %1849 = dma.done [#allocation8], 256
        $region264: #{forward.1} parent=247 // pred_fallthru
          _
        // Predicated region
        $region265: #{forward.1} parent=247 // pred_check
          %p1850 = pneg %p267
        $region266: #{forward.1} parent=247 // pred_check_branch
          %1852 = sbr.rel (%p1850) target = $region268
        $region267: #{forward.1} parent=247 // pred_region
          %1853 = dma.done [#allocation8], 256
        $region268: #{forward.1} parent=247 // pred_fallthru
          _
        // Predicated region
        $region269: #{forward.1} parent=247 // pred_check
          %p1854 = pneg %p288
        $region270: #{forward.1} parent=247 // pred_check_branch
          %1856 = sbr.rel (%p1854) target = $region272
        $region271: #{forward.1} parent=247 // pred_region
          %1857 = dma.done [#allocation11], 16
        $region272: #{forward.1} parent=247 // pred_fallthru
          _
        // Predicated region
        $region273: #{forward.1} parent=247 // pred_check
          %p1858 = pneg %p351
        $region274: #{forward.1} parent=247 // pred_check_branch
          %1860 = sbr.rel (%p1858) target = $region276
        $region275: #{forward.1} parent=247 // pred_region
          %1861 = dma.done [#allocation11], 256
        $region276: #{forward.1} parent=247 // pred_fallthru
          _
        // Predicated region
        $region277: #{forward.1} parent=247 // pred_check
          %p1862 = pneg %p372
        $region278: #{forward.1} parent=247 // pred_check_branch
          %1864 = sbr.rel (%p1862) target = $region280
        $region279: #{forward.1} parent=247 // pred_region
          %1865 = dma.done [#allocation14], 256
        $region280: #{forward.1} parent=247 // pred_fallthru
          _
        // Predicated region
        $region281: #{forward.1} parent=247 // pred_check
          %p1866 = pneg %p393
        $region282: #{forward.1} parent=247 // pred_check_branch
          %1868 = sbr.rel (%p1866) target = $region284
        $region283: #{forward.1} parent=247 // pred_region
          %1869 = dma.done [#allocation14], 256
        $region284: #{forward.1} parent=247 // pred_fallthru
          _
        // Predicated region
        $region285: #{forward.1} parent=247 // pred_check
          %p1870 = pneg %p414
        $region286: #{forward.1} parent=247 // pred_check_branch
          %1872 = sbr.rel (%p1870) target = $region288
        $region287: #{forward.1} parent=247 // pred_region
          %1873 = dma.done [#allocation17], 256
        $region288: #{forward.1} parent=247 // pred_fallthru
          _
        // Predicated region
        $region289: #{forward.1} parent=247 // pred_check
          %p1874 = pneg %p435
        $region290: #{forward.1} parent=247 // pred_check_branch
          %1876 = sbr.rel (%p1874) target = $region292
        $region291: #{forward.1} parent=247 // pred_region
          %1877 = dma.done [#allocation17], 512
        $region292: #{forward.1} parent=247 // pred_fallthru
          _
        // Predicated region
        $region293: #{forward.1} parent=247 // pred_check
          %p1878 = pneg %p456
        $region294: #{forward.1} parent=247 // pred_check_branch
          %1880 = sbr.rel (%p1878) target = $region296
        $region295: #{forward.1} parent=247 // pred_region
          %1881 = dma.done [#allocation20], 512
        $region296: #{forward.1} parent=247 // pred_fallthru
          _
        // Predicated region
        $region297: #{forward.1} parent=247 // pred_check
          %p1882 = pneg %p477
        $region298: #{forward.1} parent=247 // pred_check_branch
          %1884 = sbr.rel (%p1882) target = $region300
        $region299: #{forward.1} parent=247 // pred_region
          %1885 = dma.done [#allocation20], 512
        $region300: #{forward.1} parent=247 // pred_fallthru
          _
        // Predicated region
        $region301: #{forward.1} parent=247 // pred_check
          %p1886 = pneg %p498
        $region302: #{forward.1} parent=247 // pred_check_branch
          %1888 = sbr.rel (%p1886) target = $region304
        $region303: #{forward.1} parent=247 // pred_region
          %1889 = dma.done [#allocation23], 16
        $region304: #{forward.1} parent=247 // pred_fallthru
          _
        // Predicated region
        $region305: #{forward.1} parent=247 // pred_check
          %p1890 = pneg %p561
        $region306: #{forward.1} parent=247 // pred_check_branch
          %1892 = sbr.rel (%p1890) target = $region308
        $region307: #{forward.1} parent=247 // pred_region
          %1893 = dma.done [#allocation23], 128
        $region308: #{forward.1} parent=247 // pred_fallthru
          _
        // Predicated region
        $region309: #{forward.1} parent=247 // pred_check
          %p1894 = pneg %p582
        $region310: #{forward.1} parent=247 // pred_check_branch
          %1896 = sbr.rel (%p1894) target = $region312
        $region311: #{forward.1} parent=247 // pred_region
          %1897 = dma.done [#allocation26], 128
        $region312: #{forward.1} parent=247 // pred_fallthru
          _
        // Predicated region
        $region313: #{forward.1} parent=247 // pred_check
          %p1898 = pneg %p603
        $region314: #{forward.1} parent=247 // pred_check_branch
          %1900 = sbr.rel (%p1898) target = $region316
        $region315: #{forward.1} parent=247 // pred_region
          %1901 = dma.done [#allocation26], 128
        $region316: #{forward.1} parent=247 // pred_fallthru
          _
        // Predicated region
        $region317: #{forward.1} parent=247 // pred_check
          %p1902 = pneg %p624
        $region318: #{forward.1} parent=247 // pred_check_branch
          %1904 = sbr.rel (%p1902) target = $region320
        $region319: #{forward.1} parent=247 // pred_region
          %1905 = dma.done [#allocation29], 128
        $region320: #{forward.1} parent=247 // pred_fallthru
          _
        // Predicated region
        $region321: #{forward.1} parent=247 // pred_check
          %p1906 = pneg %p645
        $region322: #{forward.1} parent=247 // pred_check_branch
          %1908 = sbr.rel (%p1906) target = $region324
        $region323: #{forward.1} parent=247 // pred_region
          %1909 = dma.done [#allocation29], 512
        $region324: #{forward.1} parent=247 // pred_fallthru
          _
        // Predicated region
        $region325: #{forward.1} parent=247 // pred_check
          %p1910 = pneg %p666
        $region326: #{forward.1} parent=247 // pred_check_branch
          %1912 = sbr.rel (%p1910) target = $region328
        $region327: #{forward.1} parent=247 // pred_region
          %1913 = dma.done [#allocation32], 512
        $region328: #{forward.1} parent=247 // pred_fallthru
          _
        // Predicated region
        $region329: #{forward.1} parent=247 // pred_check
          %p1914 = pneg %p687
        $region330: #{forward.1} parent=247 // pred_check_branch
          %1916 = sbr.rel (%p1914) target = $region332
        $region331: #{forward.1} parent=247 // pred_region
          %1917 = dma.done [#allocation32], 512
        $region332: #{forward.1} parent=247 // pred_fallthru
          _
        // Predicated region
        $region333: #{forward.1} parent=247 // pred_check
          %p1918 = pneg %p708
        $region334: #{forward.1} parent=247 // pred_check_branch
          %1920 = sbr.rel (%p1918) target = $region336
        $region335: #{forward.1} parent=247 // pred_region
          %1921 = dma.done [#allocation35], 16
        $region336: #{forward.1} parent=247 // pred_fallthru
          _
        // Predicated region
        $region337: #{forward.1} parent=247 // pred_check
          %p1922 = pneg %p729
        $region338: #{forward.1} parent=247 // pred_check_branch
          %1924 = sbr.rel (%p1922) target = $region340
        $region339: #{forward.1} parent=247 // pred_region
          %1925 = dma.done [#allocation35], 128
        $region340: #{forward.1} parent=247 // pred_fallthru
          _
        // Predicated region
        $region341: #{forward.1} parent=247 // pred_check
          %p1926 = pneg %p750
        $region342: #{forward.1} parent=247 // pred_check_branch
          %1928 = sbr.rel (%p1926) target = $region344
        $region343: #{forward.1} parent=247 // pred_region
          %1929 = dma.done [#allocation38], 128
        $region344: #{forward.1} parent=247 // pred_fallthru
          _
        // Predicated region
        $region345: #{forward.1} parent=247 // pred_check
          %p1930 = pneg %p813
        $region346: #{forward.1} parent=247 // pred_check_branch
          %1932 = sbr.rel (%p1930) target = $region348
        $region347: #{forward.1} parent=247 // pred_region
          %1933 = dma.done [#allocation38], 1024
        $region348: #{forward.1} parent=247 // pred_fallthru
          _
        // Predicated region
        $region349: #{forward.1} parent=247 // pred_check
          %p1934 = pneg %p834
        $region350: #{forward.1} parent=247 // pred_check_branch
          %1936 = sbr.rel (%p1934) target = $region352
        $region351: #{forward.1} parent=247 // pred_region
          %1937 = dma.done [#allocation41], 16
        $region352: #{forward.1} parent=247 // pred_fallthru
          _
        // Predicated region
        $region353: #{forward.1} parent=247 // pred_check
          %p1938 = pneg %p855
        $region354: #{forward.1} parent=247 // pred_check_branch
          %1940 = sbr.rel (%p1938) target = $region356
        $region355: #{forward.1} parent=247 // pred_region
          %1941 = dma.done [#allocation41], 64
        $region356: #{forward.1} parent=247 // pred_fallthru
          _
        // Predicated region
        $region357: #{forward.1} parent=247 // pred_check
          %p1942 = pneg %p876
        $region358: #{forward.1} parent=247 // pred_check_branch
          %1944 = sbr.rel (%p1942) target = $region360
        $region359: #{forward.1} parent=247 // pred_region
          %1945 = dma.done [#allocation44], 64
        $region360: #{forward.1} parent=247 // pred_fallthru
          _
        %p1946 = scmp.lt.s32.totalorder %s141, 1
        %s1947 = scalar_select %p1946, %s141, 1
        %s1948 = smul.addr %s1947, 8
        %s1949 = smul.addr %s1948, 8
        %s1950 = scalar_lea.vmem %s1, %s1949
        %p1951 = pneg %p162
        %p1952 = pneg %p159
        %p1953 = pneg %p183
        %p1954 = pneg %p180
        %p1955 = pneg %p204
        %p1956 = pneg %p201
        %p1957 = pneg %p225
        %p1958 = pneg %p222
        %p1959 = pneg %p246
        %p1960 = pneg %p243
        %p1961 = pneg %p267
        %p1962 = pneg %p264
        %p1963 = pneg %p288
        %p1964 = pneg %p285
        %p1965 = pneg %p309
        %p1966 = pneg %p306
        %p1967 = pneg %p330
        %p1968 = pneg %p327
        %p1969 = pneg %p351
        %p1970 = pneg %p348
        %p1971 = pneg %p372
        %p1972 = pneg %p369
        %p1973 = pneg %p393
        %p1974 = pneg %p390
        %p1975 = pneg %p414
        %p1976 = pneg %p411
        %p1977 = pneg %p435
        %p1978 = pneg %p432
        %p1979 = pneg %p456
        %p1980 = pneg %p453
        %p1981 = pneg %p477
        %p1982 = pneg %p474
        %p1983 = pneg %p498
        %p1984 = pneg %p495
        %p1985 = pneg %p519
        %p1986 = pneg %p516
        %p1987 = pneg %p540
        %p1988 = pneg %p537
        %p1989 = pneg %p561
        %p1990 = pneg %p558
        %p1991 = pneg %p582
        %p1992 = pneg %p579
        %p1993 = pneg %p603
        %p1994 = pneg %p600
        %p1995 = pneg %p624
        %p1996 = pneg %p621
        %p1997 = pneg %p645
        %p1998 = pneg %p642
        %p1999 = pneg %p666
        %p2000 = pneg %p663
        %p2001 = pneg %p687
        %p2002 = pneg %p684
        %p2003 = pneg %p708
        %p2004 = pneg %p705
        %p2005 = pneg %p729
        %p2006 = pneg %p726
        %p2007 = pneg %p750
        %p2008 = pneg %p747
        %p2009 = pneg %p771
        %p2010 = pneg %p768
        %p2011 = pneg %p792
        %p2012 = pneg %p789
        %p2013 = pneg %p813
        %p2014 = pneg %p810
        %p2015 = pneg %p834
        %p2016 = pneg %p831
        %p2017 = pneg %p855
        %p2018 = pneg %p852
        %p2019 = pneg %p876
        %p2020 = pneg %p873
        %p2021 = pneg %p897
        %p2022 = pneg %p894
        %p2023 = pneg %p918
        %p2024 = pneg %p915
        %p2025 = pneg %p939
        %p2026 = pneg %p936
        %p2027 = pneg %p960
        %p2028 = pneg %p957
        %p2029 = pneg %p981
        %p2030 = pneg %p978
        %p2031 = pneg %p1002
        %p2032 = pneg %p999
        %p2033 = pneg %p1023
        %p2034 = pneg %p1020
        %p2035 = pneg %p1044
        %p2036 = pneg %p1041
        %p2037 = pneg %p1065
        %p2038 = pneg %p1062
        %p2039 = pneg %p1086
        %p2040 = pneg %p1083
        %p2041 = pneg %p1107
        %p2042 = pneg %p1104
        %p2043 = pneg %p1128
        %p2044 = pneg %p1125
        %p2045 = pneg %p1149
        %p2046 = pneg %p1146
        %p2047 = pneg %p1170
        %p2048 = pneg %p1167
        %p2049 = pneg %p1191
        %p2050 = pneg %p1188
        %p2051 = pneg %p1212
        %p2052 = pneg %p1209
        %p2053 = pneg %p1233
        %p2054 = pneg %p1230
        %p2055 = pneg %p1254
        %p2056 = pneg %p1251
        %p2057 = pneg %p1275
        %p2058 = pneg %p1272
        %p2059 = pneg %p1296
        %p2060 = pneg %p1293
        %p2061 = pneg %p1317
        %p2062 = pneg %p1314
        %p2063 = pneg %p1338
        %p2064 = pneg %p1335
        %p2065 = pneg %p1364
        %p2066 = pneg %p1361
        %p2067 = scmp.lt.s32.totalorder %s141, 1
        %s2068 = scalar_select %p2067, %s141, 1
        %s2069 = smul.addr %s2068, 4
        %s2070 = scalar_lea.vmem %s115, %s2069
        %p2071 = scmp.lt.s32.totalorder %s141, 1
        %s2072 = scalar_select %p2071, %s141, 1
        %s2073 = smul.addr %s2072, 8
        %s2074 = smul.addr %s2073, 8
        %s2075 = scalar_lea.vmem %s1, %s2074
        %p2076 = scmp.lt.s32.totalorder %s141, 1
        %s2077 = scalar_select %p2076, %s141, 1
        %s2078 = smul.addr %s2077, 4
        %s2079 = scalar_lea.vmem %s115, %s2078
        %v2081 = vld [vmem:[%s2075] sm:$0xff]
        %v2082 = vld [vmem:[%s2075 + $0x8] sm:$0xff]
        %v2083 = vld [vmem:[%s2075 + $0x10] sm:$0xff]
        %v2084 = vld [vmem:[%s2075 + $0x18] sm:$0xff]
        %v2085 = vld [vmem:[%s2075 + $0x20] sm:$0xff]
        %v2086 = vld [vmem:[%s2075 + $0x28] sm:$0xff]
        %v2087 = vld [vmem:[%s2075 + $0x30] sm:$0xff]
        %v2088 = vld [vmem:[%s2075 + $0x38] sm:$0xff]
        %v2089 = vld [vmem:[#allocation2] sm:$0xf]
        %v2090 = vld [vmem:[#allocation2 + $0x4] sm:$0xf]
        %v2091 = vld [vmem:[#allocation2 + $0x8] sm:$0xf]
        %v2092 = vld [vmem:[#allocation2 + $0xc] sm:$0xf]
        %v2093 = vld [vmem:[#allocation2 + $0x10] sm:$0xf]
        %v2094 = vld [vmem:[#allocation2 + $0x14] sm:$0xf]
        %v2095 = vld [vmem:[#allocation2 + $0x18] sm:$0xf]
        %v2096 = vld [vmem:[#allocation2 + $0x1c] sm:$0xf]
        %v2097 = vpack.c.bf16 %v2082, %v2081
        %v2098 = vpack.c.bf16 %v2084, %v2083
        %v2099 = vpack.c.bf16 %v2086, %v2085
        %v2100 = vpack.c.bf16 %v2088, %v2087
        %v2109 = vunpack.c.l.b16 %v2089
        %v2110 = vunpack.c.l.b16 %v2090
        %v2111 = vunpack.c.l.b16 %v2091
        %v2112 = vunpack.c.l.b16 %v2092
        %v2113 = vunpack.c.l.b16 %v2093
        %v2114 = vunpack.c.l.b16 %v2094
        %v2115 = vunpack.c.l.b16 %v2095
        %v2116 = vunpack.c.l.b16 %v2096
        %v2117 = vpack.c.b16 %v2110, %v2109
        %v2118 = vpack.c.b16 %v2112, %v2111
        %v2119 = vpack.c.b16 %v2114, %v2113
        %v2120 = vpack.c.b16 %v2116, %v2115
        %vm2121 = vcmask 523264
        %v2123 = vsel %vm2121, %v2117, 0
        %v2126 = vsel %vm2121, %v2118, 0
        %v2129 = vsel %vm2121, %v2119, 0
        %v2132 = vsel %vm2121, %v2120, 0
        %2134 = vmatprep.subr.bf16.mxu0 0
        %2135 = vmatpush1.bf16.msra.mxu0 %v2097
        %2136 = vmatprep.subr.bf16.mxu0 0
        %2137 = vmatpush1.bf16.msra.mxu0 %v2098
        %2138 = vmatprep.subr.bf16.mxu0 0
        %2139 = vmatpush1.bf16.msra.mxu0 %v2099
        %2140 = vmatprep.subr.bf16.mxu0 0
        %2141 = vmatpush1.bf16.msra.mxu0 %v2100
        %2142 = vmatprep.subr.bf16.mxu0 0
        %2143 = vmatpush1.bf16.msra.mxu0 0
        %2144 = vmatprep.subr.bf16.mxu0 0
        %2145 = vmatpush1.bf16.msra.mxu0 0
        %2146 = vmatprep.subr.bf16.mxu0 0
        %2147 = vmatpush1.bf16.msra.mxu0 0
        %2148 = vmatprep.subr.bf16.mxu0 0
        %2149 = vmatpush1.bf16.msra.mxu0 0
        %2150 = vmatprep.subr.bf16.mxu0 0
        %2151 = vmatpush1.bf16.msra.mxu0 0
        %2152 = vmatprep.subr.bf16.mxu0 0
        %2153 = vmatpush1.bf16.msra.mxu0 0
        %2154 = vmatprep.subr.bf16.mxu0 0
        %2155 = vmatpush1.bf16.msra.mxu0 0
        %2156 = vmatprep.subr.bf16.mxu0 0
        %2157 = vmatpush1.bf16.msra.mxu0 0
        %2158 = vmatprep.subr.bf16.mxu0 0
        %2159 = vmatpush1.bf16.msra.mxu0 0
        %2160 = vmatprep.subr.bf16.mxu0 0
        %2161 = vmatpush1.bf16.msra.mxu0 0
        %2162 = vmatprep.subr.bf16.mxu0 0
        %2163 = vmatpush1.bf16.msra.mxu0 0
        %2164 = vmatprep.subr.bf16.mxu0 0
        %2165 = vmatpush1.bf16.msra.mxu0 0
        %2166 = vmatprep.mubr.bf16.mxu0 0
        %2167 = vmatmul.mubr.bf16.gmra.mrb[0].mxu0 %v2123
        %v2168 = vpop.f32.mrb[0].mxu0
        %v2169 = vadd.f32 0.0, %v2168
        %v2170 = vpop.f32.mrb[0].mxu0
        %v2171 = vpop.f32.mrb[0].mxu0
        %v2172 = vadd.f32 0.0, %v2171
        %v2173 = vpop.f32.mrb[0].mxu0
        %2174 = vmatprep.mubr.bf16.mxu0 0
        %2175 = vmatmul.mubr.bf16.gmra.mrb[0].mxu0 %v2126
        %v2176 = vpop.f32.mrb[0].mxu0
        %v2177 = vadd.f32 0.0, %v2176
        %v2178 = vpop.f32.mrb[0].mxu0
        %v2179 = vpop.f32.mrb[0].mxu0
        %v2180 = vadd.f32 0.0, %v2179
        %v2181 = vpop.f32.mrb[0].mxu0
        %2182 = vmatprep.mubr.bf16.mxu0 0
        %2183 = vmatmul.mubr.bf16.gmra.mrb[0].mxu0 %v2129
        %v2184 = vpop.f32.mrb[0].mxu0
        %v2185 = vadd.f32 0.0, %v2184
        %v2186 = vpop.f32.mrb[0].mxu0
        %v2187 = vpop.f32.mrb[0].mxu0
        %v2188 = vadd.f32 0.0, %v2187
        %v2189 = vpop.f32.mrb[0].mxu0
        %2190 = vmatprep.mubr.bf16.mxu0 0
        %2191 = vmatmul.mubr.bf16.gmra.mrb[0].mxu0 %v2132
        %v2192 = vpop.f32.mrb[0].mxu0
        %v2193 = vadd.f32 0.0, %v2192
        %v2194 = vpop.f32.mrb[0].mxu0
        %v2195 = vpop.f32.mrb[0].mxu0
        %v2196 = vadd.f32 0.0, %v2195
        %v2197 = vpop.f32.mrb[0].mxu0
        %2198 = vdwg.mxu0
        %v2199 = vpack.c.bf16 %v2172, %v2169
        %v2200 = vpack.c.bf16 %v2180, %v2177
        %v2201 = vpack.c.bf16 %v2188, %v2185
        %v2202 = vpack.c.bf16 %v2196, %v2193
        %v2203 = vld [vmem:[#allocation6] sm:$0xf]
        %v2204 = vld [vmem:[#allocation6 + $0x4] sm:$0xf]
        %v2205 = vld [vmem:[#allocation6 + $0x8] sm:$0xf]
        %v2206 = vld [vmem:[#allocation6 + $0xc] sm:$0xf]
        %v2207 = vld [vmem:[#allocation7] sm:$0xf]
        %v2208 = vld [vmem:[#allocation7 + $0x4] sm:$0xf]
        %v2209 = vld [vmem:[#allocation7 + $0x8] sm:$0xf]
        %v2210 = vld [vmem:[#allocation7 + $0xc] sm:$0xf]
        %v2215 = vunpack.c.l.b16 %v2207
        %v2216 = vunpack.c.l.b16 %v2208
        %v2217 = vunpack.c.l.b16 %v2209
        %v2218 = vunpack.c.l.b16 %v2210
        %v2219 = vpack.c.b16 %v2216, %v2215
        %v2220 = vpack.c.b16 %v2218, %v2217
        %vm2223 = vcmask 261120
        %v2225 = vsel %vm2223, %v2097, 0
        %v2228 = vsel %vm2223, %v2098, 0
        %v2231 = vsel %vm2223, %v2099, 0
        %v2234 = vsel %vm2223, %v2100, 0
        %2236 = vmatprep.subr.bf16.mxu0 0
        %2237 = vmatpush1.bf16.msra.mxu0 %v2219
        %2238 = vmatprep.subr.bf16.mxu0 0
        %2239 = vmatpush1.bf16.msra.mxu0 %v2220
        %2240 = vmatprep.subr.bf16.mxu0 0
        %2241 = vmatpush1.bf16.msra.mxu0 0
        %2242 = vmatprep.subr.bf16.mxu0 0
        %2243 = vmatpush1.bf16.msra.mxu0 0
        %2244 = vmatprep.subr.bf16.mxu0 0
        %2245 = vmatpush1.bf16.msra.mxu0 0
        %2246 = vmatprep.subr.bf16.mxu0 0
        %2247 = vmatpush1.bf16.msra.mxu0 0
        %2248 = vmatprep.subr.bf16.mxu0 0
        %2249 = vmatpush1.bf16.msra.mxu0 0
        %2250 = vmatprep.subr.bf16.mxu0 0
        %2251 = vmatpush1.bf16.msra.mxu0 0
        %2252 = vmatprep.subr.bf16.mxu0 0
        %2253 = vmatpush1.bf16.msra.mxu0 0
        %2254 = vmatprep.subr.bf16.mxu0 0
        %2255 = vmatpush1.bf16.msra.mxu0 0
        %2256 = vmatprep.subr.bf16.mxu0 0
        %2257 = vmatpush1.bf16.msra.mxu0 0
        %2258 = vmatprep.subr.bf16.mxu0 0
        %2259 = vmatpush1.bf16.msra.mxu0 0
        %2260 = vmatprep.subr.bf16.mxu0 0
        %2261 = vmatpush1.bf16.msra.mxu0 0
        %2262 = vmatprep.subr.bf16.mxu0 0
        %2263 = vmatpush1.bf16.msra.mxu0 0
        %2264 = vmatprep.subr.bf16.mxu0 0
        %2265 = vmatpush1.bf16.msra.mxu0 0
        %2266 = vmatprep.subr.bf16.mxu0 0
        %2267 = vmatpush1.bf16.msra.mxu0 0
        %2268 = vmatprep.mubr.bf16.mxu0 0
        %2269 = vmatmul.mubr.bf16.gmra.mrb[0].mxu0 %v2225
        %v2270 = vpop.f32.mrb[0].mxu0
        %v2271 = vadd.f32 0.0, %v2270
        %v2272 = vpop.f32.mrb[0].mxu0
        %v2273 = vpop.f32.mrb[0].mxu0
        %v2274 = vadd.f32 0.0, %v2273
        %v2275 = vpop.f32.mrb[0].mxu0
        %2276 = vmatprep.mubr.bf16.mxu0 0
        %2277 = vmatmul.mubr.bf16.gmra.mrb[0].mxu0 %v2228
        %v2278 = vpop.f32.mrb[0].mxu0
        %v2279 = vadd.f32 0.0, %v2278
        %v2280 = vpop.f32.mrb[0].mxu0
        %v2281 = vpop.f32.mrb[0].mxu0
        %v2282 = vadd.f32 0.0, %v2281
        %v2283 = vpop.f32.mrb[0].mxu0
        %2284 = vmatprep.mubr.bf16.mxu0 0
        %2285 = vmatmul.mubr.bf16.gmra.mrb[0].mxu0 %v2231
        %v2286 = vpop.f32.mrb[0].mxu0
        %v2287 = vadd.f32 0.0, %v2286
        %v2288 = vpop.f32.mrb[0].mxu0
        %v2289 = vpop.f32.mrb[0].mxu0
        %v2290 = vadd.f32 0.0, %v2289
        %v2291 = vpop.f32.mrb[0].mxu0
        %2292 = vmatprep.mubr.bf16.mxu0 0
        %2293 = vmatmul.mubr.bf16.gmra.mrb[0].mxu0 %v2234
        %v2294 = vpop.f32.mrb[0].mxu0
        %v2295 = vadd.f32 0.0, %v2294
        %v2296 = vpop.f32.mrb[0].mxu0
        %v2297 = vpop.f32.mrb[0].mxu0
        %v2298 = vadd.f32 0.0, %v2297
        %v2299 = vpop.f32.mrb[0].mxu0
        %2300 = vdwg.mxu0
        %v2305 = vunpack.c.l.b16 %v2203
        %v2306 = vunpack.c.l.b16 %v2204
        %v2307 = vunpack.c.l.b16 %v2205
        %v2308 = vunpack.c.l.b16 %v2206
        %v2309 = vpack.c.b16 %v2306, %v2305
        %v2310 = vpack.c.b16 %v2308, %v2307
        %v2314 = vsel %vm2223, %v2199, 0
        %v2317 = vsel %vm2223, %v2200, 0
        %v2320 = vsel %vm2223, %v2201, 0
        %v2323 = vsel %vm2223, %v2202, 0
        %2325 = vmatprep.subr.bf16.mxu0 0
        %2326 = vmatpush1.bf16.msra.mxu0 %v2309
        %2327 = vmatprep.subr.bf16.mxu0 0
        %2328 = vmatpush1.bf16.msra.mxu0 %v2310
        %2329 = vmatprep.subr.bf16.mxu0 0
        %2330 = vmatpush1.bf16.msra.mxu0 0
        %2331 = vmatprep.subr.bf16.mxu0 0
        %2332 = vmatpush1.bf16.msra.mxu0 0
        %2333 = vmatprep.subr.bf16.mxu0 0
        %2334 = vmatpush1.bf16.msra.mxu0 0
        %2335 = vmatprep.subr.bf16.mxu0 0
        %2336 = vmatpush1.bf16.msra.mxu0 0
        %2337 = vmatprep.subr.bf16.mxu0 0
        %2338 = vmatpush1.bf16.msra.mxu0 0
        %2339 = vmatprep.subr.bf16.mxu0 0
        %2340 = vmatpush1.bf16.msra.mxu0 0
        %2341 = vmatprep.subr.bf16.mxu0 0
        %2342 = vmatpush1.bf16.msra.mxu0 0
        %2343 = vmatprep.subr.bf16.mxu0 0
        %2344 = vmatpush1.bf16.msra.mxu0 0
        %2345 = vmatprep.subr.bf16.mxu0 0
        %2346 = vmatpush1.bf16.msra.mxu0 0
        %2347 = vmatprep.subr.bf16.mxu0 0
        %2348 = vmatpush1.bf16.msra.mxu0 0
        %2349 = vmatprep.subr.bf16.mxu0 0
        %2350 = vmatpush1.bf16.msra.mxu0 0
        %2351 = vmatprep.subr.bf16.mxu0 0
        %2352 = vmatpush1.bf16.msra.mxu0 0
        %2353 = vmatprep.subr.bf16.mxu0 0
        %2354 = vmatpush1.bf16.msra.mxu0 0
        %2355 = vmatprep.subr.bf16.mxu0 0
        %2356 = vmatpush1.bf16.msra.mxu0 0
        %2357 = vmatprep.mubr.bf16.mxu0 0
        %2358 = vmatmul.mubr.bf16.gmra.mrb[0].mxu0 %v2314
        %v2359 = vpop.f32.mrb[0].mxu0
        %v2360 = vadd.f32 %v2271, %v2359
        %v2361 = vpop.f32.mrb[0].mxu0
        %v2362 = vpop.f32.mrb[0].mxu0
        %v2363 = vadd.f32 %v2274, %v2362
        %v2364 = vpop.f32.mrb[0].mxu0
        %2365 = vmatprep.mubr.bf16.mxu0 0
        %2366 = vmatmul.mubr.bf16.gmra.mrb[0].mxu0 %v2317
        %v2367 = vpop.f32.mrb[0].mxu0
        %v2368 = vadd.f32 %v2279, %v2367
        %v2369 = vpop.f32.mrb[0].mxu0
        %v2370 = vpop.f32.mrb[0].mxu0
        %v2371 = vadd.f32 %v2282, %v2370
        %v2372 = vpop.f32.mrb[0].mxu0
        %2373 = vmatprep.mubr.bf16.mxu0 0
        %2374 = vmatmul.mubr.bf16.gmra.mrb[0].mxu0 %v2320
        %v2375 = vpop.f32.mrb[0].mxu0
        %v2376 = vadd.f32 %v2287, %v2375
        %v2377 = vpop.f32.mrb[0].mxu0
        %v2378 = vpop.f32.mrb[0].mxu0
        %v2379 = vadd.f32 %v2290, %v2378
        %v2380 = vpop.f32.mrb[0].mxu0
        %2381 = vmatprep.mubr.bf16.mxu0 0
        %2382 = vmatmul.mubr.bf16.gmra.mrb[0].mxu0 %v2323
        %v2383 = vpop.f32.mrb[0].mxu0
        %v2384 = vadd.f32 %v2295, %v2383
        %v2385 = vpop.f32.mrb[0].mxu0
        %v2386 = vpop.f32.mrb[0].mxu0
        %v2387 = vadd.f32 %v2298, %v2386
        %v2388 = vpop.f32.mrb[0].mxu0
        %2389 = vdwg.mxu0
        %v2390 = vld [vmem:[#allocation4] sm:$0xf]
        %v2391 = vld [vmem:[#allocation4 + $0x4] sm:$0xf]
        %v2392 = vld [vmem:[#allocation4 + $0x8] sm:$0xf]
        %v2393 = vld [vmem:[#allocation4 + $0xc] sm:$0xf]
        %v2394 = vld [vmem:[#allocation4 + $0x10] sm:$0xf]
        %v2395 = vld [vmem:[#allocation4 + $0x14] sm:$0xf]
        %v2396 = vld [vmem:[#allocation4 + $0x18] sm:$0xf]
        %v2397 = vld [vmem:[#allocation4 + $0x1c] sm:$0xf]
        %v2406 = vunpack.c.l.b16 %v2390
        %v2407 = vunpack.c.l.b16 %v2391
        %v2408 = vunpack.c.l.b16 %v2392
        %v2409 = vunpack.c.l.b16 %v2393
        %v2410 = vunpack.c.l.b16 %v2394
        %v2411 = vunpack.c.l.b16 %v2395
        %v2412 = vunpack.c.l.b16 %v2396
        %v2413 = vunpack.c.l.b16 %v2397
        %v2414 = vpack.c.b16 %v2407, %v2406
        %v2415 = vpack.c.b16 %v2409, %v2408
        %v2416 = vpack.c.b16 %v2411, %v2410
        %v2417 = vpack.c.b16 %v2413, %v2412
        %v2419 = vsel %vm2121, %v2414, 0
        %v2422 = vsel %vm2121, %v2415, 0
        %v2425 = vsel %vm2121, %v2416, 0
        %v2428 = vsel %vm2121, %v2417, 0
        %2430 = vmatprep.subr.bf16.mxu0 0
        %2431 = vmatpush1.bf16.msra.mxu0 %v2097
        %2432 = vmatprep.subr.bf16.mxu0 0
        %2433 = vmatpush1.bf16.msra.mxu0 %v2098
        %2434 = vmatprep.subr.bf16.mxu0 0
        %2435 = vmatpush1.bf16.msra.mxu0 %v2099
        %2436 = vmatprep.subr.bf16.mxu0 0
        %2437 = vmatpush1.bf16.msra.mxu0 %v2100
        %2438 = vmatprep.subr.bf16.mxu0 0
        %2439 = vmatpush1.bf16.msra.mxu0 0
        %2440 = vmatprep.subr.bf16.mxu0 0
        %2441 = vmatpush1.bf16.msra.mxu0 0
        %2442 = vmatprep.subr.bf16.mxu0 0
        %2443 = vmatpush1.bf16.msra.mxu0 0
        %2444 = vmatprep.subr.bf16.mxu0 0
        %2445 = vmatpush1.bf16.msra.mxu0 0
        %2446 = vmatprep.subr.bf16.mxu0 0
        %2447 = vmatpush1.bf16.msra.mxu0 0
        %2448 = vmatprep.subr.bf16.mxu0 0
        %2449 = vmatpush1.bf16.msra.mxu0 0
        %2450 = vmatprep.subr.bf16.mxu0 0
        %2451 = vmatpush1.bf16.msra.mxu0 0
        %2452 = vmatprep.subr.bf16.mxu0 0
        %2453 = vmatpush1.bf16.msra.mxu0 0
        %2454 = vmatprep.subr.bf16.mxu0 0
        %2455 = vmatpush1.bf16.msra.mxu0 0
        %2456 = vmatprep.subr.bf16.mxu0 0
        %2457 = vmatpush1.bf16.msra.mxu0 0
        %2458 = vmatprep.subr.bf16.mxu0 0
        %2459 = vmatpush1.bf16.msra.mxu0 0
        %2460 = vmatprep.subr.bf16.mxu0 0
        %2461 = vmatpush1.bf16.msra.mxu0 0
        %2462 = vmatprep.mubr.bf16.mxu0 0
        %2463 = vmatmul.mubr.bf16.gmra.mrb[0].mxu0 %v2419
        %v2464 = vpop.f32.mrb[0].mxu0
        %v2465 = vadd.f32 0.0, %v2464
        %v2466 = vpop.f32.mrb[0].mxu0
        %v2467 = vpop.f32.mrb[0].mxu0
        %v2468 = vadd.f32 0.0, %v2467
        %v2469 = vpop.f32.mrb[0].mxu0
        %2470 = vmatprep.mubr.bf16.mxu0 0
        %2471 = vmatmul.mubr.bf16.gmra.mrb[0].mxu0 %v2422
        %v2472 = vpop.f32.mrb[0].mxu0
        %v2473 = vadd.f32 0.0, %v2472
        %v2474 = vpop.f32.mrb[0].mxu0
        %v2475 = vpop.f32.mrb[0].mxu0
        %v2476 = vadd.f32 0.0, %v2475
        %v2477 = vpop.f32.mrb[0].mxu0
        %2478 = vmatprep.mubr.bf16.mxu0 0
        %2479 = vmatmul.mubr.bf16.gmra.mrb[0].mxu0 %v2425
        %v2480 = vpop.f32.mrb[0].mxu0
        %v2481 = vadd.f32 0.0, %v2480
        %v2482 = vpop.f32.mrb[0].mxu0
        %v2483 = vpop.f32.mrb[0].mxu0
        %v2484 = vadd.f32 0.0, %v2483
        %v2485 = vpop.f32.mrb[0].mxu0
        %2486 = vmatprep.mubr.bf16.mxu0 0
        %2487 = vmatmul.mubr.bf16.gmra.mrb[0].mxu0 %v2428
        %v2488 = vpop.f32.mrb[0].mxu0
        %v2489 = vadd.f32 0.0, %v2488
        %v2490 = vpop.f32.mrb[0].mxu0
        %v2491 = vpop.f32.mrb[0].mxu0
        %v2492 = vadd.f32 0.0, %v2491
        %v2493 = vpop.f32.mrb[0].mxu0
        %2494 = vdwg.mxu0
        %v2495 = vpack.c.bf16 %v2468, %v2465
        %v2496 = vpack.c.bf16 %v2476, %v2473
        %v2497 = vpack.c.bf16 %v2484, %v2481
        %v2498 = vpack.c.bf16 %v2492, %v2489
        %v2499 = vld [vmem:[#allocation9] sm:$0xf]
        %v2500 = vld [vmem:[#allocation9 + $0x4] sm:$0xf]
        %v2501 = vld [vmem:[#allocation9 + $0x8] sm:$0xf]
        %v2502 = vld [vmem:[#allocation9 + $0xc] sm:$0xf]
        %v2507 = vunpack.c.l.b16 %v2499
        %v2508 = vunpack.c.l.b16 %v2500
        %v2509 = vunpack.c.l.b16 %v2501
        %v2510 = vunpack.c.l.b16 %v2502
        %v2511 = vpack.c.b16 %v2508, %v2507
        %v2512 = vpack.c.b16 %v2510, %v2509
        %v2516 = vsel %vm2223, %v2495, 0
        %v2519 = vsel %vm2223, %v2496, 0
        %v2522 = vsel %vm2223, %v2497, 0
        %v2525 = vsel %vm2223, %v2498, 0
        %2527 = vmatprep.subr.bf16.mxu0 0
        %2528 = vmatpush1.bf16.msra.mxu0 %v2511
        %2529 = vmatprep.subr.bf16.mxu0 0
        %2530 = vmatpush1.bf16.msra.mxu0 %v2512
        %2531 = vmatprep.subr.bf16.mxu0 0
        %2532 = vmatpush1.bf16.msra.mxu0 0
        %2533 = vmatprep.subr.bf16.mxu0 0
        %2534 = vmatpush1.bf16.msra.mxu0 0
        %2535 = vmatprep.subr.bf16.mxu0 0
        %2536 = vmatpush1.bf16.msra.mxu0 0
        %2537 = vmatprep.subr.bf16.mxu0 0
        %2538 = vmatpush1.bf16.msra.mxu0 0
        %2539 = vmatprep.subr.bf16.mxu0 0
        %2540 = vmatpush1.bf16.msra.mxu0 0
        %2541 = vmatprep.subr.bf16.mxu0 0
        %2542 = vmatpush1.bf16.msra.mxu0 0
        %2543 = vmatprep.subr.bf16.mxu0 0
        %2544 = vmatpush1.bf16.msra.mxu0 0
        %2545 = vmatprep.subr.bf16.mxu0 0
        %2546 = vmatpush1.bf16.msra.mxu0 0
        %2547 = vmatprep.subr.bf16.mxu0 0
        %2548 = vmatpush1.bf16.msra.mxu0 0
        %2549 = vmatprep.subr.bf16.mxu0 0
        %2550 = vmatpush1.bf16.msra.mxu0 0
        %2551 = vmatprep.subr.bf16.mxu0 0
        %2552 = vmatpush1.bf16.msra.mxu0 0
        %2553 = vmatprep.subr.bf16.mxu0 0
        %2554 = vmatpush1.bf16.msra.mxu0 0
        %2555 = vmatprep.subr.bf16.mxu0 0
        %2556 = vmatpush1.bf16.msra.mxu0 0
        %2557 = vmatprep.subr.bf16.mxu0 0
        %2558 = vmatpush1.bf16.msra.mxu0 0
        %2559 = vmatprep.mubr.bf16.mxu0 0
        %2560 = vmatmul.mubr.bf16.gmra.mrb[0].mxu0 %v2516
        %v2561 = vpop.f32.mrb[0].mxu0
        %v2562 = vadd.f32 0.0, %v2561
        %v2563 = vpop.f32.mrb[0].mxu0
        %v2564 = vpop.f32.mrb[0].mxu0
        %v2565 = vadd.f32 0.0, %v2564
        %v2566 = vpop.f32.mrb[0].mxu0
        %2567 = vmatprep.mubr.bf16.mxu0 0
        %2568 = vmatmul.mubr.bf16.gmra.mrb[0].mxu0 %v2519
        %v2569 = vpop.f32.mrb[0].mxu0
        %v2570 = vadd.f32 0.0, %v2569
        %v2571 = vpop.f32.mrb[0].mxu0
        %v2572 = vpop.f32.mrb[0].mxu0
        %v2573 = vadd.f32 0.0, %v2572
        %v2574 = vpop.f32.mrb[0].mxu0
        %2575 = vmatprep.mubr.bf16.mxu0 0
        %2576 = vmatmul.mubr.bf16.gmra.mrb[0].mxu0 %v2522
        %v2577 = vpop.f32.mrb[0].mxu0
        %v2578 = vadd.f32 0.0, %v2577
        %v2579 = vpop.f32.mrb[0].mxu0
        %v2580 = vpop.f32.mrb[0].mxu0
        %v2581 = vadd.f32 0.0, %v2580
        %v2582 = vpop.f32.mrb[0].mxu0
        %2583 = vmatprep.mubr.bf16.mxu0 0
        %2584 = vmatmul.mubr.bf16.gmra.mrb[0].mxu0 %v2525
        %v2585 = vpop.f32.mrb[0].mxu0
        %v2586 = vadd.f32 0.0, %v2585
        %v2587 = vpop.f32.mrb[0].mxu0
        %v2588 = vpop.f32.mrb[0].mxu0
        %v2589 = vadd.f32 0.0, %v2588
        %v2590 = vpop.f32.mrb[0].mxu0
        %2591 = vdwg.mxu0
        %v2592 = vadd.f32 %v2360, %v2562
        %v2593 = vadd.f32 %v2363, %v2565
        %v2594 = vadd.f32 %v2368, %v2570
        %v2595 = vadd.f32 %v2371, %v2573
        %v2596 = vadd.f32 %v2376, %v2578
        %v2597 = vadd.f32 %v2379, %v2581
        %v2598 = vadd.f32 %v2384, %v2586
        %v2599 = vadd.f32 %v2387, %v2589
        %v2600 = vld [vmem:[#allocation10] sm:$0x1]
        %v2602 = vlaneseq
        %v2603 = vshrl.u32 %v2602, 7
        %v2604 = vsub.s32 0, %v2603
        %v2605 = vrot.slane %v2600, %v2604
        %v2607 = vadd.f32 %v2592, %v2605
        %v2608 = vadd.f32 %v2593, %v2605
        %v2609 = vadd.f32 %v2594, %v2605
        %v2610 = vadd.f32 %v2595, %v2605
        %v2611 = vadd.f32 %v2596, %v2605
        %v2612 = vadd.f32 %v2597, %v2605
        %v2613 = vadd.f32 %v2598, %v2605
        %v2614 = vadd.f32 %v2599, %v2605
        %v2615 = vmax.f32 %v2607, 0.0
        %v2616 = vmax.f32 %v2608, 0.0
        %v2617 = vmax.f32 %v2609, 0.0
        %v2618 = vmax.f32 %v2610, 0.0
        %v2619 = vmax.f32 %v2611, 0.0
        %v2620 = vmax.f32 %v2612, 0.0
        %v2621 = vmax.f32 %v2613, 0.0
        %v2622 = vmax.f32 %v2614, 0.0
        %v2623 = vpack.c.bf16 %v2616, %v2615
        %v2624 = vpack.c.bf16 %v2618, %v2617
        %v2625 = vpack.c.bf16 %v2620, %v2619
        %v2626 = vpack.c.bf16 %v2622, %v2621
        %v2627 = vld [vmem:[%s15] sm:$0xf]
        %v2628 = vld [vmem:[%s15 + $0x4] sm:$0xf]
        %v2629 = vld [vmem:[%s15 + $0x8] sm:$0xf]
        %v2630 = vld [vmem:[%s15 + $0xc] sm:$0xf]
        %v2631 = vld [vmem:[%s15 + $0x10] sm:$0xf]
        %v2632 = vld [vmem:[%s15 + $0x14] sm:$0xf]
        %v2633 = vld [vmem:[%s15 + $0x18] sm:$0xf]
        %v2634 = vld [vmem:[%s15 + $0x1c] sm:$0xf]
        %v2635 = vld [vmem:[%s15 + $0x20] sm:$0xf]
        %v2636 = vld [vmem:[%s15 + $0x24] sm:$0xf]
        %v2637 = vld [vmem:[%s15 + $0x28] sm:$0xf]
        %v2638 = vld [vmem:[%s15 + $0x2c] sm:$0xf]
        %v2639 = vld [vmem:[%s15 + $0x30] sm:$0xf]
        %v2640 = vld [vmem:[%s15 + $0x34] sm:$0xf]
        %v2641 = vld [vmem:[%s15 + $0x38] sm:$0xf]
        %v2642 = vld [vmem:[%s15 + $0x3c] sm:$0xf]
        %v2659 = vunpack.c.l.b16 %v2627
        %v2660 = vunpack.c.l.b16 %v2628
        %v2661 = vunpack.c.l.b16 %v2629
        %v2662 = vunpack.c.l.b16 %v2630
        %v2663 = vunpack.c.l.b16 %v2631
        %v2664 = vunpack.c.l.b16 %v2632
        %v2665 = vunpack.c.l.b16 %v2633
        %v2666 = vunpack.c.l.b16 %v2634
        %v2667 = vunpack.c.l.b16 %v2635
        %v2668 = vunpack.c.l.b16 %v2636
        %v2669 = vunpack.c.l.b16 %v2637
        %v2670 = vunpack.c.l.b16 %v2638
        %v2671 = vunpack.c.l.b16 %v2639
        %v2672 = vunpack.c.l.b16 %v2640
        %v2673 = vunpack.c.l.b16 %v2641
        %v2674 = vunpack.c.l.b16 %v2642
        %v2675 = vpack.c.b16 %v2660, %v2659
        %v2676 = vpack.c.b16 %v2662, %v2661
        %v2677 = vpack.c.b16 %v2664, %v2663
        %v2678 = vpack.c.b16 %v2666, %v2665
        %v2679 = vpack.c.b16 %v2668, %v2667
        %v2680 = vpack.c.b16 %v2670, %v2669
        %v2681 = vpack.c.b16 %v2672, %v2671
        %v2682 = vpack.c.b16 %v2674, %v2673
        %2691 = vmatprep.subr.bf16.mxu0 0
        %2692 = vmatpush1.bf16.msra.mxu0 %v2675
        %2693 = vmatprep.subr.bf16.mxu0 0
        %2694 = vmatpush1.bf16.msra.mxu0 %v2676
        %2695 = vmatprep.subr.bf16.mxu0 0
        %2696 = vmatpush1.bf16.msra.mxu0 %v2677
        %2697 = vmatprep.subr.bf16.mxu0 0
        %2698 = vmatpush1.bf16.msra.mxu0 %v2678
        %2699 = vmatprep.subr.bf16.mxu0 0
        %2700 = vmatpush1.bf16.msra.mxu0 %v2679
        %2701 = vmatprep.subr.bf16.mxu0 0
        %2702 = vmatpush1.bf16.msra.mxu0 %v2680
        %2703 = vmatprep.subr.bf16.mxu0 0
        %2704 = vmatpush1.bf16.msra.mxu0 %v2681
        %2705 = vmatprep.subr.bf16.mxu0 0
        %2706 = vmatpush1.bf16.msra.mxu0 %v2682
        %2707 = vmatprep.subr.bf16.mxu0 0
        %2708 = vmatpush1.bf16.msra.mxu0 0
        %2709 = vmatprep.subr.bf16.mxu0 0
        %2710 = vmatpush1.bf16.msra.mxu0 0
        %2711 = vmatprep.subr.bf16.mxu0 0
        %2712 = vmatpush1.bf16.msra.mxu0 0
        %2713 = vmatprep.subr.bf16.mxu0 0
        %2714 = vmatpush1.bf16.msra.mxu0 0
        %2715 = vmatprep.subr.bf16.mxu0 0
        %2716 = vmatpush1.bf16.msra.mxu0 0
        %2717 = vmatprep.subr.bf16.mxu0 0
        %2718 = vmatpush1.bf16.msra.mxu0 0
        %2719 = vmatprep.subr.bf16.mxu0 0
        %2720 = vmatpush1.bf16.msra.mxu0 0
        %2721 = vmatprep.subr.bf16.mxu0 0
        %2722 = vmatpush1.bf16.msra.mxu0 0
        %2723 = vmatprep.mubr.bf16.mxu0 0
        %2724 = vmatmul.mubr.bf16.gmra.mrb[0].mxu0 %v2623
        %v2725 = vpop.f32.mrb[0].mxu0
        %v2726 = vadd.f32 0.0, %v2725
        %v2727 = vpop.f32.mrb[0].mxu0
        %v2728 = vpop.f32.mrb[0].mxu0
        %v2729 = vadd.f32 0.0, %v2728
        %v2730 = vpop.f32.mrb[0].mxu0
        %2731 = vmatprep.mubr.bf16.mxu0 0
        %2732 = vmatmul.mubr.bf16.gmra.mrb[0].mxu0 %v2624
        %v2733 = vpop.f32.mrb[0].mxu0
        %v2734 = vadd.f32 0.0, %v2733
        %v2735 = vpop.f32.mrb[0].mxu0
        %v2736 = vpop.f32.mrb[0].mxu0
        %v2737 = vadd.f32 0.0, %v2736
        %v2738 = vpop.f32.mrb[0].mxu0
        %2739 = vmatprep.mubr.bf16.mxu0 0
        %2740 = vmatmul.mubr.bf16.gmra.mrb[0].mxu0 %v2625
        %v2741 = vpop.f32.mrb[0].mxu0
        %v2742 = vadd.f32 0.0, %v2741
        %v2743 = vpop.f32.mrb[0].mxu0
        %v2744 = vpop.f32.mrb[0].mxu0
        %v2745 = vadd.f32 0.0, %v2744
        %v2746 = vpop.f32.mrb[0].mxu0
        %2747 = vmatprep.mubr.bf16.mxu0 0
        %2748 = vmatmul.mubr.bf16.gmra.mrb[0].mxu0 %v2626
        %v2749 = vpop.f32.mrb[0].mxu0
        %v2750 = vadd.f32 0.0, %v2749
        %v2751 = vpop.f32.mrb[0].mxu0
        %v2752 = vpop.f32.mrb[0].mxu0
        %v2753 = vadd.f32 0.0, %v2752
        %v2754 = vpop.f32.mrb[0].mxu0
        %2755 = vdwg.mxu0
        %v2756 = vld [vmem:[%s17] sm:$0xf]
        %v2757 = vld [vmem:[%s17 + $0x4] sm:$0xf]
        %v2758 = vld [vmem:[%s17 + $0x8] sm:$0xf]
        %v2759 = vld [vmem:[%s17 + $0xc] sm:$0xf]
        %v2760 = vld [vmem:[%s17 + $0x10] sm:$0xf]
        %v2761 = vld [vmem:[%s17 + $0x14] sm:$0xf]
        %v2762 = vld [vmem:[%s17 + $0x18] sm:$0xf]
        %v2763 = vld [vmem:[%s17 + $0x1c] sm:$0xf]
        %v2764 = vld [vmem:[%s17 + $0x20] sm:$0xf]
        %v2765 = vld [vmem:[%s17 + $0x24] sm:$0xf]
        %v2766 = vld [vmem:[%s17 + $0x28] sm:$0xf]
        %v2767 = vld [vmem:[%s17 + $0x2c] sm:$0xf]
        %v2768 = vld [vmem:[%s17 + $0x30] sm:$0xf]
        %v2769 = vld [vmem:[%s17 + $0x34] sm:$0xf]
        %v2770 = vld [vmem:[%s17 + $0x38] sm:$0xf]
        %v2771 = vld [vmem:[%s17 + $0x3c] sm:$0xf]
        %v2788 = vunpack.c.l.b16 %v2756
        %v2789 = vunpack.c.l.b16 %v2757
        %v2790 = vunpack.c.l.b16 %v2758
        %v2791 = vunpack.c.l.b16 %v2759
        %v2792 = vunpack.c.l.b16 %v2760
        %v2793 = vunpack.c.l.b16 %v2761
        %v2794 = vunpack.c.l.b16 %v2762
        %v2795 = vunpack.c.l.b16 %v2763
        %v2796 = vunpack.c.l.b16 %v2764
        %v2797 = vunpack.c.l.b16 %v2765
        %v2798 = vunpack.c.l.b16 %v2766
        %v2799 = vunpack.c.l.b16 %v2767
        %v2800 = vunpack.c.l.b16 %v2768
        %v2801 = vunpack.c.l.b16 %v2769
        %v2802 = vunpack.c.l.b16 %v2770
        %v2803 = vunpack.c.l.b16 %v2771
        %v2804 = vpack.c.b16 %v2789, %v2788
        %v2805 = vpack.c.b16 %v2791, %v2790
        %v2806 = vpack.c.b16 %v2793, %v2792
        %v2807 = vpack.c.b16 %v2795, %v2794
        %v2808 = vpack.c.b16 %v2797, %v2796
        %v2809 = vpack.c.b16 %v2799, %v2798
        %v2810 = vpack.c.b16 %v2801, %v2800
        %v2811 = vpack.c.b16 %v2803, %v2802
        %2820 = vmatprep.subr.bf16.mxu0 0
        %2821 = vmatpush1.bf16.msra.mxu0 %v2804
        %2822 = vmatprep.subr.bf16.mxu0 0
        %2823 = vmatpush1.bf16.msra.mxu0 %v2805
        %2824 = vmatprep.subr.bf16.mxu0 0
        %2825 = vmatpush1.bf16.msra.mxu0 %v2806
        %2826 = vmatprep.subr.bf16.mxu0 0
        %2827 = vmatpush1.bf16.msra.mxu0 %v2807
        %2828 = vmatprep.subr.bf16.mxu0 0
        %2829 = vmatpush1.bf16.msra.mxu0 %v2808
        %2830 = vmatprep.subr.bf16.mxu0 0
        %2831 = vmatpush1.bf16.msra.mxu0 %v2809
        %2832 = vmatprep.subr.bf16.mxu0 0
        %2833 = vmatpush1.bf16.msra.mxu0 %v2810
        %2834 = vmatprep.subr.bf16.mxu0 0
        %2835 = vmatpush1.bf16.msra.mxu0 %v2811
        %2836 = vmatprep.subr.bf16.mxu0 0
        %2837 = vmatpush1.bf16.msra.mxu0 0
        %2838 = vmatprep.subr.bf16.mxu0 0
        %2839 = vmatpush1.bf16.msra.mxu0 0
        %2840 = vmatprep.subr.bf16.mxu0 0
        %2841 = vmatpush1.bf16.msra.mxu0 0
        %2842 = vmatprep.subr.bf16.mxu0 0
        %2843 = vmatpush1.bf16.msra.mxu0 0
        %2844 = vmatprep.subr.bf16.mxu0 0
        %2845 = vmatpush1.bf16.msra.mxu0 0
        %2846 = vmatprep.subr.bf16.mxu0 0
        %2847 = vmatpush1.bf16.msra.mxu0 0
        %2848 = vmatprep.subr.bf16.mxu0 0
        %2849 = vmatpush1.bf16.msra.mxu0 0
        %2850 = vmatprep.subr.bf16.mxu0 0
        %2851 = vmatpush1.bf16.msra.mxu0 0
        %2852 = vmatprep.mubr.bf16.mxu0 0
        %2853 = vmatmul.mubr.bf16.gmra.mrb[0].mxu0 %v2623
        %v2854 = vpop.f32.mrb[0].mxu0
        %v2855 = vadd.f32 0.0, %v2854
        %v2856 = vpop.f32.mrb[0].mxu0
        %v2857 = vpop.f32.mrb[0].mxu0
        %v2858 = vadd.f32 0.0, %v2857
        %v2859 = vpop.f32.mrb[0].mxu0
        %2860 = vmatprep.mubr.bf16.mxu0 0
        %2861 = vmatmul.mubr.bf16.gmra.mrb[0].mxu0 %v2624
        %v2862 = vpop.f32.mrb[0].mxu0
        %v2863 = vadd.f32 0.0, %v2862
        %v2864 = vpop.f32.mrb[0].mxu0
        %v2865 = vpop.f32.mrb[0].mxu0
        %v2866 = vadd.f32 0.0, %v2865
        %v2867 = vpop.f32.mrb[0].mxu0
        %2868 = vmatprep.mubr.bf16.mxu0 0
        %2869 = vmatmul.mubr.bf16.gmra.mrb[0].mxu0 %v2625
        %v2870 = vpop.f32.mrb[0].mxu0
        %v2871 = vadd.f32 0.0, %v2870
        %v2872 = vpop.f32.mrb[0].mxu0
        %v2873 = vpop.f32.mrb[0].mxu0
        %v2874 = vadd.f32 0.0, %v2873
        %v2875 = vpop.f32.mrb[0].mxu0
        %2876 = vmatprep.mubr.bf16.mxu0 0
        %2877 = vmatmul.mubr.bf16.gmra.mrb[0].mxu0 %v2626
        %v2878 = vpop.f32.mrb[0].mxu0
        %v2879 = vadd.f32 0.0, %v2878
        %v2880 = vpop.f32.mrb[0].mxu0
        %v2881 = vpop.f32.mrb[0].mxu0
        %v2882 = vadd.f32 0.0, %v2881
        %v2883 = vpop.f32.mrb[0].mxu0
        %2884 = vdwg.mxu0
        %v2885 = vmax.f32 %v2726, %v2855
        %v2886 = vmax.f32 %v2729, %v2858
        %v2887 = vmax.f32 %v2734, %v2863
        %v2888 = vmax.f32 %v2737, %v2866
        %v2889 = vmax.f32 %v2742, %v2871
        %v2890 = vmax.f32 %v2745, %v2874
        %v2891 = vmax.f32 %v2750, %v2879
        %v2892 = vmax.f32 %v2753, %v2882
        %v2893 = vld [vmem:[#allocation12] sm:$0xf]
        %v2894 = vld [vmem:[#allocation12 + $0x4] sm:$0xf]
        %v2895 = vld [vmem:[#allocation12 + $0x8] sm:$0xf]
        %v2896 = vld [vmem:[#allocation12 + $0xc] sm:$0xf]
        %v2897 = vpack.c.bf16 %v2886, %v2885
        %v2898 = vpack.c.bf16 %v2888, %v2887
        %v2899 = vpack.c.bf16 %v2890, %v2889
        %v2900 = vpack.c.bf16 %v2892, %v2891
        %v2905 = vunpack.c.l.b16 %v2893
        %v2906 = vunpack.c.l.b16 %v2894
        %v2907 = vunpack.c.l.b16 %v2895
        %v2908 = vunpack.c.l.b16 %v2896
        %v2909 = vpack.c.b16 %v2906, %v2905
        %v2910 = vpack.c.b16 %v2908, %v2907
        %v2912 = vsel %vm2121, %v2909, 0
        %v2915 = vsel %vm2121, %v2910, 0
        %2917 = vmatprep.subr.bf16.mxu0 0
        %2918 = vmatpush1.bf16.msra.mxu0 %v2897
        %2919 = vmatprep.subr.bf16.mxu0 0
        %2920 = vmatpush1.bf16.msra.mxu0 %v2898
        %2921 = vmatprep.subr.bf16.mxu0 0
        %2922 = vmatpush1.bf16.msra.mxu0 %v2899
        %2923 = vmatprep.subr.bf16.mxu0 0
        %2924 = vmatpush1.bf16.msra.mxu0 %v2900
        %2925 = vmatprep.subr.bf16.mxu0 0
        %2926 = vmatpush1.bf16.msra.mxu0 0
        %2927 = vmatprep.subr.bf16.mxu0 0
        %2928 = vmatpush1.bf16.msra.mxu0 0
        %2929 = vmatprep.subr.bf16.mxu0 0
        %2930 = vmatpush1.bf16.msra.mxu0 0
        %2931 = vmatprep.subr.bf16.mxu0 0
        %2932 = vmatpush1.bf16.msra.mxu0 0
        %2933 = vmatprep.subr.bf16.mxu0 0
        %2934 = vmatpush1.bf16.msra.mxu0 0
        %2935 = vmatprep.subr.bf16.mxu0 0
        %2936 = vmatpush1.bf16.msra.mxu0 0
        %2937 = vmatprep.subr.bf16.mxu0 0
        %2938 = vmatpush1.bf16.msra.mxu0 0
        %2939 = vmatprep.subr.bf16.mxu0 0
        %2940 = vmatpush1.bf16.msra.mxu0 0
        %2941 = vmatprep.subr.bf16.mxu0 0
        %2942 = vmatpush1.bf16.msra.mxu0 0
        %2943 = vmatprep.subr.bf16.mxu0 0
        %2944 = vmatpush1.bf16.msra.mxu0 0
        %2945 = vmatprep.subr.bf16.mxu0 0
        %2946 = vmatpush1.bf16.msra.mxu0 0
        %2947 = vmatprep.subr.bf16.mxu0 0
        %2948 = vmatpush1.bf16.msra.mxu0 0
        %2949 = vmatprep.mubr.bf16.mxu0 0
        %2950 = vmatmul.mubr.bf16.gmra.mrb[0].mxu0 %v2912
        %v2951 = vpop.f32.mrb[0].mxu0
        %v2952 = vadd.f32 0.0, %v2951
        %v2953 = vpop.f32.mrb[0].mxu0
        %v2954 = vpop.f32.mrb[0].mxu0
        %v2955 = vadd.f32 0.0, %v2954
        %v2956 = vpop.f32.mrb[0].mxu0
        %2957 = vmatprep.mubr.bf16.mxu0 0
        %2958 = vmatmul.mubr.bf16.gmra.mrb[0].mxu0 %v2915
        %v2959 = vpop.f32.mrb[0].mxu0
        %v2960 = vadd.f32 0.0, %v2959
        %v2961 = vpop.f32.mrb[0].mxu0
        %v2962 = vpop.f32.mrb[0].mxu0
        %v2963 = vadd.f32 0.0, %v2962
        %v2964 = vpop.f32.mrb[0].mxu0
        %2965 = vdwg.mxu0
        %v2966 = vld [vmem:[#allocation13] sm:$0xf]
        %v2967 = vld [vmem:[#allocation13 + $0x4] sm:$0xf]
        %v2968 = vld [vmem:[#allocation13 + $0x8] sm:$0xf]
        %v2969 = vld [vmem:[#allocation13 + $0xc] sm:$0xf]
        %v2974 = vunpack.c.l.b16 %v2966
        %v2975 = vunpack.c.l.b16 %v2967
        %v2976 = vunpack.c.l.b16 %v2968
        %v2977 = vunpack.c.l.b16 %v2969
        %v2978 = vpack.c.b16 %v2975, %v2974
        %v2979 = vpack.c.b16 %v2977, %v2976
        %v2981 = vsel %vm2121, %v2978, 0
        %v2984 = vsel %vm2121, %v2979, 0
        %2986 = vmatprep.subr.bf16.mxu0 0
        %2987 = vmatpush1.bf16.msra.mxu0 %v2897
        %2988 = vmatprep.subr.bf16.mxu0 0
        %2989 = vmatpush1.bf16.msra.mxu0 %v2898
        %2990 = vmatprep.subr.bf16.mxu0 0
        %2991 = vmatpush1.bf16.msra.mxu0 %v2899
        %2992 = vmatprep.subr.bf16.mxu0 0
        %2993 = vmatpush1.bf16.msra.mxu0 %v2900
        %2994 = vmatprep.subr.bf16.mxu0 0
        %2995 = vmatpush1.bf16.msra.mxu0 0
        %2996 = vmatprep.subr.bf16.mxu0 0
        %2997 = vmatpush1.bf16.msra.mxu0 0
        %2998 = vmatprep.subr.bf16.mxu0 0
        %2999 = vmatpush1.bf16.msra.mxu0 0
        %3000 = vmatprep.subr.bf16.mxu0 0
        %3001 = vmatpush1.bf16.msra.mxu0 0
        %3002 = vmatprep.subr.bf16.mxu0 0
        %3003 = vmatpush1.bf16.msra.mxu0 0
        %3004 = vmatprep.subr.bf16.mxu0 0
        %3005 = vmatpush1.bf16.msra.mxu0 0
        %3006 = vmatprep.subr.bf16.mxu0 0
        %3007 = vmatpush1.bf16.msra.mxu0 0
        %3008 = vmatprep.subr.bf16.mxu0 0
        %3009 = vmatpush1.bf16.msra.mxu0 0
        %3010 = vmatprep.subr.bf16.mxu0 0
        %3011 = vmatpush1.bf16.msra.mxu0 0
        %3012 = vmatprep.subr.bf16.mxu0 0
        %3013 = vmatpush1.bf16.msra.mxu0 0
        %3014 = vmatprep.subr.bf16.mxu0 0
        %3015 = vmatpush1.bf16.msra.mxu0 0
        %3016 = vmatprep.subr.bf16.mxu0 0
        %3017 = vmatpush1.bf16.msra.mxu0 0
        %3018 = vmatprep.mubr.bf16.mxu0 0
        %3019 = vmatmul.mubr.bf16.gmra.mrb[0].mxu0 %v2981
        %v3020 = vpop.f32.mrb[0].mxu0
        %v3021 = vadd.f32 0.0, %v3020
        %v3022 = vpop.f32.mrb[0].mxu0
        %v3023 = vpop.f32.mrb[0].mxu0
        %v3024 = vadd.f32 0.0, %v3023
        %v3025 = vpop.f32.mrb[0].mxu0
        %3026 = vmatprep.mubr.bf16.mxu0 0
        %3027 = vmatmul.mubr.bf16.gmra.mrb[0].mxu0 %v2984
        %v3028 = vpop.f32.mrb[0].mxu0
        %v3029 = vadd.f32 0.0, %v3028
        %v3030 = vpop.f32.mrb[0].mxu0
        %v3031 = vpop.f32.mrb[0].mxu0
        %v3032 = vadd.f32 0.0, %v3031
        %v3033 = vpop.f32.mrb[0].mxu0
        %3034 = vdwg.mxu0
        %v3035 = vmax.f32 %v2952, %v3021
        %v3036 = vmax.f32 %v2955, %v3024
        %v3037 = vmax.f32 %v2960, %v3029
        %v3038 = vmax.f32 %v2963, %v3032
        %v3039 = vld [vmem:[#allocation15] sm:$0xf]
        %v3040 = vld [vmem:[#allocation15 + $0x4] sm:$0xf]
        %v3041 = vld [vmem:[#allocation15 + $0x8] sm:$0xf]
        %v3042 = vld [vmem:[#allocation15 + $0xc] sm:$0xf]
        %v3043 = vpack.c.bf16 %v3036, %v3035
        %v3044 = vpack.c.bf16 %v3038, %v3037
        %v3049 = vunpack.c.l.b16 %v3039
        %v3050 = vunpack.c.l.b16 %v3040
        %v3051 = vunpack.c.l.b16 %v3041
        %v3052 = vunpack.c.l.b16 %v3042
        %v3053 = vpack.c.b16 %v3050, %v3049
        %v3054 = vpack.c.b16 %v3052, %v3051
        %v3056 = vsel %vm2223, %v3053, 0
        %v3059 = vsel %vm2223, %v3054, 0
        %3061 = vmatprep.subr.bf16.mxu0 0
        %3062 = vmatpush1.bf16.msra.mxu0 %v3043
        %3063 = vmatprep.subr.bf16.mxu0 0
        %3064 = vmatpush1.bf16.msra.mxu0 %v3044
        %3065 = vmatprep.subr.bf16.mxu0 0
        %3066 = vmatpush1.bf16.msra.mxu0 0
        %3067 = vmatprep.subr.bf16.mxu0 0
        %3068 = vmatpush1.bf16.msra.mxu0 0
        %3069 = vmatprep.subr.bf16.mxu0 0
        %3070 = vmatpush1.bf16.msra.mxu0 0
        %3071 = vmatprep.subr.bf16.mxu0 0
        %3072 = vmatpush1.bf16.msra.mxu0 0
        %3073 = vmatprep.subr.bf16.mxu0 0
        %3074 = vmatpush1.bf16.msra.mxu0 0
        %3075 = vmatprep.subr.bf16.mxu0 0
        %3076 = vmatpush1.bf16.msra.mxu0 0
        %3077 = vmatprep.subr.bf16.mxu0 0
        %3078 = vmatpush1.bf16.msra.mxu0 0
        %3079 = vmatprep.subr.bf16.mxu0 0
        %3080 = vmatpush1.bf16.msra.mxu0 0
        %3081 = vmatprep.subr.bf16.mxu0 0
        %3082 = vmatpush1.bf16.msra.mxu0 0
        %3083 = vmatprep.subr.bf16.mxu0 0
        %3084 = vmatpush1.bf16.msra.mxu0 0
        %3085 = vmatprep.subr.bf16.mxu0 0
        %3086 = vmatpush1.bf16.msra.mxu0 0
        %3087 = vmatprep.subr.bf16.mxu0 0
        %3088 = vmatpush1.bf16.msra.mxu0 0
        %3089 = vmatprep.subr.bf16.mxu0 0
        %3090 = vmatpush1.bf16.msra.mxu0 0
        %3091 = vmatprep.subr.bf16.mxu0 0
        %3092 = vmatpush1.bf16.msra.mxu0 0
        %3093 = vmatprep.mubr.bf16.mxu0 0
        %3094 = vmatmul.mubr.bf16.gmra.mrb[0].mxu0 %v3056
        %v3095 = vpop.f32.mrb[0].mxu0
        %v3096 = vadd.f32 0.0, %v3095
        %v3097 = vpop.f32.mrb[0].mxu0
        %v3098 = vpop.f32.mrb[0].mxu0
        %v3099 = vadd.f32 0.0, %v3098
        %v3100 = vpop.f32.mrb[0].mxu0
        %3101 = vmatprep.mubr.bf16.mxu0 0
        %3102 = vmatmul.mubr.bf16.gmra.mrb[0].mxu0 %v3059
        %v3103 = vpop.f32.mrb[0].mxu0
        %v3104 = vadd.f32 0.0, %v3103
        %v3105 = vpop.f32.mrb[0].mxu0
        %v3106 = vpop.f32.mrb[0].mxu0
        %v3107 = vadd.f32 0.0, %v3106
        %v3108 = vpop.f32.mrb[0].mxu0
        %3109 = vdwg.mxu0
        %v3110 = vpack.c.bf16 %v3099, %v3096
        %v3111 = vpack.c.bf16 %v3107, %v3104
        %v3112 = vld [vmem:[#allocation18] sm:$0xf]
        %v3113 = vld [vmem:[#allocation18 + $0x4] sm:$0xf]
        %v3114 = vld [vmem:[#allocation18 + $0x8] sm:$0xf]
        %v3115 = vld [vmem:[#allocation18 + $0xc] sm:$0xf]
        %v3116 = vld [vmem:[#allocation18 + $0x10] sm:$0xf]
        %v3117 = vld [vmem:[#allocation18 + $0x14] sm:$0xf]
        %v3118 = vld [vmem:[#allocation18 + $0x18] sm:$0xf]
        %v3119 = vld [vmem:[#allocation18 + $0x1c] sm:$0xf]
        %v3120 = vld [vmem:[#allocation19] sm:$0xf]
        %v3121 = vld [vmem:[#allocation19 + $0x4] sm:$0xf]
        %v3122 = vld [vmem:[#allocation19 + $0x8] sm:$0xf]
        %v3123 = vld [vmem:[#allocation19 + $0xc] sm:$0xf]
        %v3124 = vld [vmem:[#allocation19 + $0x10] sm:$0xf]
        %v3125 = vld [vmem:[#allocation19 + $0x14] sm:$0xf]
        %v3126 = vld [vmem:[#allocation19 + $0x18] sm:$0xf]
        %v3127 = vld [vmem:[#allocation19 + $0x1c] sm:$0xf]
        %v3136 = vunpack.c.l.b16 %v3120
        %v3137 = vunpack.c.l.b16 %v3121
        %v3138 = vunpack.c.l.b16 %v3122
        %v3139 = vunpack.c.l.b16 %v3123
        %v3140 = vunpack.c.l.b16 %v3124
        %v3141 = vunpack.c.l.b16 %v3125
        %v3142 = vunpack.c.l.b16 %v3126
        %v3143 = vunpack.c.l.b16 %v3127
        %v3144 = vpack.c.b16 %v3137, %v3136
        %v3145 = vpack.c.b16 %v3139, %v3138
        %v3146 = vpack.c.b16 %v3141, %v3140
        %v3147 = vpack.c.b16 %v3143, %v3142
        %v3153 = vsel %vm2121, %v3043, 0
        %v3156 = vsel %vm2121, %v3044, 0
        %3158 = vmatprep.subr.bf16.mxu0 0
        %3159 = vmatpush1.bf16.msra.mxu0 %v3144
        %3160 = vmatprep.subr.bf16.mxu0 0
        %3161 = vmatpush1.bf16.msra.mxu0 %v3145
        %3162 = vmatprep.subr.bf16.mxu0 0
        %3163 = vmatpush1.bf16.msra.mxu0 %v3146
        %3164 = vmatprep.subr.bf16.mxu0 0
        %3165 = vmatpush1.bf16.msra.mxu0 %v3147
        %3166 = vmatprep.subr.bf16.mxu0 0
        %3167 = vmatpush1.bf16.msra.mxu0 0
        %3168 = vmatprep.subr.bf16.mxu0 0
        %3169 = vmatpush1.bf16.msra.mxu0 0
        %3170 = vmatprep.subr.bf16.mxu0 0
        %3171 = vmatpush1.bf16.msra.mxu0 0
        %3172 = vmatprep.subr.bf16.mxu0 0
        %3173 = vmatpush1.bf16.msra.mxu0 0
        %3174 = vmatprep.subr.bf16.mxu0 0
        %3175 = vmatpush1.bf16.msra.mxu0 0
        %3176 = vmatprep.subr.bf16.mxu0 0
        %3177 = vmatpush1.bf16.msra.mxu0 0
        %3178 = vmatprep.subr.bf16.mxu0 0
        %3179 = vmatpush1.bf16.msra.mxu0 0
        %3180 = vmatprep.subr.bf16.mxu0 0
        %3181 = vmatpush1.bf16.msra.mxu0 0
        %3182 = vmatprep.subr.bf16.mxu0 0
        %3183 = vmatpush1.bf16.msra.mxu0 0
        %3184 = vmatprep.subr.bf16.mxu0 0
        %3185 = vmatpush1.bf16.msra.mxu0 0
        %3186 = vmatprep.subr.bf16.mxu0 0
        %3187 = vmatpush1.bf16.msra.mxu0 0
        %3188 = vmatprep.subr.bf16.mxu0 0
        %3189 = vmatpush1.bf16.msra.mxu0 0
        %3190 = vmatprep.mubr.bf16.mxu0 0
        %3191 = vmatmul.mubr.bf16.gmra.mrb[0].mxu0 %v3153
        %v3192 = vpop.f32.mrb[0].mxu0
        %v3193 = vadd.f32 0.0, %v3192
        %v3194 = vpop.f32.mrb[0].mxu0
        %v3195 = vpop.f32.mrb[0].mxu0
        %v3196 = vadd.f32 0.0, %v3195
        %v3197 = vpop.f32.mrb[0].mxu0
        %3198 = vmatprep.mubr.bf16.mxu0 0
        %3199 = vmatmul.mubr.bf16.gmra.mrb[0].mxu0 %v3156
        %v3200 = vpop.f32.mrb[0].mxu0
        %v3201 = vadd.f32 0.0, %v3200
        %v3202 = vpop.f32.mrb[0].mxu0
        %v3203 = vpop.f32.mrb[0].mxu0
        %v3204 = vadd.f32 0.0, %v3203
        %v3205 = vpop.f32.mrb[0].mxu0
        %3206 = vdwg.mxu0
        %v3215 = vunpack.c.l.b16 %v3112
        %v3216 = vunpack.c.l.b16 %v3113
        %v3217 = vunpack.c.l.b16 %v3114
        %v3218 = vunpack.c.l.b16 %v3115
        %v3219 = vunpack.c.l.b16 %v3116
        %v3220 = vunpack.c.l.b16 %v3117
        %v3221 = vunpack.c.l.b16 %v3118
        %v3222 = vunpack.c.l.b16 %v3119
        %v3223 = vpack.c.b16 %v3216, %v3215
        %v3224 = vpack.c.b16 %v3218, %v3217
        %v3225 = vpack.c.b16 %v3220, %v3219
        %v3226 = vpack.c.b16 %v3222, %v3221
        %v3232 = vsel %vm2121, %v3110, 0
        %v3235 = vsel %vm2121, %v3111, 0
        %3237 = vmatprep.subr.bf16.mxu0 0
        %3238 = vmatpush1.bf16.msra.mxu0 %v3223
        %3239 = vmatprep.subr.bf16.mxu0 0
        %3240 = vmatpush1.bf16.msra.mxu0 %v3224
        %3241 = vmatprep.subr.bf16.mxu0 0
        %3242 = vmatpush1.bf16.msra.mxu0 %v3225
        %3243 = vmatprep.subr.bf16.mxu0 0
        %3244 = vmatpush1.bf16.msra.mxu0 %v3226
        %3245 = vmatprep.subr.bf16.mxu0 0
        %3246 = vmatpush1.bf16.msra.mxu0 0
        %3247 = vmatprep.subr.bf16.mxu0 0
        %3248 = vmatpush1.bf16.msra.mxu0 0
        %3249 = vmatprep.subr.bf16.mxu0 0
        %3250 = vmatpush1.bf16.msra.mxu0 0
        %3251 = vmatprep.subr.bf16.mxu0 0
        %3252 = vmatpush1.bf16.msra.mxu0 0
        %3253 = vmatprep.subr.bf16.mxu0 0
        %3254 = vmatpush1.bf16.msra.mxu0 0
        %3255 = vmatprep.subr.bf16.mxu0 0
        %3256 = vmatpush1.bf16.msra.mxu0 0
        %3257 = vmatprep.subr.bf16.mxu0 0
        %3258 = vmatpush1.bf16.msra.mxu0 0
        %3259 = vmatprep.subr.bf16.mxu0 0
        %3260 = vmatpush1.bf16.msra.mxu0 0
        %3261 = vmatprep.subr.bf16.mxu0 0
        %3262 = vmatpush1.bf16.msra.mxu0 0
        %3263 = vmatprep.subr.bf16.mxu0 0
        %3264 = vmatpush1.bf16.msra.mxu0 0
        %3265 = vmatprep.subr.bf16.mxu0 0
        %3266 = vmatpush1.bf16.msra.mxu0 0
        %3267 = vmatprep.subr.bf16.mxu0 0
        %3268 = vmatpush1.bf16.msra.mxu0 0
        %3269 = vmatprep.mubr.bf16.mxu0 0
        %3270 = vmatmul.mubr.bf16.gmra.mrb[0].mxu0 %v3232
        %v3271 = vpop.f32.mrb[0].mxu0
        %v3272 = vadd.f32 %v3193, %v3271
        %v3273 = vpop.f32.mrb[0].mxu0
        %v3274 = vpop.f32.mrb[0].mxu0
        %v3275 = vadd.f32 %v3196, %v3274
        %v3276 = vpop.f32.mrb[0].mxu0
        %3277 = vmatprep.mubr.bf16.mxu0 0
        %3278 = vmatmul.mubr.bf16.gmra.mrb[0].mxu0 %v3235
        %v3279 = vpop.f32.mrb[0].mxu0
        %v3280 = vadd.f32 %v3201, %v3279
        %v3281 = vpop.f32.mrb[0].mxu0
        %v3282 = vpop.f32.mrb[0].mxu0
        %v3283 = vadd.f32 %v3204, %v3282
        %v3284 = vpop.f32.mrb[0].mxu0
        %3285 = vdwg.mxu0
        %v3286 = vld [vmem:[#allocation16] sm:$0xf]
        %v3287 = vld [vmem:[#allocation16 + $0x4] sm:$0xf]
        %v3288 = vld [vmem:[#allocation16 + $0x8] sm:$0xf]
        %v3289 = vld [vmem:[#allocation16 + $0xc] sm:$0xf]
        %v3294 = vunpack.c.l.b16 %v3286
        %v3295 = vunpack.c.l.b16 %v3287
        %v3296 = vunpack.c.l.b16 %v3288
        %v3297 = vunpack.c.l.b16 %v3289
        %v3298 = vpack.c.b16 %v3295, %v3294
        %v3299 = vpack.c.b16 %v3297, %v3296
        %v3301 = vsel %vm2223, %v3298, 0
        %v3304 = vsel %vm2223, %v3299, 0
        %3306 = vmatprep.subr.bf16.mxu0 0
        %3307 = vmatpush1.bf16.msra.mxu0 %v3043
        %3308 = vmatprep.subr.bf16.mxu0 0
        %3309 = vmatpush1.bf16.msra.mxu0 %v3044
        %3310 = vmatprep.subr.bf16.mxu0 0
        %3311 = vmatpush1.bf16.msra.mxu0 0
        %3312 = vmatprep.subr.bf16.mxu0 0
        %3313 = vmatpush1.bf16.msra.mxu0 0
        %3314 = vmatprep.subr.bf16.mxu0 0
        %3315 = vmatpush1.bf16.msra.mxu0 0
        %3316 = vmatprep.subr.bf16.mxu0 0
        %3317 = vmatpush1.bf16.msra.mxu0 0
        %3318 = vmatprep.subr.bf16.mxu0 0
        %3319 = vmatpush1.bf16.msra.mxu0 0
        %3320 = vmatprep.subr.bf16.mxu0 0
        %3321 = vmatpush1.bf16.msra.mxu0 0
        %3322 = vmatprep.subr.bf16.mxu0 0
        %3323 = vmatpush1.bf16.msra.mxu0 0
        %3324 = vmatprep.subr.bf16.mxu0 0
        %3325 = vmatpush1.bf16.msra.mxu0 0
        %3326 = vmatprep.subr.bf16.mxu0 0
        %3327 = vmatpush1.bf16.msra.mxu0 0
        %3328 = vmatprep.subr.bf16.mxu0 0
        %3329 = vmatpush1.bf16.msra.mxu0 0
        %3330 = vmatprep.subr.bf16.mxu0 0
        %3331 = vmatpush1.bf16.msra.mxu0 0
        %3332 = vmatprep.subr.bf16.mxu0 0
        %3333 = vmatpush1.bf16.msra.mxu0 0
        %3334 = vmatprep.subr.bf16.mxu0 0
        %3335 = vmatpush1.bf16.msra.mxu0 0
        %3336 = vmatprep.subr.bf16.mxu0 0
        %3337 = vmatpush1.bf16.msra.mxu0 0
        %3338 = vmatprep.mubr.bf16.mxu0 0
        %3339 = vmatmul.mubr.bf16.gmra.mrb[0].mxu0 %v3301
        %v3340 = vpop.f32.mrb[0].mxu0
        %v3341 = vadd.f32 0.0, %v3340
        %v3342 = vpop.f32.mrb[0].mxu0
        %v3343 = vpop.f32.mrb[0].mxu0
        %v3344 = vadd.f32 0.0, %v3343
        %v3345 = vpop.f32.mrb[0].mxu0
        %3346 = vmatprep.mubr.bf16.mxu0 0
        %3347 = vmatmul.mubr.bf16.gmra.mrb[0].mxu0 %v3304
        %v3348 = vpop.f32.mrb[0].mxu0
        %v3349 = vadd.f32 0.0, %v3348
        %v3350 = vpop.f32.mrb[0].mxu0
        %v3351 = vpop.f32.mrb[0].mxu0
        %v3352 = vadd.f32 0.0, %v3351
        %v3353 = vpop.f32.mrb[0].mxu0
        %3354 = vdwg.mxu0
        %v3355 = vpack.c.bf16 %v3344, %v3341
        %v3356 = vpack.c.bf16 %v3352, %v3349
        %v3357 = vld [vmem:[#allocation21] sm:$0xf]
        %v3358 = vld [vmem:[#allocation21 + $0x4] sm:$0xf]
        %v3359 = vld [vmem:[#allocation21 + $0x8] sm:$0xf]
        %v3360 = vld [vmem:[#allocation21 + $0xc] sm:$0xf]
        %v3361 = vld [vmem:[#allocation21 + $0x10] sm:$0xf]
        %v3362 = vld [vmem:[#allocation21 + $0x14] sm:$0xf]
        %v3363 = vld [vmem:[#allocation21 + $0x18] sm:$0xf]
        %v3364 = vld [vmem:[#allocation21 + $0x1c] sm:$0xf]
        %v3373 = vunpack.c.l.b16 %v3357
        %v3374 = vunpack.c.l.b16 %v3358
        %v3375 = vunpack.c.l.b16 %v3359
        %v3376 = vunpack.c.l.b16 %v3360
        %v3377 = vunpack.c.l.b16 %v3361
        %v3378 = vunpack.c.l.b16 %v3362
        %v3379 = vunpack.c.l.b16 %v3363
        %v3380 = vunpack.c.l.b16 %v3364
        %v3381 = vpack.c.b16 %v3374, %v3373
        %v3382 = vpack.c.b16 %v3376, %v3375
        %v3383 = vpack.c.b16 %v3378, %v3377
        %v3384 = vpack.c.b16 %v3380, %v3379
        %v3390 = vsel %vm2121, %v3355, 0
        %v3393 = vsel %vm2121, %v3356, 0
        %3395 = vmatprep.subr.bf16.mxu0 0
        %3396 = vmatpush1.bf16.msra.mxu0 %v3381
        %3397 = vmatprep.subr.bf16.mxu0 0
        %3398 = vmatpush1.bf16.msra.mxu0 %v3382
        %3399 = vmatprep.subr.bf16.mxu0 0
        %3400 = vmatpush1.bf16.msra.mxu0 %v3383
        %3401 = vmatprep.subr.bf16.mxu0 0
        %3402 = vmatpush1.bf16.msra.mxu0 %v3384
        %3403 = vmatprep.subr.bf16.mxu0 0
        %3404 = vmatpush1.bf16.msra.mxu0 0
        %3405 = vmatprep.subr.bf16.mxu0 0
        %3406 = vmatpush1.bf16.msra.mxu0 0
        %3407 = vmatprep.subr.bf16.mxu0 0
        %3408 = vmatpush1.bf16.msra.mxu0 0
        %3409 = vmatprep.subr.bf16.mxu0 0
        %3410 = vmatpush1.bf16.msra.mxu0 0
        %3411 = vmatprep.subr.bf16.mxu0 0
        %3412 = vmatpush1.bf16.msra.mxu0 0
        %3413 = vmatprep.subr.bf16.mxu0 0
        %3414 = vmatpush1.bf16.msra.mxu0 0
        %3415 = vmatprep.subr.bf16.mxu0 0
        %3416 = vmatpush1.bf16.msra.mxu0 0
        %3417 = vmatprep.subr.bf16.mxu0 0
        %3418 = vmatpush1.bf16.msra.mxu0 0
        %3419 = vmatprep.subr.bf16.mxu0 0
        %3420 = vmatpush1.bf16.msra.mxu0 0
        %3421 = vmatprep.subr.bf16.mxu0 0
        %3422 = vmatpush1.bf16.msra.mxu0 0
        %3423 = vmatprep.subr.bf16.mxu0 0
        %3424 = vmatpush1.bf16.msra.mxu0 0
        %3425 = vmatprep.subr.bf16.mxu0 0
        %3426 = vmatpush1.bf16.msra.mxu0 0
        %3427 = vmatprep.mubr.bf16.mxu0 0
        %3428 = vmatmul.mubr.bf16.gmra.mrb[0].mxu0 %v3390
        %v3429 = vpop.f32.mrb[0].mxu0
        %v3430 = vadd.f32 0.0, %v3429
        %v3431 = vpop.f32.mrb[0].mxu0
        %v3432 = vpop.f32.mrb[0].mxu0
        %v3433 = vadd.f32 0.0, %v3432
        %v3434 = vpop.f32.mrb[0].mxu0
        %3435 = vmatprep.mubr.bf16.mxu0 0
        %3436 = vmatmul.mubr.bf16.gmra.mrb[0].mxu0 %v3393
        %v3437 = vpop.f32.mrb[0].mxu0
        %v3438 = vadd.f32 0.0, %v3437
        %v3439 = vpop.f32.mrb[0].mxu0
        %v3440 = vpop.f32.mrb[0].mxu0
        %v3441 = vadd.f32 0.0, %v3440
        %v3442 = vpop.f32.mrb[0].mxu0
        %3443 = vdwg.mxu0
        %v3444 = vadd.f32 %v3272, %v3430
        %v3445 = vadd.f32 %v3275, %v3433
        %v3446 = vadd.f32 %v3280, %v3438
        %v3447 = vadd.f32 %v3283, %v3441
        %v3448 = vld [vmem:[#allocation22] sm:$0x1]
        %v3450 = vlaneseq
        %v3451 = vshrl.u32 %v3450, 7
        %v3452 = vsub.s32 0, %v3451
        %v3453 = vrot.slane %v3448, %v3452
        %v3455 = vadd.f32 %v3444, %v3453
        %v3456 = vadd.f32 %v3445, %v3453
        %v3457 = vadd.f32 %v3446, %v3453
        %v3458 = vadd.f32 %v3447, %v3453
        %v3459 = vmax.f32 %v3455, 0.0
        %v3460 = vmax.f32 %v3456, 0.0
        %v3461 = vmax.f32 %v3457, 0.0
        %v3462 = vmax.f32 %v3458, 0.0
        %v3463 = vpack.c.bf16 %v3460, %v3459
        %v3464 = vpack.c.bf16 %v3462, %v3461
        %v3465 = vld [vmem:[%s35] sm:$0xf]
        %v3466 = vld [vmem:[%s35 + $0x4] sm:$0xf]
        %v3467 = vld [vmem:[%s35 + $0x8] sm:$0xf]
        %v3468 = vld [vmem:[%s35 + $0xc] sm:$0xf]
        %v3469 = vld [vmem:[%s35 + $0x10] sm:$0xf]
        %v3470 = vld [vmem:[%s35 + $0x14] sm:$0xf]
        %v3471 = vld [vmem:[%s35 + $0x18] sm:$0xf]
        %v3472 = vld [vmem:[%s35 + $0x1c] sm:$0xf]
        %v3473 = vld [vmem:[%s35 + $0x20] sm:$0xf]
        %v3474 = vld [vmem:[%s35 + $0x24] sm:$0xf]
        %v3475 = vld [vmem:[%s35 + $0x28] sm:$0xf]
        %v3476 = vld [vmem:[%s35 + $0x2c] sm:$0xf]
        %v3477 = vld [vmem:[%s35 + $0x30] sm:$0xf]
        %v3478 = vld [vmem:[%s35 + $0x34] sm:$0xf]
        %v3479 = vld [vmem:[%s35 + $0x38] sm:$0xf]
        %v3480 = vld [vmem:[%s35 + $0x3c] sm:$0xf]
        %v3497 = vunpack.c.l.b16 %v3465
        %v3498 = vunpack.c.l.b16 %v3466
        %v3499 = vunpack.c.l.b16 %v3467
        %v3500 = vunpack.c.l.b16 %v3468
        %v3501 = vunpack.c.l.b16 %v3469
        %v3502 = vunpack.c.l.b16 %v3470
        %v3503 = vunpack.c.l.b16 %v3471
        %v3504 = vunpack.c.l.b16 %v3472
        %v3505 = vunpack.c.l.b16 %v3473
        %v3506 = vunpack.c.l.b16 %v3474
        %v3507 = vunpack.c.l.b16 %v3475
        %v3508 = vunpack.c.l.b16 %v3476
        %v3509 = vunpack.c.l.b16 %v3477
        %v3510 = vunpack.c.l.b16 %v3478
        %v3511 = vunpack.c.l.b16 %v3479
        %v3512 = vunpack.c.l.b16 %v3480
        %v3513 = vpack.c.b16 %v3498, %v3497
        %v3514 = vpack.c.b16 %v3500, %v3499
        %v3515 = vpack.c.b16 %v3502, %v3501
        %v3516 = vpack.c.b16 %v3504, %v3503
        %v3517 = vpack.c.b16 %v3506, %v3505
        %v3518 = vpack.c.b16 %v3508, %v3507
        %v3519 = vpack.c.b16 %v3510, %v3509
        %v3520 = vpack.c.b16 %v3512, %v3511
        %3529 = vmatprep.subr.bf16.mxu0 0
        %3530 = vmatpush1.bf16.msra.mxu0 %v3513
        %3531 = vmatprep.subr.bf16.mxu0 0
        %3532 = vmatpush1.bf16.msra.mxu0 %v3514
        %3533 = vmatprep.subr.bf16.mxu0 0
        %3534 = vmatpush1.bf16.msra.mxu0 %v3515
        %3535 = vmatprep.subr.bf16.mxu0 0
        %3536 = vmatpush1.bf16.msra.mxu0 %v3516
        %3537 = vmatprep.subr.bf16.mxu0 0
        %3538 = vmatpush1.bf16.msra.mxu0 %v3517
        %3539 = vmatprep.subr.bf16.mxu0 0
        %3540 = vmatpush1.bf16.msra.mxu0 %v3518
        %3541 = vmatprep.subr.bf16.mxu0 0
        %3542 = vmatpush1.bf16.msra.mxu0 %v3519
        %3543 = vmatprep.subr.bf16.mxu0 0
        %3544 = vmatpush1.bf16.msra.mxu0 %v3520
        %3545 = vmatprep.subr.bf16.mxu0 0
        %3546 = vmatpush1.bf16.msra.mxu0 0
        %3547 = vmatprep.subr.bf16.mxu0 0
        %3548 = vmatpush1.bf16.msra.mxu0 0
        %3549 = vmatprep.subr.bf16.mxu0 0
        %3550 = vmatpush1.bf16.msra.mxu0 0
        %3551 = vmatprep.subr.bf16.mxu0 0
        %3552 = vmatpush1.bf16.msra.mxu0 0
        %3553 = vmatprep.subr.bf16.mxu0 0
        %3554 = vmatpush1.bf16.msra.mxu0 0
        %3555 = vmatprep.subr.bf16.mxu0 0
        %3556 = vmatpush1.bf16.msra.mxu0 0
        %3557 = vmatprep.subr.bf16.mxu0 0
        %3558 = vmatpush1.bf16.msra.mxu0 0
        %3559 = vmatprep.subr.bf16.mxu0 0
        %3560 = vmatpush1.bf16.msra.mxu0 0
        %3561 = vmatprep.mubr.bf16.mxu0 0
        %3562 = vmatmul.mubr.bf16.gmra.mrb[0].mxu0 %v3463
        %v3563 = vpop.f32.mrb[0].mxu0
        %v3564 = vadd.f32 0.0, %v3563
        %v3565 = vpop.f32.mrb[0].mxu0
        %v3566 = vpop.f32.mrb[0].mxu0
        %v3567 = vadd.f32 0.0, %v3566
        %v3568 = vpop.f32.mrb[0].mxu0
        %3569 = vmatprep.mubr.bf16.mxu0 0
        %3570 = vmatmul.mubr.bf16.gmra.mrb[0].mxu0 %v3464
        %v3571 = vpop.f32.mrb[0].mxu0
        %v3572 = vadd.f32 0.0, %v3571
        %v3573 = vpop.f32.mrb[0].mxu0
        %v3574 = vpop.f32.mrb[0].mxu0
        %v3575 = vadd.f32 0.0, %v3574
        %v3576 = vpop.f32.mrb[0].mxu0
        %3577 = vdwg.mxu0
        %v3578 = vld [vmem:[%s37] sm:$0xf]
        %v3579 = vld [vmem:[%s37 + $0x4] sm:$0xf]
        %v3580 = vld [vmem:[%s37 + $0x8] sm:$0xf]
        %v3581 = vld [vmem:[%s37 + $0xc] sm:$0xf]
        %v3582 = vld [vmem:[%s37 + $0x10] sm:$0xf]
        %v3583 = vld [vmem:[%s37 + $0x14] sm:$0xf]
        %v3584 = vld [vmem:[%s37 + $0x18] sm:$0xf]
        %v3585 = vld [vmem:[%s37 + $0x1c] sm:$0xf]
        %v3586 = vld [vmem:[%s37 + $0x20] sm:$0xf]
        %v3587 = vld [vmem:[%s37 + $0x24] sm:$0xf]
        %v3588 = vld [vmem:[%s37 + $0x28] sm:$0xf]
        %v3589 = vld [vmem:[%s37 + $0x2c] sm:$0xf]
        %v3590 = vld [vmem:[%s37 + $0x30] sm:$0xf]
        %v3591 = vld [vmem:[%s37 + $0x34] sm:$0xf]
        %v3592 = vld [vmem:[%s37 + $0x38] sm:$0xf]
        %v3593 = vld [vmem:[%s37 + $0x3c] sm:$0xf]
        %v3610 = vunpack.c.l.b16 %v3578
        %v3611 = vunpack.c.l.b16 %v3579
        %v3612 = vunpack.c.l.b16 %v3580
        %v3613 = vunpack.c.l.b16 %v3581
        %v3614 = vunpack.c.l.b16 %v3582
        %v3615 = vunpack.c.l.b16 %v3583
        %v3616 = vunpack.c.l.b16 %v3584
        %v3617 = vunpack.c.l.b16 %v3585
        %v3618 = vunpack.c.l.b16 %v3586
        %v3619 = vunpack.c.l.b16 %v3587
        %v3620 = vunpack.c.l.b16 %v3588
        %v3621 = vunpack.c.l.b16 %v3589
        %v3622 = vunpack.c.l.b16 %v3590
        %v3623 = vunpack.c.l.b16 %v3591
        %v3624 = vunpack.c.l.b16 %v3592
        %v3625 = vunpack.c.l.b16 %v3593
        %v3626 = vpack.c.b16 %v3611, %v3610
        %v3627 = vpack.c.b16 %v3613, %v3612
        %v3628 = vpack.c.b16 %v3615, %v3614
        %v3629 = vpack.c.b16 %v3617, %v3616
        %v3630 = vpack.c.b16 %v3619, %v3618
        %v3631 = vpack.c.b16 %v3621, %v3620
        %v3632 = vpack.c.b16 %v3623, %v3622
        %v3633 = vpack.c.b16 %v3625, %v3624
        %3642 = vmatprep.subr.bf16.mxu0 0
        %3643 = vmatpush1.bf16.msra.mxu0 %v3626
        %3644 = vmatprep.subr.bf16.mxu0 0
        %3645 = vmatpush1.bf16.msra.mxu0 %v3627
        %3646 = vmatprep.subr.bf16.mxu0 0
        %3647 = vmatpush1.bf16.msra.mxu0 %v3628
        %3648 = vmatprep.subr.bf16.mxu0 0
        %3649 = vmatpush1.bf16.msra.mxu0 %v3629
        %3650 = vmatprep.subr.bf16.mxu0 0
        %3651 = vmatpush1.bf16.msra.mxu0 %v3630
        %3652 = vmatprep.subr.bf16.mxu0 0
        %3653 = vmatpush1.bf16.msra.mxu0 %v3631
        %3654 = vmatprep.subr.bf16.mxu0 0
        %3655 = vmatpush1.bf16.msra.mxu0 %v3632
        %3656 = vmatprep.subr.bf16.mxu0 0
        %3657 = vmatpush1.bf16.msra.mxu0 %v3633
        %3658 = vmatprep.subr.bf16.mxu0 0
        %3659 = vmatpush1.bf16.msra.mxu0 0
        %3660 = vmatprep.subr.bf16.mxu0 0
        %3661 = vmatpush1.bf16.msra.mxu0 0
        %3662 = vmatprep.subr.bf16.mxu0 0
        %3663 = vmatpush1.bf16.msra.mxu0 0
        %3664 = vmatprep.subr.bf16.mxu0 0
        %3665 = vmatpush1.bf16.msra.mxu0 0
        %3666 = vmatprep.subr.bf16.mxu0 0
        %3667 = vmatpush1.bf16.msra.mxu0 0
        %3668 = vmatprep.subr.bf16.mxu0 0
        %3669 = vmatpush1.bf16.msra.mxu0 0
        %3670 = vmatprep.subr.bf16.mxu0 0
        %3671 = vmatpush1.bf16.msra.mxu0 0
        %3672 = vmatprep.subr.bf16.mxu0 0
        %3673 = vmatpush1.bf16.msra.mxu0 0
        %3674 = vmatprep.mubr.bf16.mxu0 0
        %3675 = vmatmul.mubr.bf16.gmra.mrb[0].mxu0 %v3463
        %v3676 = vpop.f32.mrb[0].mxu0
        %v3677 = vadd.f32 0.0, %v3676
        %v3678 = vpop.f32.mrb[0].mxu0
        %v3679 = vpop.f32.mrb[0].mxu0
        %v3680 = vadd.f32 0.0, %v3679
        %v3681 = vpop.f32.mrb[0].mxu0
        %3682 = vmatprep.mubr.bf16.mxu0 0
        %3683 = vmatmul.mubr.bf16.gmra.mrb[0].mxu0 %v3464
        %v3684 = vpop.f32.mrb[0].mxu0
        %v3685 = vadd.f32 0.0, %v3684
        %v3686 = vpop.f32.mrb[0].mxu0
        %v3687 = vpop.f32.mrb[0].mxu0
        %v3688 = vadd.f32 0.0, %v3687
        %v3689 = vpop.f32.mrb[0].mxu0
        %3690 = vdwg.mxu0
        %v3691 = vmax.f32 %v3564, %v3677
        %v3692 = vmax.f32 %v3567, %v3680
        %v3693 = vmax.f32 %v3572, %v3685
        %v3694 = vmax.f32 %v3575, %v3688
        %v3695 = vld [vmem:[#allocation24] sm:$0xf]
        %v3696 = vld [vmem:[#allocation24 + $0x4] sm:$0xf]
        %v3697 = vpack.c.bf16 %v3692, %v3691
        %v3698 = vpack.c.bf16 %v3694, %v3693
        %v3701 = vunpack.c.l.b16 %v3695
        %v3702 = vunpack.c.l.b16 %v3696
        %v3703 = vpack.c.b16 %v3702, %v3701
        %v3705 = vsel %vm2223, %v3703, 0
        %3707 = vmatprep.subr.bf16.mxu0 0
        %3708 = vmatpush1.bf16.msra.mxu0 %v3697
        %3709 = vmatprep.subr.bf16.mxu0 0
        %3710 = vmatpush1.bf16.msra.mxu0 %v3698
        %3711 = vmatprep.subr.bf16.mxu0 0
        %3712 = vmatpush1.bf16.msra.mxu0 0
        %3713 = vmatprep.subr.bf16.mxu0 0
        %3714 = vmatpush1.bf16.msra.mxu0 0
        %3715 = vmatprep.subr.bf16.mxu0 0
        %3716 = vmatpush1.bf16.msra.mxu0 0
        %3717 = vmatprep.subr.bf16.mxu0 0
        %3718 = vmatpush1.bf16.msra.mxu0 0
        %3719 = vmatprep.subr.bf16.mxu0 0
        %3720 = vmatpush1.bf16.msra.mxu0 0
        %3721 = vmatprep.subr.bf16.mxu0 0
        %3722 = vmatpush1.bf16.msra.mxu0 0
        %3723 = vmatprep.subr.bf16.mxu0 0
        %3724 = vmatpush1.bf16.msra.mxu0 0
        %3725 = vmatprep.subr.bf16.mxu0 0
        %3726 = vmatpush1.bf16.msra.mxu0 0
        %3727 = vmatprep.subr.bf16.mxu0 0
        %3728 = vmatpush1.bf16.msra.mxu0 0
        %3729 = vmatprep.subr.bf16.mxu0 0
        %3730 = vmatpush1.bf16.msra.mxu0 0
        %3731 = vmatprep.subr.bf16.mxu0 0
        %3732 = vmatpush1.bf16.msra.mxu0 0
        %3733 = vmatprep.subr.bf16.mxu0 0
        %3734 = vmatpush1.bf16.msra.mxu0 0
        %3735 = vmatprep.subr.bf16.mxu0 0
        %3736 = vmatpush1.bf16.msra.mxu0 0
        %3737 = vmatprep.subr.bf16.mxu0 0
        %3738 = vmatpush1.bf16.msra.mxu0 0
        %3739 = vmatprep.mubr.bf16.mxu0 0
        %3740 = vmatmul.mubr.bf16.gmra.mrb[0].mxu0 %v3705
        %v3741 = vpop.f32.mrb[0].mxu0
        %v3742 = vadd.f32 0.0, %v3741
        %v3743 = vpop.f32.mrb[0].mxu0
        %v3744 = vpop.f32.mrb[0].mxu0
        %v3745 = vadd.f32 0.0, %v3744
        %v3746 = vpop.f32.mrb[0].mxu0
        %3747 = vdwg.mxu0
        %v3748 = vld [vmem:[#allocation25] sm:$0xf]
        %v3749 = vld [vmem:[#allocation25 + $0x4] sm:$0xf]
        %v3752 = vunpack.c.l.b16 %v3748
        %v3753 = vunpack.c.l.b16 %v3749
        %v3754 = vpack.c.b16 %v3753, %v3752
        %v3756 = vsel %vm2223, %v3754, 0
        %3758 = vmatprep.subr.bf16.mxu0 0
        %3759 = vmatpush1.bf16.msra.mxu0 %v3697
        %3760 = vmatprep.subr.bf16.mxu0 0
        %3761 = vmatpush1.bf16.msra.mxu0 %v3698
        %3762 = vmatprep.subr.bf16.mxu0 0
        %3763 = vmatpush1.bf16.msra.mxu0 0
        %3764 = vmatprep.subr.bf16.mxu0 0
        %3765 = vmatpush1.bf16.msra.mxu0 0
        %3766 = vmatprep.subr.bf16.mxu0 0
        %3767 = vmatpush1.bf16.msra.mxu0 0
        %3768 = vmatprep.subr.bf16.mxu0 0
        %3769 = vmatpush1.bf16.msra.mxu0 0
        %3770 = vmatprep.subr.bf16.mxu0 0
        %3771 = vmatpush1.bf16.msra.mxu0 0
        %3772 = vmatprep.subr.bf16.mxu0 0
        %3773 = vmatpush1.bf16.msra.mxu0 0
        %3774 = vmatprep.subr.bf16.mxu0 0
        %3775 = vmatpush1.bf16.msra.mxu0 0
        %3776 = vmatprep.subr.bf16.mxu0 0
        %3777 = vmatpush1.bf16.msra.mxu0 0
        %3778 = vmatprep.subr.bf16.mxu0 0
        %3779 = vmatpush1.bf16.msra.mxu0 0
        %3780 = vmatprep.subr.bf16.mxu0 0
        %3781 = vmatpush1.bf16.msra.mxu0 0
        %3782 = vmatprep.subr.bf16.mxu0 0
        %3783 = vmatpush1.bf16.msra.mxu0 0
        %3784 = vmatprep.subr.bf16.mxu0 0
        %3785 = vmatpush1.bf16.msra.mxu0 0
        %3786 = vmatprep.subr.bf16.mxu0 0
        %3787 = vmatpush1.bf16.msra.mxu0 0
        %3788 = vmatprep.subr.bf16.mxu0 0
        %3789 = vmatpush1.bf16.msra.mxu0 0
        %3790 = vmatprep.mubr.bf16.mxu0 0
        %3791 = vmatmul.mubr.bf16.gmra.mrb[0].mxu0 %v3756
        %v3792 = vpop.f32.mrb[0].mxu0
        %v3793 = vadd.f32 0.0, %v3792
        %v3794 = vpop.f32.mrb[0].mxu0
        %v3795 = vpop.f32.mrb[0].mxu0
        %v3796 = vadd.f32 0.0, %v3795
        %v3797 = vpop.f32.mrb[0].mxu0
        %3798 = vdwg.mxu0
        %v3799 = vmax.f32 %v3742, %v3793
        %v3800 = vmax.f32 %v3745, %v3796
        %v3801 = vld [vmem:[#allocation27] sm:$0xf]
        %v3802 = vld [vmem:[#allocation27 + $0x4] sm:$0xf]
        %v3803 = vpack.c.bf16 %v3800, %v3799
        %v3806 = vunpack.c.l.b16 %v3801
        %v3807 = vunpack.c.l.b16 %v3802
        %v3808 = vpack.c.b16 %v3807, %v3806
        %vm3809 = vcmask 130048
        %v3811 = vsel %vm3809, %v3808, 0
        %3813 = vmatprep.subr.bf16.mxu0 0
        %3814 = vmatpush1.bf16.msra.mxu0 %v3803
        %3815 = vmatprep.subr.bf16.mxu0 0
        %3816 = vmatpush1.bf16.msra.mxu0 0
        %3817 = vmatprep.subr.bf16.mxu0 0
        %3818 = vmatpush1.bf16.msra.mxu0 0
        %3819 = vmatprep.subr.bf16.mxu0 0
        %3820 = vmatpush1.bf16.msra.mxu0 0
        %3821 = vmatprep.subr.bf16.mxu0 0
        %3822 = vmatpush1.bf16.msra.mxu0 0
        %3823 = vmatprep.subr.bf16.mxu0 0
        %3824 = vmatpush1.bf16.msra.mxu0 0
        %3825 = vmatprep.subr.bf16.mxu0 0
        %3826 = vmatpush1.bf16.msra.mxu0 0
        %3827 = vmatprep.subr.bf16.mxu0 0
        %3828 = vmatpush1.bf16.msra.mxu0 0
        %3829 = vmatprep.subr.bf16.mxu0 0
        %3830 = vmatpush1.bf16.msra.mxu0 0
        %3831 = vmatprep.subr.bf16.mxu0 0
        %3832 = vmatpush1.bf16.msra.mxu0 0
        %3833 = vmatprep.subr.bf16.mxu0 0
        %3834 = vmatpush1.bf16.msra.mxu0 0
        %3835 = vmatprep.subr.bf16.mxu0 0
        %3836 = vmatpush1.bf16.msra.mxu0 0
        %3837 = vmatprep.subr.bf16.mxu0 0
        %3838 = vmatpush1.bf16.msra.mxu0 0
        %3839 = vmatprep.subr.bf16.mxu0 0
        %3840 = vmatpush1.bf16.msra.mxu0 0
        %3841 = vmatprep.subr.bf16.mxu0 0
        %3842 = vmatpush1.bf16.msra.mxu0 0
        %3843 = vmatprep.subr.bf16.mxu0 0
        %3844 = vmatpush1.bf16.msra.mxu0 0
        %3845 = vmatprep.mubr.bf16.mxu0 0
        %3846 = vmatmul.mubr.bf16.gmra.mrb[0].mxu0 %v3811
        %v3847 = vpop.f32.mrb[0].mxu0
        %v3848 = vadd.f32 0.0, %v3847
        %v3849 = vpop.f32.mrb[0].mxu0
        %v3850 = vpop.f32.mrb[0].mxu0
        %v3851 = vadd.f32 0.0, %v3850
        %v3852 = vpop.f32.mrb[0].mxu0
        %3853 = vdwg.mxu0
        %v3854 = vpack.c.bf16 %v3851, %v3848
        %v3855 = vld [vmem:[#allocation30] sm:$0xf]
        %v3856 = vld [vmem:[#allocation30 + $0x4] sm:$0xf]
        %v3857 = vld [vmem:[#allocation30 + $0x8] sm:$0xf]
        %v3858 = vld [vmem:[#allocation30 + $0xc] sm:$0xf]
        %v3859 = vld [vmem:[#allocation30 + $0x10] sm:$0xf]
        %v3860 = vld [vmem:[#allocation30 + $0x14] sm:$0xf]
        %v3861 = vld [vmem:[#allocation30 + $0x18] sm:$0xf]
        %v3862 = vld [vmem:[#allocation30 + $0x1c] sm:$0xf]
        %v3863 = vld [vmem:[#allocation31] sm:$0xf]
        %v3864 = vld [vmem:[#allocation31 + $0x4] sm:$0xf]
        %v3865 = vld [vmem:[#allocation31 + $0x8] sm:$0xf]
        %v3866 = vld [vmem:[#allocation31 + $0xc] sm:$0xf]
        %v3867 = vld [vmem:[#allocation31 + $0x10] sm:$0xf]
        %v3868 = vld [vmem:[#allocation31 + $0x14] sm:$0xf]
        %v3869 = vld [vmem:[#allocation31 + $0x18] sm:$0xf]
        %v3870 = vld [vmem:[#allocation31 + $0x1c] sm:$0xf]
        %v3879 = vunpack.c.l.b16 %v3863
        %v3880 = vunpack.c.l.b16 %v3864
        %v3881 = vunpack.c.l.b16 %v3865
        %v3882 = vunpack.c.l.b16 %v3866
        %v3883 = vunpack.c.l.b16 %v3867
        %v3884 = vunpack.c.l.b16 %v3868
        %v3885 = vunpack.c.l.b16 %v3869
        %v3886 = vunpack.c.l.b16 %v3870
        %v3887 = vpack.c.b16 %v3880, %v3879
        %v3888 = vpack.c.b16 %v3882, %v3881
        %v3889 = vpack.c.b16 %v3884, %v3883
        %v3890 = vpack.c.b16 %v3886, %v3885
        %v3896 = vsel %vm2121, %v3803, 0
        %3898 = vmatprep.subr.bf16.mxu0 0
        %3899 = vmatpush1.bf16.msra.mxu0 %v3887
        %3900 = vmatprep.subr.bf16.mxu0 0
        %3901 = vmatpush1.bf16.msra.mxu0 %v3888
        %3902 = vmatprep.subr.bf16.mxu0 0
        %3903 = vmatpush1.bf16.msra.mxu0 %v3889
        %3904 = vmatprep.subr.bf16.mxu0 0
        %3905 = vmatpush1.bf16.msra.mxu0 %v3890
        %3906 = vmatprep.subr.bf16.mxu0 0
        %3907 = vmatpush1.bf16.msra.mxu0 0
        %3908 = vmatprep.subr.bf16.mxu0 0
        %3909 = vmatpush1.bf16.msra.mxu0 0
        %3910 = vmatprep.subr.bf16.mxu0 0
        %3911 = vmatpush1.bf16.msra.mxu0 0
        %3912 = vmatprep.subr.bf16.mxu0 0
        %3913 = vmatpush1.bf16.msra.mxu0 0
        %3914 = vmatprep.subr.bf16.mxu0 0
        %3915 = vmatpush1.bf16.msra.mxu0 0
        %3916 = vmatprep.subr.bf16.mxu0 0
        %3917 = vmatpush1.bf16.msra.mxu0 0
        %3918 = vmatprep.subr.bf16.mxu0 0
        %3919 = vmatpush1.bf16.msra.mxu0 0
        %3920 = vmatprep.subr.bf16.mxu0 0
        %3921 = vmatpush1.bf16.msra.mxu0 0
        %3922 = vmatprep.subr.bf16.mxu0 0
        %3923 = vmatpush1.bf16.msra.mxu0 0
        %3924 = vmatprep.subr.bf16.mxu0 0
        %3925 = vmatpush1.bf16.msra.mxu0 0
        %3926 = vmatprep.subr.bf16.mxu0 0
        %3927 = vmatpush1.bf16.msra.mxu0 0
        %3928 = vmatprep.subr.bf16.mxu0 0
        %3929 = vmatpush1.bf16.msra.mxu0 0
        %3930 = vmatprep.mubr.bf16.mxu0 0
        %3931 = vmatmul.mubr.bf16.gmra.mrb[0].mxu0 %v3896
        %v3932 = vpop.f32.mrb[0].mxu0
        %v3933 = vadd.f32 0.0, %v3932
        %v3934 = vpop.f32.mrb[0].mxu0
        %v3935 = vpop.f32.mrb[0].mxu0
        %v3936 = vadd.f32 0.0, %v3935
        %v3937 = vpop.f32.mrb[0].mxu0
        %3938 = vdwg.mxu0
        %v3947 = vunpack.c.l.b16 %v3855
        %v3948 = vunpack.c.l.b16 %v3856
        %v3949 = vunpack.c.l.b16 %v3857
        %v3950 = vunpack.c.l.b16 %v3858
        %v3951 = vunpack.c.l.b16 %v3859
        %v3952 = vunpack.c.l.b16 %v3860
        %v3953 = vunpack.c.l.b16 %v3861
        %v3954 = vunpack.c.l.b16 %v3862
        %v3955 = vpack.c.b16 %v3948, %v3947
        %v3956 = vpack.c.b16 %v3950, %v3949
        %v3957 = vpack.c.b16 %v3952, %v3951
        %v3958 = vpack.c.b16 %v3954, %v3953
        %v3964 = vsel %vm2121, %v3854, 0
        %3966 = vmatprep.subr.bf16.mxu0 0
        %3967 = vmatpush1.bf16.msra.mxu0 %v3955
        %3968 = vmatprep.subr.bf16.mxu0 0
        %3969 = vmatpush1.bf16.msra.mxu0 %v3956
        %3970 = vmatprep.subr.bf16.mxu0 0
        %3971 = vmatpush1.bf16.msra.mxu0 %v3957
        %3972 = vmatprep.subr.bf16.mxu0 0
        %3973 = vmatpush1.bf16.msra.mxu0 %v3958
        %3974 = vmatprep.subr.bf16.mxu0 0
        %3975 = vmatpush1.bf16.msra.mxu0 0
        %3976 = vmatprep.subr.bf16.mxu0 0
        %3977 = vmatpush1.bf16.msra.mxu0 0
        %3978 = vmatprep.subr.bf16.mxu0 0
        %3979 = vmatpush1.bf16.msra.mxu0 0
        %3980 = vmatprep.subr.bf16.mxu0 0
        %3981 = vmatpush1.bf16.msra.mxu0 0
        %3982 = vmatprep.subr.bf16.mxu0 0
        %3983 = vmatpush1.bf16.msra.mxu0 0
        %3984 = vmatprep.subr.bf16.mxu0 0
        %3985 = vmatpush1.bf16.msra.mxu0 0
        %3986 = vmatprep.subr.bf16.mxu0 0
        %3987 = vmatpush1.bf16.msra.mxu0 0
        %3988 = vmatprep.subr.bf16.mxu0 0
        %3989 = vmatpush1.bf16.msra.mxu0 0
        %3990 = vmatprep.subr.bf16.mxu0 0
        %3991 = vmatpush1.bf16.msra.mxu0 0
        %3992 = vmatprep.subr.bf16.mxu0 0
        %3993 = vmatpush1.bf16.msra.mxu0 0
        %3994 = vmatprep.subr.bf16.mxu0 0
        %3995 = vmatpush1.bf16.msra.mxu0 0
        %3996 = vmatprep.subr.bf16.mxu0 0
        %3997 = vmatpush1.bf16.msra.mxu0 0
        %3998 = vmatprep.mubr.bf16.mxu0 0
        %3999 = vmatmul.mubr.bf16.gmra.mrb[0].mxu0 %v3964
        %v4000 = vpop.f32.mrb[0].mxu0
        %v4001 = vadd.f32 %v3933, %v4000
        %v4002 = vpop.f32.mrb[0].mxu0
        %v4003 = vpop.f32.mrb[0].mxu0
        %v4004 = vadd.f32 %v3936, %v4003
        %v4005 = vpop.f32.mrb[0].mxu0
        %4006 = vdwg.mxu0
        %v4007 = vld [vmem:[#allocation28] sm:$0xf]
        %v4008 = vld [vmem:[#allocation28 + $0x4] sm:$0xf]
        %v4011 = vunpack.c.l.b16 %v4007
        %v4012 = vunpack.c.l.b16 %v4008
        %v4013 = vpack.c.b16 %v4012, %v4011
        %v4015 = vsel %vm3809, %v4013, 0
        %4017 = vmatprep.subr.bf16.mxu0 0
        %4018 = vmatpush1.bf16.msra.mxu0 %v3803
        %4019 = vmatprep.subr.bf16.mxu0 0
        %4020 = vmatpush1.bf16.msra.mxu0 0
        %4021 = vmatprep.subr.bf16.mxu0 0
        %4022 = vmatpush1.bf16.msra.mxu0 0
        %4023 = vmatprep.subr.bf16.mxu0 0
        %4024 = vmatpush1.bf16.msra.mxu0 0
        %4025 = vmatprep.subr.bf16.mxu0 0
        %4026 = vmatpush1.bf16.msra.mxu0 0
        %4027 = vmatprep.subr.bf16.mxu0 0
        %4028 = vmatpush1.bf16.msra.mxu0 0
        %4029 = vmatprep.subr.bf16.mxu0 0
        %4030 = vmatpush1.bf16.msra.mxu0 0
        %4031 = vmatprep.subr.bf16.mxu0 0
        %4032 = vmatpush1.bf16.msra.mxu0 0
        %4033 = vmatprep.subr.bf16.mxu0 0
        %4034 = vmatpush1.bf16.msra.mxu0 0
        %4035 = vmatprep.subr.bf16.mxu0 0
        %4036 = vmatpush1.bf16.msra.mxu0 0
        %4037 = vmatprep.subr.bf16.mxu0 0
        %4038 = vmatpush1.bf16.msra.mxu0 0
        %4039 = vmatprep.subr.bf16.mxu0 0
        %4040 = vmatpush1.bf16.msra.mxu0 0
        %4041 = vmatprep.subr.bf16.mxu0 0
        %4042 = vmatpush1.bf16.msra.mxu0 0
        %4043 = vmatprep.subr.bf16.mxu0 0
        %4044 = vmatpush1.bf16.msra.mxu0 0
        %4045 = vmatprep.subr.bf16.mxu0 0
        %4046 = vmatpush1.bf16.msra.mxu0 0
        %4047 = vmatprep.subr.bf16.mxu0 0
        %4048 = vmatpush1.bf16.msra.mxu0 0
        %4049 = vmatprep.mubr.bf16.mxu0 0
        %4050 = vmatmul.mubr.bf16.gmra.mrb[0].mxu0 %v4015
        %v4051 = vpop.f32.mrb[0].mxu0
        %v4052 = vadd.f32 0.0, %v4051
        %v4053 = vpop.f32.mrb[0].mxu0
        %v4054 = vpop.f32.mrb[0].mxu0
        %v4055 = vadd.f32 0.0, %v4054
        %v4056 = vpop.f32.mrb[0].mxu0
        %4057 = vdwg.mxu0
        %v4058 = vpack.c.bf16 %v4055, %v4052
        %v4059 = vld [vmem:[#allocation33] sm:$0xf]
        %v4060 = vld [vmem:[#allocation33 + $0x4] sm:$0xf]
        %v4061 = vld [vmem:[#allocation33 + $0x8] sm:$0xf]
        %v4062 = vld [vmem:[#allocation33 + $0xc] sm:$0xf]
        %v4063 = vld [vmem:[#allocation33 + $0x10] sm:$0xf]
        %v4064 = vld [vmem:[#allocation33 + $0x14] sm:$0xf]
        %v4065 = vld [vmem:[#allocation33 + $0x18] sm:$0xf]
        %v4066 = vld [vmem:[#allocation33 + $0x1c] sm:$0xf]
        %v4075 = vunpack.c.l.b16 %v4059
        %v4076 = vunpack.c.l.b16 %v4060
        %v4077 = vunpack.c.l.b16 %v4061
        %v4078 = vunpack.c.l.b16 %v4062
        %v4079 = vunpack.c.l.b16 %v4063
        %v4080 = vunpack.c.l.b16 %v4064
        %v4081 = vunpack.c.l.b16 %v4065
        %v4082 = vunpack.c.l.b16 %v4066
        %v4083 = vpack.c.b16 %v4076, %v4075
        %v4084 = vpack.c.b16 %v4078, %v4077
        %v4085 = vpack.c.b16 %v4080, %v4079
        %v4086 = vpack.c.b16 %v4082, %v4081
        %v4092 = vsel %vm2121, %v4058, 0
        %4094 = vmatprep.subr.bf16.mxu0 0
        %4095 = vmatpush1.bf16.msra.mxu0 %v4083
        %4096 = vmatprep.subr.bf16.mxu0 0
        %4097 = vmatpush1.bf16.msra.mxu0 %v4084
        %4098 = vmatprep.subr.bf16.mxu0 0
        %4099 = vmatpush1.bf16.msra.mxu0 %v4085
        %4100 = vmatprep.subr.bf16.mxu0 0
        %4101 = vmatpush1.bf16.msra.mxu0 %v4086
        %4102 = vmatprep.subr.bf16.mxu0 0
        %4103 = vmatpush1.bf16.msra.mxu0 0
        %4104 = vmatprep.subr.bf16.mxu0 0
        %4105 = vmatpush1.bf16.msra.mxu0 0
        %4106 = vmatprep.subr.bf16.mxu0 0
        %4107 = vmatpush1.bf16.msra.mxu0 0
        %4108 = vmatprep.subr.bf16.mxu0 0
        %4109 = vmatpush1.bf16.msra.mxu0 0
        %4110 = vmatprep.subr.bf16.mxu0 0
        %4111 = vmatpush1.bf16.msra.mxu0 0
        %4112 = vmatprep.subr.bf16.mxu0 0
        %4113 = vmatpush1.bf16.msra.mxu0 0
        %4114 = vmatprep.subr.bf16.mxu0 0
        %4115 = vmatpush1.bf16.msra.mxu0 0
        %4116 = vmatprep.subr.bf16.mxu0 0
        %4117 = vmatpush1.bf16.msra.mxu0 0
        %4118 = vmatprep.subr.bf16.mxu0 0
        %4119 = vmatpush1.bf16.msra.mxu0 0
        %4120 = vmatprep.subr.bf16.mxu0 0
        %4121 = vmatpush1.bf16.msra.mxu0 0
        %4122 = vmatprep.subr.bf16.mxu0 0
        %4123 = vmatpush1.bf16.msra.mxu0 0
        %4124 = vmatprep.subr.bf16.mxu0 0
        %4125 = vmatpush1.bf16.msra.mxu0 0
        %4126 = vmatprep.mubr.bf16.mxu0 0
        %4127 = vmatmul.mubr.bf16.gmra.mrb[0].mxu0 %v4092
        %v4128 = vpop.f32.mrb[0].mxu0
        %v4129 = vadd.f32 0.0, %v4128
        %v4130 = vpop.f32.mrb[0].mxu0
        %v4131 = vpop.f32.mrb[0].mxu0
        %v4132 = vadd.f32 0.0, %v4131
        %v4133 = vpop.f32.mrb[0].mxu0
        %4134 = vdwg.mxu0
        %v4135 = vadd.f32 %v4001, %v4129
        %v4136 = vadd.f32 %v4004, %v4132
        %v4137 = vld [vmem:[#allocation34] sm:$0x1]
        %v4139 = vlaneseq
        %v4140 = vshrl.u32 %v4139, 7
        %v4141 = vsub.s32 0, %v4140
        %v4142 = vrot.slane %v4137, %v4141
        %v4144 = vadd.f32 %v4135, %v4142
        %v4145 = vadd.f32 %v4136, %v4142
        %v4146 = vmax.f32 %v4144, 0.0
        %v4147 = vmax.f32 %v4145, 0.0
        %v4148 = vld [vmem:[#allocation36] sm:$0xf]
        %v4149 = vld [vmem:[#allocation36 + $0x4] sm:$0xf]
        %v4150 = vpack.c.bf16 %v4147, %v4146
        %v4153 = vunpack.c.l.b16 %v4148
        %v4154 = vunpack.c.l.b16 %v4149
        %v4155 = vpack.c.b16 %v4154, %v4153
        %v4157 = vsel %vm3809, %v4155, 0
        %4159 = vmatprep.subr.bf16.mxu0 0
        %4160 = vmatpush1.bf16.msra.mxu0 %v4150
        %4161 = vmatprep.subr.bf16.mxu0 0
        %4162 = vmatpush1.bf16.msra.mxu0 0
        %4163 = vmatprep.subr.bf16.mxu0 0
        %4164 = vmatpush1.bf16.msra.mxu0 0
        %4165 = vmatprep.subr.bf16.mxu0 0
        %4166 = vmatpush1.bf16.msra.mxu0 0
        %4167 = vmatprep.subr.bf16.mxu0 0
        %4168 = vmatpush1.bf16.msra.mxu0 0
        %4169 = vmatprep.subr.bf16.mxu0 0
        %4170 = vmatpush1.bf16.msra.mxu0 0
        %4171 = vmatprep.subr.bf16.mxu0 0
        %4172 = vmatpush1.bf16.msra.mxu0 0
        %4173 = vmatprep.subr.bf16.mxu0 0
        %4174 = vmatpush1.bf16.msra.mxu0 0
        %4175 = vmatprep.subr.bf16.mxu0 0
        %4176 = vmatpush1.bf16.msra.mxu0 0
        %4177 = vmatprep.subr.bf16.mxu0 0
        %4178 = vmatpush1.bf16.msra.mxu0 0
        %4179 = vmatprep.subr.bf16.mxu0 0
        %4180 = vmatpush1.bf16.msra.mxu0 0
        %4181 = vmatprep.subr.bf16.mxu0 0
        %4182 = vmatpush1.bf16.msra.mxu0 0
        %4183 = vmatprep.subr.bf16.mxu0 0
        %4184 = vmatpush1.bf16.msra.mxu0 0
        %4185 = vmatprep.subr.bf16.mxu0 0
        %4186 = vmatpush1.bf16.msra.mxu0 0
        %4187 = vmatprep.subr.bf16.mxu0 0
        %4188 = vmatpush1.bf16.msra.mxu0 0
        %4189 = vmatprep.subr.bf16.mxu0 0
        %4190 = vmatpush1.bf16.msra.mxu0 0
        %4191 = vmatprep.mubr.bf16.mxu0 0
        %4192 = vmatmul.mubr.bf16.gmra.mrb[0].mxu0 %v4157
        %v4193 = vpop.f32.mrb[0].mxu0
        %v4194 = vadd.f32 0.0, %v4193
        %v4195 = vpop.f32.mrb[0].mxu0
        %v4196 = vpop.f32.mrb[0].mxu0
        %v4197 = vadd.f32 0.0, %v4196
        %v4198 = vpop.f32.mrb[0].mxu0
        %4199 = vdwg.mxu0
        %v4200 = vpack.c.bf16 %v4197, %v4194
        %v4201 = vld [vmem:[%s59] sm:$0xf]
        %v4202 = vld [vmem:[%s59 + $0x4] sm:$0xf]
        %v4203 = vld [vmem:[%s59 + $0x8] sm:$0xf]
        %v4204 = vld [vmem:[%s59 + $0xc] sm:$0xf]
        %v4205 = vld [vmem:[%s59 + $0x10] sm:$0xf]
        %v4206 = vld [vmem:[%s59 + $0x14] sm:$0xf]
        %v4207 = vld [vmem:[%s59 + $0x18] sm:$0xf]
        %v4208 = vld [vmem:[%s59 + $0x1c] sm:$0xf]
        %v4209 = vld [vmem:[%s59 + $0x20] sm:$0xf]
        %v4210 = vld [vmem:[%s59 + $0x24] sm:$0xf]
        %v4211 = vld [vmem:[%s59 + $0x28] sm:$0xf]
        %v4212 = vld [vmem:[%s59 + $0x2c] sm:$0xf]
        %v4213 = vld [vmem:[%s59 + $0x30] sm:$0xf]
        %v4214 = vld [vmem:[%s59 + $0x34] sm:$0xf]
        %v4215 = vld [vmem:[%s59 + $0x38] sm:$0xf]
        %v4216 = vld [vmem:[%s59 + $0x3c] sm:$0xf]
        %v4217 = vld [vmem:[%s61] sm:$0xf]
        %v4218 = vld [vmem:[%s61 + $0x4] sm:$0xf]
        %v4219 = vld [vmem:[%s61 + $0x8] sm:$0xf]
        %v4220 = vld [vmem:[%s61 + $0xc] sm:$0xf]
        %v4221 = vld [vmem:[%s61 + $0x10] sm:$0xf]
        %v4222 = vld [vmem:[%s61 + $0x14] sm:$0xf]
        %v4223 = vld [vmem:[%s61 + $0x18] sm:$0xf]
        %v4224 = vld [vmem:[%s61 + $0x1c] sm:$0xf]
        %v4225 = vld [vmem:[%s61 + $0x20] sm:$0xf]
        %v4226 = vld [vmem:[%s61 + $0x24] sm:$0xf]
        %v4227 = vld [vmem:[%s61 + $0x28] sm:$0xf]
        %v4228 = vld [vmem:[%s61 + $0x2c] sm:$0xf]
        %v4229 = vld [vmem:[%s61 + $0x30] sm:$0xf]
        %v4230 = vld [vmem:[%s61 + $0x34] sm:$0xf]
        %v4231 = vld [vmem:[%s61 + $0x38] sm:$0xf]
        %v4232 = vld [vmem:[%s61 + $0x3c] sm:$0xf]
        %v4249 = vunpack.c.l.b16 %v4217
        %v4250 = vunpack.c.l.b16 %v4218
        %v4251 = vunpack.c.l.b16 %v4219
        %v4252 = vunpack.c.l.b16 %v4220
        %v4253 = vunpack.c.l.b16 %v4221
        %v4254 = vunpack.c.l.b16 %v4222
        %v4255 = vunpack.c.l.b16 %v4223
        %v4256 = vunpack.c.l.b16 %v4224
        %v4257 = vunpack.c.l.b16 %v4225
        %v4258 = vunpack.c.l.b16 %v4226
        %v4259 = vunpack.c.l.b16 %v4227
        %v4260 = vunpack.c.l.b16 %v4228
        %v4261 = vunpack.c.l.b16 %v4229
        %v4262 = vunpack.c.l.b16 %v4230
        %v4263 = vunpack.c.l.b16 %v4231
        %v4264 = vunpack.c.l.b16 %v4232
        %v4265 = vpack.c.b16 %v4250, %v4249
        %v4266 = vpack.c.b16 %v4252, %v4251
        %v4267 = vpack.c.b16 %v4254, %v4253
        %v4268 = vpack.c.b16 %v4256, %v4255
        %v4269 = vpack.c.b16 %v4258, %v4257
        %v4270 = vpack.c.b16 %v4260, %v4259
        %v4271 = vpack.c.b16 %v4262, %v4261
        %v4272 = vpack.c.b16 %v4264, %v4263
        %4281 = vmatprep.subr.bf16.mxu0 0
        %4282 = vmatpush1.bf16.msra.mxu0 %v4265
        %4283 = vmatprep.subr.bf16.mxu0 0
        %4284 = vmatpush1.bf16.msra.mxu0 %v4266
        %4285 = vmatprep.subr.bf16.mxu0 0
        %4286 = vmatpush1.bf16.msra.mxu0 %v4267
        %4287 = vmatprep.subr.bf16.mxu0 0
        %4288 = vmatpush1.bf16.msra.mxu0 %v4268
        %4289 = vmatprep.subr.bf16.mxu0 0
        %4290 = vmatpush1.bf16.msra.mxu0 %v4269
        %4291 = vmatprep.subr.bf16.mxu0 0
        %4292 = vmatpush1.bf16.msra.mxu0 %v4270
        %4293 = vmatprep.subr.bf16.mxu0 0
        %4294 = vmatpush1.bf16.msra.mxu0 %v4271
        %4295 = vmatprep.subr.bf16.mxu0 0
        %4296 = vmatpush1.bf16.msra.mxu0 %v4272
        %4297 = vmatprep.subr.bf16.mxu0 0
        %4298 = vmatpush1.bf16.msra.mxu0 0
        %4299 = vmatprep.subr.bf16.mxu0 0
        %4300 = vmatpush1.bf16.msra.mxu0 0
        %4301 = vmatprep.subr.bf16.mxu0 0
        %4302 = vmatpush1.bf16.msra.mxu0 0
        %4303 = vmatprep.subr.bf16.mxu0 0
        %4304 = vmatpush1.bf16.msra.mxu0 0
        %4305 = vmatprep.subr.bf16.mxu0 0
        %4306 = vmatpush1.bf16.msra.mxu0 0
        %4307 = vmatprep.subr.bf16.mxu0 0
        %4308 = vmatpush1.bf16.msra.mxu0 0
        %4309 = vmatprep.subr.bf16.mxu0 0
        %4310 = vmatpush1.bf16.msra.mxu0 0
        %4311 = vmatprep.subr.bf16.mxu0 0
        %4312 = vmatpush1.bf16.msra.mxu0 0
        %4313 = vmatprep.mubr.bf16.mxu0 0
        %4314 = vmatmul.mubr.bf16.gmra.mrb[0].mxu0 %v4150
        %v4315 = vpop.f32.mrb[0].mxu0
        %v4316 = vadd.f32 0.0, %v4315
        %v4317 = vpop.f32.mrb[0].mxu0
        %v4318 = vpop.f32.mrb[0].mxu0
        %v4319 = vadd.f32 0.0, %v4318
        %v4320 = vpop.f32.mrb[0].mxu0
        %4321 = vdwg.mxu0
        %v4338 = vunpack.c.l.b16 %v4201
        %v4339 = vunpack.c.l.b16 %v4202
        %v4340 = vunpack.c.l.b16 %v4203
        %v4341 = vunpack.c.l.b16 %v4204
        %v4342 = vunpack.c.l.b16 %v4205
        %v4343 = vunpack.c.l.b16 %v4206
        %v4344 = vunpack.c.l.b16 %v4207
        %v4345 = vunpack.c.l.b16 %v4208
        %v4346 = vunpack.c.l.b16 %v4209
        %v4347 = vunpack.c.l.b16 %v4210
        %v4348 = vunpack.c.l.b16 %v4211
        %v4349 = vunpack.c.l.b16 %v4212
        %v4350 = vunpack.c.l.b16 %v4213
        %v4351 = vunpack.c.l.b16 %v4214
        %v4352 = vunpack.c.l.b16 %v4215
        %v4353 = vunpack.c.l.b16 %v4216
        %v4354 = vpack.c.b16 %v4339, %v4338
        %v4355 = vpack.c.b16 %v4341, %v4340
        %v4356 = vpack.c.b16 %v4343, %v4342
        %v4357 = vpack.c.b16 %v4345, %v4344
        %v4358 = vpack.c.b16 %v4347, %v4346
        %v4359 = vpack.c.b16 %v4349, %v4348
        %v4360 = vpack.c.b16 %v4351, %v4350
        %v4361 = vpack.c.b16 %v4353, %v4352
        %4370 = vmatprep.subr.bf16.mxu0 0
        %4371 = vmatpush1.bf16.msra.mxu0 %v4354
        %4372 = vmatprep.subr.bf16.mxu0 0
        %4373 = vmatpush1.bf16.msra.mxu0 %v4355
        %4374 = vmatprep.subr.bf16.mxu0 0
        %4375 = vmatpush1.bf16.msra.mxu0 %v4356
        %4376 = vmatprep.subr.bf16.mxu0 0
        %4377 = vmatpush1.bf16.msra.mxu0 %v4357
        %4378 = vmatprep.subr.bf16.mxu0 0
        %4379 = vmatpush1.bf16.msra.mxu0 %v4358
        %4380 = vmatprep.subr.bf16.mxu0 0
        %4381 = vmatpush1.bf16.msra.mxu0 %v4359
        %4382 = vmatprep.subr.bf16.mxu0 0
        %4383 = vmatpush1.bf16.msra.mxu0 %v4360
        %4384 = vmatprep.subr.bf16.mxu0 0
        %4385 = vmatpush1.bf16.msra.mxu0 %v4361
        %4386 = vmatprep.subr.bf16.mxu0 0
        %4387 = vmatpush1.bf16.msra.mxu0 0
        %4388 = vmatprep.subr.bf16.mxu0 0
        %4389 = vmatpush1.bf16.msra.mxu0 0
        %4390 = vmatprep.subr.bf16.mxu0 0
        %4391 = vmatpush1.bf16.msra.mxu0 0
        %4392 = vmatprep.subr.bf16.mxu0 0
        %4393 = vmatpush1.bf16.msra.mxu0 0
        %4394 = vmatprep.subr.bf16.mxu0 0
        %4395 = vmatpush1.bf16.msra.mxu0 0
        %4396 = vmatprep.subr.bf16.mxu0 0
        %4397 = vmatpush1.bf16.msra.mxu0 0
        %4398 = vmatprep.subr.bf16.mxu0 0
        %4399 = vmatpush1.bf16.msra.mxu0 0
        %4400 = vmatprep.subr.bf16.mxu0 0
        %4401 = vmatpush1.bf16.msra.mxu0 0
        %4402 = vmatprep.mubr.bf16.mxu0 0
        %4403 = vmatmul.mubr.bf16.gmra.mrb[0].mxu0 %v4200
        %v4404 = vpop.f32.mrb[0].mxu0
        %v4405 = vadd.f32 %v4316, %v4404
        %v4406 = vpop.f32.mrb[0].mxu0
        %v4407 = vpop.f32.mrb[0].mxu0
        %v4408 = vadd.f32 %v4319, %v4407
        %v4409 = vpop.f32.mrb[0].mxu0
        %4410 = vdwg.mxu0
        %v4411 = vld [vmem:[#allocation37] sm:$0xf]
        %v4412 = vld [vmem:[#allocation37 + $0x4] sm:$0xf]
        %v4415 = vunpack.c.l.b16 %v4411
        %v4416 = vunpack.c.l.b16 %v4412
        %v4417 = vpack.c.b16 %v4416, %v4415
        %v4419 = vsel %vm3809, %v4417, 0
        %4421 = vmatprep.subr.bf16.mxu0 0
        %4422 = vmatpush1.bf16.msra.mxu0 %v4150
        %4423 = vmatprep.subr.bf16.mxu0 0
        %4424 = vmatpush1.bf16.msra.mxu0 0
        %4425 = vmatprep.subr.bf16.mxu0 0
        %4426 = vmatpush1.bf16.msra.mxu0 0
        %4427 = vmatprep.subr.bf16.mxu0 0
        %4428 = vmatpush1.bf16.msra.mxu0 0
        %4429 = vmatprep.subr.bf16.mxu0 0
        %4430 = vmatpush1.bf16.msra.mxu0 0
        %4431 = vmatprep.subr.bf16.mxu0 0
        %4432 = vmatpush1.bf16.msra.mxu0 0
        %4433 = vmatprep.subr.bf16.mxu0 0
        %4434 = vmatpush1.bf16.msra.mxu0 0
        %4435 = vmatprep.subr.bf16.mxu0 0
        %4436 = vmatpush1.bf16.msra.mxu0 0
        %4437 = vmatprep.subr.bf16.mxu0 0
        %4438 = vmatpush1.bf16.msra.mxu0 0
        %4439 = vmatprep.subr.bf16.mxu0 0
        %4440 = vmatpush1.bf16.msra.mxu0 0
        %4441 = vmatprep.subr.bf16.mxu0 0
        %4442 = vmatpush1.bf16.msra.mxu0 0
        %4443 = vmatprep.subr.bf16.mxu0 0
        %4444 = vmatpush1.bf16.msra.mxu0 0
        %4445 = vmatprep.subr.bf16.mxu0 0
        %4446 = vmatpush1.bf16.msra.mxu0 0
        %4447 = vmatprep.subr.bf16.mxu0 0
        %4448 = vmatpush1.bf16.msra.mxu0 0
        %4449 = vmatprep.subr.bf16.mxu0 0
        %4450 = vmatpush1.bf16.msra.mxu0 0
        %4451 = vmatprep.subr.bf16.mxu0 0
        %4452 = vmatpush1.bf16.msra.mxu0 0
        %4453 = vmatprep.mubr.bf16.mxu0 0
        %4454 = vmatmul.mubr.bf16.gmra.mrb[0].mxu0 %v4419
        %v4455 = vpop.f32.mrb[0].mxu0
        %v4456 = vadd.f32 0.0, %v4455
        %v4457 = vpop.f32.mrb[0].mxu0
        %v4458 = vpop.f32.mrb[0].mxu0
        %v4459 = vadd.f32 0.0, %v4458
        %v4460 = vpop.f32.mrb[0].mxu0
        %4461 = vdwg.mxu0
        %v4462 = vpack.c.bf16 %v4459, %v4456
        %v4463 = vld [vmem:[#allocation39] sm:$0xf]
        %v4464 = vld [vmem:[#allocation39 + $0x4] sm:$0xf]
        %v4465 = vld [vmem:[#allocation39 + $0x8] sm:$0xf]
        %v4466 = vld [vmem:[#allocation39 + $0xc] sm:$0xf]
        %v4467 = vld [vmem:[#allocation39 + $0x10] sm:$0xf]
        %v4468 = vld [vmem:[#allocation39 + $0x14] sm:$0xf]
        %v4469 = vld [vmem:[#allocation39 + $0x18] sm:$0xf]
        %v4470 = vld [vmem:[#allocation39 + $0x1c] sm:$0xf]
        %v4471 = vld [vmem:[#allocation39 + $0x20] sm:$0xf]
        %v4472 = vld [vmem:[#allocation39 + $0x24] sm:$0xf]
        %v4473 = vld [vmem:[#allocation39 + $0x28] sm:$0xf]
        %v4474 = vld [vmem:[#allocation39 + $0x2c] sm:$0xf]
        %v4475 = vld [vmem:[#allocation39 + $0x30] sm:$0xf]
        %v4476 = vld [vmem:[#allocation39 + $0x34] sm:$0xf]
        %v4477 = vld [vmem:[#allocation39 + $0x38] sm:$0xf]
        %v4478 = vld [vmem:[#allocation39 + $0x3c] sm:$0xf]
        %v4495 = vunpack.c.l.b16 %v4463
        %v4496 = vunpack.c.l.b16 %v4464
        %v4497 = vunpack.c.l.b16 %v4465
        %v4498 = vunpack.c.l.b16 %v4466
        %v4499 = vunpack.c.l.b16 %v4467
        %v4500 = vunpack.c.l.b16 %v4468
        %v4501 = vunpack.c.l.b16 %v4469
        %v4502 = vunpack.c.l.b16 %v4470
        %v4503 = vunpack.c.l.b16 %v4471
        %v4504 = vunpack.c.l.b16 %v4472
        %v4505 = vunpack.c.l.b16 %v4473
        %v4506 = vunpack.c.l.b16 %v4474
        %v4507 = vunpack.c.l.b16 %v4475
        %v4508 = vunpack.c.l.b16 %v4476
        %v4509 = vunpack.c.l.b16 %v4477
        %v4510 = vunpack.c.l.b16 %v4478
        %v4511 = vpack.c.b16 %v4496, %v4495
        %v4512 = vpack.c.b16 %v4498, %v4497
        %v4513 = vpack.c.b16 %v4500, %v4499
        %v4514 = vpack.c.b16 %v4502, %v4501
        %v4515 = vpack.c.b16 %v4504, %v4503
        %v4516 = vpack.c.b16 %v4506, %v4505
        %v4517 = vpack.c.b16 %v4508, %v4507
        %v4518 = vpack.c.b16 %v4510, %v4509
        %4527 = vmatprep.subr.bf16.mxu0 0
        %4528 = vmatpush1.bf16.msra.mxu0 %v4511
        %4529 = vmatprep.subr.bf16.mxu0 0
        %4530 = vmatpush1.bf16.msra.mxu0 %v4512
        %4531 = vmatprep.subr.bf16.mxu0 0
        %4532 = vmatpush1.bf16.msra.mxu0 %v4513
        %4533 = vmatprep.subr.bf16.mxu0 0
        %4534 = vmatpush1.bf16.msra.mxu0 %v4514
        %4535 = vmatprep.subr.bf16.mxu0 0
        %4536 = vmatpush1.bf16.msra.mxu0 %v4515
        %4537 = vmatprep.subr.bf16.mxu0 0
        %4538 = vmatpush1.bf16.msra.mxu0 %v4516
        %4539 = vmatprep.subr.bf16.mxu0 0
        %4540 = vmatpush1.bf16.msra.mxu0 %v4517
        %4541 = vmatprep.subr.bf16.mxu0 0
        %4542 = vmatpush1.bf16.msra.mxu0 %v4518
        %4543 = vmatprep.subr.bf16.mxu0 0
        %4544 = vmatpush1.bf16.msra.mxu0 0
        %4545 = vmatprep.subr.bf16.mxu0 0
        %4546 = vmatpush1.bf16.msra.mxu0 0
        %4547 = vmatprep.subr.bf16.mxu0 0
        %4548 = vmatpush1.bf16.msra.mxu0 0
        %4549 = vmatprep.subr.bf16.mxu0 0
        %4550 = vmatpush1.bf16.msra.mxu0 0
        %4551 = vmatprep.subr.bf16.mxu0 0
        %4552 = vmatpush1.bf16.msra.mxu0 0
        %4553 = vmatprep.subr.bf16.mxu0 0
        %4554 = vmatpush1.bf16.msra.mxu0 0
        %4555 = vmatprep.subr.bf16.mxu0 0
        %4556 = vmatpush1.bf16.msra.mxu0 0
        %4557 = vmatprep.subr.bf16.mxu0 0
        %4558 = vmatpush1.bf16.msra.mxu0 0
        %4559 = vmatprep.mubr.bf16.mxu0 0
        %4560 = vmatmul.mubr.bf16.gmra.mrb[0].mxu0 %v4462
        %v4561 = vpop.f32.mrb[0].mxu0
        %v4562 = vadd.f32 0.0, %v4561
        %v4563 = vpop.f32.mrb[0].mxu0
        %v4564 = vpop.f32.mrb[0].mxu0
        %v4565 = vadd.f32 0.0, %v4564
        %v4566 = vpop.f32.mrb[0].mxu0
        %4567 = vdwg.mxu0
        %v4568 = vadd.f32 %v4405, %v4562
        %v4569 = vadd.f32 %v4408, %v4565
        %v4570 = vld [vmem:[#allocation40] sm:$0x1]
        %v4572 = vlaneseq
        %v4573 = vshrl.u32 %v4572, 7
        %v4574 = vsub.s32 0, %v4573
        %v4575 = vrot.slane %v4570, %v4574
        %v4577 = vadd.f32 %v4568, %v4575
        %v4578 = vadd.f32 %v4569, %v4575
        %v4579 = vmax.f32 %v4577, 0.0
        %v4580 = vmax.f32 %v4578, 0.0
        %v4581 = vld [vmem:[#allocation42] sm:$0xf]
        %v4582 = vpack.c.bf16 %v4580, %v4579
        %v4584 = vsel %vm3809, %v4581, 0
        %4586 = vmatprep.subr.bf16.mxu0 0
        %4587 = vmatpush1.bf16.msra.mxu0 %v4582
        %4588 = vmatprep.subr.bf16.mxu0 0
        %4589 = vmatpush1.bf16.msra.mxu0 0
        %4590 = vmatprep.subr.bf16.mxu0 0
        %4591 = vmatpush1.bf16.msra.mxu0 0
        %4592 = vmatprep.subr.bf16.mxu0 0
        %4593 = vmatpush1.bf16.msra.mxu0 0
        %4594 = vmatprep.subr.bf16.mxu0 0
        %4595 = vmatpush1.bf16.msra.mxu0 0
        %4596 = vmatprep.subr.bf16.mxu0 0
        %4597 = vmatpush1.bf16.msra.mxu0 0
        %4598 = vmatprep.subr.bf16.mxu0 0
        %4599 = vmatpush1.bf16.msra.mxu0 0
        %4600 = vmatprep.subr.bf16.mxu0 0
        %4601 = vmatpush1.bf16.msra.mxu0 0
        %4602 = vmatprep.subr.bf16.mxu0 0
        %4603 = vmatpush1.bf16.msra.mxu0 0
        %4604 = vmatprep.subr.bf16.mxu0 0
        %4605 = vmatpush1.bf16.msra.mxu0 0
        %4606 = vmatprep.subr.bf16.mxu0 0
        %4607 = vmatpush1.bf16.msra.mxu0 0
        %4608 = vmatprep.subr.bf16.mxu0 0
        %4609 = vmatpush1.bf16.msra.mxu0 0
        %4610 = vmatprep.subr.bf16.mxu0 0
        %4611 = vmatpush1.bf16.msra.mxu0 0
        %4612 = vmatprep.subr.bf16.mxu0 0
        %4613 = vmatpush1.bf16.msra.mxu0 0
        %4614 = vmatprep.subr.bf16.mxu0 0
        %4615 = vmatpush1.bf16.msra.mxu0 0
        %4616 = vmatprep.subr.bf16.mxu0 0
        %4617 = vmatpush1.bf16.msra.mxu0 0
        %4618 = vmatprep.mubr.bf16.mxu0 0
        %4619 = vmatmul.mubr.bf16.gmra.mrb[0].mxu0 %v4584
        %v4620 = vpop.f32.mrb[0].mxu0
        %v4621 = vadd.f32 0.0, %v4620
        %v4622 = vpop.f32.mrb[0].mxu0
        %v4623 = vpop.f32.mrb[0].mxu0
        %v4624 = vpop.f32.mrb[0].mxu0
        %4625 = vdwg.mxu0
        %v4626 = vld [vmem:[#allocation43] sm:$0xf]
        %v4628 = vsel %vm3809, %v4626, 0
        %4630 = vmatprep.subr.bf16.mxu0 0
        %4631 = vmatpush1.bf16.msra.mxu0 %v4582
        %4632 = vmatprep.subr.bf16.mxu0 0
        %4633 = vmatpush1.bf16.msra.mxu0 0
        %4634 = vmatprep.subr.bf16.mxu0 0
        %4635 = vmatpush1.bf16.msra.mxu0 0
        %4636 = vmatprep.subr.bf16.mxu0 0
        %4637 = vmatpush1.bf16.msra.mxu0 0
        %4638 = vmatprep.subr.bf16.mxu0 0
        %4639 = vmatpush1.bf16.msra.mxu0 0
        %4640 = vmatprep.subr.bf16.mxu0 0
        %4641 = vmatpush1.bf16.msra.mxu0 0
        %4642 = vmatprep.subr.bf16.mxu0 0
        %4643 = vmatpush1.bf16.msra.mxu0 0
        %4644 = vmatprep.subr.bf16.mxu0 0
        %4645 = vmatpush1.bf16.msra.mxu0 0
        %4646 = vmatprep.subr.bf16.mxu0 0
        %4647 = vmatpush1.bf16.msra.mxu0 0
        %4648 = vmatprep.subr.bf16.mxu0 0
        %4649 = vmatpush1.bf16.msra.mxu0 0
        %4650 = vmatprep.subr.bf16.mxu0 0
        %4651 = vmatpush1.bf16.msra.mxu0 0
        %4652 = vmatprep.subr.bf16.mxu0 0
        %4653 = vmatpush1.bf16.msra.mxu0 0
        %4654 = vmatprep.subr.bf16.mxu0 0
        %4655 = vmatpush1.bf16.msra.mxu0 0
        %4656 = vmatprep.subr.bf16.mxu0 0
        %4657 = vmatpush1.bf16.msra.mxu0 0
        %4658 = vmatprep.subr.bf16.mxu0 0
        %4659 = vmatpush1.bf16.msra.mxu0 0
        %4660 = vmatprep.subr.bf16.mxu0 0
        %4661 = vmatpush1.bf16.msra.mxu0 0
        %4662 = vmatprep.mubr.bf16.mxu0 0
        %4663 = vmatmul.mubr.bf16.gmra.mrb[0].mxu0 %v4628
        %v4664 = vpop.f32.mrb[0].mxu0
        %v4665 = vadd.f32 0.0, %v4664
        %v4666 = vpop.f32.mrb[0].mxu0
        %v4667 = vpop.f32.mrb[0].mxu0
        %v4668 = vpop.f32.mrb[0].mxu0
        %4669 = vdwg.mxu0
        %v4670 = vmax.f32 %v4621, %v4665
        %v4671 = vld [vmem:[%s71] sm:$0xf]
        %v4672 = vpack.c.bf16 %v4670, %v4670
        %vm4673 = vcmask 64512
        %v4675 = vsel %vm4673, %v4671, 0
        %vm4677 = vcmask 1043456
        %v4679 = vsel %vm4677, %v4672, 0
        %4681 = vmatprep.subr.bf16.mxu0 0
        %4682 = vmatpush1.bf16.msra.mxu0 %v4679
        %4683 = vmatprep.subr.bf16.mxu0 0
        %4684 = vmatpush1.bf16.msra.mxu0 0
        %4685 = vmatprep.subr.bf16.mxu0 0
        %4686 = vmatpush1.bf16.msra.mxu0 0
        %4687 = vmatprep.subr.bf16.mxu0 0
        %4688 = vmatpush1.bf16.msra.mxu0 0
        %4689 = vmatprep.subr.bf16.mxu0 0
        %4690 = vmatpush1.bf16.msra.mxu0 0
        %4691 = vmatprep.subr.bf16.mxu0 0
        %4692 = vmatpush1.bf16.msra.mxu0 0
        %4693 = vmatprep.subr.bf16.mxu0 0
        %4694 = vmatpush1.bf16.msra.mxu0 0
        %4695 = vmatprep.subr.bf16.mxu0 0
        %4696 = vmatpush1.bf16.msra.mxu0 0
        %4697 = vmatprep.subr.bf16.mxu0 0
        %4698 = vmatpush1.bf16.msra.mxu0 0
        %4699 = vmatprep.subr.bf16.mxu0 0
        %4700 = vmatpush1.bf16.msra.mxu0 0
        %4701 = vmatprep.subr.bf16.mxu0 0
        %4702 = vmatpush1.bf16.msra.mxu0 0
        %4703 = vmatprep.subr.bf16.mxu0 0
        %4704 = vmatpush1.bf16.msra.mxu0 0
        %4705 = vmatprep.subr.bf16.mxu0 0
        %4706 = vmatpush1.bf16.msra.mxu0 0
        %4707 = vmatprep.subr.bf16.mxu0 0
        %4708 = vmatpush1.bf16.msra.mxu0 0
        %4709 = vmatprep.subr.bf16.mxu0 0
        %4710 = vmatpush1.bf16.msra.mxu0 0
        %4711 = vmatprep.subr.bf16.mxu0 0
        %4712 = vmatpush1.bf16.msra.mxu0 0
        %4713 = vmatprep.mubr.bf16.mxu0 0
        %4714 = vmatmul.mubr.bf16.gmra.mrb[0].mxu0 %v4675
        %v4715 = vpop.f32.mrb[0].mxu0
        %v4716 = vadd.f32 0.0, %v4715
        %v4717 = vpop.f32.mrb[0].mxu0
        %v4718 = vpop.f32.mrb[0].mxu0
        %v4719 = vpop.f32.mrb[0].mxu0
        %4720 = vdwg.mxu0
        %v4721 = vpack.c.bf16 %v4716, %v4716
        %v4722 = vld [vmem:[%s75] sm:$0xff]
        %v4723 = vld [vmem:[%s75 + $0x8] sm:$0xff]
        %v4724 = vld [vmem:[%s75 + $0x10] sm:$0xff]
        %v4725 = vld [vmem:[%s75 + $0x18] sm:$0xff]
        %v4726 = vld [vmem:[%s75 + $0x20] sm:$0xff]
        %v4727 = vld [vmem:[%s75 + $0x28] sm:$0xff]
        %v4728 = vld [vmem:[%s75 + $0x30] sm:$0xff]
        %v4729 = vld [vmem:[%s75 + $0x38] sm:$0xff]
        %v4730 = vld [vmem:[%s75 + $0x40] sm:$0xff]
        %v4731 = vld [vmem:[%s75 + $0x48] sm:$0xff]
        %v4732 = vld [vmem:[%s75 + $0x50] sm:$0xff]
        %v4733 = vld [vmem:[%s75 + $0x58] sm:$0xff]
        %v4734 = vld [vmem:[%s75 + $0x60] sm:$0xff]
        %v4735 = vld [vmem:[%s75 + $0x68] sm:$0xff]
        %v4736 = vld [vmem:[%s75 + $0x70] sm:$0xff]
        %v4737 = vld [vmem:[%s75 + $0x78] sm:$0xff]
        %v4738 = vld [vmem:[%s77] sm:$0xff]
        %v4739 = vld [vmem:[%s77 + $0x8] sm:$0xff]
        %v4740 = vld [vmem:[%s77 + $0x10] sm:$0xff]
        %v4741 = vld [vmem:[%s77 + $0x18] sm:$0xff]
        %v4742 = vld [vmem:[%s77 + $0x20] sm:$0xff]
        %v4743 = vld [vmem:[%s77 + $0x28] sm:$0xff]
        %v4744 = vld [vmem:[%s77 + $0x30] sm:$0xff]
        %v4745 = vld [vmem:[%s77 + $0x38] sm:$0xff]
        %v4746 = vld [vmem:[%s77 + $0x40] sm:$0xff]
        %v4747 = vld [vmem:[%s77 + $0x48] sm:$0xff]
        %v4748 = vld [vmem:[%s77 + $0x50] sm:$0xff]
        %v4749 = vld [vmem:[%s77 + $0x58] sm:$0xff]
        %v4750 = vld [vmem:[%s77 + $0x60] sm:$0xff]
        %v4751 = vld [vmem:[%s77 + $0x68] sm:$0xff]
        %v4752 = vld [vmem:[%s77 + $0x70] sm:$0xff]
        %v4753 = vld [vmem:[%s77 + $0x78] sm:$0xff]
        %v4770 = vunpack.c.l.b16 %v4738
        %v4771 = vunpack.c.h.b16 %v4738
        %v4772 = vunpack.c.l.b16 %v4739
        %v4773 = vunpack.c.h.b16 %v4739
        %v4774 = vunpack.c.l.b16 %v4740
        %v4775 = vunpack.c.h.b16 %v4740
        %v4776 = vunpack.c.l.b16 %v4741
        %v4777 = vunpack.c.h.b16 %v4741
        %v4778 = vunpack.c.l.b16 %v4742
        %v4779 = vunpack.c.h.b16 %v4742
        %v4780 = vunpack.c.l.b16 %v4743
        %v4781 = vunpack.c.h.b16 %v4743
        %v4782 = vunpack.c.l.b16 %v4744
        %v4783 = vunpack.c.h.b16 %v4744
        %v4784 = vunpack.c.l.b16 %v4745
        %v4785 = vunpack.c.h.b16 %v4745
        %v4786 = vunpack.c.l.b16 %v4746
        %v4787 = vunpack.c.h.b16 %v4746
        %v4788 = vunpack.c.l.b16 %v4747
        %v4789 = vunpack.c.h.b16 %v4747
        %v4790 = vunpack.c.l.b16 %v4748
        %v4791 = vunpack.c.h.b16 %v4748
        %v4792 = vunpack.c.l.b16 %v4749
        %v4793 = vunpack.c.h.b16 %v4749
        %v4794 = vunpack.c.l.b16 %v4750
        %v4795 = vunpack.c.h.b16 %v4750
        %v4796 = vunpack.c.l.b16 %v4751
        %v4797 = vunpack.c.h.b16 %v4751
        %v4798 = vunpack.c.l.b16 %v4752
        %v4799 = vunpack.c.h.b16 %v4752
        %v4800 = vunpack.c.l.b16 %v4753
        %v4801 = vunpack.c.h.b16 %v4753
        %v4802 = vpack.c.b16 %v4772, %v4770
        %v4803 = vpack.c.b16 %v4773, %v4771
        %v4804 = vpack.c.b16 %v4776, %v4774
        %v4805 = vpack.c.b16 %v4777, %v4775
        %v4806 = vpack.c.b16 %v4780, %v4778
        %v4807 = vpack.c.b16 %v4781, %v4779
        %v4808 = vpack.c.b16 %v4784, %v4782
        %v4809 = vpack.c.b16 %v4785, %v4783
        %v4810 = vpack.c.b16 %v4788, %v4786
        %v4811 = vpack.c.b16 %v4789, %v4787
        %v4812 = vpack.c.b16 %v4792, %v4790
        %v4813 = vpack.c.b16 %v4793, %v4791
        %v4814 = vpack.c.b16 %v4796, %v4794
        %v4815 = vpack.c.b16 %v4797, %v4795
        %v4816 = vpack.c.b16 %v4800, %v4798
        %v4817 = vpack.c.b16 %v4801, %v4799
        %4834 = vmatprep.subr.bf16.mxu0 %v4803
        %4835 = vmatpush1.bf16.msra.mxu0 %v4802
        %4836 = vmatprep.subr.bf16.mxu0 %v4805
        %4837 = vmatpush1.bf16.msra.mxu0 %v4804
        %4838 = vmatprep.subr.bf16.mxu0 %v4807
        %4839 = vmatpush1.bf16.msra.mxu0 %v4806
        %4840 = vmatprep.subr.bf16.mxu0 %v4809
        %4841 = vmatpush1.bf16.msra.mxu0 %v4808
        %4842 = vmatprep.subr.bf16.mxu0 %v4811
        %4843 = vmatpush1.bf16.msra.mxu0 %v4810
        %4844 = vmatprep.subr.bf16.mxu0 %v4813
        %4845 = vmatpush1.bf16.msra.mxu0 %v4812
        %4846 = vmatprep.subr.bf16.mxu0 %v4815
        %4847 = vmatpush1.bf16.msra.mxu0 %v4814
        %4848 = vmatprep.subr.bf16.mxu0 %v4817
        %4849 = vmatpush1.bf16.msra.mxu0 %v4816
        %4850 = vmatprep.subr.bf16.mxu0 0
        %4851 = vmatpush1.bf16.msra.mxu0 0
        %4852 = vmatprep.subr.bf16.mxu0 0
        %4853 = vmatpush1.bf16.msra.mxu0 0
        %4854 = vmatprep.subr.bf16.mxu0 0
        %4855 = vmatpush1.bf16.msra.mxu0 0
        %4856 = vmatprep.subr.bf16.mxu0 0
        %4857 = vmatpush1.bf16.msra.mxu0 0
        %4858 = vmatprep.subr.bf16.mxu0 0
        %4859 = vmatpush1.bf16.msra.mxu0 0
        %4860 = vmatprep.subr.bf16.mxu0 0
        %4861 = vmatpush1.bf16.msra.mxu0 0
        %4862 = vmatprep.subr.bf16.mxu0 0
        %4863 = vmatpush1.bf16.msra.mxu0 0
        %4864 = vmatprep.subr.bf16.mxu0 0
        %4865 = vmatpush1.bf16.msra.mxu0 0
        %4866 = vmatprep.mubr.bf16.mxu0 0
        %4867 = vmatmul.mubr.bf16.gmra.mrb[0].mxu0 %v4672
        %v4868 = vpop.f32.mrb[0].mxu0
        %v4869 = vadd.f32 0.0, %v4868
        %v4870 = vpop.f32.mrb[0].mxu0
        %v4871 = vadd.f32 0.0, %v4870
        %v4872 = vpop.f32.mrb[0].mxu0
        %v4873 = vpop.f32.mrb[0].mxu0
        %4874 = vdwg.mxu0
        %v4891 = vunpack.c.l.b16 %v4722
        %v4892 = vunpack.c.h.b16 %v4722
        %v4893 = vunpack.c.l.b16 %v4723
        %v4894 = vunpack.c.h.b16 %v4723
        %v4895 = vunpack.c.l.b16 %v4724
        %v4896 = vunpack.c.h.b16 %v4724
        %v4897 = vunpack.c.l.b16 %v4725
        %v4898 = vunpack.c.h.b16 %v4725
        %v4899 = vunpack.c.l.b16 %v4726
        %v4900 = vunpack.c.h.b16 %v4726
        %v4901 = vunpack.c.l.b16 %v4727
        %v4902 = vunpack.c.h.b16 %v4727
        %v4903 = vunpack.c.l.b16 %v4728
        %v4904 = vunpack.c.h.b16 %v4728
        %v4905 = vunpack.c.l.b16 %v4729
        %v4906 = vunpack.c.h.b16 %v4729
        %v4907 = vunpack.c.l.b16 %v4730
        %v4908 = vunpack.c.h.b16 %v4730
        %v4909 = vunpack.c.l.b16 %v4731
        %v4910 = vunpack.c.h.b16 %v4731
        %v4911 = vunpack.c.l.b16 %v4732
        %v4912 = vunpack.c.h.b16 %v4732
        %v4913 = vunpack.c.l.b16 %v4733
        %v4914 = vunpack.c.h.b16 %v4733
        %v4915 = vunpack.c.l.b16 %v4734
        %v4916 = vunpack.c.h.b16 %v4734
        %v4917 = vunpack.c.l.b16 %v4735
        %v4918 = vunpack.c.h.b16 %v4735
        %v4919 = vunpack.c.l.b16 %v4736
        %v4920 = vunpack.c.h.b16 %v4736
        %v4921 = vunpack.c.l.b16 %v4737
        %v4922 = vunpack.c.h.b16 %v4737
        %v4923 = vpack.c.b16 %v4893, %v4891
        %v4924 = vpack.c.b16 %v4894, %v4892
        %v4925 = vpack.c.b16 %v4897, %v4895
        %v4926 = vpack.c.b16 %v4898, %v4896
        %v4927 = vpack.c.b16 %v4901, %v4899
        %v4928 = vpack.c.b16 %v4902, %v4900
        %v4929 = vpack.c.b16 %v4905, %v4903
        %v4930 = vpack.c.b16 %v4906, %v4904
        %v4931 = vpack.c.b16 %v4909, %v4907
        %v4932 = vpack.c.b16 %v4910, %v4908
        %v4933 = vpack.c.b16 %v4913, %v4911
        %v4934 = vpack.c.b16 %v4914, %v4912
        %v4935 = vpack.c.b16 %v4917, %v4915
        %v4936 = vpack.c.b16 %v4918, %v4916
        %v4937 = vpack.c.b16 %v4921, %v4919
        %v4938 = vpack.c.b16 %v4922, %v4920
        %4955 = vmatprep.subr.bf16.mxu0 %v4924
        %4956 = vmatpush1.bf16.msra.mxu0 %v4923
        %4957 = vmatprep.subr.bf16.mxu0 %v4926
        %4958 = vmatpush1.bf16.msra.mxu0 %v4925
        %4959 = vmatprep.subr.bf16.mxu0 %v4928
        %4960 = vmatpush1.bf16.msra.mxu0 %v4927
        %4961 = vmatprep.subr.bf16.mxu0 %v4930
        %4962 = vmatpush1.bf16.msra.mxu0 %v4929
        %4963 = vmatprep.subr.bf16.mxu0 %v4932
        %4964 = vmatpush1.bf16.msra.mxu0 %v4931
        %4965 = vmatprep.subr.bf16.mxu0 %v4934
        %4966 = vmatpush1.bf16.msra.mxu0 %v4933
        %4967 = vmatprep.subr.bf16.mxu0 %v4936
        %4968 = vmatpush1.bf16.msra.mxu0 %v4935
        %4969 = vmatprep.subr.bf16.mxu0 %v4938
        %4970 = vmatpush1.bf16.msra.mxu0 %v4937
        %4971 = vmatprep.subr.bf16.mxu0 0
        %4972 = vmatpush1.bf16.msra.mxu0 0
        %4973 = vmatprep.subr.bf16.mxu0 0
        %4974 = vmatpush1.bf16.msra.mxu0 0
        %4975 = vmatprep.subr.bf16.mxu0 0
        %4976 = vmatpush1.bf16.msra.mxu0 0
        %4977 = vmatprep.subr.bf16.mxu0 0
        %4978 = vmatpush1.bf16.msra.mxu0 0
        %4979 = vmatprep.subr.bf16.mxu0 0
        %4980 = vmatpush1.bf16.msra.mxu0 0
        %4981 = vmatprep.subr.bf16.mxu0 0
        %4982 = vmatpush1.bf16.msra.mxu0 0
        %4983 = vmatprep.subr.bf16.mxu0 0
        %4984 = vmatpush1.bf16.msra.mxu0 0
        %4985 = vmatprep.subr.bf16.mxu0 0
        %4986 = vmatpush1.bf16.msra.mxu0 0
        %4987 = vmatprep.mubr.bf16.mxu0 0
        %4988 = vmatmul.mubr.bf16.gmra.mrb[0].mxu0 %v4721
        %v4989 = vpop.f32.mrb[0].mxu0
        %v4990 = vadd.f32 %v4869, %v4989
        %v4991 = vpop.f32.mrb[0].mxu0
        %v4992 = vadd.f32 %v4871, %v4991
        %v4993 = vpop.f32.mrb[0].mxu0
        %v4994 = vpop.f32.mrb[0].mxu0
        %4995 = vdwg.mxu0
        %v4996 = vld [vmem:[%s73] sm:$0xf]
        %v4998 = vsel %vm4673, %v4996, 0
        %5000 = vmatprep.subr.bf16.mxu0 0
        %5001 = vmatpush1.bf16.msra.mxu0 %v4679
        %5002 = vmatprep.subr.bf16.mxu0 0
        %5003 = vmatpush1.bf16.msra.mxu0 0
        %5004 = vmatprep.subr.bf16.mxu0 0
        %5005 = vmatpush1.bf16.msra.mxu0 0
        %5006 = vmatprep.subr.bf16.mxu0 0
        %5007 = vmatpush1.bf16.msra.mxu0 0
        %5008 = vmatprep.subr.bf16.mxu0 0
        %5009 = vmatpush1.bf16.msra.mxu0 0
        %5010 = vmatprep.subr.bf16.mxu0 0
        %5011 = vmatpush1.bf16.msra.mxu0 0
        %5012 = vmatprep.subr.bf16.mxu0 0
        %5013 = vmatpush1.bf16.msra.mxu0 0
        %5014 = vmatprep.subr.bf16.mxu0 0
        %5015 = vmatpush1.bf16.msra.mxu0 0
        %5016 = vmatprep.subr.bf16.mxu0 0
        %5017 = vmatpush1.bf16.msra.mxu0 0
        %5018 = vmatprep.subr.bf16.mxu0 0
        %5019 = vmatpush1.bf16.msra.mxu0 0
        %5020 = vmatprep.subr.bf16.mxu0 0
        %5021 = vmatpush1.bf16.msra.mxu0 0
        %5022 = vmatprep.subr.bf16.mxu0 0
        %5023 = vmatpush1.bf16.msra.mxu0 0
        %5024 = vmatprep.subr.bf16.mxu0 0
        %5025 = vmatpush1.bf16.msra.mxu0 0
        %5026 = vmatprep.subr.bf16.mxu0 0
        %5027 = vmatpush1.bf16.msra.mxu0 0
        %5028 = vmatprep.subr.bf16.mxu0 0
        %5029 = vmatpush1.bf16.msra.mxu0 0
        %5030 = vmatprep.subr.bf16.mxu0 0
        %5031 = vmatpush1.bf16.msra.mxu0 0
        %5032 = vmatprep.mubr.bf16.mxu0 0
        %5033 = vmatmul.mubr.bf16.gmra.mrb[0].mxu0 %v4998
        %v5034 = vpop.f32.mrb[0].mxu0
        %v5035 = vadd.f32 0.0, %v5034
        %v5036 = vpop.f32.mrb[0].mxu0
        %v5037 = vpop.f32.mrb[0].mxu0
        %v5038 = vpop.f32.mrb[0].mxu0
        %5039 = vdwg.mxu0
        %v5040 = vpack.c.bf16 %v5035, %v5035
        %v5041 = vld [vmem:[%s79] sm:$0xff]
        %v5042 = vld [vmem:[%s79 + $0x8] sm:$0xff]
        %v5043 = vld [vmem:[%s79 + $0x10] sm:$0xff]
        %v5044 = vld [vmem:[%s79 + $0x18] sm:$0xff]
        %v5045 = vld [vmem:[%s79 + $0x20] sm:$0xff]
        %v5046 = vld [vmem:[%s79 + $0x28] sm:$0xff]
        %v5047 = vld [vmem:[%s79 + $0x30] sm:$0xff]
        %v5048 = vld [vmem:[%s79 + $0x38] sm:$0xff]
        %v5049 = vld [vmem:[%s79 + $0x40] sm:$0xff]
        %v5050 = vld [vmem:[%s79 + $0x48] sm:$0xff]
        %v5051 = vld [vmem:[%s79 + $0x50] sm:$0xff]
        %v5052 = vld [vmem:[%s79 + $0x58] sm:$0xff]
        %v5053 = vld [vmem:[%s79 + $0x60] sm:$0xff]
        %v5054 = vld [vmem:[%s79 + $0x68] sm:$0xff]
        %v5055 = vld [vmem:[%s79 + $0x70] sm:$0xff]
        %v5056 = vld [vmem:[%s79 + $0x78] sm:$0xff]
        %v5073 = vunpack.c.l.b16 %v5041
        %v5074 = vunpack.c.h.b16 %v5041
        %v5075 = vunpack.c.l.b16 %v5042
        %v5076 = vunpack.c.h.b16 %v5042
        %v5077 = vunpack.c.l.b16 %v5043
        %v5078 = vunpack.c.h.b16 %v5043
        %v5079 = vunpack.c.l.b16 %v5044
        %v5080 = vunpack.c.h.b16 %v5044
        %v5081 = vunpack.c.l.b16 %v5045
        %v5082 = vunpack.c.h.b16 %v5045
        %v5083 = vunpack.c.l.b16 %v5046
        %v5084 = vunpack.c.h.b16 %v5046
        %v5085 = vunpack.c.l.b16 %v5047
        %v5086 = vunpack.c.h.b16 %v5047
        %v5087 = vunpack.c.l.b16 %v5048
        %v5088 = vunpack.c.h.b16 %v5048
        %v5089 = vunpack.c.l.b16 %v5049
        %v5090 = vunpack.c.h.b16 %v5049
        %v5091 = vunpack.c.l.b16 %v5050
        %v5092 = vunpack.c.h.b16 %v5050
        %v5093 = vunpack.c.l.b16 %v5051
        %v5094 = vunpack.c.h.b16 %v5051
        %v5095 = vunpack.c.l.b16 %v5052
        %v5096 = vunpack.c.h.b16 %v5052
        %v5097 = vunpack.c.l.b16 %v5053
        %v5098 = vunpack.c.h.b16 %v5053
        %v5099 = vunpack.c.l.b16 %v5054
        %v5100 = vunpack.c.h.b16 %v5054
        %v5101 = vunpack.c.l.b16 %v5055
        %v5102 = vunpack.c.h.b16 %v5055
        %v5103 = vunpack.c.l.b16 %v5056
        %v5104 = vunpack.c.h.b16 %v5056
        %v5105 = vpack.c.b16 %v5075, %v5073
        %v5106 = vpack.c.b16 %v5076, %v5074
        %v5107 = vpack.c.b16 %v5079, %v5077
        %v5108 = vpack.c.b16 %v5080, %v5078
        %v5109 = vpack.c.b16 %v5083, %v5081
        %v5110 = vpack.c.b16 %v5084, %v5082
        %v5111 = vpack.c.b16 %v5087, %v5085
        %v5112 = vpack.c.b16 %v5088, %v5086
        %v5113 = vpack.c.b16 %v5091, %v5089
        %v5114 = vpack.c.b16 %v5092, %v5090
        %v5115 = vpack.c.b16 %v5095, %v5093
        %v5116 = vpack.c.b16 %v5096, %v5094
        %v5117 = vpack.c.b16 %v5099, %v5097
        %v5118 = vpack.c.b16 %v5100, %v5098
        %v5119 = vpack.c.b16 %v5103, %v5101
        %v5120 = vpack.c.b16 %v5104, %v5102
        %5137 = vmatprep.subr.bf16.mxu0 %v5106
        %5138 = vmatpush1.bf16.msra.mxu0 %v5105
        %5139 = vmatprep.subr.bf16.mxu0 %v5108
        %5140 = vmatpush1.bf16.msra.mxu0 %v5107
        %5141 = vmatprep.subr.bf16.mxu0 %v5110
        %5142 = vmatpush1.bf16.msra.mxu0 %v5109
        %5143 = vmatprep.subr.bf16.mxu0 %v5112
        %5144 = vmatpush1.bf16.msra.mxu0 %v5111
        %5145 = vmatprep.subr.bf16.mxu0 %v5114
        %5146 = vmatpush1.bf16.msra.mxu0 %v5113
        %5147 = vmatprep.subr.bf16.mxu0 %v5116
        %5148 = vmatpush1.bf16.msra.mxu0 %v5115
        %5149 = vmatprep.subr.bf16.mxu0 %v5118
        %5150 = vmatpush1.bf16.msra.mxu0 %v5117
        %5151 = vmatprep.subr.bf16.mxu0 %v5120
        %5152 = vmatpush1.bf16.msra.mxu0 %v5119
        %5153 = vmatprep.subr.bf16.mxu0 0
        %5154 = vmatpush1.bf16.msra.mxu0 0
        %5155 = vmatprep.subr.bf16.mxu0 0
        %5156 = vmatpush1.bf16.msra.mxu0 0
        %5157 = vmatprep.subr.bf16.mxu0 0
        %5158 = vmatpush1.bf16.msra.mxu0 0
        %5159 = vmatprep.subr.bf16.mxu0 0
        %5160 = vmatpush1.bf16.msra.mxu0 0
        %5161 = vmatprep.subr.bf16.mxu0 0
        %5162 = vmatpush1.bf16.msra.mxu0 0
        %5163 = vmatprep.subr.bf16.mxu0 0
        %5164 = vmatpush1.bf16.msra.mxu0 0
        %5165 = vmatprep.subr.bf16.mxu0 0
        %5166 = vmatpush1.bf16.msra.mxu0 0
        %5167 = vmatprep.subr.bf16.mxu0 0
        %5168 = vmatpush1.bf16.msra.mxu0 0
        %5169 = vmatprep.mubr.bf16.mxu0 0
        %5170 = vmatmul.mubr.bf16.gmra.mrb[0].mxu0 %v5040
        %v5171 = vpop.f32.mrb[0].mxu0
        %v5172 = vadd.f32 0.0, %v5171
        %v5173 = vpop.f32.mrb[0].mxu0
        %v5174 = vadd.f32 0.0, %v5173
        %v5175 = vpop.f32.mrb[0].mxu0
        %v5176 = vpop.f32.mrb[0].mxu0
        %5177 = vdwg.mxu0
        %v5178 = vadd.f32 %v4990, %v5172
        %v5179 = vadd.f32 %v4992, %v5174
        %v5180 = vld [vmem:[%s81] sm:$0x3]
        %v5182 = vlaneseq
        %v5183 = vshrl.u32 %v5182, 7
        %v5184 = vsub.s32 0, %v5183
        %v5185 = vrot.slane %v5180, %v5184
        %v5186 = vlaneseq
        %v5187 = vshrl.u32 %v5186, 7
        %v5188 = vsub.s32 1, %v5187
        %v5189 = vrot.slane %v5180, %v5188
        %v5192 = vadd.f32 %v5178, %v5185
        %v5193 = vadd.f32 %v5179, %v5189
        %v5194 = vmax.f32 %v5192, 0.0
        %v5195 = vmax.f32 %v5193, 0.0
        %v5196 = vld [vmem:[%s83] sm:$0xf]
        %v5197 = vpack.c.bf16 %v5194, %v5194
        %v5198 = vpack.c.bf16 %v5195, %v5195
        %v5200 = vsel %vm4673, %v5196, 0
        %v5203 = vsel %vm4677, %v5197, 0
        %v5206 = vsel %vm4677, %v5198, 0
        %5208 = vmatprep.subr.bf16.mxu0 %v5206
        %5209 = vmatpush1.bf16.msra.mxu0 %v5203
        %5210 = vmatprep.subr.bf16.mxu0 0
        %5211 = vmatpush1.bf16.msra.mxu0 0
        %5212 = vmatprep.subr.bf16.mxu0 0
        %5213 = vmatpush1.bf16.msra.mxu0 0
        %5214 = vmatprep.subr.bf16.mxu0 0
        %5215 = vmatpush1.bf16.msra.mxu0 0
        %5216 = vmatprep.subr.bf16.mxu0 0
        %5217 = vmatpush1.bf16.msra.mxu0 0
        %5218 = vmatprep.subr.bf16.mxu0 0
        %5219 = vmatpush1.bf16.msra.mxu0 0
        %5220 = vmatprep.subr.bf16.mxu0 0
        %5221 = vmatpush1.bf16.msra.mxu0 0
        %5222 = vmatprep.subr.bf16.mxu0 0
        %5223 = vmatpush1.bf16.msra.mxu0 0
        %5224 = vmatprep.subr.bf16.mxu0 0
        %5225 = vmatpush1.bf16.msra.mxu0 0
        %5226 = vmatprep.subr.bf16.mxu0 0
        %5227 = vmatpush1.bf16.msra.mxu0 0
        %5228 = vmatprep.subr.bf16.mxu0 0
        %5229 = vmatpush1.bf16.msra.mxu0 0
        %5230 = vmatprep.subr.bf16.mxu0 0
        %5231 = vmatpush1.bf16.msra.mxu0 0
        %5232 = vmatprep.subr.bf16.mxu0 0
        %5233 = vmatpush1.bf16.msra.mxu0 0
        %5234 = vmatprep.subr.bf16.mxu0 0
        %5235 = vmatpush1.bf16.msra.mxu0 0
        %5236 = vmatprep.subr.bf16.mxu0 0
        %5237 = vmatpush1.bf16.msra.mxu0 0
        %5238 = vmatprep.subr.bf16.mxu0 0
        %5239 = vmatpush1.bf16.msra.mxu0 0
        %5240 = vmatprep.mubr.bf16.mxu0 0
        %5241 = vmatmul.mubr.bf16.gmra.mrb[0].mxu0 %v5200
        %v5242 = vpop.f32.mrb[0].mxu0
        %v5243 = vadd.f32 0.0, %v5242
        %v5244 = vpop.f32.mrb[0].mxu0
        %v5245 = vadd.f32 0.0, %v5244
        %v5246 = vpop.f32.mrb[0].mxu0
        %v5247 = vpop.f32.mrb[0].mxu0
        %5248 = vdwg.mxu0
        %v5249 = vpack.c.bf16 %v5243, %v5243
        %v5250 = vpack.c.bf16 %v5245, %v5245
        %v5251 = vld [vmem:[%s87] sm:$0xff]
        %v5252 = vld [vmem:[%s87 + $0x8] sm:$0xff]
        %v5253 = vld [vmem:[%s87 + $0x10] sm:$0xff]
        %v5254 = vld [vmem:[%s87 + $0x18] sm:$0xff]
        %v5255 = vld [vmem:[%s87 + $0x20] sm:$0xff]
        %v5256 = vld [vmem:[%s87 + $0x28] sm:$0xff]
        %v5257 = vld [vmem:[%s87 + $0x30] sm:$0xff]
        %v5258 = vld [vmem:[%s87 + $0x38] sm:$0xff]
        %v5259 = vld [vmem:[%s87 + $0x40] sm:$0xff]
        %v5260 = vld [vmem:[%s87 + $0x48] sm:$0xff]
        %v5261 = vld [vmem:[%s87 + $0x50] sm:$0xff]
        %v5262 = vld [vmem:[%s87 + $0x58] sm:$0xff]
        %v5263 = vld [vmem:[%s87 + $0x60] sm:$0xff]
        %v5264 = vld [vmem:[%s87 + $0x68] sm:$0xff]
        %v5265 = vld [vmem:[%s87 + $0x70] sm:$0xff]
        %v5266 = vld [vmem:[%s87 + $0x78] sm:$0xff]
        %v5267 = vld [vmem:[%s87 + $0x80] sm:$0xff]
        %v5268 = vld [vmem:[%s87 + $0x88] sm:$0xff]
        %v5269 = vld [vmem:[%s87 + $0x90] sm:$0xff]
        %v5270 = vld [vmem:[%s87 + $0x98] sm:$0xff]
        %v5271 = vld [vmem:[%s87 + $0xa0] sm:$0xff]
        %v5272 = vld [vmem:[%s87 + $0xa8] sm:$0xff]
        %v5273 = vld [vmem:[%s87 + $0xb0] sm:$0xff]
        %v5274 = vld [vmem:[%s87 + $0xb8] sm:$0xff]
        %v5275 = vld [vmem:[%s87 + $0xc0] sm:$0xff]
        %v5276 = vld [vmem:[%s87 + $0xc8] sm:$0xff]
        %v5277 = vld [vmem:[%s87 + $0xd0] sm:$0xff]
        %v5278 = vld [vmem:[%s87 + $0xd8] sm:$0xff]
        %v5279 = vld [vmem:[%s87 + $0xe0] sm:$0xff]
        %v5280 = vld [vmem:[%s87 + $0xe8] sm:$0xff]
        %v5281 = vld [vmem:[%s87 + $0xf0] sm:$0xff]
        %v5282 = vld [vmem:[%s87 + $0xf8] sm:$0xff]
        %v5283 = vld [vmem:[%s89] sm:$0xff]
        %v5284 = vld [vmem:[%s89 + $0x8] sm:$0xff]
        %v5285 = vld [vmem:[%s89 + $0x10] sm:$0xff]
        %v5286 = vld [vmem:[%s89 + $0x18] sm:$0xff]
        %v5287 = vld [vmem:[%s89 + $0x20] sm:$0xff]
        %v5288 = vld [vmem:[%s89 + $0x28] sm:$0xff]
        %v5289 = vld [vmem:[%s89 + $0x30] sm:$0xff]
        %v5290 = vld [vmem:[%s89 + $0x38] sm:$0xff]
        %v5291 = vld [vmem:[%s89 + $0x40] sm:$0xff]
        %v5292 = vld [vmem:[%s89 + $0x48] sm:$0xff]
        %v5293 = vld [vmem:[%s89 + $0x50] sm:$0xff]
        %v5294 = vld [vmem:[%s89 + $0x58] sm:$0xff]
        %v5295 = vld [vmem:[%s89 + $0x60] sm:$0xff]
        %v5296 = vld [vmem:[%s89 + $0x68] sm:$0xff]
        %v5297 = vld [vmem:[%s89 + $0x70] sm:$0xff]
        %v5298 = vld [vmem:[%s89 + $0x78] sm:$0xff]
        %v5299 = vld [vmem:[%s89 + $0x80] sm:$0xff]
        %v5300 = vld [vmem:[%s89 + $0x88] sm:$0xff]
        %v5301 = vld [vmem:[%s89 + $0x90] sm:$0xff]
        %v5302 = vld [vmem:[%s89 + $0x98] sm:$0xff]
        %v5303 = vld [vmem:[%s89 + $0xa0] sm:$0xff]
        %v5304 = vld [vmem:[%s89 + $0xa8] sm:$0xff]
        %v5305 = vld [vmem:[%s89 + $0xb0] sm:$0xff]
        %v5306 = vld [vmem:[%s89 + $0xb8] sm:$0xff]
        %v5307 = vld [vmem:[%s89 + $0xc0] sm:$0xff]
        %v5308 = vld [vmem:[%s89 + $0xc8] sm:$0xff]
        %v5309 = vld [vmem:[%s89 + $0xd0] sm:$0xff]
        %v5310 = vld [vmem:[%s89 + $0xd8] sm:$0xff]
        %v5311 = vld [vmem:[%s89 + $0xe0] sm:$0xff]
        %v5312 = vld [vmem:[%s89 + $0xe8] sm:$0xff]
        %v5313 = vld [vmem:[%s89 + $0xf0] sm:$0xff]
        %v5314 = vld [vmem:[%s89 + $0xf8] sm:$0xff]
        %v5347 = vunpack.c.l.b16 %v5283
        %v5348 = vunpack.c.h.b16 %v5283
        %v5349 = vunpack.c.l.b16 %v5284
        %v5350 = vunpack.c.h.b16 %v5284
        %v5351 = vunpack.c.l.b16 %v5285
        %v5352 = vunpack.c.h.b16 %v5285
        %v5353 = vunpack.c.l.b16 %v5286
        %v5354 = vunpack.c.h.b16 %v5286
        %v5355 = vunpack.c.l.b16 %v5287
        %v5356 = vunpack.c.h.b16 %v5287
        %v5357 = vunpack.c.l.b16 %v5288
        %v5358 = vunpack.c.h.b16 %v5288
        %v5359 = vunpack.c.l.b16 %v5289
        %v5360 = vunpack.c.h.b16 %v5289
        %v5361 = vunpack.c.l.b16 %v5290
        %v5362 = vunpack.c.h.b16 %v5290
        %v5363 = vunpack.c.l.b16 %v5291
        %v5364 = vunpack.c.h.b16 %v5291
        %v5365 = vunpack.c.l.b16 %v5292
        %v5366 = vunpack.c.h.b16 %v5292
        %v5367 = vunpack.c.l.b16 %v5293
        %v5368 = vunpack.c.h.b16 %v5293
        %v5369 = vunpack.c.l.b16 %v5294
        %v5370 = vunpack.c.h.b16 %v5294
        %v5371 = vunpack.c.l.b16 %v5295
        %v5372 = vunpack.c.h.b16 %v5295
        %v5373 = vunpack.c.l.b16 %v5296
        %v5374 = vunpack.c.h.b16 %v5296
        %v5375 = vunpack.c.l.b16 %v5297
        %v5376 = vunpack.c.h.b16 %v5297
        %v5377 = vunpack.c.l.b16 %v5298
        %v5378 = vunpack.c.h.b16 %v5298
        %v5379 = vunpack.c.l.b16 %v5299
        %v5380 = vunpack.c.h.b16 %v5299
        %v5381 = vunpack.c.l.b16 %v5300
        %v5382 = vunpack.c.h.b16 %v5300
        %v5383 = vunpack.c.l.b16 %v5301
        %v5384 = vunpack.c.h.b16 %v5301
        %v5385 = vunpack.c.l.b16 %v5302
        %v5386 = vunpack.c.h.b16 %v5302
        %v5387 = vunpack.c.l.b16 %v5303
        %v5388 = vunpack.c.h.b16 %v5303
        %v5389 = vunpack.c.l.b16 %v5304
        %v5390 = vunpack.c.h.b16 %v5304
        %v5391 = vunpack.c.l.b16 %v5305
        %v5392 = vunpack.c.h.b16 %v5305
        %v5393 = vunpack.c.l.b16 %v5306
        %v5394 = vunpack.c.h.b16 %v5306
        %v5395 = vunpack.c.l.b16 %v5307
        %v5396 = vunpack.c.h.b16 %v5307
        %v5397 = vunpack.c.l.b16 %v5308
        %v5398 = vunpack.c.h.b16 %v5308
        %v5399 = vunpack.c.l.b16 %v5309
        %v5400 = vunpack.c.h.b16 %v5309
        %v5401 = vunpack.c.l.b16 %v5310
        %v5402 = vunpack.c.h.b16 %v5310
        %v5403 = vunpack.c.l.b16 %v5311
        %v5404 = vunpack.c.h.b16 %v5311
        %v5405 = vunpack.c.l.b16 %v5312
        %v5406 = vunpack.c.h.b16 %v5312
        %v5407 = vunpack.c.l.b16 %v5313
        %v5408 = vunpack.c.h.b16 %v5313
        %v5409 = vunpack.c.l.b16 %v5314
        %v5410 = vunpack.c.h.b16 %v5314
        %v5411 = vpack.c.b16 %v5349, %v5347
        %v5412 = vpack.c.b16 %v5350, %v5348
        %v5413 = vpack.c.b16 %v5353, %v5351
        %v5414 = vpack.c.b16 %v5354, %v5352
        %v5415 = vpack.c.b16 %v5357, %v5355
        %v5416 = vpack.c.b16 %v5358, %v5356
        %v5417 = vpack.c.b16 %v5361, %v5359
        %v5418 = vpack.c.b16 %v5362, %v5360
        %v5419 = vpack.c.b16 %v5365, %v5363
        %v5420 = vpack.c.b16 %v5366, %v5364
        %v5421 = vpack.c.b16 %v5369, %v5367
        %v5422 = vpack.c.b16 %v5370, %v5368
        %v5423 = vpack.c.b16 %v5373, %v5371
        %v5424 = vpack.c.b16 %v5374, %v5372
        %v5425 = vpack.c.b16 %v5377, %v5375
        %v5426 = vpack.c.b16 %v5378, %v5376
        %v5427 = vpack.c.b16 %v5381, %v5379
        %v5428 = vpack.c.b16 %v5382, %v5380
        %v5429 = vpack.c.b16 %v5385, %v5383
        %v5430 = vpack.c.b16 %v5386, %v5384
        %v5431 = vpack.c.b16 %v5389, %v5387
        %v5432 = vpack.c.b16 %v5390, %v5388
        %v5433 = vpack.c.b16 %v5393, %v5391
        %v5434 = vpack.c.b16 %v5394, %v5392
        %v5435 = vpack.c.b16 %v5397, %v5395
        %v5436 = vpack.c.b16 %v5398, %v5396
        %v5437 = vpack.c.b16 %v5401, %v5399
        %v5438 = vpack.c.b16 %v5402, %v5400
        %v5439 = vpack.c.b16 %v5405, %v5403
        %v5440 = vpack.c.b16 %v5406, %v5404
        %v5441 = vpack.c.b16 %v5409, %v5407
        %v5442 = vpack.c.b16 %v5410, %v5408
        %5475 = vmatprep.subr.bf16.mxu0 %v5412
        %5476 = vmatpush1.bf16.msra.mxu0 %v5411
        %5477 = vmatprep.subr.bf16.mxu0 %v5414
        %5478 = vmatpush1.bf16.msra.mxu0 %v5413
        %5479 = vmatprep.subr.bf16.mxu0 %v5416
        %5480 = vmatpush1.bf16.msra.mxu0 %v5415
        %5481 = vmatprep.subr.bf16.mxu0 %v5418
        %5482 = vmatpush1.bf16.msra.mxu0 %v5417
        %5483 = vmatprep.subr.bf16.mxu0 %v5420
        %5484 = vmatpush1.bf16.msra.mxu0 %v5419
        %5485 = vmatprep.subr.bf16.mxu0 %v5422
        %5486 = vmatpush1.bf16.msra.mxu0 %v5421
        %5487 = vmatprep.subr.bf16.mxu0 %v5424
        %5488 = vmatpush1.bf16.msra.mxu0 %v5423
        %5489 = vmatprep.subr.bf16.mxu0 %v5426
        %5490 = vmatpush1.bf16.msra.mxu0 %v5425
        %5491 = vmatprep.subr.bf16.mxu0 %v5428
        %5492 = vmatpush1.bf16.msra.mxu0 %v5427
        %5493 = vmatprep.subr.bf16.mxu0 %v5430
        %5494 = vmatpush1.bf16.msra.mxu0 %v5429
        %5495 = vmatprep.subr.bf16.mxu0 %v5432
        %5496 = vmatpush1.bf16.msra.mxu0 %v5431
        %5497 = vmatprep.subr.bf16.mxu0 %v5434
        %5498 = vmatpush1.bf16.msra.mxu0 %v5433
        %5499 = vmatprep.subr.bf16.mxu0 %v5436
        %5500 = vmatpush1.bf16.msra.mxu0 %v5435
        %5501 = vmatprep.subr.bf16.mxu0 %v5438
        %5502 = vmatpush1.bf16.msra.mxu0 %v5437
        %5503 = vmatprep.subr.bf16.mxu0 %v5440
        %5504 = vmatpush1.bf16.msra.mxu0 %v5439
        %5505 = vmatprep.subr.bf16.mxu0 %v5442
        %5506 = vmatpush1.bf16.msra.mxu0 %v5441
        %5507 = vmatprep.mubr.bf16.mxu0 %v5198
        %5508 = vmatmul.mubr.bf16.gmra.mrb[0].mxu0 %v5197
        %v5509 = vpop.f32.mrb[0].mxu0
        %v5510 = vadd.f32 0.0, %v5509
        %v5511 = vpop.f32.mrb[0].mxu0
        %v5512 = vadd.f32 0.0, %v5511
        %v5513 = vpop.f32.mrb[0].mxu0
        %v5514 = vpop.f32.mrb[0].mxu0
        %5515 = vdwg.mxu0
        %v5548 = vunpack.c.l.b16 %v5251
        %v5549 = vunpack.c.h.b16 %v5251
        %v5550 = vunpack.c.l.b16 %v5252
        %v5551 = vunpack.c.h.b16 %v5252
        %v5552 = vunpack.c.l.b16 %v5253
        %v5553 = vunpack.c.h.b16 %v5253
        %v5554 = vunpack.c.l.b16 %v5254
        %v5555 = vunpack.c.h.b16 %v5254
        %v5556 = vunpack.c.l.b16 %v5255
        %v5557 = vunpack.c.h.b16 %v5255
        %v5558 = vunpack.c.l.b16 %v5256
        %v5559 = vunpack.c.h.b16 %v5256
        %v5560 = vunpack.c.l.b16 %v5257
        %v5561 = vunpack.c.h.b16 %v5257
        %v5562 = vunpack.c.l.b16 %v5258
        %v5563 = vunpack.c.h.b16 %v5258
        %v5564 = vunpack.c.l.b16 %v5259
        %v5565 = vunpack.c.h.b16 %v5259
        %v5566 = vunpack.c.l.b16 %v5260
        %v5567 = vunpack.c.h.b16 %v5260
        %v5568 = vunpack.c.l.b16 %v5261
        %v5569 = vunpack.c.h.b16 %v5261
        %v5570 = vunpack.c.l.b16 %v5262
        %v5571 = vunpack.c.h.b16 %v5262
        %v5572 = vunpack.c.l.b16 %v5263
        %v5573 = vunpack.c.h.b16 %v5263
        %v5574 = vunpack.c.l.b16 %v5264
        %v5575 = vunpack.c.h.b16 %v5264
        %v5576 = vunpack.c.l.b16 %v5265
        %v5577 = vunpack.c.h.b16 %v5265
        %v5578 = vunpack.c.l.b16 %v5266
        %v5579 = vunpack.c.h.b16 %v5266
        %v5580 = vunpack.c.l.b16 %v5267
        %v5581 = vunpack.c.h.b16 %v5267
        %v5582 = vunpack.c.l.b16 %v5268
        %v5583 = vunpack.c.h.b16 %v5268
        %v5584 = vunpack.c.l.b16 %v5269
        %v5585 = vunpack.c.h.b16 %v5269
        %v5586 = vunpack.c.l.b16 %v5270
        %v5587 = vunpack.c.h.b16 %v5270
        %v5588 = vunpack.c.l.b16 %v5271
        %v5589 = vunpack.c.h.b16 %v5271
        %v5590 = vunpack.c.l.b16 %v5272
        %v5591 = vunpack.c.h.b16 %v5272
        %v5592 = vunpack.c.l.b16 %v5273
        %v5593 = vunpack.c.h.b16 %v5273
        %v5594 = vunpack.c.l.b16 %v5274
        %v5595 = vunpack.c.h.b16 %v5274
        %v5596 = vunpack.c.l.b16 %v5275
        %v5597 = vunpack.c.h.b16 %v5275
        %v5598 = vunpack.c.l.b16 %v5276
        %v5599 = vunpack.c.h.b16 %v5276
        %v5600 = vunpack.c.l.b16 %v5277
        %v5601 = vunpack.c.h.b16 %v5277
        %v5602 = vunpack.c.l.b16 %v5278
        %v5603 = vunpack.c.h.b16 %v5278
        %v5604 = vunpack.c.l.b16 %v5279
        %v5605 = vunpack.c.h.b16 %v5279
        %v5606 = vunpack.c.l.b16 %v5280
        %v5607 = vunpack.c.h.b16 %v5280
        %v5608 = vunpack.c.l.b16 %v5281
        %v5609 = vunpack.c.h.b16 %v5281
        %v5610 = vunpack.c.l.b16 %v5282
        %v5611 = vunpack.c.h.b16 %v5282
        %v5612 = vpack.c.b16 %v5550, %v5548
        %v5613 = vpack.c.b16 %v5551, %v5549
        %v5614 = vpack.c.b16 %v5554, %v5552
        %v5615 = vpack.c.b16 %v5555, %v5553
        %v5616 = vpack.c.b16 %v5558, %v5556
        %v5617 = vpack.c.b16 %v5559, %v5557
        %v5618 = vpack.c.b16 %v5562, %v5560
        %v5619 = vpack.c.b16 %v5563, %v5561
        %v5620 = vpack.c.b16 %v5566, %v5564
        %v5621 = vpack.c.b16 %v5567, %v5565
        %v5622 = vpack.c.b16 %v5570, %v5568
        %v5623 = vpack.c.b16 %v5571, %v5569
        %v5624 = vpack.c.b16 %v5574, %v5572
        %v5625 = vpack.c.b16 %v5575, %v5573
        %v5626 = vpack.c.b16 %v5578, %v5576
        %v5627 = vpack.c.b16 %v5579, %v5577
        %v5628 = vpack.c.b16 %v5582, %v5580
        %v5629 = vpack.c.b16 %v5583, %v5581
        %v5630 = vpack.c.b16 %v5586, %v5584
        %v5631 = vpack.c.b16 %v5587, %v5585
        %v5632 = vpack.c.b16 %v5590, %v5588
        %v5633 = vpack.c.b16 %v5591, %v5589
        %v5634 = vpack.c.b16 %v5594, %v5592
        %v5635 = vpack.c.b16 %v5595, %v5593
        %v5636 = vpack.c.b16 %v5598, %v5596
        %v5637 = vpack.c.b16 %v5599, %v5597
        %v5638 = vpack.c.b16 %v5602, %v5600
        %v5639 = vpack.c.b16 %v5603, %v5601
        %v5640 = vpack.c.b16 %v5606, %v5604
        %v5641 = vpack.c.b16 %v5607, %v5605
        %v5642 = vpack.c.b16 %v5610, %v5608
        %v5643 = vpack.c.b16 %v5611, %v5609
        %5676 = vmatprep.subr.bf16.mxu0 %v5613
        %5677 = vmatpush1.bf16.msra.mxu0 %v5612
        %5678 = vmatprep.subr.bf16.mxu0 %v5615
        %5679 = vmatpush1.bf16.msra.mxu0 %v5614
        %5680 = vmatprep.subr.bf16.mxu0 %v5617
        %5681 = vmatpush1.bf16.msra.mxu0 %v5616
        %5682 = vmatprep.subr.bf16.mxu0 %v5619
        %5683 = vmatpush1.bf16.msra.mxu0 %v5618
        %5684 = vmatprep.subr.bf16.mxu0 %v5621
        %5685 = vmatpush1.bf16.msra.mxu0 %v5620
        %5686 = vmatprep.subr.bf16.mxu0 %v5623
        %5687 = vmatpush1.bf16.msra.mxu0 %v5622
        %5688 = vmatprep.subr.bf16.mxu0 %v5625
        %5689 = vmatpush1.bf16.msra.mxu0 %v5624
        %5690 = vmatprep.subr.bf16.mxu0 %v5627
        %5691 = vmatpush1.bf16.msra.mxu0 %v5626
        %5692 = vmatprep.subr.bf16.mxu0 %v5629
        %5693 = vmatpush1.bf16.msra.mxu0 %v5628
        %5694 = vmatprep.subr.bf16.mxu0 %v5631
        %5695 = vmatpush1.bf16.msra.mxu0 %v5630
        %5696 = vmatprep.subr.bf16.mxu0 %v5633
        %5697 = vmatpush1.bf16.msra.mxu0 %v5632
        %5698 = vmatprep.subr.bf16.mxu0 %v5635
        %5699 = vmatpush1.bf16.msra.mxu0 %v5634
        %5700 = vmatprep.subr.bf16.mxu0 %v5637
        %5701 = vmatpush1.bf16.msra.mxu0 %v5636
        %5702 = vmatprep.subr.bf16.mxu0 %v5639
        %5703 = vmatpush1.bf16.msra.mxu0 %v5638
        %5704 = vmatprep.subr.bf16.mxu0 %v5641
        %5705 = vmatpush1.bf16.msra.mxu0 %v5640
        %5706 = vmatprep.subr.bf16.mxu0 %v5643
        %5707 = vmatpush1.bf16.msra.mxu0 %v5642
        %5708 = vmatprep.mubr.bf16.mxu0 %v5250
        %5709 = vmatmul.mubr.bf16.gmra.mrb[0].mxu0 %v5249
        %v5710 = vpop.f32.mrb[0].mxu0
        %v5711 = vadd.f32 %v5510, %v5710
        %v5712 = vpop.f32.mrb[0].mxu0
        %v5713 = vadd.f32 %v5512, %v5712
        %v5714 = vpop.f32.mrb[0].mxu0
        %v5715 = vpop.f32.mrb[0].mxu0
        %5716 = vdwg.mxu0
        %v5717 = vld [vmem:[%s85] sm:$0xf]
        %v5719 = vsel %vm4673, %v5717, 0
        %5721 = vmatprep.subr.bf16.mxu0 %v5206
        %5722 = vmatpush1.bf16.msra.mxu0 %v5203
        %5723 = vmatprep.subr.bf16.mxu0 0
        %5724 = vmatpush1.bf16.msra.mxu0 0
        %5725 = vmatprep.subr.bf16.mxu0 0
        %5726 = vmatpush1.bf16.msra.mxu0 0
        %5727 = vmatprep.subr.bf16.mxu0 0
        %5728 = vmatpush1.bf16.msra.mxu0 0
        %5729 = vmatprep.subr.bf16.mxu0 0
        %5730 = vmatpush1.bf16.msra.mxu0 0
        %5731 = vmatprep.subr.bf16.mxu0 0
        %5732 = vmatpush1.bf16.msra.mxu0 0
        %5733 = vmatprep.subr.bf16.mxu0 0
        %5734 = vmatpush1.bf16.msra.mxu0 0
        %5735 = vmatprep.subr.bf16.mxu0 0
        %5736 = vmatpush1.bf16.msra.mxu0 0
        %5737 = vmatprep.subr.bf16.mxu0 0
        %5738 = vmatpush1.bf16.msra.mxu0 0
        %5739 = vmatprep.subr.bf16.mxu0 0
        %5740 = vmatpush1.bf16.msra.mxu0 0
        %5741 = vmatprep.subr.bf16.mxu0 0
        %5742 = vmatpush1.bf16.msra.mxu0 0
        %5743 = vmatprep.subr.bf16.mxu0 0
        %5744 = vmatpush1.bf16.msra.mxu0 0
        %5745 = vmatprep.subr.bf16.mxu0 0
        %5746 = vmatpush1.bf16.msra.mxu0 0
        %5747 = vmatprep.subr.bf16.mxu0 0
        %5748 = vmatpush1.bf16.msra.mxu0 0
        %5749 = vmatprep.subr.bf16.mxu0 0
        %5750 = vmatpush1.bf16.msra.mxu0 0
        %5751 = vmatprep.subr.bf16.mxu0 0
        %5752 = vmatpush1.bf16.msra.mxu0 0
        %5753 = vmatprep.mubr.bf16.mxu0 0
        %5754 = vmatmul.mubr.bf16.gmra.mrb[0].mxu0 %v5719
        %v5755 = vpop.f32.mrb[0].mxu0
        %v5756 = vadd.f32 0.0, %v5755
        %v5757 = vpop.f32.mrb[0].mxu0
        %v5758 = vadd.f32 0.0, %v5757
        %v5759 = vpop.f32.mrb[0].mxu0
        %v5760 = vpop.f32.mrb[0].mxu0
        %5761 = vdwg.mxu0
        %v5762 = vpack.c.bf16 %v5756, %v5756
        %v5763 = vpack.c.bf16 %v5758, %v5758
        %v5764 = vld [vmem:[%s91] sm:$0xff]
        %v5765 = vld [vmem:[%s91 + $0x8] sm:$0xff]
        %v5766 = vld [vmem:[%s91 + $0x10] sm:$0xff]
        %v5767 = vld [vmem:[%s91 + $0x18] sm:$0xff]
        %v5768 = vld [vmem:[%s91 + $0x20] sm:$0xff]
        %v5769 = vld [vmem:[%s91 + $0x28] sm:$0xff]
        %v5770 = vld [vmem:[%s91 + $0x30] sm:$0xff]
        %v5771 = vld [vmem:[%s91 + $0x38] sm:$0xff]
        %v5772 = vld [vmem:[%s91 + $0x40] sm:$0xff]
        %v5773 = vld [vmem:[%s91 + $0x48] sm:$0xff]
        %v5774 = vld [vmem:[%s91 + $0x50] sm:$0xff]
        %v5775 = vld [vmem:[%s91 + $0x58] sm:$0xff]
        %v5776 = vld [vmem:[%s91 + $0x60] sm:$0xff]
        %v5777 = vld [vmem:[%s91 + $0x68] sm:$0xff]
        %v5778 = vld [vmem:[%s91 + $0x70] sm:$0xff]
        %v5779 = vld [vmem:[%s91 + $0x78] sm:$0xff]
        %v5780 = vld [vmem:[%s91 + $0x80] sm:$0xff]
        %v5781 = vld [vmem:[%s91 + $0x88] sm:$0xff]
        %v5782 = vld [vmem:[%s91 + $0x90] sm:$0xff]
        %v5783 = vld [vmem:[%s91 + $0x98] sm:$0xff]
        %v5784 = vld [vmem:[%s91 + $0xa0] sm:$0xff]
        %v5785 = vld [vmem:[%s91 + $0xa8] sm:$0xff]
        %v5786 = vld [vmem:[%s91 + $0xb0] sm:$0xff]
        %v5787 = vld [vmem:[%s91 + $0xb8] sm:$0xff]
        %v5788 = vld [vmem:[%s91 + $0xc0] sm:$0xff]
        %v5789 = vld [vmem:[%s91 + $0xc8] sm:$0xff]
        %v5790 = vld [vmem:[%s91 + $0xd0] sm:$0xff]
        %v5791 = vld [vmem:[%s91 + $0xd8] sm:$0xff]
        %v5792 = vld [vmem:[%s91 + $0xe0] sm:$0xff]
        %v5793 = vld [vmem:[%s91 + $0xe8] sm:$0xff]
        %v5794 = vld [vmem:[%s91 + $0xf0] sm:$0xff]
        %v5795 = vld [vmem:[%s91 + $0xf8] sm:$0xff]
        %v5828 = vunpack.c.l.b16 %v5764
        %v5829 = vunpack.c.h.b16 %v5764
        %v5830 = vunpack.c.l.b16 %v5765
        %v5831 = vunpack.c.h.b16 %v5765
        %v5832 = vunpack.c.l.b16 %v5766
        %v5833 = vunpack.c.h.b16 %v5766
        %v5834 = vunpack.c.l.b16 %v5767
        %v5835 = vunpack.c.h.b16 %v5767
        %v5836 = vunpack.c.l.b16 %v5768
        %v5837 = vunpack.c.h.b16 %v5768
        %v5838 = vunpack.c.l.b16 %v5769
        %v5839 = vunpack.c.h.b16 %v5769
        %v5840 = vunpack.c.l.b16 %v5770
        %v5841 = vunpack.c.h.b16 %v5770
        %v5842 = vunpack.c.l.b16 %v5771
        %v5843 = vunpack.c.h.b16 %v5771
        %v5844 = vunpack.c.l.b16 %v5772
        %v5845 = vunpack.c.h.b16 %v5772
        %v5846 = vunpack.c.l.b16 %v5773
        %v5847 = vunpack.c.h.b16 %v5773
        %v5848 = vunpack.c.l.b16 %v5774
        %v5849 = vunpack.c.h.b16 %v5774
        %v5850 = vunpack.c.l.b16 %v5775
        %v5851 = vunpack.c.h.b16 %v5775
        %v5852 = vunpack.c.l.b16 %v5776
        %v5853 = vunpack.c.h.b16 %v5776
        %v5854 = vunpack.c.l.b16 %v5777
        %v5855 = vunpack.c.h.b16 %v5777
        %v5856 = vunpack.c.l.b16 %v5778
        %v5857 = vunpack.c.h.b16 %v5778
        %v5858 = vunpack.c.l.b16 %v5779
        %v5859 = vunpack.c.h.b16 %v5779
        %v5860 = vunpack.c.l.b16 %v5780
        %v5861 = vunpack.c.h.b16 %v5780
        %v5862 = vunpack.c.l.b16 %v5781
        %v5863 = vunpack.c.h.b16 %v5781
        %v5864 = vunpack.c.l.b16 %v5782
        %v5865 = vunpack.c.h.b16 %v5782
        %v5866 = vunpack.c.l.b16 %v5783
        %v5867 = vunpack.c.h.b16 %v5783
        %v5868 = vunpack.c.l.b16 %v5784
        %v5869 = vunpack.c.h.b16 %v5784
        %v5870 = vunpack.c.l.b16 %v5785
        %v5871 = vunpack.c.h.b16 %v5785
        %v5872 = vunpack.c.l.b16 %v5786
        %v5873 = vunpack.c.h.b16 %v5786
        %v5874 = vunpack.c.l.b16 %v5787
        %v5875 = vunpack.c.h.b16 %v5787
        %v5876 = vunpack.c.l.b16 %v5788
        %v5877 = vunpack.c.h.b16 %v5788
        %v5878 = vunpack.c.l.b16 %v5789
        %v5879 = vunpack.c.h.b16 %v5789
        %v5880 = vunpack.c.l.b16 %v5790
        %v5881 = vunpack.c.h.b16 %v5790
        %v5882 = vunpack.c.l.b16 %v5791
        %v5883 = vunpack.c.h.b16 %v5791
        %v5884 = vunpack.c.l.b16 %v5792
        %v5885 = vunpack.c.h.b16 %v5792
        %v5886 = vunpack.c.l.b16 %v5793
        %v5887 = vunpack.c.h.b16 %v5793
        %v5888 = vunpack.c.l.b16 %v5794
        %v5889 = vunpack.c.h.b16 %v5794
        %v5890 = vunpack.c.l.b16 %v5795
        %v5891 = vunpack.c.h.b16 %v5795
        %v5892 = vpack.c.b16 %v5830, %v5828
        %v5893 = vpack.c.b16 %v5831, %v5829
        %v5894 = vpack.c.b16 %v5834, %v5832
        %v5895 = vpack.c.b16 %v5835, %v5833
        %v5896 = vpack.c.b16 %v5838, %v5836
        %v5897 = vpack.c.b16 %v5839, %v5837
        %v5898 = vpack.c.b16 %v5842, %v5840
        %v5899 = vpack.c.b16 %v5843, %v5841
        %v5900 = vpack.c.b16 %v5846, %v5844
        %v5901 = vpack.c.b16 %v5847, %v5845
        %v5902 = vpack.c.b16 %v5850, %v5848
        %v5903 = vpack.c.b16 %v5851, %v5849
        %v5904 = vpack.c.b16 %v5854, %v5852
        %v5905 = vpack.c.b16 %v5855, %v5853
        %v5906 = vpack.c.b16 %v5858, %v5856
        %v5907 = vpack.c.b16 %v5859, %v5857
        %v5908 = vpack.c.b16 %v5862, %v5860
        %v5909 = vpack.c.b16 %v5863, %v5861
        %v5910 = vpack.c.b16 %v5866, %v5864
        %v5911 = vpack.c.b16 %v5867, %v5865
        %v5912 = vpack.c.b16 %v5870, %v5868
        %v5913 = vpack.c.b16 %v5871, %v5869
        %v5914 = vpack.c.b16 %v5874, %v5872
        %v5915 = vpack.c.b16 %v5875, %v5873
        %v5916 = vpack.c.b16 %v5878, %v5876
        %v5917 = vpack.c.b16 %v5879, %v5877
        %v5918 = vpack.c.b16 %v5882, %v5880
        %v5919 = vpack.c.b16 %v5883, %v5881
        %v5920 = vpack.c.b16 %v5886, %v5884
        %v5921 = vpack.c.b16 %v5887, %v5885
        %v5922 = vpack.c.b16 %v5890, %v5888
        %v5923 = vpack.c.b16 %v5891, %v5889
        %5956 = vmatprep.subr.bf16.mxu0 %v5893
        %5957 = vmatpush1.bf16.msra.mxu0 %v5892
        %5958 = vmatprep.subr.bf16.mxu0 %v5895
        %5959 = vmatpush1.bf16.msra.mxu0 %v5894
        %5960 = vmatprep.subr.bf16.mxu0 %v5897
        %5961 = vmatpush1.bf16.msra.mxu0 %v5896
        %5962 = vmatprep.subr.bf16.mxu0 %v5899
        %5963 = vmatpush1.bf16.msra.mxu0 %v5898
        %5964 = vmatprep.subr.bf16.mxu0 %v5901
        %5965 = vmatpush1.bf16.msra.mxu0 %v5900
        %5966 = vmatprep.subr.bf16.mxu0 %v5903
        %5967 = vmatpush1.bf16.msra.mxu0 %v5902
        %5968 = vmatprep.subr.bf16.mxu0 %v5905
        %5969 = vmatpush1.bf16.msra.mxu0 %v5904
        %5970 = vmatprep.subr.bf16.mxu0 %v5907
        %5971 = vmatpush1.bf16.msra.mxu0 %v5906
        %5972 = vmatprep.subr.bf16.mxu0 %v5909
        %5973 = vmatpush1.bf16.msra.mxu0 %v5908
        %5974 = vmatprep.subr.bf16.mxu0 %v5911
        %5975 = vmatpush1.bf16.msra.mxu0 %v5910
        %5976 = vmatprep.subr.bf16.mxu0 %v5913
        %5977 = vmatpush1.bf16.msra.mxu0 %v5912
        %5978 = vmatprep.subr.bf16.mxu0 %v5915
        %5979 = vmatpush1.bf16.msra.mxu0 %v5914
        %5980 = vmatprep.subr.bf16.mxu0 %v5917
        %5981 = vmatpush1.bf16.msra.mxu0 %v5916
        %5982 = vmatprep.subr.bf16.mxu0 %v5919
        %5983 = vmatpush1.bf16.msra.mxu0 %v5918
        %5984 = vmatprep.subr.bf16.mxu0 %v5921
        %5985 = vmatpush1.bf16.msra.mxu0 %v5920
        %5986 = vmatprep.subr.bf16.mxu0 %v5923
        %5987 = vmatpush1.bf16.msra.mxu0 %v5922
        %5988 = vmatprep.mubr.bf16.mxu0 %v5763
        %5989 = vmatmul.mubr.bf16.gmra.mrb[0].mxu0 %v5762
        %v5990 = vpop.f32.mrb[0].mxu0
        %v5991 = vadd.f32 0.0, %v5990
        %v5992 = vpop.f32.mrb[0].mxu0
        %v5993 = vadd.f32 0.0, %v5992
        %v5994 = vpop.f32.mrb[0].mxu0
        %v5995 = vpop.f32.mrb[0].mxu0
        %5996 = vdwg.mxu0
        %v5997 = vadd.f32 %v5711, %v5991
        %v5998 = vadd.f32 %v5713, %v5993
        %v5999 = vld [vmem:[%s93] sm:$0x3]
        %v6001 = vlaneseq
        %v6002 = vshrl.u32 %v6001, 7
        %v6003 = vsub.s32 0, %v6002
        %v6004 = vrot.slane %v5999, %v6003
        %v6005 = vlaneseq
        %v6006 = vshrl.u32 %v6005, 7
        %v6007 = vsub.s32 1, %v6006
        %v6008 = vrot.slane %v5999, %v6007
        %v6011 = vadd.f32 %v5997, %v6004
        %v6012 = vadd.f32 %v5998, %v6008
        %v6013 = vmax.f32 %v6011, 0.0
        %v6014 = vmax.f32 %v6012, 0.0
        %v6015 = vld [vmem:[%s95] sm:$0x3]
        %v6016 = vpack.c.bf16 %v6013, %v6013
        %v6017 = vpack.c.bf16 %v6014, %v6014
        %v6019 = vsel %vm4673, %v6015, 0
        %v6022 = vsel %vm4677, %v6016, 0
        %v6025 = vsel %vm4677, %v6017, 0
        %6027 = vmatprep.subr.bf16.mxu0 %v6025
        %6028 = vmatpush1.bf16.msra.mxu0 %v6022
        %6029 = vmatprep.subr.bf16.mxu0 0
        %6030 = vmatpush1.bf16.msra.mxu0 0
        %6031 = vmatprep.subr.bf16.mxu0 0
        %6032 = vmatpush1.bf16.msra.mxu0 0
        %6033 = vmatprep.subr.bf16.mxu0 0
        %6034 = vmatpush1.bf16.msra.mxu0 0
        %6035 = vmatprep.subr.bf16.mxu0 0
        %6036 = vmatpush1.bf16.msra.mxu0 0
        %6037 = vmatprep.subr.bf16.mxu0 0
        %6038 = vmatpush1.bf16.msra.mxu0 0
        %6039 = vmatprep.subr.bf16.mxu0 0
        %6040 = vmatpush1.bf16.msra.mxu0 0
        %6041 = vmatprep.subr.bf16.mxu0 0
        %6042 = vmatpush1.bf16.msra.mxu0 0
        %6043 = vmatprep.subr.bf16.mxu0 0
        %6044 = vmatpush1.bf16.msra.mxu0 0
        %6045 = vmatprep.subr.bf16.mxu0 0
        %6046 = vmatpush1.bf16.msra.mxu0 0
        %6047 = vmatprep.subr.bf16.mxu0 0
        %6048 = vmatpush1.bf16.msra.mxu0 0
        %6049 = vmatprep.subr.bf16.mxu0 0
        %6050 = vmatpush1.bf16.msra.mxu0 0
        %6051 = vmatprep.subr.bf16.mxu0 0
        %6052 = vmatpush1.bf16.msra.mxu0 0
        %6053 = vmatprep.subr.bf16.mxu0 0
        %6054 = vmatpush1.bf16.msra.mxu0 0
        %6055 = vmatprep.subr.bf16.mxu0 0
        %6056 = vmatpush1.bf16.msra.mxu0 0
        %6057 = vmatprep.subr.bf16.mxu0 0
        %6058 = vmatpush1.bf16.msra.mxu0 0
        %6059 = vmatprep.mubr.bf16.mxu0 0
        %6060 = vmatmul.mubr.bf16.gmra.mrb[0].mxu0 %v6019
        %v6061 = vpop.f32.mrb[0].mxu0
        %v6062 = vadd.f32 0.0, %v6061
        %v6063 = vpop.f32.mrb[0].mxu0
        %v6064 = vadd.f32 0.0, %v6063
        %v6065 = vpop.f32.mrb[0].mxu0
        %v6066 = vpop.f32.mrb[0].mxu0
        %6067 = vdwg.mxu0
        %v6068 = vld [vmem:[%s97] sm:$0x3]
        %v6070 = vsel %vm4673, %v6068, 0
        %6072 = vmatprep.subr.bf16.mxu0 %v6025
        %6073 = vmatpush1.bf16.msra.mxu0 %v6022
        %6074 = vmatprep.subr.bf16.mxu0 0
        %6075 = vmatpush1.bf16.msra.mxu0 0
        %6076 = vmatprep.subr.bf16.mxu0 0
        %6077 = vmatpush1.bf16.msra.mxu0 0
        %6078 = vmatprep.subr.bf16.mxu0 0
        %6079 = vmatpush1.bf16.msra.mxu0 0
        %6080 = vmatprep.subr.bf16.mxu0 0
        %6081 = vmatpush1.bf16.msra.mxu0 0
        %6082 = vmatprep.subr.bf16.mxu0 0
        %6083 = vmatpush1.bf16.msra.mxu0 0
        %6084 = vmatprep.subr.bf16.mxu0 0
        %6085 = vmatpush1.bf16.msra.mxu0 0
        %6086 = vmatprep.subr.bf16.mxu0 0
        %6087 = vmatpush1.bf16.msra.mxu0 0
        %6088 = vmatprep.subr.bf16.mxu0 0
        %6089 = vmatpush1.bf16.msra.mxu0 0
        %6090 = vmatprep.subr.bf16.mxu0 0
        %6091 = vmatpush1.bf16.msra.mxu0 0
        %6092 = vmatprep.subr.bf16.mxu0 0
        %6093 = vmatpush1.bf16.msra.mxu0 0
        %6094 = vmatprep.subr.bf16.mxu0 0
        %6095 = vmatpush1.bf16.msra.mxu0 0
        %6096 = vmatprep.subr.bf16.mxu0 0
        %6097 = vmatpush1.bf16.msra.mxu0 0
        %6098 = vmatprep.subr.bf16.mxu0 0
        %6099 = vmatpush1.bf16.msra.mxu0 0
        %6100 = vmatprep.subr.bf16.mxu0 0
        %6101 = vmatpush1.bf16.msra.mxu0 0
        %6102 = vmatprep.subr.bf16.mxu0 0
        %6103 = vmatpush1.bf16.msra.mxu0 0
        %6104 = vmatprep.mubr.bf16.mxu0 0
        %6105 = vmatmul.mubr.bf16.gmra.mrb[0].mxu0 %v6070
        %v6106 = vpop.f32.mrb[0].mxu0
        %v6107 = vadd.f32 0.0, %v6106
        %v6108 = vpop.f32.mrb[0].mxu0
        %v6109 = vadd.f32 0.0, %v6108
        %v6110 = vpop.f32.mrb[0].mxu0
        %v6111 = vpop.f32.mrb[0].mxu0
        %6112 = vdwg.mxu0
        %v6113 = vmax.f32 %v6062, %v6107
        %v6114 = vmax.f32 %v6064, %v6109
        %v6115 = vld [vmem:[%s99] sm:$0x3]
        %v6116 = vpack.c.bf16 %v6113, %v6113
        %v6117 = vpack.c.bf16 %v6114, %v6114
        %vm6118 = vcmask 31744
        %v6120 = vsel %vm6118, %v6115, 0
        %vm6122 = vcmask 1041408
        %v6124 = vsel %vm6122, %v6116, 0
        %v6127 = vsel %vm6122, %v6117, 0
        %6129 = vmatprep.subr.bf16.mxu0 %v6127
        %6130 = vmatpush1.bf16.msra.mxu0 %v6124
        %6131 = vmatprep.subr.bf16.mxu0 0
        %6132 = vmatpush1.bf16.msra.mxu0 0
        %6133 = vmatprep.subr.bf16.mxu0 0
        %6134 = vmatpush1.bf16.msra.mxu0 0
        %6135 = vmatprep.subr.bf16.mxu0 0
        %6136 = vmatpush1.bf16.msra.mxu0 0
        %6137 = vmatprep.subr.bf16.mxu0 0
        %6138 = vmatpush1.bf16.msra.mxu0 0
        %6139 = vmatprep.subr.bf16.mxu0 0
        %6140 = vmatpush1.bf16.msra.mxu0 0
        %6141 = vmatprep.subr.bf16.mxu0 0
        %6142 = vmatpush1.bf16.msra.mxu0 0
        %6143 = vmatprep.subr.bf16.mxu0 0
        %6144 = vmatpush1.bf16.msra.mxu0 0
        %6145 = vmatprep.subr.bf16.mxu0 0
        %6146 = vmatpush1.bf16.msra.mxu0 0
        %6147 = vmatprep.subr.bf16.mxu0 0
        %6148 = vmatpush1.bf16.msra.mxu0 0
        %6149 = vmatprep.subr.bf16.mxu0 0
        %6150 = vmatpush1.bf16.msra.mxu0 0
        %6151 = vmatprep.subr.bf16.mxu0 0
        %6152 = vmatpush1.bf16.msra.mxu0 0
        %6153 = vmatprep.subr.bf16.mxu0 0
        %6154 = vmatpush1.bf16.msra.mxu0 0
        %6155 = vmatprep.subr.bf16.mxu0 0
        %6156 = vmatpush1.bf16.msra.mxu0 0
        %6157 = vmatprep.subr.bf16.mxu0 0
        %6158 = vmatpush1.bf16.msra.mxu0 0
        %6159 = vmatprep.subr.bf16.mxu0 0
        %6160 = vmatpush1.bf16.msra.mxu0 0
        %6161 = vmatprep.mubr.bf16.mxu0 0
        %6162 = vmatmul.mubr.bf16.gmra.mrb[0].mxu0 %v6120
        %v6163 = vpop.f32.mrb[0].mxu0
        %v6164 = vadd.f32 0.0, %v6163
        %v6165 = vpop.f32.mrb[0].mxu0
        %v6166 = vadd.f32 0.0, %v6165
        %v6167 = vpop.f32.mrb[0].mxu0
        %v6168 = vpop.f32.mrb[0].mxu0
        %6169 = vdwg.mxu0
        %v6170 = vpack.c.bf16 %v6164, %v6164
        %v6171 = vpack.c.bf16 %v6166, %v6166
        %v6172 = vld [vmem:[%s103] sm:$0xff]
        %v6173 = vld [vmem:[%s103 + $0x8] sm:$0xff]
        %v6174 = vld [vmem:[%s103 + $0x10] sm:$0xff]
        %v6175 = vld [vmem:[%s103 + $0x18] sm:$0xff]
        %v6176 = vld [vmem:[%s103 + $0x20] sm:$0xff]
        %v6177 = vld [vmem:[%s103 + $0x28] sm:$0xff]
        %v6178 = vld [vmem:[%s103 + $0x30] sm:$0xff]
        %v6179 = vld [vmem:[%s103 + $0x38] sm:$0xff]
        %v6180 = vld [vmem:[%s103 + $0x40] sm:$0xff]
        %v6181 = vld [vmem:[%s103 + $0x48] sm:$0xff]
        %v6182 = vld [vmem:[%s103 + $0x50] sm:$0xff]
        %v6183 = vld [vmem:[%s103 + $0x58] sm:$0xff]
        %v6184 = vld [vmem:[%s103 + $0x60] sm:$0xff]
        %v6185 = vld [vmem:[%s103 + $0x68] sm:$0xff]
        %v6186 = vld [vmem:[%s103 + $0x70] sm:$0xff]
        %v6187 = vld [vmem:[%s103 + $0x78] sm:$0xff]
        %v6188 = vld [vmem:[%s103 + $0x80] sm:$0xff]
        %v6189 = vld [vmem:[%s103 + $0x88] sm:$0xff]
        %v6190 = vld [vmem:[%s103 + $0x90] sm:$0xff]
        %v6191 = vld [vmem:[%s103 + $0x98] sm:$0xff]
        %v6192 = vld [vmem:[%s103 + $0xa0] sm:$0xff]
        %v6193 = vld [vmem:[%s103 + $0xa8] sm:$0xff]
        %v6194 = vld [vmem:[%s103 + $0xb0] sm:$0xff]
        %v6195 = vld [vmem:[%s103 + $0xb8] sm:$0xff]
        %v6196 = vld [vmem:[%s103 + $0xc0] sm:$0xff]
        %v6197 = vld [vmem:[%s103 + $0xc8] sm:$0xff]
        %v6198 = vld [vmem:[%s103 + $0xd0] sm:$0xff]
        %v6199 = vld [vmem:[%s103 + $0xd8] sm:$0xff]
        %v6200 = vld [vmem:[%s103 + $0xe0] sm:$0xff]
        %v6201 = vld [vmem:[%s103 + $0xe8] sm:$0xff]
        %v6202 = vld [vmem:[%s103 + $0xf0] sm:$0xff]
        %v6203 = vld [vmem:[%s103 + $0xf8] sm:$0xff]
        %v6204 = vld [vmem:[%s101] sm:$0x3]
        %v6206 = vsel %vm6118, %v6204, 0
        %6208 = vmatprep.subr.bf16.mxu0 %v6127
        %6209 = vmatpush1.bf16.msra.mxu0 %v6124
        %6210 = vmatprep.subr.bf16.mxu0 0
        %6211 = vmatpush1.bf16.msra.mxu0 0
        %6212 = vmatprep.subr.bf16.mxu0 0
        %6213 = vmatpush1.bf16.msra.mxu0 0
        %6214 = vmatprep.subr.bf16.mxu0 0
        %6215 = vmatpush1.bf16.msra.mxu0 0
        %6216 = vmatprep.subr.bf16.mxu0 0
        %6217 = vmatpush1.bf16.msra.mxu0 0
        %6218 = vmatprep.subr.bf16.mxu0 0
        %6219 = vmatpush1.bf16.msra.mxu0 0
        %6220 = vmatprep.subr.bf16.mxu0 0
        %6221 = vmatpush1.bf16.msra.mxu0 0
        %6222 = vmatprep.subr.bf16.mxu0 0
        %6223 = vmatpush1.bf16.msra.mxu0 0
        %6224 = vmatprep.subr.bf16.mxu0 0
        %6225 = vmatpush1.bf16.msra.mxu0 0
        %6226 = vmatprep.subr.bf16.mxu0 0
        %6227 = vmatpush1.bf16.msra.mxu0 0
        %6228 = vmatprep.subr.bf16.mxu0 0
        %6229 = vmatpush1.bf16.msra.mxu0 0
        %6230 = vmatprep.subr.bf16.mxu0 0
        %6231 = vmatpush1.bf16.msra.mxu0 0
        %6232 = vmatprep.subr.bf16.mxu0 0
        %6233 = vmatpush1.bf16.msra.mxu0 0
        %6234 = vmatprep.subr.bf16.mxu0 0
        %6235 = vmatpush1.bf16.msra.mxu0 0
        %6236 = vmatprep.subr.bf16.mxu0 0
        %6237 = vmatpush1.bf16.msra.mxu0 0
        %6238 = vmatprep.subr.bf16.mxu0 0
        %6239 = vmatpush1.bf16.msra.mxu0 0
        %6240 = vmatprep.mubr.bf16.mxu0 0
        %6241 = vmatmul.mubr.bf16.gmra.mrb[0].mxu0 %v6206
        %v6242 = vpop.f32.mrb[0].mxu0
        %v6243 = vadd.f32 0.0, %v6242
        %v6244 = vpop.f32.mrb[0].mxu0
        %v6245 = vadd.f32 0.0, %v6244
        %v6246 = vpop.f32.mrb[0].mxu0
        %v6247 = vpop.f32.mrb[0].mxu0
        %6248 = vdwg.mxu0
        %v6249 = vpack.c.bf16 %v6243, %v6243
        %v6250 = vpack.c.bf16 %v6245, %v6245
        %v6251 = vld [vmem:[%s105] sm:$0xff]
        %v6252 = vld [vmem:[%s105 + $0x8] sm:$0xff]
        %v6253 = vld [vmem:[%s105 + $0x10] sm:$0xff]
        %v6254 = vld [vmem:[%s105 + $0x18] sm:$0xff]
        %v6255 = vld [vmem:[%s105 + $0x20] sm:$0xff]
        %v6256 = vld [vmem:[%s105 + $0x28] sm:$0xff]
        %v6257 = vld [vmem:[%s105 + $0x30] sm:$0xff]
        %v6258 = vld [vmem:[%s105 + $0x38] sm:$0xff]
        %v6259 = vld [vmem:[%s105 + $0x40] sm:$0xff]
        %v6260 = vld [vmem:[%s105 + $0x48] sm:$0xff]
        %v6261 = vld [vmem:[%s105 + $0x50] sm:$0xff]
        %v6262 = vld [vmem:[%s105 + $0x58] sm:$0xff]
        %v6263 = vld [vmem:[%s105 + $0x60] sm:$0xff]
        %v6264 = vld [vmem:[%s105 + $0x68] sm:$0xff]
        %v6265 = vld [vmem:[%s105 + $0x70] sm:$0xff]
        %v6266 = vld [vmem:[%s105 + $0x78] sm:$0xff]
        %v6267 = vld [vmem:[%s105 + $0x80] sm:$0xff]
        %v6268 = vld [vmem:[%s105 + $0x88] sm:$0xff]
        %v6269 = vld [vmem:[%s105 + $0x90] sm:$0xff]
        %v6270 = vld [vmem:[%s105 + $0x98] sm:$0xff]
        %v6271 = vld [vmem:[%s105 + $0xa0] sm:$0xff]
        %v6272 = vld [vmem:[%s105 + $0xa8] sm:$0xff]
        %v6273 = vld [vmem:[%s105 + $0xb0] sm:$0xff]
        %v6274 = vld [vmem:[%s105 + $0xb8] sm:$0xff]
        %v6275 = vld [vmem:[%s105 + $0xc0] sm:$0xff]
        %v6276 = vld [vmem:[%s105 + $0xc8] sm:$0xff]
        %v6277 = vld [vmem:[%s105 + $0xd0] sm:$0xff]
        %v6278 = vld [vmem:[%s105 + $0xd8] sm:$0xff]
        %v6279 = vld [vmem:[%s105 + $0xe0] sm:$0xff]
        %v6280 = vld [vmem:[%s105 + $0xe8] sm:$0xff]
        %v6281 = vld [vmem:[%s105 + $0xf0] sm:$0xff]
        %v6282 = vld [vmem:[%s105 + $0xf8] sm:$0xff]
        %v6315 = vunpack.c.l.b16 %v6251
        %v6316 = vunpack.c.h.b16 %v6251
        %v6317 = vunpack.c.l.b16 %v6252
        %v6318 = vunpack.c.h.b16 %v6252
        %v6319 = vunpack.c.l.b16 %v6253
        %v6320 = vunpack.c.h.b16 %v6253
        %v6321 = vunpack.c.l.b16 %v6254
        %v6322 = vunpack.c.h.b16 %v6254
        %v6323 = vunpack.c.l.b16 %v6255
        %v6324 = vunpack.c.h.b16 %v6255
        %v6325 = vunpack.c.l.b16 %v6256
        %v6326 = vunpack.c.h.b16 %v6256
        %v6327 = vunpack.c.l.b16 %v6257
        %v6328 = vunpack.c.h.b16 %v6257
        %v6329 = vunpack.c.l.b16 %v6258
        %v6330 = vunpack.c.h.b16 %v6258
        %v6331 = vunpack.c.l.b16 %v6259
        %v6332 = vunpack.c.h.b16 %v6259
        %v6333 = vunpack.c.l.b16 %v6260
        %v6334 = vunpack.c.h.b16 %v6260
        %v6335 = vunpack.c.l.b16 %v6261
        %v6336 = vunpack.c.h.b16 %v6261
        %v6337 = vunpack.c.l.b16 %v6262
        %v6338 = vunpack.c.h.b16 %v6262
        %v6339 = vunpack.c.l.b16 %v6263
        %v6340 = vunpack.c.h.b16 %v6263
        %v6341 = vunpack.c.l.b16 %v6264
        %v6342 = vunpack.c.h.b16 %v6264
        %v6343 = vunpack.c.l.b16 %v6265
        %v6344 = vunpack.c.h.b16 %v6265
        %v6345 = vunpack.c.l.b16 %v6266
        %v6346 = vunpack.c.h.b16 %v6266
        %v6347 = vunpack.c.l.b16 %v6267
        %v6348 = vunpack.c.h.b16 %v6267
        %v6349 = vunpack.c.l.b16 %v6268
        %v6350 = vunpack.c.h.b16 %v6268
        %v6351 = vunpack.c.l.b16 %v6269
        %v6352 = vunpack.c.h.b16 %v6269
        %v6353 = vunpack.c.l.b16 %v6270
        %v6354 = vunpack.c.h.b16 %v6270
        %v6355 = vunpack.c.l.b16 %v6271
        %v6356 = vunpack.c.h.b16 %v6271
        %v6357 = vunpack.c.l.b16 %v6272
        %v6358 = vunpack.c.h.b16 %v6272
        %v6359 = vunpack.c.l.b16 %v6273
        %v6360 = vunpack.c.h.b16 %v6273
        %v6361 = vunpack.c.l.b16 %v6274
        %v6362 = vunpack.c.h.b16 %v6274
        %v6363 = vunpack.c.l.b16 %v6275
        %v6364 = vunpack.c.h.b16 %v6275
        %v6365 = vunpack.c.l.b16 %v6276
        %v6366 = vunpack.c.h.b16 %v6276
        %v6367 = vunpack.c.l.b16 %v6277
        %v6368 = vunpack.c.h.b16 %v6277
        %v6369 = vunpack.c.l.b16 %v6278
        %v6370 = vunpack.c.h.b16 %v6278
        %v6371 = vunpack.c.l.b16 %v6279
        %v6372 = vunpack.c.h.b16 %v6279
        %v6373 = vunpack.c.l.b16 %v6280
        %v6374 = vunpack.c.h.b16 %v6280
        %v6375 = vunpack.c.l.b16 %v6281
        %v6376 = vunpack.c.h.b16 %v6281
        %v6377 = vunpack.c.l.b16 %v6282
        %v6378 = vunpack.c.h.b16 %v6282
        %v6379 = vpack.c.b16 %v6317, %v6315
        %v6380 = vpack.c.b16 %v6318, %v6316
        %v6381 = vpack.c.b16 %v6321, %v6319
        %v6382 = vpack.c.b16 %v6322, %v6320
        %v6383 = vpack.c.b16 %v6325, %v6323
        %v6384 = vpack.c.b16 %v6326, %v6324
        %v6385 = vpack.c.b16 %v6329, %v6327
        %v6386 = vpack.c.b16 %v6330, %v6328
        %v6387 = vpack.c.b16 %v6333, %v6331
        %v6388 = vpack.c.b16 %v6334, %v6332
        %v6389 = vpack.c.b16 %v6337, %v6335
        %v6390 = vpack.c.b16 %v6338, %v6336
        %v6391 = vpack.c.b16 %v6341, %v6339
        %v6392 = vpack.c.b16 %v6342, %v6340
        %v6393 = vpack.c.b16 %v6345, %v6343
        %v6394 = vpack.c.b16 %v6346, %v6344
        %v6395 = vpack.c.b16 %v6349, %v6347
        %v6396 = vpack.c.b16 %v6350, %v6348
        %v6397 = vpack.c.b16 %v6353, %v6351
        %v6398 = vpack.c.b16 %v6354, %v6352
        %v6399 = vpack.c.b16 %v6357, %v6355
        %v6400 = vpack.c.b16 %v6358, %v6356
        %v6401 = vpack.c.b16 %v6361, %v6359
        %v6402 = vpack.c.b16 %v6362, %v6360
        %v6403 = vpack.c.b16 %v6365, %v6363
        %v6404 = vpack.c.b16 %v6366, %v6364
        %v6405 = vpack.c.b16 %v6369, %v6367
        %v6406 = vpack.c.b16 %v6370, %v6368
        %v6407 = vpack.c.b16 %v6373, %v6371
        %v6408 = vpack.c.b16 %v6374, %v6372
        %v6409 = vpack.c.b16 %v6377, %v6375
        %v6410 = vpack.c.b16 %v6378, %v6376
        %6443 = vmatprep.subr.bf16.mxu0 %v6380
        %6444 = vmatpush1.bf16.msra.mxu0 %v6379
        %6445 = vmatprep.subr.bf16.mxu0 %v6382
        %6446 = vmatpush1.bf16.msra.mxu0 %v6381
        %6447 = vmatprep.subr.bf16.mxu0 %v6384
        %6448 = vmatpush1.bf16.msra.mxu0 %v6383
        %6449 = vmatprep.subr.bf16.mxu0 %v6386
        %6450 = vmatpush1.bf16.msra.mxu0 %v6385
        %6451 = vmatprep.subr.bf16.mxu0 %v6388
        %6452 = vmatpush1.bf16.msra.mxu0 %v6387
        %6453 = vmatprep.subr.bf16.mxu0 %v6390
        %6454 = vmatpush1.bf16.msra.mxu0 %v6389
        %6455 = vmatprep.subr.bf16.mxu0 %v6392
        %6456 = vmatpush1.bf16.msra.mxu0 %v6391
        %6457 = vmatprep.subr.bf16.mxu0 %v6394
        %6458 = vmatpush1.bf16.msra.mxu0 %v6393
        %6459 = vmatprep.subr.bf16.mxu0 %v6396
        %6460 = vmatpush1.bf16.msra.mxu0 %v6395
        %6461 = vmatprep.subr.bf16.mxu0 %v6398
        %6462 = vmatpush1.bf16.msra.mxu0 %v6397
        %6463 = vmatprep.subr.bf16.mxu0 %v6400
        %6464 = vmatpush1.bf16.msra.mxu0 %v6399
        %6465 = vmatprep.subr.bf16.mxu0 %v6402
        %6466 = vmatpush1.bf16.msra.mxu0 %v6401
        %6467 = vmatprep.subr.bf16.mxu0 %v6404
        %6468 = vmatpush1.bf16.msra.mxu0 %v6403
        %6469 = vmatprep.subr.bf16.mxu0 %v6406
        %6470 = vmatpush1.bf16.msra.mxu0 %v6405
        %6471 = vmatprep.subr.bf16.mxu0 %v6408
        %6472 = vmatpush1.bf16.msra.mxu0 %v6407
        %6473 = vmatprep.subr.bf16.mxu0 %v6410
        %6474 = vmatpush1.bf16.msra.mxu0 %v6409
        %6475 = vmatprep.mubr.bf16.mxu0 %v6250
        %6476 = vmatmul.mubr.bf16.gmra.mrb[0].mxu0 %v6249
        %v6477 = vpop.f32.mrb[0].mxu0
        %v6478 = vadd.f32 0.0, %v6477
        %v6479 = vpop.f32.mrb[0].mxu0
        %v6480 = vadd.f32 0.0, %v6479
        %v6481 = vpop.f32.mrb[0].mxu0
        %v6482 = vpop.f32.mrb[0].mxu0
        %6483 = vdwg.mxu0
        %v6516 = vunpack.c.l.b16 %v6172
        %v6517 = vunpack.c.h.b16 %v6172
        %v6518 = vunpack.c.l.b16 %v6173
        %v6519 = vunpack.c.h.b16 %v6173
        %v6520 = vunpack.c.l.b16 %v6174
        %v6521 = vunpack.c.h.b16 %v6174
        %v6522 = vunpack.c.l.b16 %v6175
        %v6523 = vunpack.c.h.b16 %v6175
        %v6524 = vunpack.c.l.b16 %v6176
        %v6525 = vunpack.c.h.b16 %v6176
        %v6526 = vunpack.c.l.b16 %v6177
        %v6527 = vunpack.c.h.b16 %v6177
        %v6528 = vunpack.c.l.b16 %v6178
        %v6529 = vunpack.c.h.b16 %v6178
        %v6530 = vunpack.c.l.b16 %v6179
        %v6531 = vunpack.c.h.b16 %v6179
        %v6532 = vunpack.c.l.b16 %v6180
        %v6533 = vunpack.c.h.b16 %v6180
        %v6534 = vunpack.c.l.b16 %v6181
        %v6535 = vunpack.c.h.b16 %v6181
        %v6536 = vunpack.c.l.b16 %v6182
        %v6537 = vunpack.c.h.b16 %v6182
        %v6538 = vunpack.c.l.b16 %v6183
        %v6539 = vunpack.c.h.b16 %v6183
        %v6540 = vunpack.c.l.b16 %v6184
        %v6541 = vunpack.c.h.b16 %v6184
        %v6542 = vunpack.c.l.b16 %v6185
        %v6543 = vunpack.c.h.b16 %v6185
        %v6544 = vunpack.c.l.b16 %v6186
        %v6545 = vunpack.c.h.b16 %v6186
        %v6546 = vunpack.c.l.b16 %v6187
        %v6547 = vunpack.c.h.b16 %v6187
        %v6548 = vunpack.c.l.b16 %v6188
        %v6549 = vunpack.c.h.b16 %v6188
        %v6550 = vunpack.c.l.b16 %v6189
        %v6551 = vunpack.c.h.b16 %v6189
        %v6552 = vunpack.c.l.b16 %v6190
        %v6553 = vunpack.c.h.b16 %v6190
        %v6554 = vunpack.c.l.b16 %v6191
        %v6555 = vunpack.c.h.b16 %v6191
        %v6556 = vunpack.c.l.b16 %v6192
        %v6557 = vunpack.c.h.b16 %v6192
        %v6558 = vunpack.c.l.b16 %v6193
        %v6559 = vunpack.c.h.b16 %v6193
        %v6560 = vunpack.c.l.b16 %v6194
        %v6561 = vunpack.c.h.b16 %v6194
        %v6562 = vunpack.c.l.b16 %v6195
        %v6563 = vunpack.c.h.b16 %v6195
        %v6564 = vunpack.c.l.b16 %v6196
        %v6565 = vunpack.c.h.b16 %v6196
        %v6566 = vunpack.c.l.b16 %v6197
        %v6567 = vunpack.c.h.b16 %v6197
        %v6568 = vunpack.c.l.b16 %v6198
        %v6569 = vunpack.c.h.b16 %v6198
        %v6570 = vunpack.c.l.b16 %v6199
        %v6571 = vunpack.c.h.b16 %v6199
        %v6572 = vunpack.c.l.b16 %v6200
        %v6573 = vunpack.c.h.b16 %v6200
        %v6574 = vunpack.c.l.b16 %v6201
        %v6575 = vunpack.c.h.b16 %v6201
        %v6576 = vunpack.c.l.b16 %v6202
        %v6577 = vunpack.c.h.b16 %v6202
        %v6578 = vunpack.c.l.b16 %v6203
        %v6579 = vunpack.c.h.b16 %v6203
        %v6580 = vpack.c.b16 %v6518, %v6516
        %v6581 = vpack.c.b16 %v6519, %v6517
        %v6582 = vpack.c.b16 %v6522, %v6520
        %v6583 = vpack.c.b16 %v6523, %v6521
        %v6584 = vpack.c.b16 %v6526, %v6524
        %v6585 = vpack.c.b16 %v6527, %v6525
        %v6586 = vpack.c.b16 %v6530, %v6528
        %v6587 = vpack.c.b16 %v6531, %v6529
        %v6588 = vpack.c.b16 %v6534, %v6532
        %v6589 = vpack.c.b16 %v6535, %v6533
        %v6590 = vpack.c.b16 %v6538, %v6536
        %v6591 = vpack.c.b16 %v6539, %v6537
        %v6592 = vpack.c.b16 %v6542, %v6540
        %v6593 = vpack.c.b16 %v6543, %v6541
        %v6594 = vpack.c.b16 %v6546, %v6544
        %v6595 = vpack.c.b16 %v6547, %v6545
        %v6596 = vpack.c.b16 %v6550, %v6548
        %v6597 = vpack.c.b16 %v6551, %v6549
        %v6598 = vpack.c.b16 %v6554, %v6552
        %v6599 = vpack.c.b16 %v6555, %v6553
        %v6600 = vpack.c.b16 %v6558, %v6556
        %v6601 = vpack.c.b16 %v6559, %v6557
        %v6602 = vpack.c.b16 %v6562, %v6560
        %v6603 = vpack.c.b16 %v6563, %v6561
        %v6604 = vpack.c.b16 %v6566, %v6564
        %v6605 = vpack.c.b16 %v6567, %v6565
        %v6606 = vpack.c.b16 %v6570, %v6568
        %v6607 = vpack.c.b16 %v6571, %v6569
        %v6608 = vpack.c.b16 %v6574, %v6572
        %v6609 = vpack.c.b16 %v6575, %v6573
        %v6610 = vpack.c.b16 %v6578, %v6576
        %v6611 = vpack.c.b16 %v6579, %v6577
        %6644 = vmatprep.subr.bf16.mxu0 %v6581
        %6645 = vmatpush1.bf16.msra.mxu0 %v6580
        %6646 = vmatprep.subr.bf16.mxu0 %v6583
        %6647 = vmatpush1.bf16.msra.mxu0 %v6582
        %6648 = vmatprep.subr.bf16.mxu0 %v6585
        %6649 = vmatpush1.bf16.msra.mxu0 %v6584
        %6650 = vmatprep.subr.bf16.mxu0 %v6587
        %6651 = vmatpush1.bf16.msra.mxu0 %v6586
        %6652 = vmatprep.subr.bf16.mxu0 %v6589
        %6653 = vmatpush1.bf16.msra.mxu0 %v6588
        %6654 = vmatprep.subr.bf16.mxu0 %v6591
        %6655 = vmatpush1.bf16.msra.mxu0 %v6590
        %6656 = vmatprep.subr.bf16.mxu0 %v6593
        %6657 = vmatpush1.bf16.msra.mxu0 %v6592
        %6658 = vmatprep.subr.bf16.mxu0 %v6595
        %6659 = vmatpush1.bf16.msra.mxu0 %v6594
        %6660 = vmatprep.subr.bf16.mxu0 %v6597
        %6661 = vmatpush1.bf16.msra.mxu0 %v6596
        %6662 = vmatprep.subr.bf16.mxu0 %v6599
        %6663 = vmatpush1.bf16.msra.mxu0 %v6598
        %6664 = vmatprep.subr.bf16.mxu0 %v6601
        %6665 = vmatpush1.bf16.msra.mxu0 %v6600
        %6666 = vmatprep.subr.bf16.mxu0 %v6603
        %6667 = vmatpush1.bf16.msra.mxu0 %v6602
        %6668 = vmatprep.subr.bf16.mxu0 %v6605
        %6669 = vmatpush1.bf16.msra.mxu0 %v6604
        %6670 = vmatprep.subr.bf16.mxu0 %v6607
        %6671 = vmatpush1.bf16.msra.mxu0 %v6606
        %6672 = vmatprep.subr.bf16.mxu0 %v6609
        %6673 = vmatpush1.bf16.msra.mxu0 %v6608
        %6674 = vmatprep.subr.bf16.mxu0 %v6611
        %6675 = vmatpush1.bf16.msra.mxu0 %v6610
        %6676 = vmatprep.mubr.bf16.mxu0 %v6171
        %6677 = vmatmul.mubr.bf16.gmra.mrb[0].mxu0 %v6170
        %v6678 = vpop.f32.mrb[0].mxu0
        %v6679 = vadd.f32 %v6478, %v6678
        %v6680 = vpop.f32.mrb[0].mxu0
        %v6681 = vadd.f32 %v6480, %v6680
        %v6682 = vpop.f32.mrb[0].mxu0
        %v6683 = vpop.f32.mrb[0].mxu0
        %6684 = vdwg.mxu0
        %v6685 = vld [vmem:[%s107] sm:$0x3]
        %v6687 = vlaneseq
        %v6688 = vshrl.u32 %v6687, 7
        %v6689 = vsub.s32 0, %v6688
        %v6690 = vrot.slane %v6685, %v6689
        %v6691 = vlaneseq
        %v6692 = vshrl.u32 %v6691, 7
        %v6693 = vsub.s32 1, %v6692
        %v6694 = vrot.slane %v6685, %v6693
        %v6697 = vadd.f32 %v6679, %v6690
        %v6698 = vadd.f32 %v6681, %v6694
        %v6699 = vmax.f32 %v6697, 0.0
        %v6700 = vmax.f32 %v6698, 0.0
        %v6701 = vpack.c.bf16 %v6699, %v6699
        %v6702 = vpack.c.bf16 %v6700, %v6700
        %v6703 = vld [vmem:[%s109] sm:$0xf]
        %v6704 = vld [vmem:[%s109 + $0x4] sm:$0xf]
        %v6705 = vld [vmem:[%s109 + $0x8] sm:$0xf]
        %v6706 = vld [vmem:[%s109 + $0xc] sm:$0xf]
        %v6707 = vld [vmem:[%s109 + $0x10] sm:$0xf]
        %v6708 = vld [vmem:[%s109 + $0x14] sm:$0xf]
        %v6709 = vld [vmem:[%s109 + $0x18] sm:$0xf]
        %v6710 = vld [vmem:[%s109 + $0x1c] sm:$0xf]
        %v6711 = vld [vmem:[%s109 + $0x20] sm:$0xf]
        %v6712 = vld [vmem:[%s109 + $0x24] sm:$0xf]
        %v6713 = vld [vmem:[%s109 + $0x28] sm:$0xf]
        %v6714 = vld [vmem:[%s109 + $0x2c] sm:$0xf]
        %v6715 = vld [vmem:[%s109 + $0x30] sm:$0xf]
        %v6716 = vld [vmem:[%s109 + $0x34] sm:$0xf]
        %v6717 = vld [vmem:[%s109 + $0x38] sm:$0xf]
        %v6718 = vld [vmem:[%s109 + $0x3c] sm:$0xf]
        %v6719 = vld [vmem:[%s109 + $0x40] sm:$0xf]
        %v6720 = vld [vmem:[%s109 + $0x44] sm:$0xf]
        %v6721 = vld [vmem:[%s109 + $0x48] sm:$0xf]
        %v6722 = vld [vmem:[%s109 + $0x4c] sm:$0xf]
        %v6723 = vld [vmem:[%s109 + $0x50] sm:$0xf]
        %v6724 = vld [vmem:[%s109 + $0x54] sm:$0xf]
        %v6725 = vld [vmem:[%s109 + $0x58] sm:$0xf]
        %v6726 = vld [vmem:[%s109 + $0x5c] sm:$0xf]
        %v6727 = vld [vmem:[%s109 + $0x60] sm:$0xf]
        %v6728 = vld [vmem:[%s109 + $0x64] sm:$0xf]
        %v6729 = vld [vmem:[%s109 + $0x68] sm:$0xf]
        %v6730 = vld [vmem:[%s109 + $0x6c] sm:$0xf]
        %v6759 = vunpack.c.l.b16 %v6703
        %v6760 = vunpack.c.l.b16 %v6704
        %v6761 = vunpack.c.l.b16 %v6705
        %v6762 = vunpack.c.l.b16 %v6706
        %v6763 = vunpack.c.l.b16 %v6707
        %v6764 = vunpack.c.l.b16 %v6708
        %v6765 = vunpack.c.l.b16 %v6709
        %v6766 = vunpack.c.l.b16 %v6710
        %v6767 = vunpack.c.l.b16 %v6711
        %v6768 = vunpack.c.l.b16 %v6712
        %v6769 = vunpack.c.l.b16 %v6713
        %v6770 = vunpack.c.l.b16 %v6714
        %v6771 = vunpack.c.l.b16 %v6715
        %v6772 = vunpack.c.l.b16 %v6716
        %v6773 = vunpack.c.l.b16 %v6717
        %v6774 = vunpack.c.l.b16 %v6718
        %v6775 = vunpack.c.l.b16 %v6719
        %v6776 = vunpack.c.l.b16 %v6720
        %v6777 = vunpack.c.l.b16 %v6721
        %v6778 = vunpack.c.l.b16 %v6722
        %v6779 = vunpack.c.l.b16 %v6723
        %v6780 = vunpack.c.l.b16 %v6724
        %v6781 = vunpack.c.l.b16 %v6725
        %v6782 = vunpack.c.l.b16 %v6726
        %v6783 = vunpack.c.l.b16 %v6727
        %v6784 = vunpack.c.l.b16 %v6728
        %v6785 = vunpack.c.l.b16 %v6729
        %v6786 = vunpack.c.l.b16 %v6730
        %v6787 = vpack.c.b16 %v6760, %v6759
        %v6788 = vpack.c.b16 %v6762, %v6761
        %v6789 = vpack.c.b16 %v6764, %v6763
        %v6790 = vpack.c.b16 %v6766, %v6765
        %v6791 = vpack.c.b16 %v6768, %v6767
        %v6792 = vpack.c.b16 %v6770, %v6769
        %v6793 = vpack.c.b16 %v6772, %v6771
        %v6794 = vpack.c.b16 %v6774, %v6773
        %v6795 = vpack.c.b16 %v6776, %v6775
        %v6796 = vpack.c.b16 %v6778, %v6777
        %v6797 = vpack.c.b16 %v6780, %v6779
        %v6798 = vpack.c.b16 %v6782, %v6781
        %v6799 = vpack.c.b16 %v6784, %v6783
        %v6800 = vpack.c.b16 %v6786, %v6785
        %vm6815 = vcmask 785408
        %v6817 = vsel %vm6815, %v6702, 0
        %6819 = vmatprep.subr.bf16.mxu0 0
        %6820 = vmatpush1.bf16.msra.mxu0 %v6787
        %6821 = vmatprep.subr.bf16.mxu0 0
        %6822 = vmatpush1.bf16.msra.mxu0 %v6788
        %6823 = vmatprep.subr.bf16.mxu0 0
        %6824 = vmatpush1.bf16.msra.mxu0 %v6789
        %6825 = vmatprep.subr.bf16.mxu0 0
        %6826 = vmatpush1.bf16.msra.mxu0 %v6790
        %6827 = vmatprep.subr.bf16.mxu0 0
        %6828 = vmatpush1.bf16.msra.mxu0 %v6791
        %6829 = vmatprep.subr.bf16.mxu0 0
        %6830 = vmatpush1.bf16.msra.mxu0 %v6792
        %6831 = vmatprep.subr.bf16.mxu0 0
        %6832 = vmatpush1.bf16.msra.mxu0 %v6793
        %6833 = vmatprep.subr.bf16.mxu0 0
        %6834 = vmatpush1.bf16.msra.mxu0 %v6794
        %6835 = vmatprep.subr.bf16.mxu0 0
        %6836 = vmatpush1.bf16.msra.mxu0 %v6795
        %6837 = vmatprep.subr.bf16.mxu0 0
        %6838 = vmatpush1.bf16.msra.mxu0 %v6796
        %6839 = vmatprep.subr.bf16.mxu0 0
        %6840 = vmatpush1.bf16.msra.mxu0 %v6797
        %6841 = vmatprep.subr.bf16.mxu0 0
        %6842 = vmatpush1.bf16.msra.mxu0 %v6798
        %6843 = vmatprep.subr.bf16.mxu0 0
        %6844 = vmatpush1.bf16.msra.mxu0 %v6799
        %6845 = vmatprep.subr.bf16.mxu0 0
        %6846 = vmatpush1.bf16.msra.mxu0 %v6800
        %6847 = vmatprep.subr.bf16.mxu0 0
        %6848 = vmatpush1.bf16.msra.mxu0 0
        %6849 = vmatprep.subr.bf16.mxu0 0
        %6850 = vmatpush1.bf16.msra.mxu0 0
        %6851 = vmatprep.mubr.bf16.mxu0 %v6817
        %6852 = vmatmul.mubr.bf16.gmra.mrb[0].mxu0 %v6701
        %v6853 = vpop.f32.mrb[0].mxu0
        %v6854 = vadd.f32 0.0, %v6853
        %v6855 = vpop.f32.mrb[0].mxu0
        %v6856 = vpop.f32.mrb[0].mxu0
        %v6857 = vpop.f32.mrb[0].mxu0
        %6858 = vdwg.mxu0
        %v6859 = vpack.c.bf16 %v6854, %v6854
        %v6860 = vld [vmem:[%s111] sm:$0xf]
        %v6861 = vld [vmem:[%s111 + $0x4] sm:$0xf]
        %v6862 = vld [vmem:[%s111 + $0x8] sm:$0xf]
        %v6863 = vld [vmem:[%s111 + $0xc] sm:$0xf]
        %v6864 = vld [vmem:[%s113] sm:$0x1]
        %v6866 = vlaneseq
        %v6867 = vshrl.u32 %v6866, 7
        %v6868 = vsub.s32 0, %v6867
        %v6869 = vrot.slane %v6864, %v6868
        %v6875 = vunpack.c.l.b16 %v6860
        %v6876 = vunpack.c.l.b16 %v6861
        %v6877 = vunpack.c.l.b16 %v6862
        %v6878 = vunpack.c.l.b16 %v6863
        %v6879 = vpack.c.b16 %v6876, %v6875
        %v6880 = vpack.c.b16 %v6878, %v6877
        %v6884 = vsel %vm2223, %v6859, 0
        %6886 = vmatprep.subr.bf16.mxu0 0
        %6887 = vmatpush1.bf16.msra.mxu0 %v6879
        %6888 = vmatprep.subr.bf16.mxu0 0
        %6889 = vmatpush1.bf16.msra.mxu0 %v6880
        %6890 = vmatprep.subr.bf16.mxu0 0
        %6891 = vmatpush1.bf16.msra.mxu0 0
        %6892 = vmatprep.subr.bf16.mxu0 0
        %6893 = vmatpush1.bf16.msra.mxu0 0
        %6894 = vmatprep.subr.bf16.mxu0 0
        %6895 = vmatpush1.bf16.msra.mxu0 0
        %6896 = vmatprep.subr.bf16.mxu0 0
        %6897 = vmatpush1.bf16.msra.mxu0 0
        %6898 = vmatprep.subr.bf16.mxu0 0
        %6899 = vmatpush1.bf16.msra.mxu0 0
        %6900 = vmatprep.subr.bf16.mxu0 0
        %6901 = vmatpush1.bf16.msra.mxu0 0
        %6902 = vmatprep.subr.bf16.mxu0 0
        %6903 = vmatpush1.bf16.msra.mxu0 0
        %6904 = vmatprep.subr.bf16.mxu0 0
        %6905 = vmatpush1.bf16.msra.mxu0 0
        %6906 = vmatprep.subr.bf16.mxu0 0
        %6907 = vmatpush1.bf16.msra.mxu0 0
        %6908 = vmatprep.subr.bf16.mxu0 0
        %6909 = vmatpush1.bf16.msra.mxu0 0
        %6910 = vmatprep.subr.bf16.mxu0 0
        %6911 = vmatpush1.bf16.msra.mxu0 0
        %6912 = vmatprep.subr.bf16.mxu0 0
        %6913 = vmatpush1.bf16.msra.mxu0 0
        %6914 = vmatprep.subr.bf16.mxu0 0
        %6915 = vmatpush1.bf16.msra.mxu0 0
        %6916 = vmatprep.subr.bf16.mxu0 0
        %6917 = vmatpush1.bf16.msra.mxu0 0
        %6918 = vmatprep.mubr.bf16.mxu0 0
        %6919 = vmatmul.mubr.bf16.gmra.mrb[0].mxu0 %v6884
        %v6920 = vpop.f32.mrb[0].mxu0
        %v6921 = vadd.f32 %v6869, %v6920
        %v6922 = vpop.f32.mrb[0].mxu0
        %v6923 = vpop.f32.mrb[0].mxu0
        %v6924 = vpop.f32.mrb[0].mxu0
        %6925 = vdwg.mxu0
        %vm6926 = vcmask 75776
        %6927 = vst.msk [vmem:[%s2079] sm:$0x7] %vm6926, %v6921
        %p6928 = scmp.lt.s32.totalorder %s141, 1
        %s6929 = scalar_select %p6928, %s141, 1
        %s6930 = smul.addr %s6929, 4
        %s6931 = scalar_lea.vmem %s115, %s6930
        // Predicated region
        $region361: #{forward.1} parent=247 // pred_check
          %p6932 = pneg %p1361
        $region362: #{forward.1} parent=247 // pred_check_branch
          %6934 = sbr.rel (%p6932) target = $region364
        $region363: #{forward.1} parent=247 // pred_region
          _
        $region364: #{forward.1} parent=247 // pred_fallthru
          _
      $region248: #{forward.1} parent=5 // pred_fallthru
        _
      %p6935 = scmp.le.s32.totalorder 2, %s136
      // Predicated region
      $region365: #{forward.1} parent=5 // pred_check
        %p6936 = pneg %p6935
      $region366: #{forward.1} parent=5 // pred_check_branch
        %6938 = sbr.rel (%p6936) target = $region368
      $region367: #{forward.1} parent=5 // pred_region
        %s6939 = ssub.s32 %s136, 2
        // Predicated region
        $region369: #{forward.1} parent=367 // pred_check
          %p6940 = pneg %p1367
        $region370: #{forward.1} parent=367 // pred_check_branch
          %6942 = sbr.rel (%p6940) target = $region372
        $region371: #{forward.1} parent=367 // pred_region
          %p6943 = scmp.lt.s32.totalorder %s142, 1
          %s6944 = scalar_select %p6943, %s142, 1
          %s6945 = smul.addr %s6944, 4
          %s6946 = scalar_lea.vmem %s115, %s6945
        $region372: #{forward.1} parent=367 // pred_fallthru
          _
      $region368: #{forward.1} parent=5 // pred_fallthru
        _
    $region6: #{forward.1} parent=1 // loop_footer
      %s140 = sadd.s32 1, %s136
    $region7: #{forward.1} parent=1 // loop_footer_branch
      %135 = sbr.rel target = $region3
    $region8: #{forward.1} parent=1 // loop_exit
      _
    %6947 = vsyncpa [#allocation3], 1
    %s6948 = scalar_lea.sflag [#allocation3], 1
    %6949 = vsyncpa %s6948, 1
    %6950 = vsyncpa [#allocation5], 1
    %6951 = vsyncpa [#allocation8], 1
    %6952 = vsyncpa [#allocation11], 1
    %6953 = vsyncpa [#allocation14], 1
    %6954 = vsyncpa [#allocation17], 1
    %6955 = vsyncpa [#allocation20], 1
    %6956 = vsyncpa [#allocation23], 1
    %6957 = vsyncpa [#allocation26], 1
    %6958 = vsyncpa [#allocation29], 1
    %6959 = vsyncpa [#allocation32], 1
    %6960 = vsyncpa [#allocation35], 1
    %6961 = vsyncpa [#allocation38], 1
    %6962 = vsyncpa [#allocation41], 1
    %6963 = vsyncpa [#allocation44], 1

</llo_original>
